<compile_context>
chip_gen: v7x
topology: tpu7x:2x2x1
jax: 0.10.0
libtpu: 0.0.40
codegen_flags: <defaults>
</compile_context>

<pallas_src>
import functools

import jax
import jax.numpy as jnp
from jax.experimental import pallas as pl
from jax.experimental.pallas import tpu as pltpu

BN_EPS = 1e-5          # nn.BatchNorm2d default eps
LRELU_BACKBONE = 0.1   # conv_layer LeakyReLU slope
LRELU_HEAD = 0.01      # dense_layer LeakyReLU (nn.LeakyReLU() default)
C1 = 64                # conv1 output channels
K1 = 32                # conv1 im2col K (3*3*3 = 27 taps, zero lane-padded to 32)


def _leaky(x, slope):
    return jnp.where(x >= 0, x, slope * x)


def _pick_row_tile(m):
    """Largest row tile (<=512, multiple of 32) dividing m; fall back to a single tile."""
    for t in (512, 256, 128, 64, 32):
        if t <= m and m % t == 0:
            return t
    return m


# --------------------------------------------------------------------------------------
# Kernel 1: conv1 (3x3) + bias + BatchNorm(batch stats) + LeakyReLU(0.1) + MaxPool2d(2,2)
# --------------------------------------------------------------------------------------
def _conv1_bn_lrelu_pool_kernel(x_ref, w_ref, b_ref, g_ref, be_ref, o_ref,
                                sum_ref, ssq_ref, *, total_rows):
    # grid = (pass, m_tile, pool_tap); rows of x are tap-major: row = tap*M2 + (b,ho,wo)
    p = pl.program_id(0)
    i = pl.program_id(1)
    t = pl.program_id(2)

    # conv-as-matmul (bf16 operands, f32 accumulation on the MXU) + conv bias
    y = jnp.dot(x_ref[...], w_ref[...], preferred_element_type=jnp.float32)
    y = y + b_ref[...]

    @pl.when((p == 0) & (i == 0) & (t == 0))
    def _init_stats():
        sum_ref[...] = jnp.zeros_like(sum_ref)
        ssq_ref[...] = jnp.zeros_like(ssq_ref)

    @pl.when(p == 0)  # pass 0: accumulate BatchNorm batch statistics (train mode)
    def _accumulate_stats():
        sum_ref[...] += jnp.sum(y, axis=0, keepdims=True)
        ssq_ref[...] += jnp.sum(y * y, axis=0, keepdims=True)

    @pl.when(p == 1)  # pass 1: normalize, LeakyReLU(0.1), fused 2x2 max-pool
    def _apply():
        inv_m = jnp.float32(1.0 / total_rows)
        mean = sum_ref[...] * inv_m
        var = jnp.maximum(ssq_ref[...] * inv_m - mean * mean, 0.0)  # biased var (BN train)
        z = (y - mean) * jax.lax.rsqrt(var + BN_EPS) * g_ref[...] + be_ref[...]
        z = _leaky(z, LRELU_BACKBONE).astype(o_ref.dtype)

        @pl.when(t == 0)
        def _():
            o_ref[...] = z

        @pl.when(t > 0)  # max-accumulate the 4 pool-window taps (block stays resident)
        def _():
            o_ref[...] = jnp.maximum(o_ref[...], z)


def conv1_bn_lrelu_pool(patches_tap_major, w1, b1, g1, be1, *, m2):
    m1, k = patches_tap_major.shape      # m1 = 4 * m2 rows of (kh*kw*cin) patches
    tm = _pick_row_tile(m2)
    nm2 = m2 // tm

    kernel = functools.partial(_conv1_bn_lrelu_pool_kernel, total_rows=m1)
    full = lambda p, i, t: (0, 0)

    return pl.pallas_call(
        kernel,
        out_shape=jax.ShapeDtypeStruct((m2, C1), jnp.bfloat16),
        grid=(2, nm2, 4),
        in_specs=[
            pl.BlockSpec((tm, k), lambda p, i, t: (t * nm2 + i, 0)),
            pl.BlockSpec((k, C1), full),
            pl.BlockSpec((1, C1), full),
            pl.BlockSpec((1, C1), full),
            pl.BlockSpec((1, C1), full),
        ],
        # During the stats pass (p==0) nothing is written and the block index is pinned to 0,
        # so there is no garbage write-back; in pass 1 block i stays resident across the 4
        # pool taps (fastest grid axis) and is written back once when i advances.
        out_specs=pl.BlockSpec((tm, C1), lambda p, i, t: (i * p, 0)),
        scratch_shapes=[pltpu.VMEM((1, C1), jnp.float32),   # per-channel sum
                        pltpu.VMEM((1, C1), jnp.float32)],  # per-channel sum of squares
        compiler_params=pltpu.CompilerParams(
            dimension_semantics=("arbitrary", "arbitrary", "arbitrary"),
            vmem_limit_bytes=32 * 1024 * 1024),
        cost_estimate=pl.CostEstimate(
            flops=int(2 * 2 * m1 * k * C1),                       # matmul runs in both passes
            transcendentals=int(C1),
            bytes_accessed=int(2 * m1 * k * 2 + m2 * C1 * 2 + k * C1 * 2 + 3 * C1 * 4)),
    )(patches_tap_major, w1, b1, g1, be1)


# --------------------------------------------------------------------------------------
# Kernel 2: 1x1 conv chain (64->128->256->512, each +BN+LeakyReLU) + AdaptiveAvgPool + head
# --------------------------------------------------------------------------------------
def _backbone_tail_kernel(x_ref,
                          w2_ref, b2_ref, g2_ref, be2_ref,
                          w3_ref, b3_ref, g3_ref, be3_ref,
                          w4_ref, b4_ref, g4_ref, be4_ref,
                          hw1_ref, hb1_ref, hw2_ref, hb2_ref,
                          o_ref, *, batch):
    m = x_ref.shape[0]
    inv_m = jnp.float32(1.0 / m)

    def conv1x1_bn_lrelu(a_bf16, w_ref, b_ref, g_ref, be_ref):
        y = jnp.dot(a_bf16, w_ref[...], preferred_element_type=jnp.float32)
        y = y + b_ref[...]
        mean = jnp.sum(y, axis=0, keepdims=True) * inv_m
        var = jnp.maximum(jnp.sum(y * y, axis=0, keepdims=True) * inv_m - mean * mean, 0.0)
        z = (y - mean) * jax.lax.rsqrt(var + BN_EPS) * g_ref[...] + be_ref[...]
        return _leaky(z, LRELU_BACKBONE)

    a1 = x_ref[...]                                                 # (M, 64) bf16
    a2 = conv1x1_bn_lrelu(a1, w2_ref, b2_ref, g2_ref, be2_ref)      # (M, 128) f32
    a3 = conv1x1_bn_lrelu(a2.astype(jnp.bfloat16), w3_ref, b3_ref, g3_ref, be3_ref)
    a4 = conv1x1_bn_lrelu(a3.astype(jnp.bfloat16), w4_ref, b4_ref, g4_ref, be4_ref)

    # AdaptiveAvgPool2d((1,1)) + view(B, -1): per-sample mean over spatial positions
    p_spatial = m // batch
    pooled = jnp.mean(a4.reshape(batch, p_spatial, a4.shape[-1]), axis=1)   # (B, 512)

    # imagehead: dense_layer(512,64) and dense_layer(64,8); Dropout(p=0) is identity
    h = jnp.dot(pooled.astype(jnp.bfloat16), hw1_ref[...],
                preferred_element_type=jnp.float32) + hb1_ref[...]
    h = _leaky(h, LRELU_HEAD)
    out = jnp.dot(h.astype(jnp.bfloat16), hw2_ref[...],
                  preferred_element_type=jnp.float32) + hb2_ref[...]
    o_ref[...] = _leaky(out, LRELU_HEAD)


def backbone_tail(x1, p, *, batch):
    m = x1.shape[0]
    args = (x1,
            p['w2'], p['b2'], p['g2'], p['be2'],
            p['w3'], p['b3'], p['g3'], p['be3'],
            p['w4'], p['b4'], p['g4'], p['be4'],
            p['hw1'], p['hb1'], p['hw2'], p['hb2'])
    vspec = pl.BlockSpec(memory_space=pltpu.MemorySpace.VMEM)
    flops = int(2 * m * (64 * 128 + 128 * 256 + 256 * 512)
                + 2 * batch * (512 * 64 + 64 * 8))
    weight_bytes = 2 * (64 * 128 + 128 * 256 + 256 * 512 + 512 * 64 + 64 * 8)
    bytes_accessed = int(m * 64 * 2 + weight_bytes + batch * 8 * 4)
    # TODO(synk): for very large B*H*W the whole (M,512) activation no longer fits VMEM;
    #             that regime needs the same two-pass-per-layer M-tiling used in kernel 1.
    vmem_limit = int(min(60 * 1024 * 1024, max(32 * 1024 * 1024, 20 * 1024 * m)))
    return pl.pallas_call(
        functools.partial(_backbone_tail_kernel, batch=batch),
        out_shape=jax.ShapeDtypeStruct((batch, 8), jnp.float32),
        in_specs=[vspec] * len(args),
        out_specs=vspec,
        compiler_params=pltpu.CompilerParams(vmem_limit_bytes=vmem_limit),
        cost_estimate=pl.CostEstimate(flops=flops, transcendentals=int(3 * 512),
                                      bytes_accessed=bytes_accessed),
    )(*args)


# --------------------------------------------------------------------------------------
# Layout-only glue (fused by XLA under jit)
# --------------------------------------------------------------------------------------
def _im2col_3x3_tap_major(x_nhwc):
    """3x3 / stride 1 / pad 1 patches; rows ordered (pool_tap, b, ho, wo) so each of the 4
    MaxPool2d(2,2) window taps is a contiguous (B*Ho*Wo)-row slab; K lane-padded 27 -> 32."""
    B, H, W, C = x_nhwc.shape
    k = 9 * C
    xp = jnp.pad(x_nhwc, ((0, 0), (1, 1), (1, 1), (0, 0)))
    cols = [xp[:, dy:dy + H, dx:dx + W, :] for dy in range(3) for dx in range(3)]
    patches = jnp.concatenate(cols, axis=-1)                 # (B,H,W,9C), tap order (dy,dx,cin)
    patches = patches.reshape(B, H // 2, 2, W // 2, 2, k)    # (b, ho, wy, wo, wx, k)
    patches = patches.transpose(2, 4, 0, 1, 3, 5)            # (wy, wx, b, ho, wo, k)
    patches = patches.reshape(4 * B * (H // 2) * (W // 2), k)
    return jnp.pad(patches, ((0, 0), (0, K1 - k)))


def init_params(key):
    ks = jax.random.split(key, 12)

    def conv_w(k, kh, kw, cin, cout):
        fan_in = kh * kw * cin
        w = jax.random.normal(k, (kh, kw, cin, cout), jnp.float32)
        return (w / jnp.sqrt(jnp.float32(fan_in))).reshape(kh * kw * cin, cout)

    def lin_w(k, din, dout):
        return jax.random.normal(k, (din, dout), jnp.float32) / jnp.sqrt(jnp.float32(din))

    def bias(k, n):
        return 0.01 * jax.random.normal(k, (1, n), jnp.float32)

    def bn(n):  # BatchNorm default init: weight=1, bias=0
        return jnp.ones((1, n), jnp.float32), jnp.zeros((1, n), jnp.float32)

    p = {}
    w1 = conv_w(ks[0], 3, 3, 3, C1)                             # (27, 64), tap order (dy,dx,cin)
    p['w1'] = jnp.pad(w1, ((0, K1 - w1.shape[0]), (0, 0))).astype(jnp.bfloat16)
    p['b1'] = bias(ks[1], C1)
    p['g1'], p['be1'] = bn(C1)
    p['w2'] = conv_w(ks[2], 1, 1, 64, 128).astype(jnp.bfloat16)
    p['b2'] = bias(ks[3], 128)
    p['g2'], p['be2'] = bn(128)
    p['w3'] = conv_w(ks[4], 1, 1, 128, 256).astype(jnp.bfloat16)
    p['b3'] = bias(ks[5], 256)
    p['g3'], p['be3'] = bn(256)
    p['w4'] = conv_w(ks[6], 1, 1, 256, 512).astype(jnp.bfloat16)
    p['b4'] = bias(ks[7], 512)
    p['g4'], p['be4'] = bn(512)
    p['hw1'] = lin_w(ks[8], 512, 64).astype(jnp.bfloat16)
    p['hb1'] = bias(ks[9], 64)
    p['hw2'] = lin_w(ks[10], 64, 8).astype(jnp.bfloat16)
    p['hb2'] = bias(ks[11], 8)
    return p


def deep_image_forward(params, x_nchw):
    # PyTorch NCHW -> NHWC (channels on the lane dim)
    x = jnp.transpose(x_nchw, (0, 2, 3, 1)).astype(jnp.float32)
    B, H, W, C = x.shape
    assert C == 3 and H % 2 == 0 and W % 2 == 0
    m2 = B * (H // 2) * (W // 2)

    patches = _im2col_3x3_tap_major(x).astype(jnp.bfloat16)        # (4*m2, 32) bf16
    x1 = conv1_bn_lrelu_pool(patches, params['w1'], params['b1'],
                             params['g1'], params['be1'], m2=m2)   # (m2, 64) bf16
    return backbone_tail(x1, params, batch=B)                      # (B, 8) f32


if __name__ == "__main__":
    key = jax.random.PRNGKey(0)
    k_param, k_x = jax.random.split(key)
    params = init_params(k_param)
    x = jax.random.uniform(k_x, (2, 3, 32, 32), dtype=jnp.float32)  # NCHW image batch

    fwd = jax.jit(deep_image_forward)
    out = jax.block_until_ready(fwd(params, x))

    assert out.shape == (2, 8), out.shape
    assert bool(jnp.all(jnp.isfinite(out)))
    print("KERNEL_OK")
</pallas_src>

<mosaic_0001>
module attributes {stable_mosaic.version = 11 : i64} {
  func.func @_backbone_tail_kernel(%arg0: memref<512x64xbf16, #tpu.memory_space<vmem>>, %arg1: memref<64x128xbf16, #tpu.memory_space<vmem>>, %arg2: memref<1x128xf32, #tpu.memory_space<vmem>>, %arg3: memref<1x128xf32, #tpu.memory_space<vmem>>, %arg4: memref<1x128xf32, #tpu.memory_space<vmem>>, %arg5: memref<128x256xbf16, #tpu.memory_space<vmem>>, %arg6: memref<1x256xf32, #tpu.memory_space<vmem>>, %arg7: memref<1x256xf32, #tpu.memory_space<vmem>>, %arg8: memref<1x256xf32, #tpu.memory_space<vmem>>, %arg9: memref<256x512xbf16, #tpu.memory_space<vmem>>, %arg10: memref<1x512xf32, #tpu.memory_space<vmem>>, %arg11: memref<1x512xf32, #tpu.memory_space<vmem>>, %arg12: memref<1x512xf32, #tpu.memory_space<vmem>>, %arg13: memref<512x64xbf16, #tpu.memory_space<vmem>>, %arg14: memref<1x64xf32, #tpu.memory_space<vmem>>, %arg15: memref<64x8xbf16, #tpu.memory_space<vmem>>, %arg16: memref<1x8xf32, #tpu.memory_space<vmem>>, %arg17: memref<2x8xf32, #tpu.memory_space<vmem>>) attributes {dimension_semantics = [], scalar_prefetch = 0 : i64, scratch_operands = 0 : i64, tpu.core_type = #tpu.core_type<tc>} {
    %c0 = arith.constant 0 : index
    %c0_0 = arith.constant 0 : index
    %0 = vector.load %arg0[%c0, %c0_0] : memref<512x64xbf16, #tpu.memory_space<vmem>>, vector<512x64xbf16>
    %c0_1 = arith.constant 0 : index
    %c0_2 = arith.constant 0 : index
    %1 = vector.load %arg1[%c0_1, %c0_2] : memref<64x128xbf16, #tpu.memory_space<vmem>>, vector<64x128xbf16>
    %cst = arith.constant dense<0.000000e+00> : vector<512x128xf32>
    %2 = tpu.matmul %0, %1, %cst {dimension_numbers = #tpu.dot_dimension_numbers<[1], [0], [0], [1], [0, 0, 1, 1], [], []>} : vector<512x64xbf16>, vector<64x128xbf16>, vector<512x128xf32> -> vector<512x128xf32>
    %c0_3 = arith.constant 0 : index
    %c0_4 = arith.constant 0 : index
    %3 = vector.load %arg2[%c0_3, %c0_4] : memref<1x128xf32, #tpu.memory_space<vmem>>, vector<1x128xf32>
    %4 = vector.broadcast %3 : vector<1x128xf32> to vector<512x128xf32>
    %5 = arith.addf %2, %4 : vector<512x128xf32>
    %cst_5 = arith.constant dense<0.000000e+00> : vector<128xf32>
    %6 = vector.multi_reduction <add>, %5, %cst_5 [0] : vector<512x128xf32> to vector<128xf32>
    %7 = vector.shape_cast %6 : vector<128xf32> to vector<1x128xf32>
    %cst_6 = arith.constant 0.001953125 : f32
    %8 = vector.broadcast %cst_6 : f32 to vector<1x128xf32>
    %9 = arith.mulf %7, %8 : vector<1x128xf32>
    %10 = arith.mulf %5, %5 : vector<512x128xf32>
    %cst_7 = arith.constant dense<0.000000e+00> : vector<128xf32>
    %11 = vector.multi_reduction <add>, %10, %cst_7 [0] : vector<512x128xf32> to vector<128xf32>
    %12 = vector.shape_cast %11 : vector<128xf32> to vector<1x128xf32>
    %cst_8 = arith.constant 0.001953125 : f32
    %13 = vector.broadcast %cst_8 : f32 to vector<1x128xf32>
    %14 = arith.mulf %12, %13 : vector<1x128xf32>
    %15 = arith.mulf %9, %9 : vector<1x128xf32>
    %16 = arith.subf %14, %15 : vector<1x128xf32>
    %cst_9 = arith.constant 0.000000e+00 : f32
    %17 = vector.broadcast %cst_9 : f32 to vector<1x128xf32>
    %18 = arith.maximumf %16, %17 : vector<1x128xf32>
    %19 = vector.broadcast %9 : vector<1x128xf32> to vector<512x128xf32>
    %20 = arith.subf %5, %19 : vector<512x128xf32>
    %cst_10 = arith.constant 9.99999974E-6 : f32
    %21 = vector.broadcast %cst_10 : f32 to vector<1x128xf32>
    %22 = arith.addf %18, %21 : vector<1x128xf32>
    %23 = math.rsqrt %22 : vector<1x128xf32>
    %24 = vector.broadcast %23 : vector<1x128xf32> to vector<512x128xf32>
    %25 = arith.mulf %20, %24 : vector<512x128xf32>
    %c0_11 = arith.constant 0 : index
    %c0_12 = arith.constant 0 : index
    %26 = vector.load %arg3[%c0_11, %c0_12] : memref<1x128xf32, #tpu.memory_space<vmem>>, vector<1x128xf32>
    %27 = vector.broadcast %26 : vector<1x128xf32> to vector<512x128xf32>
    %28 = arith.mulf %25, %27 : vector<512x128xf32>
    %c0_13 = arith.constant 0 : index
    %c0_14 = arith.constant 0 : index
    %29 = vector.load %arg4[%c0_13, %c0_14] : memref<1x128xf32, #tpu.memory_space<vmem>>, vector<1x128xf32>
    %30 = vector.broadcast %29 : vector<1x128xf32> to vector<512x128xf32>
    %31 = arith.addf %28, %30 : vector<512x128xf32>
    %cst_15 = arith.constant 0.000000e+00 : f32
    %32 = vector.broadcast %cst_15 : f32 to vector<512x128xf32>
    %33 = arith.cmpf oge, %31, %32 : vector<512x128xf32>
    %cst_16 = arith.constant 1.000000e-01 : f32
    %34 = vector.broadcast %cst_16 : f32 to vector<512x128xf32>
    %35 = arith.mulf %34, %31 : vector<512x128xf32>
    %36 = arith.select %33, %31, %35 : vector<512x128xi1>, vector<512x128xf32>
    %37 = arith.truncf %36 : vector<512x128xf32> to vector<512x128xbf16>
    %c0_17 = arith.constant 0 : index
    %c0_18 = arith.constant 0 : index
    %38 = vector.load %arg5[%c0_17, %c0_18] : memref<128x256xbf16, #tpu.memory_space<vmem>>, vector<128x256xbf16>
    %cst_19 = arith.constant dense<0.000000e+00> : vector<512x256xf32>
    %39 = tpu.matmul %37, %38, %cst_19 {dimension_numbers = #tpu.dot_dimension_numbers<[1], [0], [0], [1], [0, 0, 1, 1], [], []>} : vector<512x128xbf16>, vector<128x256xbf16>, vector<512x256xf32> -> vector<512x256xf32>
    %c0_20 = arith.constant 0 : index
    %c0_21 = arith.constant 0 : index
    %40 = vector.load %arg6[%c0_20, %c0_21] : memref<1x256xf32, #tpu.memory_space<vmem>>, vector<1x256xf32>
    %41 = vector.broadcast %40 : vector<1x256xf32> to vector<512x256xf32>
    %42 = arith.addf %39, %41 : vector<512x256xf32>
    %cst_22 = arith.constant dense<0.000000e+00> : vector<256xf32>
    %43 = vector.multi_reduction <add>, %42, %cst_22 [0] : vector<512x256xf32> to vector<256xf32>
    %44 = vector.shape_cast %43 : vector<256xf32> to vector<1x256xf32>
    %cst_23 = arith.constant 0.001953125 : f32
    %45 = vector.broadcast %cst_23 : f32 to vector<1x256xf32>
    %46 = arith.mulf %44, %45 : vector<1x256xf32>
    %47 = arith.mulf %42, %42 : vector<512x256xf32>
    %cst_24 = arith.constant dense<0.000000e+00> : vector<256xf32>
    %48 = vector.multi_reduction <add>, %47, %cst_24 [0] : vector<512x256xf32> to vector<256xf32>
    %49 = vector.shape_cast %48 : vector<256xf32> to vector<1x256xf32>
    %cst_25 = arith.constant 0.001953125 : f32
    %50 = vector.broadcast %cst_25 : f32 to vector<1x256xf32>
    %51 = arith.mulf %49, %50 : vector<1x256xf32>
    %52 = arith.mulf %46, %46 : vector<1x256xf32>
    %53 = arith.subf %51, %52 : vector<1x256xf32>
    %cst_26 = arith.constant 0.000000e+00 : f32
    %54 = vector.broadcast %cst_26 : f32 to vector<1x256xf32>
    %55 = arith.maximumf %53, %54 : vector<1x256xf32>
    %56 = vector.broadcast %46 : vector<1x256xf32> to vector<512x256xf32>
    %57 = arith.subf %42, %56 : vector<512x256xf32>
    %cst_27 = arith.constant 9.99999974E-6 : f32
    %58 = vector.broadcast %cst_27 : f32 to vector<1x256xf32>
    %59 = arith.addf %55, %58 : vector<1x256xf32>
    %60 = math.rsqrt %59 : vector<1x256xf32>
    %61 = vector.broadcast %60 : vector<1x256xf32> to vector<512x256xf32>
    %62 = arith.mulf %57, %61 : vector<512x256xf32>
    %c0_28 = arith.constant 0 : index
    %c0_29 = arith.constant 0 : index
    %63 = vector.load %arg7[%c0_28, %c0_29] : memref<1x256xf32, #tpu.memory_space<vmem>>, vector<1x256xf32>
    %64 = vector.broadcast %63 : vector<1x256xf32> to vector<512x256xf32>
    %65 = arith.mulf %62, %64 : vector<512x256xf32>
    %c0_30 = arith.constant 0 : index
    %c0_31 = arith.constant 0 : index
    %66 = vector.load %arg8[%c0_30, %c0_31] : memref<1x256xf32, #tpu.memory_space<vmem>>, vector<1x256xf32>
    %67 = vector.broadcast %66 : vector<1x256xf32> to vector<512x256xf32>
    %68 = arith.addf %65, %67 : vector<512x256xf32>
    %cst_32 = arith.constant 0.000000e+00 : f32
    %69 = vector.broadcast %cst_32 : f32 to vector<512x256xf32>
    %70 = arith.cmpf oge, %68, %69 : vector<512x256xf32>
    %cst_33 = arith.constant 1.000000e-01 : f32
    %71 = vector.broadcast %cst_33 : f32 to vector<512x256xf32>
    %72 = arith.mulf %71, %68 : vector<512x256xf32>
    %73 = arith.select %70, %68, %72 : vector<512x256xi1>, vector<512x256xf32>
    %74 = arith.truncf %73 : vector<512x256xf32> to vector<512x256xbf16>
    %c0_34 = arith.constant 0 : index
    %c0_35 = arith.constant 0 : index
    %75 = vector.load %arg9[%c0_34, %c0_35] : memref<256x512xbf16, #tpu.memory_space<vmem>>, vector<256x512xbf16>
    %cst_36 = arith.constant dense<0.000000e+00> : vector<512x512xf32>
    %76 = tpu.matmul %74, %75, %cst_36 {dimension_numbers = #tpu.dot_dimension_numbers<[1], [0], [0], [1], [0, 0, 1, 1], [], []>} : vector<512x256xbf16>, vector<256x512xbf16>, vector<512x512xf32> -> vector<512x512xf32>
    %c0_37 = arith.constant 0 : index
    %c0_38 = arith.constant 0 : index
    %77 = vector.load %arg10[%c0_37, %c0_38] : memref<1x512xf32, #tpu.memory_space<vmem>>, vector<1x512xf32>
    %78 = vector.broadcast %77 : vector<1x512xf32> to vector<512x512xf32>
    %79 = arith.addf %76, %78 : vector<512x512xf32>
    %cst_39 = arith.constant dense<0.000000e+00> : vector<512xf32>
    %80 = vector.multi_reduction <add>, %79, %cst_39 [0] : vector<512x512xf32> to vector<512xf32>
    %81 = vector.shape_cast %80 : vector<512xf32> to vector<1x512xf32>
    %cst_40 = arith.constant 0.001953125 : f32
    %82 = vector.broadcast %cst_40 : f32 to vector<1x512xf32>
    %83 = arith.mulf %81, %82 : vector<1x512xf32>
    %84 = arith.mulf %79, %79 : vector<512x512xf32>
    %cst_41 = arith.constant dense<0.000000e+00> : vector<512xf32>
    %85 = vector.multi_reduction <add>, %84, %cst_41 [0] : vector<512x512xf32> to vector<512xf32>
    %86 = vector.shape_cast %85 : vector<512xf32> to vector<1x512xf32>
    %cst_42 = arith.constant 0.001953125 : f32
    %87 = vector.broadcast %cst_42 : f32 to vector<1x512xf32>
    %88 = arith.mulf %86, %87 : vector<1x512xf32>
    %89 = arith.mulf %83, %83 : vector<1x512xf32>
    %90 = arith.subf %88, %89 : vector<1x512xf32>
    %cst_43 = arith.constant 0.000000e+00 : f32
    %91 = vector.broadcast %cst_43 : f32 to vector<1x512xf32>
    %92 = arith.maximumf %90, %91 : vector<1x512xf32>
    %93 = vector.broadcast %83 : vector<1x512xf32> to vector<512x512xf32>
    %94 = arith.subf %79, %93 : vector<512x512xf32>
    %cst_44 = arith.constant 9.99999974E-6 : f32
    %95 = vector.broadcast %cst_44 : f32 to vector<1x512xf32>
    %96 = arith.addf %92, %95 : vector<1x512xf32>
    %97 = math.rsqrt %96 : vector<1x512xf32>
    %98 = vector.broadcast %97 : vector<1x512xf32> to vector<512x512xf32>
    %99 = arith.mulf %94, %98 : vector<512x512xf32>
    %c0_45 = arith.constant 0 : index
    %c0_46 = arith.constant 0 : index
    %100 = vector.load %arg11[%c0_45, %c0_46] : memref<1x512xf32, #tpu.memory_space<vmem>>, vector<1x512xf32>
    %101 = vector.broadcast %100 : vector<1x512xf32> to vector<512x512xf32>
    %102 = arith.mulf %99, %101 : vector<512x512xf32>
    %c0_47 = arith.constant 0 : index
    %c0_48 = arith.constant 0 : index
    %103 = vector.load %arg12[%c0_47, %c0_48] : memref<1x512xf32, #tpu.memory_space<vmem>>, vector<1x512xf32>
    %104 = vector.broadcast %103 : vector<1x512xf32> to vector<512x512xf32>
    %105 = arith.addf %102, %104 : vector<512x512xf32>
    %cst_49 = arith.constant 0.000000e+00 : f32
    %106 = vector.broadcast %cst_49 : f32 to vector<512x512xf32>
    %107 = arith.cmpf oge, %105, %106 : vector<512x512xf32>
    %cst_50 = arith.constant 1.000000e-01 : f32
    %108 = vector.broadcast %cst_50 : f32 to vector<512x512xf32>
    %109 = arith.mulf %108, %105 : vector<512x512xf32>
    %110 = arith.select %107, %105, %109 : vector<512x512xi1>, vector<512x512xf32>
    %111 = vector.shape_cast %110 : vector<512x512xf32> to vector<2x256x512xf32>
    %cst_51 = arith.constant dense<0.000000e+00> : vector<2x512xf32>
    %112 = vector.multi_reduction <add>, %111, %cst_51 [1] : vector<2x256x512xf32> to vector<2x512xf32>
    %cst_52 = arith.constant 2.560000e+02 : f32
    %113 = vector.broadcast %cst_52 : f32 to vector<2x512xf32>
    %114 = arith.divf %112, %113 : vector<2x512xf32>
    %115 = arith.truncf %114 : vector<2x512xf32> to vector<2x512xbf16>
    %c0_53 = arith.constant 0 : index
    %c0_54 = arith.constant 0 : index
    %116 = vector.load %arg13[%c0_53, %c0_54] : memref<512x64xbf16, #tpu.memory_space<vmem>>, vector<512x64xbf16>
    %cst_55 = arith.constant dense<0.000000e+00> : vector<2x64xf32>
    %117 = tpu.matmul %115, %116, %cst_55 {dimension_numbers = #tpu.dot_dimension_numbers<[1], [0], [0], [1], [0, 0, 1, 1], [], []>} : vector<2x512xbf16>, vector<512x64xbf16>, vector<2x64xf32> -> vector<2x64xf32>
    %c0_56 = arith.constant 0 : index
    %c0_57 = arith.constant 0 : index
    %118 = vector.load %arg14[%c0_56, %c0_57] : memref<1x64xf32, #tpu.memory_space<vmem>>, vector<1x64xf32>
    %119 = vector.broadcast %118 : vector<1x64xf32> to vector<2x64xf32>
    %120 = arith.addf %117, %119 : vector<2x64xf32>
    %cst_58 = arith.constant 0.000000e+00 : f32
    %121 = vector.broadcast %cst_58 : f32 to vector<2x64xf32>
    %122 = arith.cmpf oge, %120, %121 : vector<2x64xf32>
    %cst_59 = arith.constant 0.00999999977 : f32
    %123 = vector.broadcast %cst_59 : f32 to vector<2x64xf32>
    %124 = arith.mulf %123, %120 : vector<2x64xf32>
    %125 = arith.select %122, %120, %124 : vector<2x64xi1>, vector<2x64xf32>
    %126 = arith.truncf %125 : vector<2x64xf32> to vector<2x64xbf16>
    %c0_60 = arith.constant 0 : index
    %c0_61 = arith.constant 0 : index
    %127 = vector.load %arg15[%c0_60, %c0_61] : memref<64x8xbf16, #tpu.memory_space<vmem>>, vector<64x8xbf16>
    %cst_62 = arith.constant dense<0.000000e+00> : vector<2x8xf32>
    %128 = tpu.matmul %126, %127, %cst_62 {dimension_numbers = #tpu.dot_dimension_numbers<[1], [0], [0], [1], [0, 0, 1, 1], [], []>} : vector<2x64xbf16>, vector<64x8xbf16>, vector<2x8xf32> -> vector<2x8xf32>
    %c0_63 = arith.constant 0 : index
    %c0_64 = arith.constant 0 : index
    %129 = vector.load %arg16[%c0_63, %c0_64] : memref<1x8xf32, #tpu.memory_space<vmem>>, vector<1x8xf32>
    %130 = vector.broadcast %129 : vector<1x8xf32> to vector<2x8xf32>
    %131 = arith.addf %128, %130 : vector<2x8xf32>
    %cst_65 = arith.constant 0.000000e+00 : f32
    %132 = vector.broadcast %cst_65 : f32 to vector<2x8xf32>
    %133 = arith.cmpf oge, %131, %132 : vector<2x8xf32>
    %cst_66 = arith.constant 0.00999999977 : f32
    %134 = vector.broadcast %cst_66 : f32 to vector<2x8xf32>
    %135 = arith.mulf %134, %131 : vector<2x8xf32>
    %136 = arith.select %133, %131, %135 : vector<2x8xi1>, vector<2x8xf32>
    %c0_67 = arith.constant 0 : index
    %c0_68 = arith.constant 0 : index
    %137 = vector.load %arg17[%c0_67, %c0_68] : memref<2x8xf32, #tpu.memory_space<vmem>>, vector<2x8xf32>
    tpu.vector_store %arg17[%c0_67, %c0_68], %136 {strides = array<i32>} : memref<2x8xf32, #tpu.memory_space<vmem>>, vector<2x8xf32>,
    return
  }
}

module attributes {stable_mosaic.version = 11 : i64} {
  func.func @_conv1_bn_lrelu_pool_kernel(%arg0: i32, %arg1: i32, %arg2: i32, %arg3: memref<512x32xbf16, #tpu.memory_space<vmem>>, %arg4: memref<32x64xbf16, #tpu.memory_space<vmem>>, %arg5: memref<1x64xf32, #tpu.memory_space<vmem>>, %arg6: memref<1x64xf32, #tpu.memory_space<vmem>>, %arg7: memref<1x64xf32, #tpu.memory_space<vmem>>, %arg8: memref<512x64xbf16, #tpu.memory_space<vmem>>, %arg9: memref<1x64xf32, #tpu.memory_space<vmem>>, %arg10: memref<1x64xf32, #tpu.memory_space<vmem>>) attributes {dimension_semantics = [#tpu.dimension_semantics<arbitrary>, #tpu.dimension_semantics<arbitrary>, #tpu.dimension_semantics<arbitrary>], iteration_bounds = array<i64: 2, 1, 4>, scalar_prefetch = 0 : i64, scratch_operands = 2 : i64, tpu.core_type = #tpu.core_type<tc>, window_params = [{transform_indices = @transform_0, window_bounds = array<i64: 512, 32>}, {pipeline_mode = #tpu.pipeline_mode<synchronous>, transform_indices = @transform_1, window_bounds = array<i64: 32, 64>}, {pipeline_mode = #tpu.pipeline_mode<synchronous>, transform_indices = @transform_2, window_bounds = array<i64: 1, 64>}, {pipeline_mode = #tpu.pipeline_mode<synchronous>, transform_indices = @transform_3, window_bounds = array<i64: 1, 64>}, {pipeline_mode = #tpu.pipeline_mode<synchronous>, transform_indices = @transform_4, window_bounds = array<i64: 1, 64>}, {transform_indices = @transform_5, window_bounds = array<i64: 512, 64>}]} {
    %c0 = arith.constant 0 : index
    %c0_0 = arith.constant 0 : index
    %0 = vector.load %arg3[%c0, %c0_0] : memref<512x32xbf16, #tpu.memory_space<vmem>>, vector<512x32xbf16>
    %c0_1 = arith.constant 0 : index
    %c0_2 = arith.constant 0 : index
    %1 = vector.load %arg4[%c0_1, %c0_2] : memref<32x64xbf16, #tpu.memory_space<vmem>>, vector<32x64xbf16>
    %cst = arith.constant dense<0.000000e+00> : vector<512x64xf32>
    %2 = tpu.matmul %0, %1, %cst {dimension_numbers = #tpu.dot_dimension_numbers<[1], [0], [0], [1], [0, 0, 1, 1], [], []>} : vector<512x32xbf16>, vector<32x64xbf16>, vector<512x64xf32> -> vector<512x64xf32>
    %c0_3 = arith.constant 0 : index
    %c0_4 = arith.constant 0 : index
    %3 = vector.load %arg5[%c0_3, %c0_4] : memref<1x64xf32, #tpu.memory_space<vmem>>, vector<1x64xf32>
    %4 = vector.broadcast %3 : vector<1x64xf32> to vector<512x64xf32>
    %5 = arith.addf %2, %4 : vector<512x64xf32>
    %c0_i32 = arith.constant 0 : i32
    %6 = arith.cmpi eq, %arg0, %c0_i32 : i32
    %c0_i32_5 = arith.constant 0 : i32
    %7 = arith.cmpi eq, %arg1, %c0_i32_5 : i32
    %8 = arith.andi %6, %7 : i1
    %c0_i32_6 = arith.constant 0 : i32
    %9 = arith.cmpi eq, %arg2, %c0_i32_6 : i32
    %10 = arith.andi %8, %9 : i1
    %11 = arith.extui %10 : i1 to i32
    %c0_i32_7 = arith.constant 0 : i32
    %12 = arith.cmpi ne, %11, %c0_i32_7 : i32
    scf.if %12 {
      %cst_11 = arith.constant 0.000000e+00 : f32
      %19 = vector.broadcast %cst_11 : f32 to vector<1x64xf32>
      %c0_12 = arith.constant 0 : index
      %c0_13 = arith.constant 0 : index
      %20 = vector.load %arg9[%c0_12, %c0_13] : memref<1x64xf32, #tpu.memory_space<vmem>>, vector<1x64xf32>
      tpu.vector_store %arg9[%c0_12, %c0_13], %19 {strides = array<i32>} : memref<1x64xf32, #tpu.memory_space<vmem>>, vector<1x64xf32>,
      %cst_14 = arith.constant 0.000000e+00 : f32
      %21 = vector.broadcast %cst_14 : f32 to vector<1x64xf32>
      %c0_15 = arith.constant 0 : index
      %c0_16 = arith.constant 0 : index
      %22 = vector.load %arg10[%c0_15, %c0_16] : memref<1x64xf32, #tpu.memory_space<vmem>>, vector<1x64xf32>
      tpu.vector_store %arg10[%c0_15, %c0_16], %21 {strides = array<i32>} : memref<1x64xf32, #tpu.memory_space<vmem>>, vector<1x64xf32>,
    } else {
    }
    %c0_i32_8 = arith.constant 0 : i32
    %13 = arith.cmpi eq, %arg0, %c0_i32_8 : i32
    %14 = arith.extui %13 : i1 to i32
    %c0_i32_9 = arith.constant 0 : i32
    %15 = arith.cmpi ne, %14, %c0_i32_9 : i32
    scf.if %15 {
      %c0_11 = arith.constant 0 : index
      %c0_12 = arith.constant 0 : index
      %19 = vector.load %arg9[%c0_11, %c0_12] : memref<1x64xf32, #tpu.memory_space<vmem>>, vector<1x64xf32>
      %cst_13 = arith.constant dense<0.000000e+00> : vector<64xf32>
      %20 = vector.multi_reduction <add>, %5, %cst_13 [0] : vector<512x64xf32> to vector<64xf32>
      %21 = vector.shape_cast %20 : vector<64xf32> to vector<1x64xf32>
      %22 = arith.addf %19, %21 : vector<1x64xf32>
      %c0_14 = arith.constant 0 : index
      %c0_15 = arith.constant 0 : index
      %23 = vector.load %arg9[%c0_14, %c0_15] : memref<1x64xf32, #tpu.memory_space<vmem>>, vector<1x64xf32>
      tpu.vector_store %arg9[%c0_14, %c0_15], %22 {strides = array<i32>} : memref<1x64xf32, #tpu.memory_space<vmem>>, vector<1x64xf32>,
      %c0_16 = arith.constant 0 : index
      %c0_17 = arith.constant 0 : index
      %24 = vector.load %arg10[%c0_16, %c0_17] : memref<1x64xf32, #tpu.memory_space<vmem>>, vector<1x64xf32>
      %25 = arith.mulf %5, %5 : vector<512x64xf32>
      %cst_18 = arith.constant dense<0.000000e+00> : vector<64xf32>
      %26 = vector.multi_reduction <add>, %25, %cst_18 [0] : vector<512x64xf32> to vector<64xf32>
      %27 = vector.shape_cast %26 : vector<64xf32> to vector<1x64xf32>
      %28 = arith.addf %24, %27 : vector<1x64xf32>
      %c0_19 = arith.constant 0 : index
      %c0_20 = arith.constant 0 : index
      %29 = vector.load %arg10[%c0_19, %c0_20] : memref<1x64xf32, #tpu.memory_space<vmem>>, vector<1x64xf32>
      tpu.vector_store %arg10[%c0_19, %c0_20], %28 {strides = array<i32>} : memref<1x64xf32, #tpu.memory_space<vmem>>, vector<1x64xf32>,
    } else {
    }
    %c1_i32 = arith.constant 1 : i32
    %16 = arith.cmpi eq, %arg0, %c1_i32 : i32
    %17 = arith.extui %16 : i1 to i32
    %c0_i32_10 = arith.constant 0 : i32
    %18 = arith.cmpi ne, %17, %c0_i32_10 : i32
    scf.if %18 {
      %c0_11 = arith.constant 0 : index
      %c0_12 = arith.constant 0 : index
      %19 = vector.load %arg9[%c0_11, %c0_12] : memref<1x64xf32, #tpu.memory_space<vmem>>, vector<1x64xf32>
      %cst_13 = arith.constant 4.8828125E-4 : f32
      %20 = vector.broadcast %cst_13 : f32 to vector<1x64xf32>
      %21 = arith.mulf %19, %20 : vector<1x64xf32>
      %c0_14 = arith.constant 0 : index
      %c0_15 = arith.constant 0 : index
      %22 = vector.load %arg10[%c0_14, %c0_15] : memref<1x64xf32, #tpu.memory_space<vmem>>, vector<1x64xf32>
      %cst_16 = arith.constant 4.8828125E-4 : f32
      %23 = vector.broadcast %cst_16 : f32 to vector<1x64xf32>
      %24 = arith.mulf %22, %23 : vector<1x64xf32>
      %25 = arith.mulf %21, %21 : vector<1x64xf32>
      %26 = arith.subf %24, %25 : vector<1x64xf32>
      %cst_17 = arith.constant 0.000000e+00 : f32
      %27 = vector.broadcast %cst_17 : f32 to vector<1x64xf32>
      %28 = arith.maximumf %26, %27 : vector<1x64xf32>
      %29 = vector.broadcast %21 : vector<1x64xf32> to vector<512x64xf32>
      %30 = arith.subf %5, %29 : vector<512x64xf32>
      %cst_18 = arith.constant 9.99999974E-6 : f32
      %31 = vector.broadcast %cst_18 : f32 to vector<1x64xf32>
      %32 = arith.addf %28, %31 : vector<1x64xf32>
      %33 = math.rsqrt %32 : vector<1x64xf32>
      %34 = vector.broadcast %33 : vector<1x64xf32> to vector<512x64xf32>
      %35 = arith.mulf %30, %34 : vector<512x64xf32>
      %c0_19 = arith.constant 0 : index
      %c0_20 = arith.constant 0 : index
      %36 = vector.load %arg6[%c0_19, %c0_20] : memref<1x64xf32, #tpu.memory_space<vmem>>, vector<1x64xf32>
      %37 = vector.broadcast %36 : vector<1x64xf32> to vector<512x64xf32>
      %38 = arith.mulf %35, %37 : vector<512x64xf32>
      %c0_21 = arith.constant 0 : index
      %c0_22 = arith.constant 0 : index
      %39 = vector.load %arg7[%c0_21, %c0_22] : memref<1x64xf32, #tpu.memory_space<vmem>>, vector<1x64xf32>
      %40 = vector.broadcast %39 : vector<1x64xf32> to vector<512x64xf32>
      %41 = arith.addf %38, %40 : vector<512x64xf32>
      %cst_23 = arith.constant 0.000000e+00 : f32
      %42 = vector.broadcast %cst_23 : f32 to vector<512x64xf32>
      %43 = arith.cmpf oge, %41, %42 : vector<512x64xf32>
      %cst_24 = arith.constant 1.000000e-01 : f32
      %44 = vector.broadcast %cst_24 : f32 to vector<512x64xf32>
      %45 = arith.mulf %44, %41 : vector<512x64xf32>
      %46 = arith.select %43, %41, %45 : vector<512x64xi1>, vector<512x64xf32>
      %47 = arith.truncf %46 : vector<512x64xf32> to vector<512x64xbf16>
      %c0_i32_25 = arith.constant 0 : i32
      %48 = arith.cmpi eq, %arg2, %c0_i32_25 : i32
      %49 = arith.extui %48 : i1 to i32
      %c0_i32_26 = arith.constant 0 : i32
      %50 = arith.cmpi ne, %49, %c0_i32_26 : i32
      scf.if %50 {
        %c0_29 = arith.constant 0 : index
        %c0_30 = arith.constant 0 : index
        %54 = vector.load %arg8[%c0_29, %c0_30] : memref<512x64xbf16, #tpu.memory_space<vmem>>, vector<512x64xbf16>
        tpu.vector_store %arg8[%c0_29, %c0_30], %47 {strides = array<i32>} : memref<512x64xbf16, #tpu.memory_space<vmem>>, vector<512x64xbf16>,
      } else {
      }
      %c0_i32_27 = arith.constant 0 : i32
      %51 = arith.cmpi sgt, %arg2, %c0_i32_27 : i32
      %52 = arith.extui %51 : i1 to i32
      %c0_i32_28 = arith.constant 0 : i32
      %53 = arith.cmpi ne, %52, %c0_i32_28 : i32
      scf.if %53 {
        %c0_29 = arith.constant 0 : index
        %c0_30 = arith.constant 0 : index
        %54 = vector.load %arg8[%c0_29, %c0_30] : memref<512x64xbf16, #tpu.memory_space<vmem>>, vector<512x64xbf16>
        %55 = arith.maximumf %54, %47 : vector<512x64xbf16>
        %c0_31 = arith.constant 0 : index
        %c0_32 = arith.constant 0 : index
        %56 = vector.load %arg8[%c0_31, %c0_32] : memref<512x64xbf16, #tpu.memory_space<vmem>>, vector<512x64xbf16>
        tpu.vector_store %arg8[%c0_31, %c0_32], %55 {strides = array<i32>} : memref<512x64xbf16, #tpu.memory_space<vmem>>, vector<512x64xbf16>,
      } else {
      }
    } else {
    }
    return
  }
  func.func @transform_0(%arg0: i32, %arg1: i32, %arg2: i32) -> (i32, i32) {
    %c1_i32 = arith.constant 1 : i32
    %0 = arith.muli %arg2, %c1_i32 : i32
    %1 = arith.addi %0, %arg1 : i32
    %c0_i32 = arith.constant 0 : i32
    %c0_i32_0 = arith.constant 0 : i32
    return %1, %c0_i32 : i32, i32
  }
  func.func @transform_1(%arg0: i32, %arg1: i32, %arg2: i32) -> (i32, i32) {
    %c0_i32 = arith.constant 0 : i32
    %c0_i32_0 = arith.constant 0 : i32
    %c0_i32_1 = arith.constant 0 : i32
    return %c0_i32, %c0_i32_0 : i32, i32
  }
  func.func @transform_2(%arg0: i32, %arg1: i32, %arg2: i32) -> (i32, i32) {
    %c0_i32 = arith.constant 0 : i32
    %c0_i32_0 = arith.constant 0 : i32
    %c0_i32_1 = arith.constant 0 : i32
    return %c0_i32, %c0_i32_0 : i32, i32
  }
  func.func @transform_3(%arg0: i32, %arg1: i32, %arg2: i32) -> (i32, i32) {
    %c0_i32 = arith.constant 0 : i32
    %c0_i32_0 = arith.constant 0 : i32
    %c0_i32_1 = arith.constant 0 : i32
    return %c0_i32, %c0_i32_0 : i32, i32
  }
  func.func @transform_4(%arg0: i32, %arg1: i32, %arg2: i32) -> (i32, i32) {
    %c0_i32 = arith.constant 0 : i32
    %c0_i32_0 = arith.constant 0 : i32
    %c0_i32_1 = arith.constant 0 : i32
    return %c0_i32, %c0_i32_0 : i32, i32
  }
  func.func @transform_5(%arg0: i32, %arg1: i32, %arg2: i32) -> (i32, i32) {
    %0 = arith.muli %arg1, %arg0 : i32
    %c0_i32 = arith.constant 0 : i32
    %c0_i32_0 = arith.constant 0 : i32
    return %0, %c0_i32 : i32, i32
  }
}

</mosaic_0001>

<llo_original>
// kernel: deep_image_forward.2
$region0: #{deep_image_forward.2}
  #allocation0 [shape = 'u32[]', space=smem, size = 0x4, offset = 0x4, fixed_abs, tag = 'smem constant byte address 0x4 - core index']
  #allocation1 [shape = 'u32[144,128]{1,0:T(1,128)}', space=vmem, size = 0x12000, scoped, tag = 'internal scratch']
  #allocation2 [shape = 'f32[1,64]{1,0:T(1,128)}', space=vmem, size = 0x200, scoped, tag = 'scratch operand']
  #allocation3 [shape = 'f32[1,64]{1,0:T(1,128)}', space=vmem, size = 0x200, scoped, tag = 'scratch operand']
  %s0 = inlined_call_operand.vmem [shape: bf16[2048,32], index: 0, kind: input, shape index: {}]
  %s1 = inlined_call_operand.vmem [shape: bf16[32,64], index: 1, kind: input, shape index: {}]
  %s2 = inlined_call_operand.vmem [shape: f32[1,64], index: 2, kind: input, shape index: {}]
  %s3 = inlined_call_operand.vmem [shape: f32[1,64], index: 3, kind: input, shape index: {}]
  %s4 = inlined_call_operand.vmem [shape: f32[1,64], index: 4, kind: input, shape index: {}]
  %s5 = inlined_call_operand.vmem [shape: bf16[512,64], index: 5, kind: output, shape index: {}]
  %s6 = sld [smem:[#allocation0]]
  $region73: #{deep_image_forward.2} parent=0
    _
  %s8 = ssub.s32 1, %s6
  %s9 = scalar_select 0, %s8, %s6
  loop: start=0, step=1, limit=10
  $region2: #{deep_image_forward.2} parent=0 // loop_pre_header
    _
  $region3: #{deep_image_forward.2} parent=0 // loop_header
    %s11 = sphi 0, %s15
    %p12 = scmp.ge.s32.totalorder %s11, 10
    %s18 = sphi 0, %s37
    %s19 = sphi 0, %s33
    %s20 = sphi 0, %s29
    %s21 = sphi 0, %s18
    %s22 = sphi 0, %s19
    %s23 = sphi 0, %s20
    %s24 = sphi 0, %s21
    %s25 = sphi 0, %s22
    %s26 = sphi 0, %s23
    %s42 = sphi 0, %s44
    %s45 = sphi 0, %s42
    %s46 = sphi 0, %s45
    %s62 = sphi 0, %s46
    %s66 = sphi 0, %s66
    %s68 = sphi 0, %s66
    %s69 = sphi 0, %s68
    %s83 = sphi 0, %s69
    %s87 = sphi 0, %s87
    %s89 = sphi 0, %s87
    %s90 = sphi 0, %s89
    %s104 = sphi 0, %s90
    %s108 = sphi 0, %s108
    %s110 = sphi 0, %s108
    %s111 = sphi 0, %s110
    %s125 = sphi 0, %s111
    %s129 = sphi 0, %s129
    %s131 = sphi 0, %s129
    %s132 = sphi 0, %s131
    %s146 = sphi 0, %s132
    %s154 = sphi 0, %s156
    %s157 = sphi 0, %s154
    %s158 = sphi 0, %s157
    %s174 = sphi 0, %s158
  $region4: #{deep_image_forward.2} parent=0 // loop_header_branch
    %14 = sbr.rel (%p12) target = $region8
  $region5: #{deep_image_forward.2} parent=0 // loop_body
    %s16 = ssub.s32 %s11, 1
    %s17 = ssub.s32 %s11, 2
    %s27 = sadd.s32 1, %s20
    %p28 = scmp.ge.s32.totalorder %s27, 4
    %s29 = scalar_select %p28, 0, %s27
    %s30 = sadd.s32 1, %s19
    %s31 = scalar_select %p28, %s30, %s19
    %p32 = scmp.ge.s32.totalorder %s31, 1
    %s33 = scalar_select %p32, 0, %s31
    %s34 = sadd.s32 1, %s18
    %s35 = scalar_select %p32, %s34, %s18
    %p36 = scmp.ge.s32.totalorder %s35, 2
    %s37 = scalar_select %p36, 0, %s35
    %s38 = sadd.s32 %s20, %s19
    %s39 = sadd.s32 %s29, %s33
    %s40 = ssub.s32 %s38, %s39
    %p41 = scmp.eq.s32.totalorder %s40, 0
    %s43 = sadd.s32 %s42, 1
    %s44 = scalar_select %p41, %s42, %s43
    %p47 = pneg %p41
    %p48 = scmp.eq.s32.totalorder %s11, 7
    %p49 = por %p47, %p48
    %p50 = scmp.ne.s32.totalorder %s42, %s45
    %p51 = scmp.eq.s32.totalorder %s11, 0
    %p52 = por %p50, %p51
    %p53 = scmp.ne.s32.totalorder %s42, %s45
    %p54 = scmp.eq.s32.totalorder %s16, 7
    %p55 = por %p53, %p54
    %p56 = scmp.ne.s32.totalorder %s45, %s46
    %p57 = scmp.eq.s32.totalorder %s16, 0
    %p58 = por %p56, %p57
    %p59 = scmp.ne.s32.totalorder %s45, %s46
    %p60 = scmp.eq.s32.totalorder %s17, 7
    %p61 = por %p59, %p60
    %p63 = scmp.ne.s32.totalorder %s46, %s62
    %p64 = scmp.eq.s32.totalorder %s17, 0
    %p65 = por %p63, %p64
    %s67 = sadd.s32 %s66, 1
    %p70 = scmp.eq.s32.totalorder %s11, 7
    %p71 = scmp.ne.s32.totalorder %s66, %s68
    %p72 = scmp.eq.s32.totalorder %s11, 0
    %p73 = por %p71, %p72
    %p74 = scmp.ne.s32.totalorder %s66, %s68
    %p75 = scmp.eq.s32.totalorder %s16, 7
    %p76 = por %p74, %p75
    %p77 = scmp.ne.s32.totalorder %s68, %s69
    %p78 = scmp.eq.s32.totalorder %s16, 0
    %p79 = por %p77, %p78
    %p80 = scmp.ne.s32.totalorder %s68, %s69
    %p81 = scmp.eq.s32.totalorder %s17, 7
    %p82 = por %p80, %p81
    %p84 = scmp.ne.s32.totalorder %s69, %s83
    %p85 = scmp.eq.s32.totalorder %s17, 0
    %p86 = por %p84, %p85
    %s88 = sadd.s32 %s87, 1
    %p91 = scmp.eq.s32.totalorder %s11, 7
    %p92 = scmp.ne.s32.totalorder %s87, %s89
    %p93 = scmp.eq.s32.totalorder %s11, 0
    %p94 = por %p92, %p93
    %p95 = scmp.ne.s32.totalorder %s87, %s89
    %p96 = scmp.eq.s32.totalorder %s16, 7
    %p97 = por %p95, %p96
    %p98 = scmp.ne.s32.totalorder %s89, %s90
    %p99 = scmp.eq.s32.totalorder %s16, 0
    %p100 = por %p98, %p99
    %p101 = scmp.ne.s32.totalorder %s89, %s90
    %p102 = scmp.eq.s32.totalorder %s17, 7
    %p103 = por %p101, %p102
    %p105 = scmp.ne.s32.totalorder %s90, %s104
    %p106 = scmp.eq.s32.totalorder %s17, 0
    %p107 = por %p105, %p106
    %s109 = sadd.s32 %s108, 1
    %p112 = scmp.eq.s32.totalorder %s11, 7
    %p113 = scmp.ne.s32.totalorder %s108, %s110
    %p114 = scmp.eq.s32.totalorder %s11, 0
    %p115 = por %p113, %p114
    %p116 = scmp.ne.s32.totalorder %s108, %s110
    %p117 = scmp.eq.s32.totalorder %s16, 7
    %p118 = por %p116, %p117
    %p119 = scmp.ne.s32.totalorder %s110, %s111
    %p120 = scmp.eq.s32.totalorder %s16, 0
    %p121 = por %p119, %p120
    %p122 = scmp.ne.s32.totalorder %s110, %s111
    %p123 = scmp.eq.s32.totalorder %s17, 7
    %p124 = por %p122, %p123
    %p126 = scmp.ne.s32.totalorder %s111, %s125
    %p127 = scmp.eq.s32.totalorder %s17, 0
    %p128 = por %p126, %p127
    %s130 = sadd.s32 %s129, 1
    %p133 = scmp.eq.s32.totalorder %s11, 7
    %p134 = scmp.ne.s32.totalorder %s129, %s131
    %p135 = scmp.eq.s32.totalorder %s11, 0
    %p136 = por %p134, %p135
    %p137 = scmp.ne.s32.totalorder %s129, %s131
    %p138 = scmp.eq.s32.totalorder %s16, 7
    %p139 = por %p137, %p138
    %p140 = scmp.ne.s32.totalorder %s131, %s132
    %p141 = scmp.eq.s32.totalorder %s16, 0
    %p142 = por %p140, %p141
    %p143 = scmp.ne.s32.totalorder %s131, %s132
    %p144 = scmp.eq.s32.totalorder %s17, 7
    %p145 = por %p143, %p144
    %p147 = scmp.ne.s32.totalorder %s132, %s146
    %p148 = scmp.eq.s32.totalorder %s17, 0
    %p149 = por %p147, %p148
    %s150 = smul.u32 %s19, %s18
    %s151 = smul.u32 %s33, %s37
    %s152 = ssub.s32 %s150, %s151
    %p153 = scmp.eq.s32.totalorder %s152, 0
    %s155 = sadd.s32 %s154, 1
    %s156 = scalar_select %p153, %s154, %s155
    %p159 = pneg %p153
    %p160 = scmp.eq.s32.totalorder %s11, 7
    %p161 = por %p159, %p160
    %p162 = scmp.ne.s32.totalorder %s154, %s157
    %p163 = scmp.eq.s32.totalorder %s11, 0
    %p164 = por %p162, %p163
    %p165 = scmp.ne.s32.totalorder %s154, %s157
    %p166 = scmp.eq.s32.totalorder %s16, 7
    %p167 = por %p165, %p166
    %p168 = scmp.ne.s32.totalorder %s157, %s158
    %p169 = scmp.eq.s32.totalorder %s16, 0
    %p170 = por %p168, %p169
    %p171 = scmp.ne.s32.totalorder %s157, %s158
    %p172 = scmp.eq.s32.totalorder %s17, 7
    %p173 = por %p171, %p172
    %p175 = scmp.ne.s32.totalorder %s158, %s174
    %p176 = scmp.eq.s32.totalorder %s17, 0
    %p177 = por %p175, %p176
    %p178 = scmp.le.s32.totalorder 1, %s11
    %p179 = scmp.lt.s32.totalorder %s11, 9
    %p180 = pnand %p178, %p179
    %p181 = pneg %p180
    // Predicated region
    $region9: #{deep_image_forward.2} parent=5 // pred_check
      _
    $region10: #{deep_image_forward.2} parent=5 // pred_check_branch
      %183 = sbr.rel (%p180) target = $region12
    $region11: #{deep_image_forward.2} parent=5 // pred_region
      %s184 = ssub.s32 %s11, 1
      // Predicated region
      $region13: #{deep_image_forward.2} parent=11 // pred_check
        %p185 = pneg %p79
      $region14: #{deep_image_forward.2} parent=11 // pred_check_branch
        %187 = sbr.rel (%p185) target = $region16
      $region15: #{deep_image_forward.2} parent=11 // pred_region
        _
      $region16: #{deep_image_forward.2} parent=11 // pred_fallthru
        _
      // Predicated region
      $region17: #{deep_image_forward.2} parent=11 // pred_check
        %p188 = pneg %p100
      $region18: #{deep_image_forward.2} parent=11 // pred_check_branch
        %190 = sbr.rel (%p188) target = $region20
      $region19: #{deep_image_forward.2} parent=11 // pred_region
        _
      $region20: #{deep_image_forward.2} parent=11 // pred_fallthru
        _
      // Predicated region
      $region21: #{deep_image_forward.2} parent=11 // pred_check
        %p191 = pneg %p121
      $region22: #{deep_image_forward.2} parent=11 // pred_check_branch
        %193 = sbr.rel (%p191) target = $region24
      $region23: #{deep_image_forward.2} parent=11 // pred_region
        _
      $region24: #{deep_image_forward.2} parent=11 // pred_fallthru
        _
      // Predicated region
      $region25: #{deep_image_forward.2} parent=11 // pred_check
        %p194 = pneg %p142
      $region26: #{deep_image_forward.2} parent=11 // pred_check_branch
        %196 = sbr.rel (%p194) target = $region28
      $region27: #{deep_image_forward.2} parent=11 // pred_region
        _
      $region28: #{deep_image_forward.2} parent=11 // pred_fallthru
        _
    $region12: #{deep_image_forward.2} parent=5 // pred_fallthru
      _
    %p197 = scmp.lt.s32.totalorder %s11, 8
    // Predicated region
    $region29: #{deep_image_forward.2} parent=5 // pred_check
      %p198 = pneg %p197
    $region30: #{deep_image_forward.2} parent=5 // pred_check_branch
      %200 = sbr.rel (%p198) target = $region32
    $region31: #{deep_image_forward.2} parent=5 // pred_region
      // Predicated region
      $region33: #{deep_image_forward.2} parent=31 // pred_check
        %p201 = pneg %p52
      $region34: #{deep_image_forward.2} parent=31 // pred_check_branch
        %203 = sbr.rel (%p201) target = $region36
      $region35: #{deep_image_forward.2} parent=31 // pred_region
        %s204 = sadd.s32 %s20, %s19
        %s205 = smul.u32 64, %s204
        %p206 = scmp.lt.s32.totalorder %s205, 255
        %s207 = scalar_select %p206, %s205, 255
        %s208 = smul.addr %s207, 4
        %s209 = scalar_lea.vmem %s0, %s208
        %s210 = sadd.s32 %s20, %s19
        %s211 = smul.u32 64, %s210
      $region36: #{deep_image_forward.2} parent=31 // pred_fallthru
        _
    $region32: #{deep_image_forward.2} parent=5 // pred_fallthru
      _
    %p212 = scmp.le.s32.totalorder 1, %s11
    %p213 = scmp.lt.s32.totalorder %s11, 9
    %p214 = pnand %p212, %p213
    %p215 = pneg %p214
    // Predicated region
    $region37: #{deep_image_forward.2} parent=5 // pred_check
      _
    $region38: #{deep_image_forward.2} parent=5 // pred_check_branch
      %217 = sbr.rel (%p214) target = $region40
    $region39: #{deep_image_forward.2} parent=5 // pred_region
      %s218 = ssub.s32 %s11, 1
      %s219 = sadd.s32 %s23, %s22
      %s220 = smul.u32 64, %s219
      %p221 = scmp.lt.s32.totalorder %s220, 255
      %s222 = scalar_select %p221, %s220, 255
      %s223 = smul.addr %s222, 4
      %s224 = scalar_lea.vmem %s0, %s223
      %p225 = pneg %p58
      %p226 = pneg %p55
      %p227 = pneg %p79
      %p228 = pneg %p76
      %p229 = pneg %p100
      %p230 = pneg %p97
      %p231 = pneg %p121
      %p232 = pneg %p118
      %p233 = pneg %p142
      %p234 = pneg %p139
      %p235 = pneg %p170
      %p236 = pneg %p167
      %s237 = smul.u32 %s22, %s21
      %s238 = smul.u32 64, %s237
      %p239 = scmp.lt.s32.totalorder %s238, 63
      %s240 = scalar_select %p239, %s238, 63
      %s241 = smul.addr %s240, 4
      %s242 = scalar_lea.vmem %s5, %s241
      %s243 = sadd.s32 %s23, %s22
      %s244 = smul.u32 64, %s243
      %p245 = scmp.lt.s32.totalorder %s244, 255
      %s246 = scalar_select %p245, %s244, 255
      %s247 = smul.addr %s246, 4
      %s248 = scalar_lea.vmem %s0, %s247
      %s249 = sadd.s32 %s23, %s22
      %s250 = smul.u32 64, %s249
      %s251 = smul.u32 %s22, %s21
      %s252 = smul.u32 64, %s251
      %p253 = scmp.lt.s32.totalorder %s252, 63
      %s254 = scalar_select %p253, %s252, 63
      %s255 = smul.addr %s254, 4
      %s256 = scalar_lea.vmem %s5, %s255
      %s257 = smul.u32 %s22, %s21
      %s258 = smul.u32 64, %s257
      %v260 = vld [vmem:[%s248] sm:$0xf]
      %v261 = vld [vmem:[%s248 + $0x4] sm:$0xf]
      %v262 = vld [vmem:[%s248 + $0x8] sm:$0xf]
      %v263 = vld [vmem:[%s248 + $0xc] sm:$0xf]
      %v264 = vld [vmem:[%s248 + $0x10] sm:$0xf]
      %v265 = vld [vmem:[%s248 + $0x14] sm:$0xf]
      %v266 = vld [vmem:[%s248 + $0x18] sm:$0xf]
      %v267 = vld [vmem:[%s248 + $0x1c] sm:$0xf]
      %v268 = vld [vmem:[%s248 + $0x20] sm:$0xf]
      %v269 = vld [vmem:[%s248 + $0x24] sm:$0xf]
      %v270 = vld [vmem:[%s248 + $0x28] sm:$0xf]
      %v271 = vld [vmem:[%s248 + $0x2c] sm:$0xf]
      %v272 = vld [vmem:[%s248 + $0x30] sm:$0xf]
      %v273 = vld [vmem:[%s248 + $0x34] sm:$0xf]
      %v274 = vld [vmem:[%s248 + $0x38] sm:$0xf]
      %v275 = vld [vmem:[%s248 + $0x3c] sm:$0xf]
      %v276 = vld [vmem:[%s248 + $0x40] sm:$0xf]
      %v277 = vld [vmem:[%s248 + $0x44] sm:$0xf]
      %v278 = vld [vmem:[%s248 + $0x48] sm:$0xf]
      %v279 = vld [vmem:[%s248 + $0x4c] sm:$0xf]
      %v280 = vld [vmem:[%s248 + $0x50] sm:$0xf]
      %v281 = vld [vmem:[%s248 + $0x54] sm:$0xf]
      %v282 = vld [vmem:[%s248 + $0x58] sm:$0xf]
      %v283 = vld [vmem:[%s248 + $0x5c] sm:$0xf]
      %v284 = vld [vmem:[%s248 + $0x60] sm:$0xf]
      %v285 = vld [vmem:[%s248 + $0x64] sm:$0xf]
      %v286 = vld [vmem:[%s248 + $0x68] sm:$0xf]
      %v287 = vld [vmem:[%s248 + $0x6c] sm:$0xf]
      %v288 = vld [vmem:[%s248 + $0x70] sm:$0xf]
      %v289 = vld [vmem:[%s248 + $0x74] sm:$0xf]
      %v290 = vld [vmem:[%s248 + $0x78] sm:$0xf]
      %v291 = vld [vmem:[%s248 + $0x7c] sm:$0xf]
      %v292 = vld [vmem:[%s248 + $0x80] sm:$0xf]
      %v293 = vld [vmem:[%s248 + $0x84] sm:$0xf]
      %v294 = vld [vmem:[%s248 + $0x88] sm:$0xf]
      %v295 = vld [vmem:[%s248 + $0x8c] sm:$0xf]
      %v296 = vld [vmem:[%s248 + $0x90] sm:$0xf]
      %v297 = vld [vmem:[%s248 + $0x94] sm:$0xf]
      %v298 = vld [vmem:[%s248 + $0x98] sm:$0xf]
      %v299 = vld [vmem:[%s248 + $0x9c] sm:$0xf]
      %v300 = vld [vmem:[%s248 + $0xa0] sm:$0xf]
      %v301 = vld [vmem:[%s248 + $0xa4] sm:$0xf]
      %v302 = vld [vmem:[%s248 + $0xa8] sm:$0xf]
      %v303 = vld [vmem:[%s248 + $0xac] sm:$0xf]
      %v304 = vld [vmem:[%s248 + $0xb0] sm:$0xf]
      %v305 = vld [vmem:[%s248 + $0xb4] sm:$0xf]
      %v306 = vld [vmem:[%s248 + $0xb8] sm:$0xf]
      %v307 = vld [vmem:[%s248 + $0xbc] sm:$0xf]
      %v308 = vld [vmem:[%s248 + $0xc0] sm:$0xf]
      %v309 = vld [vmem:[%s248 + $0xc4] sm:$0xf]
      %v310 = vld [vmem:[%s248 + $0xc8] sm:$0xf]
      %v311 = vld [vmem:[%s248 + $0xcc] sm:$0xf]
      %v312 = vld [vmem:[%s248 + $0xd0] sm:$0xf]
      %v313 = vld [vmem:[%s248 + $0xd4] sm:$0xf]
      %v314 = vld [vmem:[%s248 + $0xd8] sm:$0xf]
      %v315 = vld [vmem:[%s248 + $0xdc] sm:$0xf]
      %v316 = vld [vmem:[%s248 + $0xe0] sm:$0xf]
      %v317 = vld [vmem:[%s248 + $0xe4] sm:$0xf]
      %v318 = vld [vmem:[%s248 + $0xe8] sm:$0xf]
      %v319 = vld [vmem:[%s248 + $0xec] sm:$0xf]
      %v320 = vld [vmem:[%s248 + $0xf0] sm:$0xf]
      %v321 = vld [vmem:[%s248 + $0xf4] sm:$0xf]
      %v322 = vld [vmem:[%s248 + $0xf8] sm:$0xf]
      %v323 = vld [vmem:[%s248 + $0xfc] sm:$0xf]
      %v324 = vld [vmem:[%s1] sm:$0xf]
      %v325 = vld [vmem:[%s1 + $0x4] sm:$0xf]
      %v326 = vld [vmem:[%s1 + $0x8] sm:$0xf]
      %v327 = vld [vmem:[%s1 + $0xc] sm:$0xf]
      %v328 = vld [vmem:[%s2] sm:$0x1]
      %v330 = vlaneseq
      %v331 = vshrl.u32 %v330, 7
      %v332 = vsub.s32 0, %v331
      %v333 = vrot.slane %v328, %v332
      %v399 = vunpack.c.l.b16 %v260
      %v400 = vunpack.c.l.b16 %v261
      %v401 = vunpack.c.l.b16 %v262
      %v402 = vunpack.c.l.b16 %v263
      %v403 = vunpack.c.l.b16 %v264
      %v404 = vunpack.c.l.b16 %v265
      %v405 = vunpack.c.l.b16 %v266
      %v406 = vunpack.c.l.b16 %v267
      %v407 = vunpack.c.l.b16 %v268
      %v408 = vunpack.c.l.b16 %v269
      %v409 = vunpack.c.l.b16 %v270
      %v410 = vunpack.c.l.b16 %v271
      %v411 = vunpack.c.l.b16 %v272
      %v412 = vunpack.c.l.b16 %v273
      %v413 = vunpack.c.l.b16 %v274
      %v414 = vunpack.c.l.b16 %v275
      %v415 = vunpack.c.l.b16 %v276
      %v416 = vunpack.c.l.b16 %v277
      %v417 = vunpack.c.l.b16 %v278
      %v418 = vunpack.c.l.b16 %v279
      %v419 = vunpack.c.l.b16 %v280
      %v420 = vunpack.c.l.b16 %v281
      %v421 = vunpack.c.l.b16 %v282
      %v422 = vunpack.c.l.b16 %v283
      %v423 = vunpack.c.l.b16 %v284
      %v424 = vunpack.c.l.b16 %v285
      %v425 = vunpack.c.l.b16 %v286
      %v426 = vunpack.c.l.b16 %v287
      %v427 = vunpack.c.l.b16 %v288
      %v428 = vunpack.c.l.b16 %v289
      %v429 = vunpack.c.l.b16 %v290
      %v430 = vunpack.c.l.b16 %v291
      %v431 = vunpack.c.l.b16 %v292
      %v432 = vunpack.c.l.b16 %v293
      %v433 = vunpack.c.l.b16 %v294
      %v434 = vunpack.c.l.b16 %v295
      %v435 = vunpack.c.l.b16 %v296
      %v436 = vunpack.c.l.b16 %v297
      %v437 = vunpack.c.l.b16 %v298
      %v438 = vunpack.c.l.b16 %v299
      %v439 = vunpack.c.l.b16 %v300
      %v440 = vunpack.c.l.b16 %v301
      %v441 = vunpack.c.l.b16 %v302
      %v442 = vunpack.c.l.b16 %v303
      %v443 = vunpack.c.l.b16 %v304
      %v444 = vunpack.c.l.b16 %v305
      %v445 = vunpack.c.l.b16 %v306
      %v446 = vunpack.c.l.b16 %v307
      %v447 = vunpack.c.l.b16 %v308
      %v448 = vunpack.c.l.b16 %v309
      %v449 = vunpack.c.l.b16 %v310
      %v450 = vunpack.c.l.b16 %v311
      %v451 = vunpack.c.l.b16 %v312
      %v452 = vunpack.c.l.b16 %v313
      %v453 = vunpack.c.l.b16 %v314
      %v454 = vunpack.c.l.b16 %v315
      %v455 = vunpack.c.l.b16 %v316
      %v456 = vunpack.c.l.b16 %v317
      %v457 = vunpack.c.l.b16 %v318
      %v458 = vunpack.c.l.b16 %v319
      %v459 = vunpack.c.l.b16 %v320
      %v460 = vunpack.c.l.b16 %v321
      %v461 = vunpack.c.l.b16 %v322
      %v462 = vunpack.c.l.b16 %v323
      %v463 = vpack.c.b16 %v400, %v399
      %v464 = vpack.c.b16 %v402, %v401
      %v465 = vpack.c.b16 %v404, %v403
      %v466 = vpack.c.b16 %v406, %v405
      %v467 = vpack.c.b16 %v408, %v407
      %v468 = vpack.c.b16 %v410, %v409
      %v469 = vpack.c.b16 %v412, %v411
      %v470 = vpack.c.b16 %v414, %v413
      %v471 = vpack.c.b16 %v416, %v415
      %v472 = vpack.c.b16 %v418, %v417
      %v473 = vpack.c.b16 %v420, %v419
      %v474 = vpack.c.b16 %v422, %v421
      %v475 = vpack.c.b16 %v424, %v423
      %v476 = vpack.c.b16 %v426, %v425
      %v477 = vpack.c.b16 %v428, %v427
      %v478 = vpack.c.b16 %v430, %v429
      %v479 = vpack.c.b16 %v432, %v431
      %v480 = vpack.c.b16 %v434, %v433
      %v481 = vpack.c.b16 %v436, %v435
      %v482 = vpack.c.b16 %v438, %v437
      %v483 = vpack.c.b16 %v440, %v439
      %v484 = vpack.c.b16 %v442, %v441
      %v485 = vpack.c.b16 %v444, %v443
      %v486 = vpack.c.b16 %v446, %v445
      %v487 = vpack.c.b16 %v448, %v447
      %v488 = vpack.c.b16 %v450, %v449
      %v489 = vpack.c.b16 %v452, %v451
      %v490 = vpack.c.b16 %v454, %v453
      %v491 = vpack.c.b16 %v456, %v455
      %v492 = vpack.c.b16 %v458, %v457
      %v493 = vpack.c.b16 %v460, %v459
      %v494 = vpack.c.b16 %v462, %v461
      %v499 = vunpack.c.l.b16 %v324
      %v500 = vunpack.c.l.b16 %v325
      %v501 = vunpack.c.l.b16 %v326
      %v502 = vunpack.c.l.b16 %v327
      %v503 = vpack.c.b16 %v500, %v499
      %v504 = vpack.c.b16 %v502, %v501
      %vm507 = vcmask 261120
      %v509 = vsel %vm507, %v463, 0
      %v512 = vsel %vm507, %v464, 0
      %v515 = vsel %vm507, %v465, 0
      %v518 = vsel %vm507, %v466, 0
      %v521 = vsel %vm507, %v467, 0
      %v524 = vsel %vm507, %v468, 0
      %v527 = vsel %vm507, %v469, 0
      %v530 = vsel %vm507, %v470, 0
      %v533 = vsel %vm507, %v471, 0
      %v536 = vsel %vm507, %v472, 0
      %v539 = vsel %vm507, %v473, 0
      %v542 = vsel %vm507, %v474, 0
      %v545 = vsel %vm507, %v475, 0
      %v548 = vsel %vm507, %v476, 0
      %v551 = vsel %vm507, %v477, 0
      %v554 = vsel %vm507, %v478, 0
      %v557 = vsel %vm507, %v479, 0
      %v560 = vsel %vm507, %v480, 0
      %v563 = vsel %vm507, %v481, 0
      %v566 = vsel %vm507, %v482, 0
      %v569 = vsel %vm507, %v483, 0
      %v572 = vsel %vm507, %v484, 0
      %v575 = vsel %vm507, %v485, 0
      %v578 = vsel %vm507, %v486, 0
      %v581 = vsel %vm507, %v487, 0
      %v584 = vsel %vm507, %v488, 0
      %v587 = vsel %vm507, %v489, 0
      %v590 = vsel %vm507, %v490, 0
      %v593 = vsel %vm507, %v491, 0
      %v596 = vsel %vm507, %v492, 0
      %v599 = vsel %vm507, %v493, 0
      %v602 = vsel %vm507, %v494, 0
      %604 = vmatprep.subr.bf16.mxu0 0
      %605 = vmatpush1.bf16.msra.mxu0 %v503
      %606 = vmatprep.subr.bf16.mxu0 0
      %607 = vmatpush1.bf16.msra.mxu0 %v504
      %608 = vmatprep.subr.bf16.mxu0 0
      %609 = vmatpush1.bf16.msra.mxu0 0
      %610 = vmatprep.subr.bf16.mxu0 0
      %611 = vmatpush1.bf16.msra.mxu0 0
      %612 = vmatprep.subr.bf16.mxu0 0
      %613 = vmatpush1.bf16.msra.mxu0 0
      %614 = vmatprep.subr.bf16.mxu0 0
      %615 = vmatpush1.bf16.msra.mxu0 0
      %616 = vmatprep.subr.bf16.mxu0 0
      %617 = vmatpush1.bf16.msra.mxu0 0
      %618 = vmatprep.subr.bf16.mxu0 0
      %619 = vmatpush1.bf16.msra.mxu0 0
      %620 = vmatprep.subr.bf16.mxu0 0
      %621 = vmatpush1.bf16.msra.mxu0 0
      %622 = vmatprep.subr.bf16.mxu0 0
      %623 = vmatpush1.bf16.msra.mxu0 0
      %624 = vmatprep.subr.bf16.mxu0 0
      %625 = vmatpush1.bf16.msra.mxu0 0
      %626 = vmatprep.subr.bf16.mxu0 0
      %627 = vmatpush1.bf16.msra.mxu0 0
      %628 = vmatprep.subr.bf16.mxu0 0
      %629 = vmatpush1.bf16.msra.mxu0 0
      %630 = vmatprep.subr.bf16.mxu0 0
      %631 = vmatpush1.bf16.msra.mxu0 0
      %632 = vmatprep.subr.bf16.mxu0 0
      %633 = vmatpush1.bf16.msra.mxu0 0
      %634 = vmatprep.subr.bf16.mxu0 0
      %635 = vmatpush1.bf16.msra.mxu0 0
      %636 = vmatprep.mubr.bf16.mxu0 0
      %637 = vmatmul.mubr.bf16.gmra.mrb[0].mxu0 %v509
      %v638 = vpop.f32.mrb[0].mxu0
      %v639 = vadd.f32 %v333, %v638
      %v640 = vpop.f32.mrb[0].mxu0
      %v641 = vpop.f32.mrb[0].mxu0
      %v642 = vadd.f32 %v333, %v641
      %v643 = vpop.f32.mrb[0].mxu0
      %644 = vmatprep.mubr.bf16.mxu0 0
      %645 = vmatmul.mubr.bf16.gmra.mrb[0].mxu0 %v512
      %v646 = vpop.f32.mrb[0].mxu0
      %v647 = vadd.f32 %v333, %v646
      %v648 = vpop.f32.mrb[0].mxu0
      %v649 = vpop.f32.mrb[0].mxu0
      %v650 = vadd.f32 %v333, %v649
      %v651 = vpop.f32.mrb[0].mxu0
      %652 = vmatprep.mubr.bf16.mxu0 0
      %653 = vmatmul.mubr.bf16.gmra.mrb[0].mxu0 %v515
      %v654 = vpop.f32.mrb[0].mxu0
      %v655 = vadd.f32 %v333, %v654
      %v656 = vpop.f32.mrb[0].mxu0
      %v657 = vpop.f32.mrb[0].mxu0
      %v658 = vadd.f32 %v333, %v657
      %v659 = vpop.f32.mrb[0].mxu0
      %660 = vmatprep.mubr.bf16.mxu0 0
      %661 = vmatmul.mubr.bf16.gmra.mrb[0].mxu0 %v518
      %v662 = vpop.f32.mrb[0].mxu0
      %v663 = vadd.f32 %v333, %v662
      %v664 = vpop.f32.mrb[0].mxu0
      %v665 = vpop.f32.mrb[0].mxu0
      %v666 = vadd.f32 %v333, %v665
      %v667 = vpop.f32.mrb[0].mxu0
      %668 = vmatprep.mubr.bf16.mxu0 0
      %669 = vmatmul.mubr.bf16.gmra.mrb[0].mxu0 %v521
      %v670 = vpop.f32.mrb[0].mxu0
      %v671 = vadd.f32 %v333, %v670
      %v672 = vpop.f32.mrb[0].mxu0
      %v673 = vpop.f32.mrb[0].mxu0
      %v674 = vadd.f32 %v333, %v673
      %v675 = vpop.f32.mrb[0].mxu0
      %676 = vmatprep.mubr.bf16.mxu0 0
      %677 = vmatmul.mubr.bf16.gmra.mrb[0].mxu0 %v524
      %v678 = vpop.f32.mrb[0].mxu0
      %v679 = vadd.f32 %v333, %v678
      %v680 = vpop.f32.mrb[0].mxu0
      %v681 = vpop.f32.mrb[0].mxu0
      %v682 = vadd.f32 %v333, %v681
      %v683 = vpop.f32.mrb[0].mxu0
      %684 = vmatprep.mubr.bf16.mxu0 0
      %685 = vmatmul.mubr.bf16.gmra.mrb[0].mxu0 %v527
      %v686 = vpop.f32.mrb[0].mxu0
      %v687 = vadd.f32 %v333, %v686
      %v688 = vpop.f32.mrb[0].mxu0
      %v689 = vpop.f32.mrb[0].mxu0
      %v690 = vadd.f32 %v333, %v689
      %v691 = vpop.f32.mrb[0].mxu0
      %692 = vmatprep.mubr.bf16.mxu0 0
      %693 = vmatmul.mubr.bf16.gmra.mrb[0].mxu0 %v530
      %v694 = vpop.f32.mrb[0].mxu0
      %v695 = vadd.f32 %v333, %v694
      %v696 = vpop.f32.mrb[0].mxu0
      %v697 = vpop.f32.mrb[0].mxu0
      %v698 = vadd.f32 %v333, %v697
      %v699 = vpop.f32.mrb[0].mxu0
      %700 = vmatprep.mubr.bf16.mxu0 0
      %701 = vmatmul.mubr.bf16.gmra.mrb[0].mxu0 %v533
      %v702 = vpop.f32.mrb[0].mxu0
      %v703 = vadd.f32 %v333, %v702
      %v704 = vpop.f32.mrb[0].mxu0
      %v705 = vpop.f32.mrb[0].mxu0
      %v706 = vadd.f32 %v333, %v705
      %v707 = vpop.f32.mrb[0].mxu0
      %708 = vmatprep.mubr.bf16.mxu0 0
      %709 = vmatmul.mubr.bf16.gmra.mrb[0].mxu0 %v536
      %v710 = vpop.f32.mrb[0].mxu0
      %v711 = vadd.f32 %v333, %v710
      %v712 = vpop.f32.mrb[0].mxu0
      %v713 = vpop.f32.mrb[0].mxu0
      %v714 = vadd.f32 %v333, %v713
      %v715 = vpop.f32.mrb[0].mxu0
      %716 = vmatprep.mubr.bf16.mxu0 0
      %717 = vmatmul.mubr.bf16.gmra.mrb[0].mxu0 %v539
      %v718 = vpop.f32.mrb[0].mxu0
      %v719 = vadd.f32 %v333, %v718
      %v720 = vpop.f32.mrb[0].mxu0
      %v721 = vpop.f32.mrb[0].mxu0
      %v722 = vadd.f32 %v333, %v721
      %v723 = vpop.f32.mrb[0].mxu0
      %724 = vmatprep.mubr.bf16.mxu0 0
      %725 = vmatmul.mubr.bf16.gmra.mrb[0].mxu0 %v542
      %v726 = vpop.f32.mrb[0].mxu0
      %v727 = vadd.f32 %v333, %v726
      %v728 = vpop.f32.mrb[0].mxu0
      %v729 = vpop.f32.mrb[0].mxu0
      %v730 = vadd.f32 %v333, %v729
      %v731 = vpop.f32.mrb[0].mxu0
      %732 = vmatprep.mubr.bf16.mxu0 0
      %733 = vmatmul.mubr.bf16.gmra.mrb[0].mxu0 %v545
      %v734 = vpop.f32.mrb[0].mxu0
      %v735 = vadd.f32 %v333, %v734
      %v736 = vpop.f32.mrb[0].mxu0
      %v737 = vpop.f32.mrb[0].mxu0
      %v738 = vadd.f32 %v333, %v737
      %v739 = vpop.f32.mrb[0].mxu0
      %740 = vmatprep.mubr.bf16.mxu0 0
      %741 = vmatmul.mubr.bf16.gmra.mrb[0].mxu0 %v548
      %v742 = vpop.f32.mrb[0].mxu0
      %v743 = vadd.f32 %v333, %v742
      %v744 = vpop.f32.mrb[0].mxu0
      %v745 = vpop.f32.mrb[0].mxu0
      %v746 = vadd.f32 %v333, %v745
      %v747 = vpop.f32.mrb[0].mxu0
      %748 = vmatprep.mubr.bf16.mxu0 0
      %749 = vmatmul.mubr.bf16.gmra.mrb[0].mxu0 %v551
      %v750 = vpop.f32.mrb[0].mxu0
      %v751 = vadd.f32 %v333, %v750
      %v752 = vpop.f32.mrb[0].mxu0
      %v753 = vpop.f32.mrb[0].mxu0
      %v754 = vadd.f32 %v333, %v753
      %v755 = vpop.f32.mrb[0].mxu0
      %756 = vmatprep.mubr.bf16.mxu0 0
      %757 = vmatmul.mubr.bf16.gmra.mrb[0].mxu0 %v554
      %v758 = vpop.f32.mrb[0].mxu0
      %v759 = vadd.f32 %v333, %v758
      %v760 = vpop.f32.mrb[0].mxu0
      %v761 = vpop.f32.mrb[0].mxu0
      %v762 = vadd.f32 %v333, %v761
      %v763 = vpop.f32.mrb[0].mxu0
      %764 = vmatprep.mubr.bf16.mxu0 0
      %765 = vmatmul.mubr.bf16.gmra.mrb[0].mxu0 %v557
      %v766 = vpop.f32.mrb[0].mxu0
      %v767 = vadd.f32 %v333, %v766
      %v768 = vpop.f32.mrb[0].mxu0
      %v769 = vpop.f32.mrb[0].mxu0
      %v770 = vadd.f32 %v333, %v769
      %v771 = vpop.f32.mrb[0].mxu0
      %772 = vmatprep.mubr.bf16.mxu0 0
      %773 = vmatmul.mubr.bf16.gmra.mrb[0].mxu0 %v560
      %v774 = vpop.f32.mrb[0].mxu0
      %v775 = vadd.f32 %v333, %v774
      %v776 = vpop.f32.mrb[0].mxu0
      %v777 = vpop.f32.mrb[0].mxu0
      %v778 = vadd.f32 %v333, %v777
      %v779 = vpop.f32.mrb[0].mxu0
      %780 = vmatprep.mubr.bf16.mxu0 0
      %781 = vmatmul.mubr.bf16.gmra.mrb[0].mxu0 %v563
      %v782 = vpop.f32.mrb[0].mxu0
      %v783 = vadd.f32 %v333, %v782
      %v784 = vpop.f32.mrb[0].mxu0
      %v785 = vpop.f32.mrb[0].mxu0
      %v786 = vadd.f32 %v333, %v785
      %v787 = vpop.f32.mrb[0].mxu0
      %788 = vmatprep.mubr.bf16.mxu0 0
      %789 = vmatmul.mubr.bf16.gmra.mrb[0].mxu0 %v566
      %v790 = vpop.f32.mrb[0].mxu0
      %v791 = vadd.f32 %v333, %v790
      %v792 = vpop.f32.mrb[0].mxu0
      %v793 = vpop.f32.mrb[0].mxu0
      %v794 = vadd.f32 %v333, %v793
      %v795 = vpop.f32.mrb[0].mxu0
      %796 = vmatprep.mubr.bf16.mxu0 0
      %797 = vmatmul.mubr.bf16.gmra.mrb[0].mxu0 %v569
      %v798 = vpop.f32.mrb[0].mxu0
      %v799 = vadd.f32 %v333, %v798
      %v800 = vpop.f32.mrb[0].mxu0
      %v801 = vpop.f32.mrb[0].mxu0
      %v802 = vadd.f32 %v333, %v801
      %v803 = vpop.f32.mrb[0].mxu0
      %804 = vmatprep.mubr.bf16.mxu0 0
      %805 = vmatmul.mubr.bf16.gmra.mrb[0].mxu0 %v572
      %v806 = vpop.f32.mrb[0].mxu0
      %v807 = vadd.f32 %v333, %v806
      %v808 = vpop.f32.mrb[0].mxu0
      %v809 = vpop.f32.mrb[0].mxu0
      %v810 = vadd.f32 %v333, %v809
      %v811 = vpop.f32.mrb[0].mxu0
      %812 = vmatprep.mubr.bf16.mxu0 0
      %813 = vmatmul.mubr.bf16.gmra.mrb[0].mxu0 %v575
      %v814 = vpop.f32.mrb[0].mxu0
      %v815 = vadd.f32 %v333, %v814
      %v816 = vpop.f32.mrb[0].mxu0
      %v817 = vpop.f32.mrb[0].mxu0
      %v818 = vadd.f32 %v333, %v817
      %v819 = vpop.f32.mrb[0].mxu0
      %820 = vmatprep.mubr.bf16.mxu0 0
      %821 = vmatmul.mubr.bf16.gmra.mrb[0].mxu0 %v578
      %v822 = vpop.f32.mrb[0].mxu0
      %v823 = vadd.f32 %v333, %v822
      %v824 = vpop.f32.mrb[0].mxu0
      %v825 = vpop.f32.mrb[0].mxu0
      %v826 = vadd.f32 %v333, %v825
      %v827 = vpop.f32.mrb[0].mxu0
      %828 = vmatprep.mubr.bf16.mxu0 0
      %829 = vmatmul.mubr.bf16.gmra.mrb[0].mxu0 %v581
      %v830 = vpop.f32.mrb[0].mxu0
      %v831 = vadd.f32 %v333, %v830
      %v832 = vpop.f32.mrb[0].mxu0
      %v833 = vpop.f32.mrb[0].mxu0
      %v834 = vadd.f32 %v333, %v833
      %v835 = vpop.f32.mrb[0].mxu0
      %836 = vmatprep.mubr.bf16.mxu0 0
      %837 = vmatmul.mubr.bf16.gmra.mrb[0].mxu0 %v584
      %v838 = vpop.f32.mrb[0].mxu0
      %v839 = vadd.f32 %v333, %v838
      %v840 = vpop.f32.mrb[0].mxu0
      %v841 = vpop.f32.mrb[0].mxu0
      %v842 = vadd.f32 %v333, %v841
      %v843 = vpop.f32.mrb[0].mxu0
      %844 = vmatprep.mubr.bf16.mxu0 0
      %845 = vmatmul.mubr.bf16.gmra.mrb[0].mxu0 %v587
      %v846 = vpop.f32.mrb[0].mxu0
      %v847 = vadd.f32 %v333, %v846
      %v848 = vpop.f32.mrb[0].mxu0
      %v849 = vpop.f32.mrb[0].mxu0
      %v850 = vadd.f32 %v333, %v849
      %v851 = vpop.f32.mrb[0].mxu0
      %852 = vmatprep.mubr.bf16.mxu0 0
      %853 = vmatmul.mubr.bf16.gmra.mrb[0].mxu0 %v590
      %v854 = vpop.f32.mrb[0].mxu0
      %v855 = vadd.f32 %v333, %v854
      %v856 = vpop.f32.mrb[0].mxu0
      %v857 = vpop.f32.mrb[0].mxu0
      %v858 = vadd.f32 %v333, %v857
      %v859 = vpop.f32.mrb[0].mxu0
      %860 = vmatprep.mubr.bf16.mxu0 0
      %861 = vmatmul.mubr.bf16.gmra.mrb[0].mxu0 %v593
      %v862 = vpop.f32.mrb[0].mxu0
      %v863 = vadd.f32 %v333, %v862
      %v864 = vpop.f32.mrb[0].mxu0
      %v865 = vpop.f32.mrb[0].mxu0
      %v866 = vadd.f32 %v333, %v865
      %v867 = vpop.f32.mrb[0].mxu0
      %868 = vmatprep.mubr.bf16.mxu0 0
      %869 = vmatmul.mubr.bf16.gmra.mrb[0].mxu0 %v596
      %v870 = vpop.f32.mrb[0].mxu0
      %v871 = vadd.f32 %v333, %v870
      %v872 = vpop.f32.mrb[0].mxu0
      %v873 = vpop.f32.mrb[0].mxu0
      %v874 = vadd.f32 %v333, %v873
      %v875 = vpop.f32.mrb[0].mxu0
      %876 = vmatprep.mubr.bf16.mxu0 0
      %877 = vmatmul.mubr.bf16.gmra.mrb[0].mxu0 %v599
      %v878 = vpop.f32.mrb[0].mxu0
      %v879 = vadd.f32 %v333, %v878
      %v880 = vpop.f32.mrb[0].mxu0
      %v881 = vpop.f32.mrb[0].mxu0
      %v882 = vadd.f32 %v333, %v881
      %v883 = vpop.f32.mrb[0].mxu0
      %884 = vmatprep.mubr.bf16.mxu0 0
      %885 = vmatmul.mubr.bf16.gmra.mrb[0].mxu0 %v602
      %v886 = vpop.f32.mrb[0].mxu0
      %v887 = vadd.f32 %v333, %v886
      %v888 = vpop.f32.mrb[0].mxu0
      %v889 = vpop.f32.mrb[0].mxu0
      %v890 = vadd.f32 %v333, %v889
      %v891 = vpop.f32.mrb[0].mxu0
      %892 = vdwg.mxu0
      %p893 = scmp.eq.s32.totalorder %s21, 0
      %p894 = scmp.eq.s32.totalorder %s22, 0
      %p895 = pnand %p893, %p894
      %p896 = pneg %p895
      %p897 = scmp.eq.s32.totalorder %s23, 0
      %p898 = pnand %p896, %p897
      %p899 = pneg %p898
      // Predicated region
      $region41: #{deep_image_forward.2} parent=39 // pred_check
        _
      $region42: #{deep_image_forward.2} parent=39 // pred_check_branch
        %901 = sbr.rel (%p898) target = $region44
      $region43: #{deep_image_forward.2} parent=39 // pred_region
        %vm902 = vcmask 516096
        %903 = vst.msk [vmem:[#allocation2] sm:$0x1] %vm902, 0.0
        %904 = vst.msk [vmem:[#allocation3] sm:$0x1] %vm902, 0.0
      $region44: #{deep_image_forward.2} parent=39 // pred_fallthru
        _
      // Predicated region
      $region45: #{deep_image_forward.2} parent=39 // pred_check
        %p905 = pneg %p893
      $region46: #{deep_image_forward.2} parent=39 // pred_check_branch
        %907 = sbr.rel (%p905) target = $region48
      $region47: #{deep_image_forward.2} parent=39 // pred_region
        %v908 = vld [vmem:[#allocation2] sm:$0x1]
        %vm909 = vcmask 523264
        %v910 = vsel %vm909, %v639, 0.0
        %v911 = vsel %vm909, %v642, 0.0
        %v912 = vadd.f32 %v910, %v911
        %v913 = vsel %vm909, %v647, 0.0
        %v914 = vadd.f32 %v912, %v913
        %v915 = vsel %vm909, %v650, 0.0
        %v916 = vadd.f32 %v914, %v915
        %v917 = vsel %vm909, %v655, 0.0
        %v918 = vadd.f32 %v916, %v917
        %v919 = vsel %vm909, %v658, 0.0
        %v920 = vadd.f32 %v918, %v919
        %v921 = vsel %vm909, %v663, 0.0
        %v922 = vadd.f32 %v920, %v921
        %v923 = vsel %vm909, %v666, 0.0
        %v924 = vadd.f32 %v922, %v923
        %v925 = vsel %vm909, %v671, 0.0
        %v926 = vadd.f32 %v924, %v925
        %v927 = vsel %vm909, %v674, 0.0
        %v928 = vadd.f32 %v926, %v927
        %v929 = vsel %vm909, %v679, 0.0
        %v930 = vadd.f32 %v928, %v929
        %v931 = vsel %vm909, %v682, 0.0
        %v932 = vadd.f32 %v930, %v931
        %v933 = vsel %vm909, %v687, 0.0
        %v934 = vadd.f32 %v932, %v933
        %v935 = vsel %vm909, %v690, 0.0
        %v936 = vadd.f32 %v934, %v935
        %v937 = vsel %vm909, %v695, 0.0
        %v938 = vadd.f32 %v936, %v937
        %v939 = vsel %vm909, %v698, 0.0
        %v940 = vadd.f32 %v938, %v939
        %v941 = vsel %vm909, %v703, 0.0
        %v942 = vadd.f32 %v940, %v941
        %v943 = vsel %vm909, %v706, 0.0
        %v944 = vadd.f32 %v942, %v943
        %v945 = vsel %vm909, %v711, 0.0
        %v946 = vadd.f32 %v944, %v945
        %v947 = vsel %vm909, %v714, 0.0
        %v948 = vadd.f32 %v946, %v947
        %v949 = vsel %vm909, %v719, 0.0
        %v950 = vadd.f32 %v948, %v949
        %v951 = vsel %vm909, %v722, 0.0
        %v952 = vadd.f32 %v950, %v951
        %v953 = vsel %vm909, %v727, 0.0
        %v954 = vadd.f32 %v952, %v953
        %v955 = vsel %vm909, %v730, 0.0
        %v956 = vadd.f32 %v954, %v955
        %v957 = vsel %vm909, %v735, 0.0
        %v958 = vadd.f32 %v956, %v957
        %v959 = vsel %vm909, %v738, 0.0
        %v960 = vadd.f32 %v958, %v959
        %v961 = vsel %vm909, %v743, 0.0
        %v962 = vadd.f32 %v960, %v961
        %v963 = vsel %vm909, %v746, 0.0
        %v964 = vadd.f32 %v962, %v963
        %v965 = vsel %vm909, %v751, 0.0
        %v966 = vadd.f32 %v964, %v965
        %v967 = vsel %vm909, %v754, 0.0
        %v968 = vadd.f32 %v966, %v967
        %v969 = vsel %vm909, %v759, 0.0
        %v970 = vadd.f32 %v968, %v969
        %v971 = vsel %vm909, %v762, 0.0
        %v972 = vadd.f32 %v970, %v971
        %v973 = vsel %vm909, %v767, 0.0
        %v974 = vadd.f32 %v972, %v973
        %v975 = vsel %vm909, %v770, 0.0
        %v976 = vadd.f32 %v974, %v975
        %v977 = vsel %vm909, %v775, 0.0
        %v978 = vadd.f32 %v976, %v977
        %v979 = vsel %vm909, %v778, 0.0
        %v980 = vadd.f32 %v978, %v979
        %v981 = vsel %vm909, %v783, 0.0
        %v982 = vadd.f32 %v980, %v981
        %v983 = vsel %vm909, %v786, 0.0
        %v984 = vadd.f32 %v982, %v983
        %v985 = vsel %vm909, %v791, 0.0
        %v986 = vadd.f32 %v984, %v985
        %v987 = vsel %vm909, %v794, 0.0
        %v988 = vadd.f32 %v986, %v987
        %v989 = vsel %vm909, %v799, 0.0
        %v990 = vadd.f32 %v988, %v989
        %v991 = vsel %vm909, %v802, 0.0
        %v992 = vadd.f32 %v990, %v991
        %v993 = vsel %vm909, %v807, 0.0
        %v994 = vadd.f32 %v992, %v993
        %v995 = vsel %vm909, %v810, 0.0
        %v996 = vadd.f32 %v994, %v995
        %v997 = vsel %vm909, %v815, 0.0
        %v998 = vadd.f32 %v996, %v997
        %v999 = vsel %vm909, %v818, 0.0
        %v1000 = vadd.f32 %v998, %v999
        %v1001 = vsel %vm909, %v823, 0.0
        %v1002 = vadd.f32 %v1000, %v1001
        %v1003 = vsel %vm909, %v826, 0.0
        %v1004 = vadd.f32 %v1002, %v1003
        %v1005 = vsel %vm909, %v831, 0.0
        %v1006 = vadd.f32 %v1004, %v1005
        %v1007 = vsel %vm909, %v834, 0.0
        %v1008 = vadd.f32 %v1006, %v1007
        %v1009 = vsel %vm909, %v839, 0.0
        %v1010 = vadd.f32 %v1008, %v1009
        %v1011 = vsel %vm909, %v842, 0.0
        %v1012 = vadd.f32 %v1010, %v1011
        %v1013 = vsel %vm909, %v847, 0.0
        %v1014 = vadd.f32 %v1012, %v1013
        %v1015 = vsel %vm909, %v850, 0.0
        %v1016 = vadd.f32 %v1014, %v1015
        %v1017 = vsel %vm909, %v855, 0.0
        %v1018 = vadd.f32 %v1016, %v1017
        %v1019 = vsel %vm909, %v858, 0.0
        %v1020 = vadd.f32 %v1018, %v1019
        %v1021 = vsel %vm909, %v863, 0.0
        %v1022 = vadd.f32 %v1020, %v1021
        %v1023 = vsel %vm909, %v866, 0.0
        %v1024 = vadd.f32 %v1022, %v1023
        %v1025 = vsel %vm909, %v871, 0.0
        %v1026 = vadd.f32 %v1024, %v1025
        %v1027 = vsel %vm909, %v874, 0.0
        %v1028 = vadd.f32 %v1026, %v1027
        %v1029 = vsel %vm909, %v879, 0.0
        %v1030 = vadd.f32 %v1028, %v1029
        %v1031 = vsel %vm909, %v882, 0.0
        %v1032 = vadd.f32 %v1030, %v1031
        %v1033 = vsel %vm909, %v887, 0.0
        %v1034 = vadd.f32 %v1032, %v1033
        %v1035 = vsel %vm909, %v890, 0.0
        %v1036 = vadd.f32 %v1034, %v1035
        %v1037 = vrot.slane %v1036, 4
        %v1038 = vadd.f32 %v1036, %v1037
        %v1039 = vrot.slane %v1038, 2
        %v1040 = vadd.f32 %v1038, %v1039
        %v1041 = vrot.slane %v1040, 1
        %v1042 = vadd.f32 %v1040, %v1041
        %v1043 = vadd.f32 %v908, %v1042
        %vm1044 = vcmask 516096
        %1045 = vst.msk [vmem:[#allocation2] sm:$0x1] %vm1044, %v1043
        %v1046 = vld [vmem:[#allocation3] sm:$0x1]
        %v1047 = vmul.f32 %v639, %v639
        %v1048 = vmul.f32 %v642, %v642
        %v1049 = vmul.f32 %v647, %v647
        %v1050 = vmul.f32 %v650, %v650
        %v1051 = vmul.f32 %v655, %v655
        %v1052 = vmul.f32 %v658, %v658
        %v1053 = vmul.f32 %v663, %v663
        %v1054 = vmul.f32 %v666, %v666
        %v1055 = vmul.f32 %v671, %v671
        %v1056 = vmul.f32 %v674, %v674
        %v1057 = vmul.f32 %v679, %v679
        %v1058 = vmul.f32 %v682, %v682
        %v1059 = vmul.f32 %v687, %v687
        %v1060 = vmul.f32 %v690, %v690
        %v1061 = vmul.f32 %v695, %v695
        %v1062 = vmul.f32 %v698, %v698
        %v1063 = vmul.f32 %v703, %v703
        %v1064 = vmul.f32 %v706, %v706
        %v1065 = vmul.f32 %v711, %v711
        %v1066 = vmul.f32 %v714, %v714
        %v1067 = vmul.f32 %v719, %v719
        %v1068 = vmul.f32 %v722, %v722
        %v1069 = vmul.f32 %v727, %v727
        %v1070 = vmul.f32 %v730, %v730
        %v1071 = vmul.f32 %v735, %v735
        %v1072 = vmul.f32 %v738, %v738
        %v1073 = vmul.f32 %v743, %v743
        %v1074 = vmul.f32 %v746, %v746
        %v1075 = vmul.f32 %v751, %v751
        %v1076 = vmul.f32 %v754, %v754
        %v1077 = vmul.f32 %v759, %v759
        %v1078 = vmul.f32 %v762, %v762
        %v1079 = vmul.f32 %v767, %v767
        %v1080 = vmul.f32 %v770, %v770
        %v1081 = vmul.f32 %v775, %v775
        %v1082 = vmul.f32 %v778, %v778
        %v1083 = vmul.f32 %v783, %v783
        %v1084 = vmul.f32 %v786, %v786
        %v1085 = vmul.f32 %v791, %v791
        %v1086 = vmul.f32 %v794, %v794
        %v1087 = vmul.f32 %v799, %v799
        %v1088 = vmul.f32 %v802, %v802
        %v1089 = vmul.f32 %v807, %v807
        %v1090 = vmul.f32 %v810, %v810
        %v1091 = vmul.f32 %v815, %v815
        %v1092 = vmul.f32 %v818, %v818
        %v1093 = vmul.f32 %v823, %v823
        %v1094 = vmul.f32 %v826, %v826
        %v1095 = vmul.f32 %v831, %v831
        %v1096 = vmul.f32 %v834, %v834
        %v1097 = vmul.f32 %v839, %v839
        %v1098 = vmul.f32 %v842, %v842
        %v1099 = vmul.f32 %v847, %v847
        %v1100 = vmul.f32 %v850, %v850
        %v1101 = vmul.f32 %v855, %v855
        %v1102 = vmul.f32 %v858, %v858
        %v1103 = vmul.f32 %v863, %v863
        %v1104 = vmul.f32 %v866, %v866
        %v1105 = vmul.f32 %v871, %v871
        %v1106 = vmul.f32 %v874, %v874
        %v1107 = vmul.f32 %v879, %v879
        %v1108 = vmul.f32 %v882, %v882
        %v1109 = vmul.f32 %v887, %v887
        %v1110 = vmul.f32 %v890, %v890
        %v1111 = vsel %vm909, %v1047, 0.0
        %v1112 = vsel %vm909, %v1048, 0.0
        %v1113 = vadd.f32 %v1111, %v1112
        %v1114 = vsel %vm909, %v1049, 0.0
        %v1115 = vadd.f32 %v1113, %v1114
        %v1116 = vsel %vm909, %v1050, 0.0
        %v1117 = vadd.f32 %v1115, %v1116
        %v1118 = vsel %vm909, %v1051, 0.0
        %v1119 = vadd.f32 %v1117, %v1118
        %v1120 = vsel %vm909, %v1052, 0.0
        %v1121 = vadd.f32 %v1119, %v1120
        %v1122 = vsel %vm909, %v1053, 0.0
        %v1123 = vadd.f32 %v1121, %v1122
        %v1124 = vsel %vm909, %v1054, 0.0
        %v1125 = vadd.f32 %v1123, %v1124
        %v1126 = vsel %vm909, %v1055, 0.0
        %v1127 = vadd.f32 %v1125, %v1126
        %v1128 = vsel %vm909, %v1056, 0.0
        %v1129 = vadd.f32 %v1127, %v1128
        %v1130 = vsel %vm909, %v1057, 0.0
        %v1131 = vadd.f32 %v1129, %v1130
        %v1132 = vsel %vm909, %v1058, 0.0
        %v1133 = vadd.f32 %v1131, %v1132
        %v1134 = vsel %vm909, %v1059, 0.0
        %v1135 = vadd.f32 %v1133, %v1134
        %v1136 = vsel %vm909, %v1060, 0.0
        %v1137 = vadd.f32 %v1135, %v1136
        %v1138 = vsel %vm909, %v1061, 0.0
        %v1139 = vadd.f32 %v1137, %v1138
        %v1140 = vsel %vm909, %v1062, 0.0
        %v1141 = vadd.f32 %v1139, %v1140
        %v1142 = vsel %vm909, %v1063, 0.0
        %v1143 = vadd.f32 %v1141, %v1142
        %v1144 = vsel %vm909, %v1064, 0.0
        %v1145 = vadd.f32 %v1143, %v1144
        %v1146 = vsel %vm909, %v1065, 0.0
        %v1147 = vadd.f32 %v1145, %v1146
        %v1148 = vsel %vm909, %v1066, 0.0
        %v1149 = vadd.f32 %v1147, %v1148
        %v1150 = vsel %vm909, %v1067, 0.0
        %v1151 = vadd.f32 %v1149, %v1150
        %v1152 = vsel %vm909, %v1068, 0.0
        %v1153 = vadd.f32 %v1151, %v1152
        %v1154 = vsel %vm909, %v1069, 0.0
        %v1155 = vadd.f32 %v1153, %v1154
        %v1156 = vsel %vm909, %v1070, 0.0
        %v1157 = vadd.f32 %v1155, %v1156
        %v1158 = vsel %vm909, %v1071, 0.0
        %v1159 = vadd.f32 %v1157, %v1158
        %v1160 = vsel %vm909, %v1072, 0.0
        %v1161 = vadd.f32 %v1159, %v1160
        %v1162 = vsel %vm909, %v1073, 0.0
        %v1163 = vadd.f32 %v1161, %v1162
        %v1164 = vsel %vm909, %v1074, 0.0
        %v1165 = vadd.f32 %v1163, %v1164
        %v1166 = vsel %vm909, %v1075, 0.0
        %v1167 = vadd.f32 %v1165, %v1166
        %v1168 = vsel %vm909, %v1076, 0.0
        %v1169 = vadd.f32 %v1167, %v1168
        %v1170 = vsel %vm909, %v1077, 0.0
        %v1171 = vadd.f32 %v1169, %v1170
        %v1172 = vsel %vm909, %v1078, 0.0
        %v1173 = vadd.f32 %v1171, %v1172
        %v1174 = vsel %vm909, %v1079, 0.0
        %v1175 = vadd.f32 %v1173, %v1174
        %v1176 = vsel %vm909, %v1080, 0.0
        %v1177 = vadd.f32 %v1175, %v1176
        %v1178 = vsel %vm909, %v1081, 0.0
        %v1179 = vadd.f32 %v1177, %v1178
        %v1180 = vsel %vm909, %v1082, 0.0
        %v1181 = vadd.f32 %v1179, %v1180
        %v1182 = vsel %vm909, %v1083, 0.0
        %v1183 = vadd.f32 %v1181, %v1182
        %v1184 = vsel %vm909, %v1084, 0.0
        %v1185 = vadd.f32 %v1183, %v1184
        %v1186 = vsel %vm909, %v1085, 0.0
        %v1187 = vadd.f32 %v1185, %v1186
        %v1188 = vsel %vm909, %v1086, 0.0
        %v1189 = vadd.f32 %v1187, %v1188
        %v1190 = vsel %vm909, %v1087, 0.0
        %v1191 = vadd.f32 %v1189, %v1190
        %v1192 = vsel %vm909, %v1088, 0.0
        %v1193 = vadd.f32 %v1191, %v1192
        %v1194 = vsel %vm909, %v1089, 0.0
        %v1195 = vadd.f32 %v1193, %v1194
        %v1196 = vsel %vm909, %v1090, 0.0
        %v1197 = vadd.f32 %v1195, %v1196
        %v1198 = vsel %vm909, %v1091, 0.0
        %v1199 = vadd.f32 %v1197, %v1198
        %v1200 = vsel %vm909, %v1092, 0.0
        %v1201 = vadd.f32 %v1199, %v1200
        %v1202 = vsel %vm909, %v1093, 0.0
        %v1203 = vadd.f32 %v1201, %v1202
        %v1204 = vsel %vm909, %v1094, 0.0
        %v1205 = vadd.f32 %v1203, %v1204
        %v1206 = vsel %vm909, %v1095, 0.0
        %v1207 = vadd.f32 %v1205, %v1206
        %v1208 = vsel %vm909, %v1096, 0.0
        %v1209 = vadd.f32 %v1207, %v1208
        %v1210 = vsel %vm909, %v1097, 0.0
        %v1211 = vadd.f32 %v1209, %v1210
        %v1212 = vsel %vm909, %v1098, 0.0
        %v1213 = vadd.f32 %v1211, %v1212
        %v1214 = vsel %vm909, %v1099, 0.0
        %v1215 = vadd.f32 %v1213, %v1214
        %v1216 = vsel %vm909, %v1100, 0.0
        %v1217 = vadd.f32 %v1215, %v1216
        %v1218 = vsel %vm909, %v1101, 0.0
        %v1219 = vadd.f32 %v1217, %v1218
        %v1220 = vsel %vm909, %v1102, 0.0
        %v1221 = vadd.f32 %v1219, %v1220
        %v1222 = vsel %vm909, %v1103, 0.0
        %v1223 = vadd.f32 %v1221, %v1222
        %v1224 = vsel %vm909, %v1104, 0.0
        %v1225 = vadd.f32 %v1223, %v1224
        %v1226 = vsel %vm909, %v1105, 0.0
        %v1227 = vadd.f32 %v1225, %v1226
        %v1228 = vsel %vm909, %v1106, 0.0
        %v1229 = vadd.f32 %v1227, %v1228
        %v1230 = vsel %vm909, %v1107, 0.0
        %v1231 = vadd.f32 %v1229, %v1230
        %v1232 = vsel %vm909, %v1108, 0.0
        %v1233 = vadd.f32 %v1231, %v1232
        %v1234 = vsel %vm909, %v1109, 0.0
        %v1235 = vadd.f32 %v1233, %v1234
        %v1236 = vsel %vm909, %v1110, 0.0
        %v1237 = vadd.f32 %v1235, %v1236
        %v1238 = vrot.slane %v1237, 4
        %v1239 = vadd.f32 %v1237, %v1238
        %v1240 = vrot.slane %v1239, 2
        %v1241 = vadd.f32 %v1239, %v1240
        %v1242 = vrot.slane %v1241, 1
        %v1243 = vadd.f32 %v1241, %v1242
        %v1244 = vadd.f32 %v1046, %v1243
        %1245 = vst.msk [vmem:[#allocation3] sm:$0x1] %vm1044, %v1244
      $region48: #{deep_image_forward.2} parent=39 // pred_fallthru
        _
      %p1246 = scmp.eq.s32.totalorder %s21, 1
      // Predicated region
      $region49: #{deep_image_forward.2} parent=39 // pred_check
        %p1247 = pneg %p1246
      $region50: #{deep_image_forward.2} parent=39 // pred_check_branch
        %1249 = sbr.rel (%p1247) target = $region52
      $region51: #{deep_image_forward.2} parent=39 // pred_region
        %v1250 = vld [vmem:[#allocation2] sm:$0x1]
        %v1251 = vmul.f32 %v1250, 0.00048828125
        %v1252 = vld [vmem:[#allocation3] sm:$0x1]
        %v1253 = vmul.f32 %v1252, 0.00048828125
        %v1254 = vmul.f32 %v1251, %v1251
        %v1255 = vsub.f32 %v1253, %v1254
        %v1256 = vmax.f32 %v1255, 0.0
        %v1258 = vlaneseq
        %v1259 = vshrl.u32 %v1258, 7
        %v1260 = vsub.s32 0, %v1259
        %v1261 = vrot.slane %v1251, %v1260
        %v1263 = vsub.f32 %v639, %v1261
        %v1264 = vsub.f32 %v642, %v1261
        %v1265 = vsub.f32 %v647, %v1261
        %v1266 = vsub.f32 %v650, %v1261
        %v1267 = vsub.f32 %v655, %v1261
        %v1268 = vsub.f32 %v658, %v1261
        %v1269 = vsub.f32 %v663, %v1261
        %v1270 = vsub.f32 %v666, %v1261
        %v1271 = vsub.f32 %v671, %v1261
        %v1272 = vsub.f32 %v674, %v1261
        %v1273 = vsub.f32 %v679, %v1261
        %v1274 = vsub.f32 %v682, %v1261
        %v1275 = vsub.f32 %v687, %v1261
        %v1276 = vsub.f32 %v690, %v1261
        %v1277 = vsub.f32 %v695, %v1261
        %v1278 = vsub.f32 %v698, %v1261
        %v1279 = vsub.f32 %v703, %v1261
        %v1280 = vsub.f32 %v706, %v1261
        %v1281 = vsub.f32 %v711, %v1261
        %v1282 = vsub.f32 %v714, %v1261
        %v1283 = vsub.f32 %v719, %v1261
        %v1284 = vsub.f32 %v722, %v1261
        %v1285 = vsub.f32 %v727, %v1261
        %v1286 = vsub.f32 %v730, %v1261
        %v1287 = vsub.f32 %v735, %v1261
        %v1288 = vsub.f32 %v738, %v1261
        %v1289 = vsub.f32 %v743, %v1261
        %v1290 = vsub.f32 %v746, %v1261
        %v1291 = vsub.f32 %v751, %v1261
        %v1292 = vsub.f32 %v754, %v1261
        %v1293 = vsub.f32 %v759, %v1261
        %v1294 = vsub.f32 %v762, %v1261
        %v1295 = vsub.f32 %v767, %v1261
        %v1296 = vsub.f32 %v770, %v1261
        %v1297 = vsub.f32 %v775, %v1261
        %v1298 = vsub.f32 %v778, %v1261
        %v1299 = vsub.f32 %v783, %v1261
        %v1300 = vsub.f32 %v786, %v1261
        %v1301 = vsub.f32 %v791, %v1261
        %v1302 = vsub.f32 %v794, %v1261
        %v1303 = vsub.f32 %v799, %v1261
        %v1304 = vsub.f32 %v802, %v1261
        %v1305 = vsub.f32 %v807, %v1261
        %v1306 = vsub.f32 %v810, %v1261
        %v1307 = vsub.f32 %v815, %v1261
        %v1308 = vsub.f32 %v818, %v1261
        %v1309 = vsub.f32 %v823, %v1261
        %v1310 = vsub.f32 %v826, %v1261
        %v1311 = vsub.f32 %v831, %v1261
        %v1312 = vsub.f32 %v834, %v1261
        %v1313 = vsub.f32 %v839, %v1261
        %v1314 = vsub.f32 %v842, %v1261
        %v1315 = vsub.f32 %v847, %v1261
        %v1316 = vsub.f32 %v850, %v1261
        %v1317 = vsub.f32 %v855, %v1261
        %v1318 = vsub.f32 %v858, %v1261
        %v1319 = vsub.f32 %v863, %v1261
        %v1320 = vsub.f32 %v866, %v1261
        %v1321 = vsub.f32 %v871, %v1261
        %v1322 = vsub.f32 %v874, %v1261
        %v1323 = vsub.f32 %v879, %v1261
        %v1324 = vsub.f32 %v882, %v1261
        %v1325 = vsub.f32 %v887, %v1261
        %v1326 = vsub.f32 %v890, %v1261
        %v1327 = vadd.f32 %v1256, 1e-05
        %v1328 = vrsqrt.pop %v1327
        %v1330 = vlaneseq
        %v1331 = vshrl.u32 %v1330, 7
        %v1332 = vsub.s32 0, %v1331
        %v1333 = vrot.slane %v1328, %v1332
        %v1335 = vmul.f32 %v1263, %v1333
        %v1336 = vmul.f32 %v1264, %v1333
        %v1337 = vmul.f32 %v1265, %v1333
        %v1338 = vmul.f32 %v1266, %v1333
        %v1339 = vmul.f32 %v1267, %v1333
        %v1340 = vmul.f32 %v1268, %v1333
        %v1341 = vmul.f32 %v1269, %v1333
        %v1342 = vmul.f32 %v1270, %v1333
        %v1343 = vmul.f32 %v1271, %v1333
        %v1344 = vmul.f32 %v1272, %v1333
        %v1345 = vmul.f32 %v1273, %v1333
        %v1346 = vmul.f32 %v1274, %v1333
        %v1347 = vmul.f32 %v1275, %v1333
        %v1348 = vmul.f32 %v1276, %v1333
        %v1349 = vmul.f32 %v1277, %v1333
        %v1350 = vmul.f32 %v1278, %v1333
        %v1351 = vmul.f32 %v1279, %v1333
        %v1352 = vmul.f32 %v1280, %v1333
        %v1353 = vmul.f32 %v1281, %v1333
        %v1354 = vmul.f32 %v1282, %v1333
        %v1355 = vmul.f32 %v1283, %v1333
        %v1356 = vmul.f32 %v1284, %v1333
        %v1357 = vmul.f32 %v1285, %v1333
        %v1358 = vmul.f32 %v1286, %v1333
        %v1359 = vmul.f32 %v1287, %v1333
        %v1360 = vmul.f32 %v1288, %v1333
        %v1361 = vmul.f32 %v1289, %v1333
        %v1362 = vmul.f32 %v1290, %v1333
        %v1363 = vmul.f32 %v1291, %v1333
        %v1364 = vmul.f32 %v1292, %v1333
        %v1365 = vmul.f32 %v1293, %v1333
        %v1366 = vmul.f32 %v1294, %v1333
        %v1367 = vmul.f32 %v1295, %v1333
        %v1368 = vmul.f32 %v1296, %v1333
        %v1369 = vmul.f32 %v1297, %v1333
        %v1370 = vmul.f32 %v1298, %v1333
        %v1371 = vmul.f32 %v1299, %v1333
        %v1372 = vmul.f32 %v1300, %v1333
        %v1373 = vmul.f32 %v1301, %v1333
        %v1374 = vmul.f32 %v1302, %v1333
        %v1375 = vmul.f32 %v1303, %v1333
        %v1376 = vmul.f32 %v1304, %v1333
        %v1377 = vmul.f32 %v1305, %v1333
        %v1378 = vmul.f32 %v1306, %v1333
        %v1379 = vmul.f32 %v1307, %v1333
        %v1380 = vmul.f32 %v1308, %v1333
        %v1381 = vmul.f32 %v1309, %v1333
        %v1382 = vmul.f32 %v1310, %v1333
        %v1383 = vmul.f32 %v1311, %v1333
        %v1384 = vmul.f32 %v1312, %v1333
        %v1385 = vmul.f32 %v1313, %v1333
        %v1386 = vmul.f32 %v1314, %v1333
        %v1387 = vmul.f32 %v1315, %v1333
        %v1388 = vmul.f32 %v1316, %v1333
        %v1389 = vmul.f32 %v1317, %v1333
        %v1390 = vmul.f32 %v1318, %v1333
        %v1391 = vmul.f32 %v1319, %v1333
        %v1392 = vmul.f32 %v1320, %v1333
        %v1393 = vmul.f32 %v1321, %v1333
        %v1394 = vmul.f32 %v1322, %v1333
        %v1395 = vmul.f32 %v1323, %v1333
        %v1396 = vmul.f32 %v1324, %v1333
        %v1397 = vmul.f32 %v1325, %v1333
        %v1398 = vmul.f32 %v1326, %v1333
        %v1399 = vld [vmem:[%s3] sm:$0x1]
        %v1401 = vlaneseq
        %v1402 = vshrl.u32 %v1401, 7
        %v1403 = vsub.s32 0, %v1402
        %v1404 = vrot.slane %v1399, %v1403
        %v1406 = vmul.f32 %v1335, %v1404
        %v1407 = vmul.f32 %v1336, %v1404
        %v1408 = vmul.f32 %v1337, %v1404
        %v1409 = vmul.f32 %v1338, %v1404
        %v1410 = vmul.f32 %v1339, %v1404
        %v1411 = vmul.f32 %v1340, %v1404
        %v1412 = vmul.f32 %v1341, %v1404
        %v1413 = vmul.f32 %v1342, %v1404
        %v1414 = vmul.f32 %v1343, %v1404
        %v1415 = vmul.f32 %v1344, %v1404
        %v1416 = vmul.f32 %v1345, %v1404
        %v1417 = vmul.f32 %v1346, %v1404
        %v1418 = vmul.f32 %v1347, %v1404
        %v1419 = vmul.f32 %v1348, %v1404
        %v1420 = vmul.f32 %v1349, %v1404
        %v1421 = vmul.f32 %v1350, %v1404
        %v1422 = vmul.f32 %v1351, %v1404
        %v1423 = vmul.f32 %v1352, %v1404
        %v1424 = vmul.f32 %v1353, %v1404
        %v1425 = vmul.f32 %v1354, %v1404
        %v1426 = vmul.f32 %v1355, %v1404
        %v1427 = vmul.f32 %v1356, %v1404
        %v1428 = vmul.f32 %v1357, %v1404
        %v1429 = vmul.f32 %v1358, %v1404
        %v1430 = vmul.f32 %v1359, %v1404
        %v1431 = vmul.f32 %v1360, %v1404
        %v1432 = vmul.f32 %v1361, %v1404
        %v1433 = vmul.f32 %v1362, %v1404
        %v1434 = vmul.f32 %v1363, %v1404
        %v1435 = vmul.f32 %v1364, %v1404
        %v1436 = vmul.f32 %v1365, %v1404
        %v1437 = vmul.f32 %v1366, %v1404
        %v1438 = vmul.f32 %v1367, %v1404
        %v1439 = vmul.f32 %v1368, %v1404
        %v1440 = vmul.f32 %v1369, %v1404
        %v1441 = vmul.f32 %v1370, %v1404
        %v1442 = vmul.f32 %v1371, %v1404
        %v1443 = vmul.f32 %v1372, %v1404
        %v1444 = vmul.f32 %v1373, %v1404
        %v1445 = vmul.f32 %v1374, %v1404
        %v1446 = vmul.f32 %v1375, %v1404
        %v1447 = vmul.f32 %v1376, %v1404
        %v1448 = vmul.f32 %v1377, %v1404
        %v1449 = vmul.f32 %v1378, %v1404
        %v1450 = vmul.f32 %v1379, %v1404
        %v1451 = vmul.f32 %v1380, %v1404
        %v1452 = vmul.f32 %v1381, %v1404
        %v1453 = vmul.f32 %v1382, %v1404
        %v1454 = vmul.f32 %v1383, %v1404
        %v1455 = vmul.f32 %v1384, %v1404
        %v1456 = vmul.f32 %v1385, %v1404
        %v1457 = vmul.f32 %v1386, %v1404
        %v1458 = vmul.f32 %v1387, %v1404
        %v1459 = vmul.f32 %v1388, %v1404
        %v1460 = vmul.f32 %v1389, %v1404
        %v1461 = vmul.f32 %v1390, %v1404
        %v1462 = vmul.f32 %v1391, %v1404
        %v1463 = vmul.f32 %v1392, %v1404
        %v1464 = vmul.f32 %v1393, %v1404
        %v1465 = vmul.f32 %v1394, %v1404
        %v1466 = vmul.f32 %v1395, %v1404
        %v1467 = vmul.f32 %v1396, %v1404
        %v1468 = vmul.f32 %v1397, %v1404
        %v1469 = vmul.f32 %v1398, %v1404
        %v1470 = vld [vmem:[%s4] sm:$0x1]
        %v1472 = vlaneseq
        %v1473 = vshrl.u32 %v1472, 7
        %v1474 = vsub.s32 0, %v1473
        %v1475 = vrot.slane %v1470, %v1474
        %v1477 = vadd.f32 %v1406, %v1475
        %v1478 = vadd.f32 %v1407, %v1475
        %v1479 = vadd.f32 %v1408, %v1475
        %v1480 = vadd.f32 %v1409, %v1475
        %v1481 = vadd.f32 %v1410, %v1475
        %v1482 = vadd.f32 %v1411, %v1475
        %v1483 = vadd.f32 %v1412, %v1475
        %v1484 = vadd.f32 %v1413, %v1475
        %v1485 = vadd.f32 %v1414, %v1475
        %v1486 = vadd.f32 %v1415, %v1475
        %v1487 = vadd.f32 %v1416, %v1475
        %v1488 = vadd.f32 %v1417, %v1475
        %v1489 = vadd.f32 %v1418, %v1475
        %v1490 = vadd.f32 %v1419, %v1475
        %v1491 = vadd.f32 %v1420, %v1475
        %v1492 = vadd.f32 %v1421, %v1475
        %v1493 = vadd.f32 %v1422, %v1475
        %v1494 = vadd.f32 %v1423, %v1475
        %v1495 = vadd.f32 %v1424, %v1475
        %v1496 = vadd.f32 %v1425, %v1475
        %v1497 = vadd.f32 %v1426, %v1475
        %v1498 = vadd.f32 %v1427, %v1475
        %v1499 = vadd.f32 %v1428, %v1475
        %v1500 = vadd.f32 %v1429, %v1475
        %v1501 = vadd.f32 %v1430, %v1475
        %v1502 = vadd.f32 %v1431, %v1475
        %v1503 = vadd.f32 %v1432, %v1475
        %v1504 = vadd.f32 %v1433, %v1475
        %v1505 = vadd.f32 %v1434, %v1475
        %v1506 = vadd.f32 %v1435, %v1475
        %v1507 = vadd.f32 %v1436, %v1475
        %v1508 = vadd.f32 %v1437, %v1475
        %v1509 = vadd.f32 %v1438, %v1475
        %v1510 = vadd.f32 %v1439, %v1475
        %v1511 = vadd.f32 %v1440, %v1475
        %v1512 = vadd.f32 %v1441, %v1475
        %v1513 = vadd.f32 %v1442, %v1475
        %v1514 = vadd.f32 %v1443, %v1475
        %v1515 = vadd.f32 %v1444, %v1475
        %v1516 = vadd.f32 %v1445, %v1475
        %v1517 = vadd.f32 %v1446, %v1475
        %v1518 = vadd.f32 %v1447, %v1475
        %v1519 = vadd.f32 %v1448, %v1475
        %v1520 = vadd.f32 %v1449, %v1475
        %v1521 = vadd.f32 %v1450, %v1475
        %v1522 = vadd.f32 %v1451, %v1475
        %v1523 = vadd.f32 %v1452, %v1475
        %v1524 = vadd.f32 %v1453, %v1475
        %v1525 = vadd.f32 %v1454, %v1475
        %v1526 = vadd.f32 %v1455, %v1475
        %v1527 = vadd.f32 %v1456, %v1475
        %v1528 = vadd.f32 %v1457, %v1475
        %v1529 = vadd.f32 %v1458, %v1475
        %v1530 = vadd.f32 %v1459, %v1475
        %v1531 = vadd.f32 %v1460, %v1475
        %v1532 = vadd.f32 %v1461, %v1475
        %v1533 = vadd.f32 %v1462, %v1475
        %v1534 = vadd.f32 %v1463, %v1475
        %v1535 = vadd.f32 %v1464, %v1475
        %v1536 = vadd.f32 %v1465, %v1475
        %v1537 = vadd.f32 %v1466, %v1475
        %v1538 = vadd.f32 %v1467, %v1475
        %v1539 = vadd.f32 %v1468, %v1475
        %v1540 = vadd.f32 %v1469, %v1475
        %vm1541 = vcmp.ge.f32.partialorder %v1477, 0.0
        %vm1542 = vcmp.ge.f32.partialorder %v1478, 0.0
        %vm1543 = vcmp.ge.f32.partialorder %v1479, 0.0
        %vm1544 = vcmp.ge.f32.partialorder %v1480, 0.0
        %vm1545 = vcmp.ge.f32.partialorder %v1481, 0.0
        %vm1546 = vcmp.ge.f32.partialorder %v1482, 0.0
        %vm1547 = vcmp.ge.f32.partialorder %v1483, 0.0
        %vm1548 = vcmp.ge.f32.partialorder %v1484, 0.0
        %vm1549 = vcmp.ge.f32.partialorder %v1485, 0.0
        %vm1550 = vcmp.ge.f32.partialorder %v1486, 0.0
        %vm1551 = vcmp.ge.f32.partialorder %v1487, 0.0
        %vm1552 = vcmp.ge.f32.partialorder %v1488, 0.0
        %vm1553 = vcmp.ge.f32.partialorder %v1489, 0.0
        %vm1554 = vcmp.ge.f32.partialorder %v1490, 0.0
        %vm1555 = vcmp.ge.f32.partialorder %v1491, 0.0
        %vm1556 = vcmp.ge.f32.partialorder %v1492, 0.0
        %vm1557 = vcmp.ge.f32.partialorder %v1493, 0.0
        %vm1558 = vcmp.ge.f32.partialorder %v1494, 0.0
        %vm1559 = vcmp.ge.f32.partialorder %v1495, 0.0
        %vm1560 = vcmp.ge.f32.partialorder %v1496, 0.0
        %vm1561 = vcmp.ge.f32.partialorder %v1497, 0.0
        %vm1562 = vcmp.ge.f32.partialorder %v1498, 0.0
        %vm1563 = vcmp.ge.f32.partialorder %v1499, 0.0
        %vm1564 = vcmp.ge.f32.partialorder %v1500, 0.0
        %vm1565 = vcmp.ge.f32.partialorder %v1501, 0.0
        %vm1566 = vcmp.ge.f32.partialorder %v1502, 0.0
        %vm1567 = vcmp.ge.f32.partialorder %v1503, 0.0
        %vm1568 = vcmp.ge.f32.partialorder %v1504, 0.0
        %vm1569 = vcmp.ge.f32.partialorder %v1505, 0.0
        %vm1570 = vcmp.ge.f32.partialorder %v1506, 0.0
        %vm1571 = vcmp.ge.f32.partialorder %v1507, 0.0
        %vm1572 = vcmp.ge.f32.partialorder %v1508, 0.0
        %vm1573 = vcmp.ge.f32.partialorder %v1509, 0.0
        %vm1574 = vcmp.ge.f32.partialorder %v1510, 0.0
        %vm1575 = vcmp.ge.f32.partialorder %v1511, 0.0
        %vm1576 = vcmp.ge.f32.partialorder %v1512, 0.0
        %vm1577 = vcmp.ge.f32.partialorder %v1513, 0.0
        %vm1578 = vcmp.ge.f32.partialorder %v1514, 0.0
        %vm1579 = vcmp.ge.f32.partialorder %v1515, 0.0
        %vm1580 = vcmp.ge.f32.partialorder %v1516, 0.0
        %vm1581 = vcmp.ge.f32.partialorder %v1517, 0.0
        %vm1582 = vcmp.ge.f32.partialorder %v1518, 0.0
        %vm1583 = vcmp.ge.f32.partialorder %v1519, 0.0
        %vm1584 = vcmp.ge.f32.partialorder %v1520, 0.0
        %vm1585 = vcmp.ge.f32.partialorder %v1521, 0.0
        %vm1586 = vcmp.ge.f32.partialorder %v1522, 0.0
        %vm1587 = vcmp.ge.f32.partialorder %v1523, 0.0
        %vm1588 = vcmp.ge.f32.partialorder %v1524, 0.0
        %vm1589 = vcmp.ge.f32.partialorder %v1525, 0.0
        %vm1590 = vcmp.ge.f32.partialorder %v1526, 0.0
        %vm1591 = vcmp.ge.f32.partialorder %v1527, 0.0
        %vm1592 = vcmp.ge.f32.partialorder %v1528, 0.0
        %vm1593 = vcmp.ge.f32.partialorder %v1529, 0.0
        %vm1594 = vcmp.ge.f32.partialorder %v1530, 0.0
        %vm1595 = vcmp.ge.f32.partialorder %v1531, 0.0
        %vm1596 = vcmp.ge.f32.partialorder %v1532, 0.0
        %vm1597 = vcmp.ge.f32.partialorder %v1533, 0.0
        %vm1598 = vcmp.ge.f32.partialorder %v1534, 0.0
        %vm1599 = vcmp.ge.f32.partialorder %v1535, 0.0
        %vm1600 = vcmp.ge.f32.partialorder %v1536, 0.0
        %vm1601 = vcmp.ge.f32.partialorder %v1537, 0.0
        %vm1602 = vcmp.ge.f32.partialorder %v1538, 0.0
        %vm1603 = vcmp.ge.f32.partialorder %v1539, 0.0
        %vm1604 = vcmp.ge.f32.partialorder %v1540, 0.0
        %v1605 = vmul.f32 %v1477, 0.1
        %v1606 = vmul.f32 %v1478, 0.1
        %v1607 = vmul.f32 %v1479, 0.1
        %v1608 = vmul.f32 %v1480, 0.1
        %v1609 = vmul.f32 %v1481, 0.1
        %v1610 = vmul.f32 %v1482, 0.1
        %v1611 = vmul.f32 %v1483, 0.1
        %v1612 = vmul.f32 %v1484, 0.1
        %v1613 = vmul.f32 %v1485, 0.1
        %v1614 = vmul.f32 %v1486, 0.1
        %v1615 = vmul.f32 %v1487, 0.1
        %v1616 = vmul.f32 %v1488, 0.1
        %v1617 = vmul.f32 %v1489, 0.1
        %v1618 = vmul.f32 %v1490, 0.1
        %v1619 = vmul.f32 %v1491, 0.1
        %v1620 = vmul.f32 %v1492, 0.1
        %v1621 = vmul.f32 %v1493, 0.1
        %v1622 = vmul.f32 %v1494, 0.1
        %v1623 = vmul.f32 %v1495, 0.1
        %v1624 = vmul.f32 %v1496, 0.1
        %v1625 = vmul.f32 %v1497, 0.1
        %v1626 = vmul.f32 %v1498, 0.1
        %v1627 = vmul.f32 %v1499, 0.1
        %v1628 = vmul.f32 %v1500, 0.1
        %v1629 = vmul.f32 %v1501, 0.1
        %v1630 = vmul.f32 %v1502, 0.1
        %v1631 = vmul.f32 %v1503, 0.1
        %v1632 = vmul.f32 %v1504, 0.1
        %v1633 = vmul.f32 %v1505, 0.1
        %v1634 = vmul.f32 %v1506, 0.1
        %v1635 = vmul.f32 %v1507, 0.1
        %v1636 = vmul.f32 %v1508, 0.1
        %v1637 = vmul.f32 %v1509, 0.1
        %v1638 = vmul.f32 %v1510, 0.1
        %v1639 = vmul.f32 %v1511, 0.1
        %v1640 = vmul.f32 %v1512, 0.1
        %v1641 = vmul.f32 %v1513, 0.1
        %v1642 = vmul.f32 %v1514, 0.1
        %v1643 = vmul.f32 %v1515, 0.1
        %v1644 = vmul.f32 %v1516, 0.1
        %v1645 = vmul.f32 %v1517, 0.1
        %v1646 = vmul.f32 %v1518, 0.1
        %v1647 = vmul.f32 %v1519, 0.1
        %v1648 = vmul.f32 %v1520, 0.1
        %v1649 = vmul.f32 %v1521, 0.1
        %v1650 = vmul.f32 %v1522, 0.1
        %v1651 = vmul.f32 %v1523, 0.1
        %v1652 = vmul.f32 %v1524, 0.1
        %v1653 = vmul.f32 %v1525, 0.1
        %v1654 = vmul.f32 %v1526, 0.1
        %v1655 = vmul.f32 %v1527, 0.1
        %v1656 = vmul.f32 %v1528, 0.1
        %v1657 = vmul.f32 %v1529, 0.1
        %v1658 = vmul.f32 %v1530, 0.1
        %v1659 = vmul.f32 %v1531, 0.1
        %v1660 = vmul.f32 %v1532, 0.1
        %v1661 = vmul.f32 %v1533, 0.1
        %v1662 = vmul.f32 %v1534, 0.1
        %v1663 = vmul.f32 %v1535, 0.1
        %v1664 = vmul.f32 %v1536, 0.1
        %v1665 = vmul.f32 %v1537, 0.1
        %v1666 = vmul.f32 %v1538, 0.1
        %v1667 = vmul.f32 %v1539, 0.1
        %v1668 = vmul.f32 %v1540, 0.1
        %v1669 = vsel %vm1541, %v1477, %v1605
        %v1670 = vsel %vm1542, %v1478, %v1606
        %v1671 = vsel %vm1543, %v1479, %v1607
        %v1672 = vsel %vm1544, %v1480, %v1608
        %v1673 = vsel %vm1545, %v1481, %v1609
        %v1674 = vsel %vm1546, %v1482, %v1610
        %v1675 = vsel %vm1547, %v1483, %v1611
        %v1676 = vsel %vm1548, %v1484, %v1612
        %v1677 = vsel %vm1549, %v1485, %v1613
        %v1678 = vsel %vm1550, %v1486, %v1614
        %v1679 = vsel %vm1551, %v1487, %v1615
        %v1680 = vsel %vm1552, %v1488, %v1616
        %v1681 = vsel %vm1553, %v1489, %v1617
        %v1682 = vsel %vm1554, %v1490, %v1618
        %v1683 = vsel %vm1555, %v1491, %v1619
        %v1684 = vsel %vm1556, %v1492, %v1620
        %v1685 = vsel %vm1557, %v1493, %v1621
        %v1686 = vsel %vm1558, %v1494, %v1622
        %v1687 = vsel %vm1559, %v1495, %v1623
        %v1688 = vsel %vm1560, %v1496, %v1624
        %v1689 = vsel %vm1561, %v1497, %v1625
        %v1690 = vsel %vm1562, %v1498, %v1626
        %v1691 = vsel %vm1563, %v1499, %v1627
        %v1692 = vsel %vm1564, %v1500, %v1628
        %v1693 = vsel %vm1565, %v1501, %v1629
        %v1694 = vsel %vm1566, %v1502, %v1630
        %v1695 = vsel %vm1567, %v1503, %v1631
        %v1696 = vsel %vm1568, %v1504, %v1632
        %v1697 = vsel %vm1569, %v1505, %v1633
        %v1698 = vsel %vm1570, %v1506, %v1634
        %v1699 = vsel %vm1571, %v1507, %v1635
        %v1700 = vsel %vm1572, %v1508, %v1636
        %v1701 = vsel %vm1573, %v1509, %v1637
        %v1702 = vsel %vm1574, %v1510, %v1638
        %v1703 = vsel %vm1575, %v1511, %v1639
        %v1704 = vsel %vm1576, %v1512, %v1640
        %v1705 = vsel %vm1577, %v1513, %v1641
        %v1706 = vsel %vm1578, %v1514, %v1642
        %v1707 = vsel %vm1579, %v1515, %v1643
        %v1708 = vsel %vm1580, %v1516, %v1644
        %v1709 = vsel %vm1581, %v1517, %v1645
        %v1710 = vsel %vm1582, %v1518, %v1646
        %v1711 = vsel %vm1583, %v1519, %v1647
        %v1712 = vsel %vm1584, %v1520, %v1648
        %v1713 = vsel %vm1585, %v1521, %v1649
        %v1714 = vsel %vm1586, %v1522, %v1650
        %v1715 = vsel %vm1587, %v1523, %v1651
        %v1716 = vsel %vm1588, %v1524, %v1652
        %v1717 = vsel %vm1589, %v1525, %v1653
        %v1718 = vsel %vm1590, %v1526, %v1654
        %v1719 = vsel %vm1591, %v1527, %v1655
        %v1720 = vsel %vm1592, %v1528, %v1656
        %v1721 = vsel %vm1593, %v1529, %v1657
        %v1722 = vsel %vm1594, %v1530, %v1658
        %v1723 = vsel %vm1595, %v1531, %v1659
        %v1724 = vsel %vm1596, %v1532, %v1660
        %v1725 = vsel %vm1597, %v1533, %v1661
        %v1726 = vsel %vm1598, %v1534, %v1662
        %v1727 = vsel %vm1599, %v1535, %v1663
        %v1728 = vsel %vm1600, %v1536, %v1664
        %v1729 = vsel %vm1601, %v1537, %v1665
        %v1730 = vsel %vm1602, %v1538, %v1666
        %v1731 = vsel %vm1603, %v1539, %v1667
        %v1732 = vsel %vm1604, %v1540, %v1668
        %v1733 = vpack.c.bf16 %v1670, %v1669
        %v1734 = vpack.c.bf16 %v1672, %v1671
        %v1735 = vpack.c.bf16 %v1674, %v1673
        %v1736 = vpack.c.bf16 %v1676, %v1675
        %v1737 = vpack.c.bf16 %v1678, %v1677
        %v1738 = vpack.c.bf16 %v1680, %v1679
        %v1739 = vpack.c.bf16 %v1682, %v1681
        %v1740 = vpack.c.bf16 %v1684, %v1683
        %v1741 = vpack.c.bf16 %v1686, %v1685
        %v1742 = vpack.c.bf16 %v1688, %v1687
        %v1743 = vpack.c.bf16 %v1690, %v1689
        %v1744 = vpack.c.bf16 %v1692, %v1691
        %v1745 = vpack.c.bf16 %v1694, %v1693
        %v1746 = vpack.c.bf16 %v1696, %v1695
        %v1747 = vpack.c.bf16 %v1698, %v1697
        %v1748 = vpack.c.bf16 %v1700, %v1699
        %v1749 = vpack.c.bf16 %v1702, %v1701
        %v1750 = vpack.c.bf16 %v1704, %v1703
        %v1751 = vpack.c.bf16 %v1706, %v1705
        %v1752 = vpack.c.bf16 %v1708, %v1707
        %v1753 = vpack.c.bf16 %v1710, %v1709
        %v1754 = vpack.c.bf16 %v1712, %v1711
        %v1755 = vpack.c.bf16 %v1714, %v1713
        %v1756 = vpack.c.bf16 %v1716, %v1715
        %v1757 = vpack.c.bf16 %v1718, %v1717
        %v1758 = vpack.c.bf16 %v1720, %v1719
        %v1759 = vpack.c.bf16 %v1722, %v1721
        %v1760 = vpack.c.bf16 %v1724, %v1723
        %v1761 = vpack.c.bf16 %v1726, %v1725
        %v1762 = vpack.c.bf16 %v1728, %v1727
        %v1763 = vpack.c.bf16 %v1730, %v1729
        %v1764 = vpack.c.bf16 %v1732, %v1731
        // Predicated region
        $region53: #{deep_image_forward.2} parent=51 // pred_check
          %p1765 = pneg %p897
        $region54: #{deep_image_forward.2} parent=51 // pred_check_branch
          %1767 = sbr.rel (%p1765) target = $region56
        $region55: #{deep_image_forward.2} parent=51 // pred_region
          %v1800 = vunpack.c.l.b16 %v1733
          %v1801 = vunpack.c.h.b16 %v1733
          %v1802 = vunpack.c.l.b16 %v1734
          %v1803 = vunpack.c.h.b16 %v1734
          %v1804 = vunpack.c.l.b16 %v1735
          %v1805 = vunpack.c.h.b16 %v1735
          %v1806 = vunpack.c.l.b16 %v1736
          %v1807 = vunpack.c.h.b16 %v1736
          %v1808 = vunpack.c.l.b16 %v1737
          %v1809 = vunpack.c.h.b16 %v1737
          %v1810 = vunpack.c.l.b16 %v1738
          %v1811 = vunpack.c.h.b16 %v1738
          %v1812 = vunpack.c.l.b16 %v1739
          %v1813 = vunpack.c.h.b16 %v1739
          %v1814 = vunpack.c.l.b16 %v1740
          %v1815 = vunpack.c.h.b16 %v1740
          %v1816 = vunpack.c.l.b16 %v1741
          %v1817 = vunpack.c.h.b16 %v1741
          %v1818 = vunpack.c.l.b16 %v1742
          %v1819 = vunpack.c.h.b16 %v1742
          %v1820 = vunpack.c.l.b16 %v1743
          %v1821 = vunpack.c.h.b16 %v1743
          %v1822 = vunpack.c.l.b16 %v1744
          %v1823 = vunpack.c.h.b16 %v1744
          %v1824 = vunpack.c.l.b16 %v1745
          %v1825 = vunpack.c.h.b16 %v1745
          %v1826 = vunpack.c.l.b16 %v1746
          %v1827 = vunpack.c.h.b16 %v1746
          %v1828 = vunpack.c.l.b16 %v1747
          %v1829 = vunpack.c.h.b16 %v1747
          %v1830 = vunpack.c.l.b16 %v1748
          %v1831 = vunpack.c.h.b16 %v1748
          %v1832 = vunpack.c.l.b16 %v1749
          %v1833 = vunpack.c.h.b16 %v1749
          %v1834 = vunpack.c.l.b16 %v1750
          %v1835 = vunpack.c.h.b16 %v1750
          %v1836 = vunpack.c.l.b16 %v1751
          %v1837 = vunpack.c.h.b16 %v1751
          %v1838 = vunpack.c.l.b16 %v1752
          %v1839 = vunpack.c.h.b16 %v1752
          %v1840 = vunpack.c.l.b16 %v1753
          %v1841 = vunpack.c.h.b16 %v1753
          %v1842 = vunpack.c.l.b16 %v1754
          %v1843 = vunpack.c.h.b16 %v1754
          %v1844 = vunpack.c.l.b16 %v1755
          %v1845 = vunpack.c.h.b16 %v1755
          %v1846 = vunpack.c.l.b16 %v1756
          %v1847 = vunpack.c.h.b16 %v1756
          %v1848 = vunpack.c.l.b16 %v1757
          %v1849 = vunpack.c.h.b16 %v1757
          %v1850 = vunpack.c.l.b16 %v1758
          %v1851 = vunpack.c.h.b16 %v1758
          %v1852 = vunpack.c.l.b16 %v1759
          %v1853 = vunpack.c.h.b16 %v1759
          %v1854 = vunpack.c.l.b16 %v1760
          %v1855 = vunpack.c.h.b16 %v1760
          %v1856 = vunpack.c.l.b16 %v1761
          %v1857 = vunpack.c.h.b16 %v1761
          %v1858 = vunpack.c.l.b16 %v1762
          %v1859 = vunpack.c.h.b16 %v1762
          %v1860 = vunpack.c.l.b16 %v1763
          %v1861 = vunpack.c.h.b16 %v1763
          %v1862 = vunpack.c.l.b16 %v1764
          %v1863 = vunpack.c.h.b16 %v1764
          %v1864 = vpack.c.b16 %v1800, %v1800
          %v1865 = vpack.c.b16 %v1801, %v1801
          %v1866 = vpack.c.b16 %v1802, %v1802
          %v1867 = vpack.c.b16 %v1803, %v1803
          %v1868 = vpack.c.b16 %v1804, %v1804
          %v1869 = vpack.c.b16 %v1805, %v1805
          %v1870 = vpack.c.b16 %v1806, %v1806
          %v1871 = vpack.c.b16 %v1807, %v1807
          %v1872 = vpack.c.b16 %v1808, %v1808
          %v1873 = vpack.c.b16 %v1809, %v1809
          %v1874 = vpack.c.b16 %v1810, %v1810
          %v1875 = vpack.c.b16 %v1811, %v1811
          %v1876 = vpack.c.b16 %v1812, %v1812
          %v1877 = vpack.c.b16 %v1813, %v1813
          %v1878 = vpack.c.b16 %v1814, %v1814
          %v1879 = vpack.c.b16 %v1815, %v1815
          %v1880 = vpack.c.b16 %v1816, %v1816
          %v1881 = vpack.c.b16 %v1817, %v1817
          %v1882 = vpack.c.b16 %v1818, %v1818
          %v1883 = vpack.c.b16 %v1819, %v1819
          %v1884 = vpack.c.b16 %v1820, %v1820
          %v1885 = vpack.c.b16 %v1821, %v1821
          %v1886 = vpack.c.b16 %v1822, %v1822
          %v1887 = vpack.c.b16 %v1823, %v1823
          %v1888 = vpack.c.b16 %v1824, %v1824
          %v1889 = vpack.c.b16 %v1825, %v1825
          %v1890 = vpack.c.b16 %v1826, %v1826
          %v1891 = vpack.c.b16 %v1827, %v1827
          %v1892 = vpack.c.b16 %v1828, %v1828
          %v1893 = vpack.c.b16 %v1829, %v1829
          %v1894 = vpack.c.b16 %v1830, %v1830
          %v1895 = vpack.c.b16 %v1831, %v1831
          %v1896 = vpack.c.b16 %v1832, %v1832
          %v1897 = vpack.c.b16 %v1833, %v1833
          %v1898 = vpack.c.b16 %v1834, %v1834
          %v1899 = vpack.c.b16 %v1835, %v1835
          %v1900 = vpack.c.b16 %v1836, %v1836
          %v1901 = vpack.c.b16 %v1837, %v1837
          %v1902 = vpack.c.b16 %v1838, %v1838
          %v1903 = vpack.c.b16 %v1839, %v1839
          %v1904 = vpack.c.b16 %v1840, %v1840
          %v1905 = vpack.c.b16 %v1841, %v1841
          %v1906 = vpack.c.b16 %v1842, %v1842
          %v1907 = vpack.c.b16 %v1843, %v1843
          %v1908 = vpack.c.b16 %v1844, %v1844
          %v1909 = vpack.c.b16 %v1845, %v1845
          %v1910 = vpack.c.b16 %v1846, %v1846
          %v1911 = vpack.c.b16 %v1847, %v1847
          %v1912 = vpack.c.b16 %v1848, %v1848
          %v1913 = vpack.c.b16 %v1849, %v1849
          %v1914 = vpack.c.b16 %v1850, %v1850
          %v1915 = vpack.c.b16 %v1851, %v1851
          %v1916 = vpack.c.b16 %v1852, %v1852
          %v1917 = vpack.c.b16 %v1853, %v1853
          %v1918 = vpack.c.b16 %v1854, %v1854
          %v1919 = vpack.c.b16 %v1855, %v1855
          %v1920 = vpack.c.b16 %v1856, %v1856
          %v1921 = vpack.c.b16 %v1857, %v1857
          %v1922 = vpack.c.b16 %v1858, %v1858
          %v1923 = vpack.c.b16 %v1859, %v1859
          %v1924 = vpack.c.b16 %v1860, %v1860
          %v1925 = vpack.c.b16 %v1861, %v1861
          %v1926 = vpack.c.b16 %v1862, %v1862
          %v1927 = vpack.c.b16 %v1863, %v1863
          %vm1992 = vcmask 519168
          %1993 = vst.msk [vmem:[%s256] sm:$0xf] %vm1992, %v1864
          %1994 = vst.msk [vmem:[%s256 + $0x4] sm:$0xf] %vm1992, %v1865
          %1995 = vst.msk [vmem:[%s256 + $0x8] sm:$0xf] %vm1992, %v1866
          %1996 = vst.msk [vmem:[%s256 + $0xc] sm:$0xf] %vm1992, %v1867
          %1997 = vst.msk [vmem:[%s256 + $0x10] sm:$0xf] %vm1992, %v1868
          %1998 = vst.msk [vmem:[%s256 + $0x14] sm:$0xf] %vm1992, %v1869
          %1999 = vst.msk [vmem:[%s256 + $0x18] sm:$0xf] %vm1992, %v1870
          %2000 = vst.msk [vmem:[%s256 + $0x1c] sm:$0xf] %vm1992, %v1871
          %2001 = vst.msk [vmem:[%s256 + $0x20] sm:$0xf] %vm1992, %v1872
          %2002 = vst.msk [vmem:[%s256 + $0x24] sm:$0xf] %vm1992, %v1873
          %2003 = vst.msk [vmem:[%s256 + $0x28] sm:$0xf] %vm1992, %v1874
          %2004 = vst.msk [vmem:[%s256 + $0x2c] sm:$0xf] %vm1992, %v1875
          %2005 = vst.msk [vmem:[%s256 + $0x30] sm:$0xf] %vm1992, %v1876
          %2006 = vst.msk [vmem:[%s256 + $0x34] sm:$0xf] %vm1992, %v1877
          %2007 = vst.msk [vmem:[%s256 + $0x38] sm:$0xf] %vm1992, %v1878
          %2008 = vst.msk [vmem:[%s256 + $0x3c] sm:$0xf] %vm1992, %v1879
          %2009 = vst.msk [vmem:[%s256 + $0x40] sm:$0xf] %vm1992, %v1880
          %2010 = vst.msk [vmem:[%s256 + $0x44] sm:$0xf] %vm1992, %v1881
          %2011 = vst.msk [vmem:[%s256 + $0x48] sm:$0xf] %vm1992, %v1882
          %2012 = vst.msk [vmem:[%s256 + $0x4c] sm:$0xf] %vm1992, %v1883
          %2013 = vst.msk [vmem:[%s256 + $0x50] sm:$0xf] %vm1992, %v1884
          %2014 = vst.msk [vmem:[%s256 + $0x54] sm:$0xf] %vm1992, %v1885
          %2015 = vst.msk [vmem:[%s256 + $0x58] sm:$0xf] %vm1992, %v1886
          %2016 = vst.msk [vmem:[%s256 + $0x5c] sm:$0xf] %vm1992, %v1887
          %2017 = vst.msk [vmem:[%s256 + $0x60] sm:$0xf] %vm1992, %v1888
          %2018 = vst.msk [vmem:[%s256 + $0x64] sm:$0xf] %vm1992, %v1889
          %2019 = vst.msk [vmem:[%s256 + $0x68] sm:$0xf] %vm1992, %v1890
          %2020 = vst.msk [vmem:[%s256 + $0x6c] sm:$0xf] %vm1992, %v1891
          %2021 = vst.msk [vmem:[%s256 + $0x70] sm:$0xf] %vm1992, %v1892
          %2022 = vst.msk [vmem:[%s256 + $0x74] sm:$0xf] %vm1992, %v1893
          %2023 = vst.msk [vmem:[%s256 + $0x78] sm:$0xf] %vm1992, %v1894
          %2024 = vst.msk [vmem:[%s256 + $0x7c] sm:$0xf] %vm1992, %v1895
          %2025 = vst.msk [vmem:[%s256 + $0x80] sm:$0xf] %vm1992, %v1896
          %2026 = vst.msk [vmem:[%s256 + $0x84] sm:$0xf] %vm1992, %v1897
          %2027 = vst.msk [vmem:[%s256 + $0x88] sm:$0xf] %vm1992, %v1898
          %2028 = vst.msk [vmem:[%s256 + $0x8c] sm:$0xf] %vm1992, %v1899
          %2029 = vst.msk [vmem:[%s256 + $0x90] sm:$0xf] %vm1992, %v1900
          %2030 = vst.msk [vmem:[%s256 + $0x94] sm:$0xf] %vm1992, %v1901
          %2031 = vst.msk [vmem:[%s256 + $0x98] sm:$0xf] %vm1992, %v1902
          %2032 = vst.msk [vmem:[%s256 + $0x9c] sm:$0xf] %vm1992, %v1903
          %2033 = vst.msk [vmem:[%s256 + $0xa0] sm:$0xf] %vm1992, %v1904
          %2034 = vst.msk [vmem:[%s256 + $0xa4] sm:$0xf] %vm1992, %v1905
          %2035 = vst.msk [vmem:[%s256 + $0xa8] sm:$0xf] %vm1992, %v1906
          %2036 = vst.msk [vmem:[%s256 + $0xac] sm:$0xf] %vm1992, %v1907
          %2037 = vst.msk [vmem:[%s256 + $0xb0] sm:$0xf] %vm1992, %v1908
          %2038 = vst.msk [vmem:[%s256 + $0xb4] sm:$0xf] %vm1992, %v1909
          %2039 = vst.msk [vmem:[%s256 + $0xb8] sm:$0xf] %vm1992, %v1910
          %2040 = vst.msk [vmem:[%s256 + $0xbc] sm:$0xf] %vm1992, %v1911
          %2041 = vst.msk [vmem:[%s256 + $0xc0] sm:$0xf] %vm1992, %v1912
          %2042 = vst.msk [vmem:[%s256 + $0xc4] sm:$0xf] %vm1992, %v1913
          %2043 = vst.msk [vmem:[%s256 + $0xc8] sm:$0xf] %vm1992, %v1914
          %2044 = vst.msk [vmem:[%s256 + $0xcc] sm:$0xf] %vm1992, %v1915
          %2045 = vst.msk [vmem:[%s256 + $0xd0] sm:$0xf] %vm1992, %v1916
          %2046 = vst.msk [vmem:[%s256 + $0xd4] sm:$0xf] %vm1992, %v1917
          %2047 = vst.msk [vmem:[%s256 + $0xd8] sm:$0xf] %vm1992, %v1918
          %2048 = vst.msk [vmem:[%s256 + $0xdc] sm:$0xf] %vm1992, %v1919
          %2049 = vst.msk [vmem:[%s256 + $0xe0] sm:$0xf] %vm1992, %v1920
          %2050 = vst.msk [vmem:[%s256 + $0xe4] sm:$0xf] %vm1992, %v1921
          %2051 = vst.msk [vmem:[%s256 + $0xe8] sm:$0xf] %vm1992, %v1922
          %2052 = vst.msk [vmem:[%s256 + $0xec] sm:$0xf] %vm1992, %v1923
          %2053 = vst.msk [vmem:[%s256 + $0xf0] sm:$0xf] %vm1992, %v1924
          %2054 = vst.msk [vmem:[%s256 + $0xf4] sm:$0xf] %vm1992, %v1925
          %2055 = vst.msk [vmem:[%s256 + $0xf8] sm:$0xf] %vm1992, %v1926
          %2056 = vst.msk [vmem:[%s256 + $0xfc] sm:$0xf] %vm1992, %v1927
        $region56: #{deep_image_forward.2} parent=51 // pred_fallthru
          _
        %p2057 = scmp.gt.s32.totalorder %s23, 0
        // Predicated region
        $region57: #{deep_image_forward.2} parent=51 // pred_check
          %p2058 = pneg %p2057
        $region58: #{deep_image_forward.2} parent=51 // pred_check_branch
          %2060 = sbr.rel (%p2058) target = $region60
        $region59: #{deep_image_forward.2} parent=51 // pred_region
          %v2061 = vld [vmem:[%s256] sm:$0xf]
          %v2062 = vld [vmem:[%s256 + $0x4] sm:$0xf]
          %v2063 = vld [vmem:[%s256 + $0x8] sm:$0xf]
          %v2064 = vld [vmem:[%s256 + $0xc] sm:$0xf]
          %v2065 = vld [vmem:[%s256 + $0x10] sm:$0xf]
          %v2066 = vld [vmem:[%s256 + $0x14] sm:$0xf]
          %v2067 = vld [vmem:[%s256 + $0x18] sm:$0xf]
          %v2068 = vld [vmem:[%s256 + $0x1c] sm:$0xf]
          %v2069 = vld [vmem:[%s256 + $0x20] sm:$0xf]
          %v2070 = vld [vmem:[%s256 + $0x24] sm:$0xf]
          %v2071 = vld [vmem:[%s256 + $0x28] sm:$0xf]
          %v2072 = vld [vmem:[%s256 + $0x2c] sm:$0xf]
          %v2073 = vld [vmem:[%s256 + $0x30] sm:$0xf]
          %v2074 = vld [vmem:[%s256 + $0x34] sm:$0xf]
          %v2075 = vld [vmem:[%s256 + $0x38] sm:$0xf]
          %v2076 = vld [vmem:[%s256 + $0x3c] sm:$0xf]
          %v2077 = vld [vmem:[%s256 + $0x40] sm:$0xf]
          %v2078 = vld [vmem:[%s256 + $0x44] sm:$0xf]
          %v2079 = vld [vmem:[%s256 + $0x48] sm:$0xf]
          %v2080 = vld [vmem:[%s256 + $0x4c] sm:$0xf]
          %v2081 = vld [vmem:[%s256 + $0x50] sm:$0xf]
          %v2082 = vld [vmem:[%s256 + $0x54] sm:$0xf]
          %v2083 = vld [vmem:[%s256 + $0x58] sm:$0xf]
          %v2084 = vld [vmem:[%s256 + $0x5c] sm:$0xf]
          %v2085 = vld [vmem:[%s256 + $0x60] sm:$0xf]
          %v2086 = vld [vmem:[%s256 + $0x64] sm:$0xf]
          %v2087 = vld [vmem:[%s256 + $0x68] sm:$0xf]
          %v2088 = vld [vmem:[%s256 + $0x6c] sm:$0xf]
          %v2089 = vld [vmem:[%s256 + $0x70] sm:$0xf]
          %v2090 = vld [vmem:[%s256 + $0x74] sm:$0xf]
          %v2091 = vld [vmem:[%s256 + $0x78] sm:$0xf]
          %v2092 = vld [vmem:[%s256 + $0x7c] sm:$0xf]
          %v2093 = vld [vmem:[%s256 + $0x80] sm:$0xf]
          %v2094 = vld [vmem:[%s256 + $0x84] sm:$0xf]
          %v2095 = vld [vmem:[%s256 + $0x88] sm:$0xf]
          %v2096 = vld [vmem:[%s256 + $0x8c] sm:$0xf]
          %v2097 = vld [vmem:[%s256 + $0x90] sm:$0xf]
          %v2098 = vld [vmem:[%s256 + $0x94] sm:$0xf]
          %v2099 = vld [vmem:[%s256 + $0x98] sm:$0xf]
          %v2100 = vld [vmem:[%s256 + $0x9c] sm:$0xf]
          %v2101 = vld [vmem:[%s256 + $0xa0] sm:$0xf]
          %v2102 = vld [vmem:[%s256 + $0xa4] sm:$0xf]
          %v2103 = vld [vmem:[%s256 + $0xa8] sm:$0xf]
          %v2104 = vld [vmem:[%s256 + $0xac] sm:$0xf]
          %v2105 = vld [vmem:[%s256 + $0xb0] sm:$0xf]
          %v2106 = vld [vmem:[%s256 + $0xb4] sm:$0xf]
          %v2107 = vld [vmem:[%s256 + $0xb8] sm:$0xf]
          %v2108 = vld [vmem:[%s256 + $0xbc] sm:$0xf]
          %v2109 = vld [vmem:[%s256 + $0xc0] sm:$0xf]
          %v2110 = vld [vmem:[%s256 + $0xc4] sm:$0xf]
          %v2111 = vld [vmem:[%s256 + $0xc8] sm:$0xf]
          %v2112 = vld [vmem:[%s256 + $0xcc] sm:$0xf]
          %v2113 = vld [vmem:[%s256 + $0xd0] sm:$0xf]
          %v2114 = vld [vmem:[%s256 + $0xd4] sm:$0xf]
          %v2115 = vld [vmem:[%s256 + $0xd8] sm:$0xf]
          %v2116 = vld [vmem:[%s256 + $0xdc] sm:$0xf]
          %v2117 = vld [vmem:[%s256 + $0xe0] sm:$0xf]
          %v2118 = vld [vmem:[%s256 + $0xe4] sm:$0xf]
          %v2119 = vld [vmem:[%s256 + $0xe8] sm:$0xf]
          %v2120 = vld [vmem:[%s256 + $0xec] sm:$0xf]
          %v2121 = vld [vmem:[%s256 + $0xf0] sm:$0xf]
          %v2122 = vld [vmem:[%s256 + $0xf4] sm:$0xf]
          %v2123 = vld [vmem:[%s256 + $0xf8] sm:$0xf]
          %v2124 = vld [vmem:[%s256 + $0xfc] sm:$0xf]
          %v2157 = vunpack.c.l.b16 %v1733
          %v2158 = vunpack.c.h.b16 %v1733
          %v2159 = vunpack.c.l.b16 %v1734
          %v2160 = vunpack.c.h.b16 %v1734
          %v2161 = vunpack.c.l.b16 %v1735
          %v2162 = vunpack.c.h.b16 %v1735
          %v2163 = vunpack.c.l.b16 %v1736
          %v2164 = vunpack.c.h.b16 %v1736
          %v2165 = vunpack.c.l.b16 %v1737
          %v2166 = vunpack.c.h.b16 %v1737
          %v2167 = vunpack.c.l.b16 %v1738
          %v2168 = vunpack.c.h.b16 %v1738
          %v2169 = vunpack.c.l.b16 %v1739
          %v2170 = vunpack.c.h.b16 %v1739
          %v2171 = vunpack.c.l.b16 %v1740
          %v2172 = vunpack.c.h.b16 %v1740
          %v2173 = vunpack.c.l.b16 %v1741
          %v2174 = vunpack.c.h.b16 %v1741
          %v2175 = vunpack.c.l.b16 %v1742
          %v2176 = vunpack.c.h.b16 %v1742
          %v2177 = vunpack.c.l.b16 %v1743
          %v2178 = vunpack.c.h.b16 %v1743
          %v2179 = vunpack.c.l.b16 %v1744
          %v2180 = vunpack.c.h.b16 %v1744
          %v2181 = vunpack.c.l.b16 %v1745
          %v2182 = vunpack.c.h.b16 %v1745
          %v2183 = vunpack.c.l.b16 %v1746
          %v2184 = vunpack.c.h.b16 %v1746
          %v2185 = vunpack.c.l.b16 %v1747
          %v2186 = vunpack.c.h.b16 %v1747
          %v2187 = vunpack.c.l.b16 %v1748
          %v2188 = vunpack.c.h.b16 %v1748
          %v2189 = vunpack.c.l.b16 %v1749
          %v2190 = vunpack.c.h.b16 %v1749
          %v2191 = vunpack.c.l.b16 %v1750
          %v2192 = vunpack.c.h.b16 %v1750
          %v2193 = vunpack.c.l.b16 %v1751
          %v2194 = vunpack.c.h.b16 %v1751
          %v2195 = vunpack.c.l.b16 %v1752
          %v2196 = vunpack.c.h.b16 %v1752
          %v2197 = vunpack.c.l.b16 %v1753
          %v2198 = vunpack.c.h.b16 %v1753
          %v2199 = vunpack.c.l.b16 %v1754
          %v2200 = vunpack.c.h.b16 %v1754
          %v2201 = vunpack.c.l.b16 %v1755
          %v2202 = vunpack.c.h.b16 %v1755
          %v2203 = vunpack.c.l.b16 %v1756
          %v2204 = vunpack.c.h.b16 %v1756
          %v2205 = vunpack.c.l.b16 %v1757
          %v2206 = vunpack.c.h.b16 %v1757
          %v2207 = vunpack.c.l.b16 %v1758
          %v2208 = vunpack.c.h.b16 %v1758
          %v2209 = vunpack.c.l.b16 %v1759
          %v2210 = vunpack.c.h.b16 %v1759
          %v2211 = vunpack.c.l.b16 %v1760
          %v2212 = vunpack.c.h.b16 %v1760
          %v2213 = vunpack.c.l.b16 %v1761
          %v2214 = vunpack.c.h.b16 %v1761
          %v2215 = vunpack.c.l.b16 %v1762
          %v2216 = vunpack.c.h.b16 %v1762
          %v2217 = vunpack.c.l.b16 %v1763
          %v2218 = vunpack.c.h.b16 %v1763
          %v2219 = vunpack.c.l.b16 %v1764
          %v2220 = vunpack.c.h.b16 %v1764
          %v2221 = vpack.c.b16 %v2157, %v2157
          %v2222 = vpack.c.b16 %v2158, %v2158
          %v2223 = vpack.c.b16 %v2159, %v2159
          %v2224 = vpack.c.b16 %v2160, %v2160
          %v2225 = vpack.c.b16 %v2161, %v2161
          %v2226 = vpack.c.b16 %v2162, %v2162
          %v2227 = vpack.c.b16 %v2163, %v2163
          %v2228 = vpack.c.b16 %v2164, %v2164
          %v2229 = vpack.c.b16 %v2165, %v2165
          %v2230 = vpack.c.b16 %v2166, %v2166
          %v2231 = vpack.c.b16 %v2167, %v2167
          %v2232 = vpack.c.b16 %v2168, %v2168
          %v2233 = vpack.c.b16 %v2169, %v2169
          %v2234 = vpack.c.b16 %v2170, %v2170
          %v2235 = vpack.c.b16 %v2171, %v2171
          %v2236 = vpack.c.b16 %v2172, %v2172
          %v2237 = vpack.c.b16 %v2173, %v2173
          %v2238 = vpack.c.b16 %v2174, %v2174
          %v2239 = vpack.c.b16 %v2175, %v2175
          %v2240 = vpack.c.b16 %v2176, %v2176
          %v2241 = vpack.c.b16 %v2177, %v2177
          %v2242 = vpack.c.b16 %v2178, %v2178
          %v2243 = vpack.c.b16 %v2179, %v2179
          %v2244 = vpack.c.b16 %v2180, %v2180
          %v2245 = vpack.c.b16 %v2181, %v2181
          %v2246 = vpack.c.b16 %v2182, %v2182
          %v2247 = vpack.c.b16 %v2183, %v2183
          %v2248 = vpack.c.b16 %v2184, %v2184
          %v2249 = vpack.c.b16 %v2185, %v2185
          %v2250 = vpack.c.b16 %v2186, %v2186
          %v2251 = vpack.c.b16 %v2187, %v2187
          %v2252 = vpack.c.b16 %v2188, %v2188
          %v2253 = vpack.c.b16 %v2189, %v2189
          %v2254 = vpack.c.b16 %v2190, %v2190
          %v2255 = vpack.c.b16 %v2191, %v2191
          %v2256 = vpack.c.b16 %v2192, %v2192
          %v2257 = vpack.c.b16 %v2193, %v2193
          %v2258 = vpack.c.b16 %v2194, %v2194
          %v2259 = vpack.c.b16 %v2195, %v2195
          %v2260 = vpack.c.b16 %v2196, %v2196
          %v2261 = vpack.c.b16 %v2197, %v2197
          %v2262 = vpack.c.b16 %v2198, %v2198
          %v2263 = vpack.c.b16 %v2199, %v2199
          %v2264 = vpack.c.b16 %v2200, %v2200
          %v2265 = vpack.c.b16 %v2201, %v2201
          %v2266 = vpack.c.b16 %v2202, %v2202
          %v2267 = vpack.c.b16 %v2203, %v2203
          %v2268 = vpack.c.b16 %v2204, %v2204
          %v2269 = vpack.c.b16 %v2205, %v2205
          %v2270 = vpack.c.b16 %v2206, %v2206
          %v2271 = vpack.c.b16 %v2207, %v2207
          %v2272 = vpack.c.b16 %v2208, %v2208
          %v2273 = vpack.c.b16 %v2209, %v2209
          %v2274 = vpack.c.b16 %v2210, %v2210
          %v2275 = vpack.c.b16 %v2211, %v2211
          %v2276 = vpack.c.b16 %v2212, %v2212
          %v2277 = vpack.c.b16 %v2213, %v2213
          %v2278 = vpack.c.b16 %v2214, %v2214
          %v2279 = vpack.c.b16 %v2215, %v2215
          %v2280 = vpack.c.b16 %v2216, %v2216
          %v2281 = vpack.c.b16 %v2217, %v2217
          %v2282 = vpack.c.b16 %v2218, %v2218
          %v2283 = vpack.c.b16 %v2219, %v2219
          %v2284 = vpack.c.b16 %v2220, %v2220
          %v2349 = vmax.bf16 %v2061, %v2221
          %v2350 = vmax.bf16 %v2062, %v2222
          %v2351 = vmax.bf16 %v2063, %v2223
          %v2352 = vmax.bf16 %v2064, %v2224
          %v2353 = vmax.bf16 %v2065, %v2225
          %v2354 = vmax.bf16 %v2066, %v2226
          %v2355 = vmax.bf16 %v2067, %v2227
          %v2356 = vmax.bf16 %v2068, %v2228
          %v2357 = vmax.bf16 %v2069, %v2229
          %v2358 = vmax.bf16 %v2070, %v2230
          %v2359 = vmax.bf16 %v2071, %v2231
          %v2360 = vmax.bf16 %v2072, %v2232
          %v2361 = vmax.bf16 %v2073, %v2233
          %v2362 = vmax.bf16 %v2074, %v2234
          %v2363 = vmax.bf16 %v2075, %v2235
          %v2364 = vmax.bf16 %v2076, %v2236
          %v2365 = vmax.bf16 %v2077, %v2237
          %v2366 = vmax.bf16 %v2078, %v2238
          %v2367 = vmax.bf16 %v2079, %v2239
          %v2368 = vmax.bf16 %v2080, %v2240
          %v2369 = vmax.bf16 %v2081, %v2241
          %v2370 = vmax.bf16 %v2082, %v2242
          %v2371 = vmax.bf16 %v2083, %v2243
          %v2372 = vmax.bf16 %v2084, %v2244
          %v2373 = vmax.bf16 %v2085, %v2245
          %v2374 = vmax.bf16 %v2086, %v2246
          %v2375 = vmax.bf16 %v2087, %v2247
          %v2376 = vmax.bf16 %v2088, %v2248
          %v2377 = vmax.bf16 %v2089, %v2249
          %v2378 = vmax.bf16 %v2090, %v2250
          %v2379 = vmax.bf16 %v2091, %v2251
          %v2380 = vmax.bf16 %v2092, %v2252
          %v2381 = vmax.bf16 %v2093, %v2253
          %v2382 = vmax.bf16 %v2094, %v2254
          %v2383 = vmax.bf16 %v2095, %v2255
          %v2384 = vmax.bf16 %v2096, %v2256
          %v2385 = vmax.bf16 %v2097, %v2257
          %v2386 = vmax.bf16 %v2098, %v2258
          %v2387 = vmax.bf16 %v2099, %v2259
          %v2388 = vmax.bf16 %v2100, %v2260
          %v2389 = vmax.bf16 %v2101, %v2261
          %v2390 = vmax.bf16 %v2102, %v2262
          %v2391 = vmax.bf16 %v2103, %v2263
          %v2392 = vmax.bf16 %v2104, %v2264
          %v2393 = vmax.bf16 %v2105, %v2265
          %v2394 = vmax.bf16 %v2106, %v2266
          %v2395 = vmax.bf16 %v2107, %v2267
          %v2396 = vmax.bf16 %v2108, %v2268
          %v2397 = vmax.bf16 %v2109, %v2269
          %v2398 = vmax.bf16 %v2110, %v2270
          %v2399 = vmax.bf16 %v2111, %v2271
          %v2400 = vmax.bf16 %v2112, %v2272
          %v2401 = vmax.bf16 %v2113, %v2273
          %v2402 = vmax.bf16 %v2114, %v2274
          %v2403 = vmax.bf16 %v2115, %v2275
          %v2404 = vmax.bf16 %v2116, %v2276
          %v2405 = vmax.bf16 %v2117, %v2277
          %v2406 = vmax.bf16 %v2118, %v2278
          %v2407 = vmax.bf16 %v2119, %v2279
          %v2408 = vmax.bf16 %v2120, %v2280
          %v2409 = vmax.bf16 %v2121, %v2281
          %v2410 = vmax.bf16 %v2122, %v2282
          %v2411 = vmax.bf16 %v2123, %v2283
          %v2412 = vmax.bf16 %v2124, %v2284
          %vm2413 = vcmask 519168
          %2414 = vst.msk [vmem:[%s256] sm:$0xf] %vm2413, %v2349
          %2415 = vst.msk [vmem:[%s256 + $0x4] sm:$0xf] %vm2413, %v2350
          %2416 = vst.msk [vmem:[%s256 + $0x8] sm:$0xf] %vm2413, %v2351
          %2417 = vst.msk [vmem:[%s256 + $0xc] sm:$0xf] %vm2413, %v2352
          %2418 = vst.msk [vmem:[%s256 + $0x10] sm:$0xf] %vm2413, %v2353
          %2419 = vst.msk [vmem:[%s256 + $0x14] sm:$0xf] %vm2413, %v2354
          %2420 = vst.msk [vmem:[%s256 + $0x18] sm:$0xf] %vm2413, %v2355
          %2421 = vst.msk [vmem:[%s256 + $0x1c] sm:$0xf] %vm2413, %v2356
          %2422 = vst.msk [vmem:[%s256 + $0x20] sm:$0xf] %vm2413, %v2357
          %2423 = vst.msk [vmem:[%s256 + $0x24] sm:$0xf] %vm2413, %v2358
          %2424 = vst.msk [vmem:[%s256 + $0x28] sm:$0xf] %vm2413, %v2359
          %2425 = vst.msk [vmem:[%s256 + $0x2c] sm:$0xf] %vm2413, %v2360
          %2426 = vst.msk [vmem:[%s256 + $0x30] sm:$0xf] %vm2413, %v2361
          %2427 = vst.msk [vmem:[%s256 + $0x34] sm:$0xf] %vm2413, %v2362
          %2428 = vst.msk [vmem:[%s256 + $0x38] sm:$0xf] %vm2413, %v2363
          %2429 = vst.msk [vmem:[%s256 + $0x3c] sm:$0xf] %vm2413, %v2364
          %2430 = vst.msk [vmem:[%s256 + $0x40] sm:$0xf] %vm2413, %v2365
          %2431 = vst.msk [vmem:[%s256 + $0x44] sm:$0xf] %vm2413, %v2366
          %2432 = vst.msk [vmem:[%s256 + $0x48] sm:$0xf] %vm2413, %v2367
          %2433 = vst.msk [vmem:[%s256 + $0x4c] sm:$0xf] %vm2413, %v2368
          %2434 = vst.msk [vmem:[%s256 + $0x50] sm:$0xf] %vm2413, %v2369
          %2435 = vst.msk [vmem:[%s256 + $0x54] sm:$0xf] %vm2413, %v2370
          %2436 = vst.msk [vmem:[%s256 + $0x58] sm:$0xf] %vm2413, %v2371
          %2437 = vst.msk [vmem:[%s256 + $0x5c] sm:$0xf] %vm2413, %v2372
          %2438 = vst.msk [vmem:[%s256 + $0x60] sm:$0xf] %vm2413, %v2373
          %2439 = vst.msk [vmem:[%s256 + $0x64] sm:$0xf] %vm2413, %v2374
          %2440 = vst.msk [vmem:[%s256 + $0x68] sm:$0xf] %vm2413, %v2375
          %2441 = vst.msk [vmem:[%s256 + $0x6c] sm:$0xf] %vm2413, %v2376
          %2442 = vst.msk [vmem:[%s256 + $0x70] sm:$0xf] %vm2413, %v2377
          %2443 = vst.msk [vmem:[%s256 + $0x74] sm:$0xf] %vm2413, %v2378
          %2444 = vst.msk [vmem:[%s256 + $0x78] sm:$0xf] %vm2413, %v2379
          %2445 = vst.msk [vmem:[%s256 + $0x7c] sm:$0xf] %vm2413, %v2380
          %2446 = vst.msk [vmem:[%s256 + $0x80] sm:$0xf] %vm2413, %v2381
          %2447 = vst.msk [vmem:[%s256 + $0x84] sm:$0xf] %vm2413, %v2382
          %2448 = vst.msk [vmem:[%s256 + $0x88] sm:$0xf] %vm2413, %v2383
          %2449 = vst.msk [vmem:[%s256 + $0x8c] sm:$0xf] %vm2413, %v2384
          %2450 = vst.msk [vmem:[%s256 + $0x90] sm:$0xf] %vm2413, %v2385
          %2451 = vst.msk [vmem:[%s256 + $0x94] sm:$0xf] %vm2413, %v2386
          %2452 = vst.msk [vmem:[%s256 + $0x98] sm:$0xf] %vm2413, %v2387
          %2453 = vst.msk [vmem:[%s256 + $0x9c] sm:$0xf] %vm2413, %v2388
          %2454 = vst.msk [vmem:[%s256 + $0xa0] sm:$0xf] %vm2413, %v2389
          %2455 = vst.msk [vmem:[%s256 + $0xa4] sm:$0xf] %vm2413, %v2390
          %2456 = vst.msk [vmem:[%s256 + $0xa8] sm:$0xf] %vm2413, %v2391
          %2457 = vst.msk [vmem:[%s256 + $0xac] sm:$0xf] %vm2413, %v2392
          %2458 = vst.msk [vmem:[%s256 + $0xb0] sm:$0xf] %vm2413, %v2393
          %2459 = vst.msk [vmem:[%s256 + $0xb4] sm:$0xf] %vm2413, %v2394
          %2460 = vst.msk [vmem:[%s256 + $0xb8] sm:$0xf] %vm2413, %v2395
          %2461 = vst.msk [vmem:[%s256 + $0xbc] sm:$0xf] %vm2413, %v2396
          %2462 = vst.msk [vmem:[%s256 + $0xc0] sm:$0xf] %vm2413, %v2397
          %2463 = vst.msk [vmem:[%s256 + $0xc4] sm:$0xf] %vm2413, %v2398
          %2464 = vst.msk [vmem:[%s256 + $0xc8] sm:$0xf] %vm2413, %v2399
          %2465 = vst.msk [vmem:[%s256 + $0xcc] sm:$0xf] %vm2413, %v2400
          %2466 = vst.msk [vmem:[%s256 + $0xd0] sm:$0xf] %vm2413, %v2401
          %2467 = vst.msk [vmem:[%s256 + $0xd4] sm:$0xf] %vm2413, %v2402
          %2468 = vst.msk [vmem:[%s256 + $0xd8] sm:$0xf] %vm2413, %v2403
          %2469 = vst.msk [vmem:[%s256 + $0xdc] sm:$0xf] %vm2413, %v2404
          %2470 = vst.msk [vmem:[%s256 + $0xe0] sm:$0xf] %vm2413, %v2405
          %2471 = vst.msk [vmem:[%s256 + $0xe4] sm:$0xf] %vm2413, %v2406
          %2472 = vst.msk [vmem:[%s256 + $0xe8] sm:$0xf] %vm2413, %v2407
          %2473 = vst.msk [vmem:[%s256 + $0xec] sm:$0xf] %vm2413, %v2408
          %2474 = vst.msk [vmem:[%s256 + $0xf0] sm:$0xf] %vm2413, %v2409
          %2475 = vst.msk [vmem:[%s256 + $0xf4] sm:$0xf] %vm2413, %v2410
          %2476 = vst.msk [vmem:[%s256 + $0xf8] sm:$0xf] %vm2413, %v2411
          %2477 = vst.msk [vmem:[%s256 + $0xfc] sm:$0xf] %vm2413, %v2412
        $region60: #{deep_image_forward.2} parent=51 // pred_fallthru
          _
      $region52: #{deep_image_forward.2} parent=39 // pred_fallthru
        _
      %s2478 = smul.u32 %s22, %s21
      %s2479 = smul.u32 64, %s2478
      %p2480 = scmp.lt.s32.totalorder %s2479, 63
      %s2481 = scalar_select %p2480, %s2479, 63
      %s2482 = smul.addr %s2481, 4
      %s2483 = scalar_lea.vmem %s5, %s2482
      // Predicated region
      $region61: #{deep_image_forward.2} parent=39 // pred_check
        %p2484 = pneg %p167
      $region62: #{deep_image_forward.2} parent=39 // pred_check_branch
        %2486 = sbr.rel (%p2484) target = $region64
      $region63: #{deep_image_forward.2} parent=39 // pred_region
        %s2487 = smul.u32 %s22, %s21
        %s2488 = smul.u32 64, %s2487
      $region64: #{deep_image_forward.2} parent=39 // pred_fallthru
        _
    $region40: #{deep_image_forward.2} parent=5 // pred_fallthru
      _
    %p2489 = scmp.le.s32.totalorder 2, %s11
    // Predicated region
    $region65: #{deep_image_forward.2} parent=5 // pred_check
      %p2490 = pneg %p2489
    $region66: #{deep_image_forward.2} parent=5 // pred_check_branch
      %2492 = sbr.rel (%p2490) target = $region68
    $region67: #{deep_image_forward.2} parent=5 // pred_region
      %s2493 = ssub.s32 %s11, 2
      // Predicated region
      $region69: #{deep_image_forward.2} parent=67 // pred_check
        %p2494 = pneg %p173
      $region70: #{deep_image_forward.2} parent=67 // pred_check_branch
        %2496 = sbr.rel (%p2494) target = $region72
      $region71: #{deep_image_forward.2} parent=67 // pred_region
        %s2497 = smul.u32 %s25, %s24
        %s2498 = smul.u32 64, %s2497
        %p2499 = scmp.lt.s32.totalorder %s2498, 63
        %s2500 = scalar_select %p2499, %s2498, 63
        %s2501 = smul.addr %s2500, 4
        %s2502 = scalar_lea.vmem %s5, %s2501
      $region72: #{deep_image_forward.2} parent=67 // pred_fallthru
        _
    $region68: #{deep_image_forward.2} parent=5 // pred_fallthru
      _
  $region6: #{deep_image_forward.2} parent=0 // loop_footer
    %s15 = sadd.s32 1, %s11
  $region7: #{deep_image_forward.2} parent=0 // loop_footer_branch
    %10 = sbr.rel target = $region3
  $region8: #{deep_image_forward.2} parent=0 // loop_exit
    _

// kernel: deep_image_forward.3
$region0: #{deep_image_forward.3}
  #allocation0 [shape = 'u32[]', space=smem, size = 0x4, offset = 0x4, fixed_abs, tag = 'smem constant byte address 0x4 - core index']
  #allocation1 [shape = 'u32[144,128]{1,0:T(1,128)}', space=vmem, size = 0x12000, scoped, tag = 'internal scratch']
  %s0 = inlined_call_operand.vmem [shape: bf16[512,64], index: 0, kind: input, shape index: {}]
  %s1 = inlined_call_operand.vmem [shape: bf16[64,128], index: 1, kind: input, shape index: {}]
  %s2 = inlined_call_operand.vmem [shape: f32[1,128], index: 2, kind: input, shape index: {}]
  %s3 = inlined_call_operand.vmem [shape: f32[1,128], index: 3, kind: input, shape index: {}]
  %s4 = inlined_call_operand.vmem [shape: f32[1,128], index: 4, kind: input, shape index: {}]
  %s5 = inlined_call_operand.vmem [shape: bf16[128,256], index: 5, kind: input, shape index: {}]
  %s6 = inlined_call_operand.vmem [shape: f32[1,256], index: 6, kind: input, shape index: {}]
  %s7 = inlined_call_operand.vmem [shape: f32[1,256], index: 7, kind: input, shape index: {}]
  %s8 = inlined_call_operand.vmem [shape: f32[1,256], index: 8, kind: input, shape index: {}]
  %s9 = inlined_call_operand.vmem [shape: bf16[256,512], index: 9, kind: input, shape index: {}]
  %s10 = inlined_call_operand.vmem [shape: f32[1,512], index: 10, kind: input, shape index: {}]
  %s11 = inlined_call_operand.vmem [shape: f32[1,512], index: 11, kind: input, shape index: {}]
  %s12 = inlined_call_operand.vmem [shape: f32[1,512], index: 12, kind: input, shape index: {}]
  %s13 = inlined_call_operand.vmem [shape: bf16[512,64], index: 13, kind: input, shape index: {}]
  %s14 = inlined_call_operand.vmem [shape: f32[1,64], index: 14, kind: input, shape index: {}]
  %s15 = inlined_call_operand.vmem [shape: bf16[64,8], index: 15, kind: input, shape index: {}]
  %s16 = inlined_call_operand.vmem [shape: f32[1,8], index: 16, kind: input, shape index: {}]
  %s17 = inlined_call_operand.hbm [shape: f32[2,8], index: 17, kind: output, shape index: {}]
  %s18 = sld [smem:[#allocation0]]
  $region78: #{deep_image_forward.3} parent=0
    _
  %s20 = ssub.s32 1, %s18
  %s21 = scalar_select 0, %s20, %s18
  $region1: #{deep_image_forward.3} parent=0
    #allocation2 [shape = 'u8[1024]{0}', space=vmem, size = 0x400, scoped, tag = 'output window, operand 0, single buffered']
    #allocation3 [shape = 's32[1]{0}', space=sflag, size = 0x4, scoped, tag = 'scoped memory for deep_image_forward.3']
    %22 = vsyncpa [#allocation3], 0
    // Predicated region
    $region2: #{deep_image_forward.3} parent=1 // pred_check
      _
    $region3: #{deep_image_forward.3} parent=1 // pred_check_branch
      %24 = sbr.rel (0) target = $region5
    $region4: #{deep_image_forward.3} parent=1 // pred_region
      _
    $region5: #{deep_image_forward.3} parent=1 // pred_fallthru
      _
    // Predicated region
    $region6: #{deep_image_forward.3} parent=1 // pred_check
      _
    $region7: #{deep_image_forward.3} parent=1 // pred_check_branch
      %26 = sbr.rel (0) target = $region9
    $region8: #{deep_image_forward.3} parent=1 // pred_region
      _
    $region9: #{deep_image_forward.3} parent=1 // pred_fallthru
      _
    // Predicated region
    $region10: #{deep_image_forward.3} parent=1 // pred_check
      _
    $region11: #{deep_image_forward.3} parent=1 // pred_check_branch
      %28 = sbr.rel (0) target = $region13
    $region12: #{deep_image_forward.3} parent=1 // pred_region
      _
    $region13: #{deep_image_forward.3} parent=1 // pred_fallthru
      _
    // Predicated region
    $region14: #{deep_image_forward.3} parent=1 // pred_check
      _
    $region15: #{deep_image_forward.3} parent=1 // pred_check_branch
      %30 = sbr.rel (0) target = $region17
    $region16: #{deep_image_forward.3} parent=1 // pred_region
      _
    $region17: #{deep_image_forward.3} parent=1 // pred_fallthru
      _
    // Predicated region
    $region18: #{deep_image_forward.3} parent=1 // pred_check
      _
    $region19: #{deep_image_forward.3} parent=1 // pred_check_branch
      %32 = sbr.rel (0) target = $region21
    $region20: #{deep_image_forward.3} parent=1 // pred_region
      _
    $region21: #{deep_image_forward.3} parent=1 // pred_fallthru
      _
    // Predicated region
    $region22: #{deep_image_forward.3} parent=1 // pred_check
      _
    $region23: #{deep_image_forward.3} parent=1 // pred_check_branch
      %34 = sbr.rel (0) target = $region25
    $region24: #{deep_image_forward.3} parent=1 // pred_region
      _
    $region25: #{deep_image_forward.3} parent=1 // pred_fallthru
      _
    // Predicated region
    $region26: #{deep_image_forward.3} parent=1 // pred_check
      _
    $region27: #{deep_image_forward.3} parent=1 // pred_check_branch
      %36 = sbr.rel (0) target = $region29
    $region28: #{deep_image_forward.3} parent=1 // pred_region
      _
    $region29: #{deep_image_forward.3} parent=1 // pred_fallthru
      _
    // Predicated region
    $region30: #{deep_image_forward.3} parent=1 // pred_check
      _
    $region31: #{deep_image_forward.3} parent=1 // pred_check_branch
      %38 = sbr.rel (0) target = $region33
    $region32: #{deep_image_forward.3} parent=1 // pred_region
      _
    $region33: #{deep_image_forward.3} parent=1 // pred_fallthru
      _
    // Predicated region
    $region34: #{deep_image_forward.3} parent=1 // pred_check
      _
    $region35: #{deep_image_forward.3} parent=1 // pred_check_branch
      %40 = sbr.rel (0) target = $region37
    $region36: #{deep_image_forward.3} parent=1 // pred_region
      _
    $region37: #{deep_image_forward.3} parent=1 // pred_fallthru
      _
    // Predicated region
    $region38: #{deep_image_forward.3} parent=1 // pred_check
      _
    $region39: #{deep_image_forward.3} parent=1 // pred_check_branch
      %42 = sbr.rel (0) target = $region41
    $region40: #{deep_image_forward.3} parent=1 // pred_region
      _
    $region41: #{deep_image_forward.3} parent=1 // pred_fallthru
      _
    // Predicated region
    $region42: #{deep_image_forward.3} parent=1 // pred_check
      _
    $region43: #{deep_image_forward.3} parent=1 // pred_check_branch
      %44 = sbr.rel (0) target = $region45
    $region44: #{deep_image_forward.3} parent=1 // pred_region
      _
    $region45: #{deep_image_forward.3} parent=1 // pred_fallthru
      _
    // Predicated region
    $region46: #{deep_image_forward.3} parent=1 // pred_check
      _
    $region47: #{deep_image_forward.3} parent=1 // pred_check_branch
      %46 = sbr.rel (0) target = $region49
    $region48: #{deep_image_forward.3} parent=1 // pred_region
      _
    $region49: #{deep_image_forward.3} parent=1 // pred_fallthru
      _
    // Predicated region
    $region50: #{deep_image_forward.3} parent=1 // pred_check
      _
    $region51: #{deep_image_forward.3} parent=1 // pred_check_branch
      %48 = sbr.rel (0) target = $region53
    $region52: #{deep_image_forward.3} parent=1 // pred_region
      _
    $region53: #{deep_image_forward.3} parent=1 // pred_fallthru
      _
    // Predicated region
    $region54: #{deep_image_forward.3} parent=1 // pred_check
      _
    $region55: #{deep_image_forward.3} parent=1 // pred_check_branch
      %50 = sbr.rel (0) target = $region57
    $region56: #{deep_image_forward.3} parent=1 // pred_region
      _
    $region57: #{deep_image_forward.3} parent=1 // pred_fallthru
      _
    // Predicated region
    $region58: #{deep_image_forward.3} parent=1 // pred_check
      _
    $region59: #{deep_image_forward.3} parent=1 // pred_check_branch
      %52 = sbr.rel (0) target = $region61
    $region60: #{deep_image_forward.3} parent=1 // pred_region
      _
    $region61: #{deep_image_forward.3} parent=1 // pred_fallthru
      _
    // Predicated region
    $region62: #{deep_image_forward.3} parent=1 // pred_check
      _
    $region63: #{deep_image_forward.3} parent=1 // pred_check_branch
      %54 = sbr.rel (0) target = $region65
    $region64: #{deep_image_forward.3} parent=1 // pred_region
      _
    $region65: #{deep_image_forward.3} parent=1 // pred_fallthru
      _
    // Predicated region
    $region66: #{deep_image_forward.3} parent=1 // pred_check
      _
    $region67: #{deep_image_forward.3} parent=1 // pred_check_branch
      %56 = sbr.rel (0) target = $region69
    $region68: #{deep_image_forward.3} parent=1 // pred_region
      _
    $region69: #{deep_image_forward.3} parent=1 // pred_fallthru
      _
    %v58 = vld [vmem:[%s0] sm:$0xf]
    %v59 = vld [vmem:[%s0 + $0x4] sm:$0xf]
    %v60 = vld [vmem:[%s0 + $0x8] sm:$0xf]
    %v61 = vld [vmem:[%s0 + $0xc] sm:$0xf]
    %v62 = vld [vmem:[%s0 + $0x10] sm:$0xf]
    %v63 = vld [vmem:[%s0 + $0x14] sm:$0xf]
    %v64 = vld [vmem:[%s0 + $0x18] sm:$0xf]
    %v65 = vld [vmem:[%s0 + $0x1c] sm:$0xf]
    %v66 = vld [vmem:[%s0 + $0x20] sm:$0xf]
    %v67 = vld [vmem:[%s0 + $0x24] sm:$0xf]
    %v68 = vld [vmem:[%s0 + $0x28] sm:$0xf]
    %v69 = vld [vmem:[%s0 + $0x2c] sm:$0xf]
    %v70 = vld [vmem:[%s0 + $0x30] sm:$0xf]
    %v71 = vld [vmem:[%s0 + $0x34] sm:$0xf]
    %v72 = vld [vmem:[%s0 + $0x38] sm:$0xf]
    %v73 = vld [vmem:[%s0 + $0x3c] sm:$0xf]
    %v74 = vld [vmem:[%s0 + $0x40] sm:$0xf]
    %v75 = vld [vmem:[%s0 + $0x44] sm:$0xf]
    %v76 = vld [vmem:[%s0 + $0x48] sm:$0xf]
    %v77 = vld [vmem:[%s0 + $0x4c] sm:$0xf]
    %v78 = vld [vmem:[%s0 + $0x50] sm:$0xf]
    %v79 = vld [vmem:[%s0 + $0x54] sm:$0xf]
    %v80 = vld [vmem:[%s0 + $0x58] sm:$0xf]
    %v81 = vld [vmem:[%s0 + $0x5c] sm:$0xf]
    %v82 = vld [vmem:[%s0 + $0x60] sm:$0xf]
    %v83 = vld [vmem:[%s0 + $0x64] sm:$0xf]
    %v84 = vld [vmem:[%s0 + $0x68] sm:$0xf]
    %v85 = vld [vmem:[%s0 + $0x6c] sm:$0xf]
    %v86 = vld [vmem:[%s0 + $0x70] sm:$0xf]
    %v87 = vld [vmem:[%s0 + $0x74] sm:$0xf]
    %v88 = vld [vmem:[%s0 + $0x78] sm:$0xf]
    %v89 = vld [vmem:[%s0 + $0x7c] sm:$0xf]
    %v90 = vld [vmem:[%s0 + $0x80] sm:$0xf]
    %v91 = vld [vmem:[%s0 + $0x84] sm:$0xf]
    %v92 = vld [vmem:[%s0 + $0x88] sm:$0xf]
    %v93 = vld [vmem:[%s0 + $0x8c] sm:$0xf]
    %v94 = vld [vmem:[%s0 + $0x90] sm:$0xf]
    %v95 = vld [vmem:[%s0 + $0x94] sm:$0xf]
    %v96 = vld [vmem:[%s0 + $0x98] sm:$0xf]
    %v97 = vld [vmem:[%s0 + $0x9c] sm:$0xf]
    %v98 = vld [vmem:[%s0 + $0xa0] sm:$0xf]
    %v99 = vld [vmem:[%s0 + $0xa4] sm:$0xf]
    %v100 = vld [vmem:[%s0 + $0xa8] sm:$0xf]
    %v101 = vld [vmem:[%s0 + $0xac] sm:$0xf]
    %v102 = vld [vmem:[%s0 + $0xb0] sm:$0xf]
    %v103 = vld [vmem:[%s0 + $0xb4] sm:$0xf]
    %v104 = vld [vmem:[%s0 + $0xb8] sm:$0xf]
    %v105 = vld [vmem:[%s0 + $0xbc] sm:$0xf]
    %v106 = vld [vmem:[%s0 + $0xc0] sm:$0xf]
    %v107 = vld [vmem:[%s0 + $0xc4] sm:$0xf]
    %v108 = vld [vmem:[%s0 + $0xc8] sm:$0xf]
    %v109 = vld [vmem:[%s0 + $0xcc] sm:$0xf]
    %v110 = vld [vmem:[%s0 + $0xd0] sm:$0xf]
    %v111 = vld [vmem:[%s0 + $0xd4] sm:$0xf]
    %v112 = vld [vmem:[%s0 + $0xd8] sm:$0xf]
    %v113 = vld [vmem:[%s0 + $0xdc] sm:$0xf]
    %v114 = vld [vmem:[%s0 + $0xe0] sm:$0xf]
    %v115 = vld [vmem:[%s0 + $0xe4] sm:$0xf]
    %v116 = vld [vmem:[%s0 + $0xe8] sm:$0xf]
    %v117 = vld [vmem:[%s0 + $0xec] sm:$0xf]
    %v118 = vld [vmem:[%s0 + $0xf0] sm:$0xf]
    %v119 = vld [vmem:[%s0 + $0xf4] sm:$0xf]
    %v120 = vld [vmem:[%s0 + $0xf8] sm:$0xf]
    %v121 = vld [vmem:[%s0 + $0xfc] sm:$0xf]
    %v122 = vld [vmem:[%s1] sm:$0xf]
    %v123 = vld [vmem:[%s1 + $0x4] sm:$0xf]
    %v124 = vld [vmem:[%s1 + $0x8] sm:$0xf]
    %v125 = vld [vmem:[%s1 + $0xc] sm:$0xf]
    %v126 = vld [vmem:[%s1 + $0x10] sm:$0xf]
    %v127 = vld [vmem:[%s1 + $0x14] sm:$0xf]
    %v128 = vld [vmem:[%s1 + $0x18] sm:$0xf]
    %v129 = vld [vmem:[%s1 + $0x1c] sm:$0xf]
    %v130 = vld [vmem:[%s2] sm:$0x1]
    %v132 = vlaneseq
    %v133 = vshrl.u32 %v132, 7
    %v134 = vsub.s32 0, %v133
    %v135 = vrot.slane %v130, %v134
    %v201 = vunpack.c.l.b16 %v58
    %v202 = vunpack.c.l.b16 %v59
    %v203 = vunpack.c.l.b16 %v60
    %v204 = vunpack.c.l.b16 %v61
    %v205 = vunpack.c.l.b16 %v62
    %v206 = vunpack.c.l.b16 %v63
    %v207 = vunpack.c.l.b16 %v64
    %v208 = vunpack.c.l.b16 %v65
    %v209 = vunpack.c.l.b16 %v66
    %v210 = vunpack.c.l.b16 %v67
    %v211 = vunpack.c.l.b16 %v68
    %v212 = vunpack.c.l.b16 %v69
    %v213 = vunpack.c.l.b16 %v70
    %v214 = vunpack.c.l.b16 %v71
    %v215 = vunpack.c.l.b16 %v72
    %v216 = vunpack.c.l.b16 %v73
    %v217 = vunpack.c.l.b16 %v74
    %v218 = vunpack.c.l.b16 %v75
    %v219 = vunpack.c.l.b16 %v76
    %v220 = vunpack.c.l.b16 %v77
    %v221 = vunpack.c.l.b16 %v78
    %v222 = vunpack.c.l.b16 %v79
    %v223 = vunpack.c.l.b16 %v80
    %v224 = vunpack.c.l.b16 %v81
    %v225 = vunpack.c.l.b16 %v82
    %v226 = vunpack.c.l.b16 %v83
    %v227 = vunpack.c.l.b16 %v84
    %v228 = vunpack.c.l.b16 %v85
    %v229 = vunpack.c.l.b16 %v86
    %v230 = vunpack.c.l.b16 %v87
    %v231 = vunpack.c.l.b16 %v88
    %v232 = vunpack.c.l.b16 %v89
    %v233 = vunpack.c.l.b16 %v90
    %v234 = vunpack.c.l.b16 %v91
    %v235 = vunpack.c.l.b16 %v92
    %v236 = vunpack.c.l.b16 %v93
    %v237 = vunpack.c.l.b16 %v94
    %v238 = vunpack.c.l.b16 %v95
    %v239 = vunpack.c.l.b16 %v96
    %v240 = vunpack.c.l.b16 %v97
    %v241 = vunpack.c.l.b16 %v98
    %v242 = vunpack.c.l.b16 %v99
    %v243 = vunpack.c.l.b16 %v100
    %v244 = vunpack.c.l.b16 %v101
    %v245 = vunpack.c.l.b16 %v102
    %v246 = vunpack.c.l.b16 %v103
    %v247 = vunpack.c.l.b16 %v104
    %v248 = vunpack.c.l.b16 %v105
    %v249 = vunpack.c.l.b16 %v106
    %v250 = vunpack.c.l.b16 %v107
    %v251 = vunpack.c.l.b16 %v108
    %v252 = vunpack.c.l.b16 %v109
    %v253 = vunpack.c.l.b16 %v110
    %v254 = vunpack.c.l.b16 %v111
    %v255 = vunpack.c.l.b16 %v112
    %v256 = vunpack.c.l.b16 %v113
    %v257 = vunpack.c.l.b16 %v114
    %v258 = vunpack.c.l.b16 %v115
    %v259 = vunpack.c.l.b16 %v116
    %v260 = vunpack.c.l.b16 %v117
    %v261 = vunpack.c.l.b16 %v118
    %v262 = vunpack.c.l.b16 %v119
    %v263 = vunpack.c.l.b16 %v120
    %v264 = vunpack.c.l.b16 %v121
    %v265 = vpack.c.b16 %v202, %v201
    %v266 = vpack.c.b16 %v204, %v203
    %v267 = vpack.c.b16 %v206, %v205
    %v268 = vpack.c.b16 %v208, %v207
    %v269 = vpack.c.b16 %v210, %v209
    %v270 = vpack.c.b16 %v212, %v211
    %v271 = vpack.c.b16 %v214, %v213
    %v272 = vpack.c.b16 %v216, %v215
    %v273 = vpack.c.b16 %v218, %v217
    %v274 = vpack.c.b16 %v220, %v219
    %v275 = vpack.c.b16 %v222, %v221
    %v276 = vpack.c.b16 %v224, %v223
    %v277 = vpack.c.b16 %v226, %v225
    %v278 = vpack.c.b16 %v228, %v227
    %v279 = vpack.c.b16 %v230, %v229
    %v280 = vpack.c.b16 %v232, %v231
    %v281 = vpack.c.b16 %v234, %v233
    %v282 = vpack.c.b16 %v236, %v235
    %v283 = vpack.c.b16 %v238, %v237
    %v284 = vpack.c.b16 %v240, %v239
    %v285 = vpack.c.b16 %v242, %v241
    %v286 = vpack.c.b16 %v244, %v243
    %v287 = vpack.c.b16 %v246, %v245
    %v288 = vpack.c.b16 %v248, %v247
    %v289 = vpack.c.b16 %v250, %v249
    %v290 = vpack.c.b16 %v252, %v251
    %v291 = vpack.c.b16 %v254, %v253
    %v292 = vpack.c.b16 %v256, %v255
    %v293 = vpack.c.b16 %v258, %v257
    %v294 = vpack.c.b16 %v260, %v259
    %v295 = vpack.c.b16 %v262, %v261
    %v296 = vpack.c.b16 %v264, %v263
    %v305 = vunpack.c.l.b16 %v122
    %v306 = vunpack.c.l.b16 %v123
    %v307 = vunpack.c.l.b16 %v124
    %v308 = vunpack.c.l.b16 %v125
    %v309 = vunpack.c.l.b16 %v126
    %v310 = vunpack.c.l.b16 %v127
    %v311 = vunpack.c.l.b16 %v128
    %v312 = vunpack.c.l.b16 %v129
    %v313 = vpack.c.b16 %v306, %v305
    %v314 = vpack.c.b16 %v308, %v307
    %v315 = vpack.c.b16 %v310, %v309
    %v316 = vpack.c.b16 %v312, %v311
    %vm321 = vcmask 523264
    %v323 = vsel %vm321, %v265, 0
    %v326 = vsel %vm321, %v266, 0
    %v329 = vsel %vm321, %v267, 0
    %v332 = vsel %vm321, %v268, 0
    %v335 = vsel %vm321, %v269, 0
    %v338 = vsel %vm321, %v270, 0
    %v341 = vsel %vm321, %v271, 0
    %v344 = vsel %vm321, %v272, 0
    %v347 = vsel %vm321, %v273, 0
    %v350 = vsel %vm321, %v274, 0
    %v353 = vsel %vm321, %v275, 0
    %v356 = vsel %vm321, %v276, 0
    %v359 = vsel %vm321, %v277, 0
    %v362 = vsel %vm321, %v278, 0
    %v365 = vsel %vm321, %v279, 0
    %v368 = vsel %vm321, %v280, 0
    %v371 = vsel %vm321, %v281, 0
    %v374 = vsel %vm321, %v282, 0
    %v377 = vsel %vm321, %v283, 0
    %v380 = vsel %vm321, %v284, 0
    %v383 = vsel %vm321, %v285, 0
    %v386 = vsel %vm321, %v286, 0
    %v389 = vsel %vm321, %v287, 0
    %v392 = vsel %vm321, %v288, 0
    %v395 = vsel %vm321, %v289, 0
    %v398 = vsel %vm321, %v290, 0
    %v401 = vsel %vm321, %v291, 0
    %v404 = vsel %vm321, %v292, 0
    %v407 = vsel %vm321, %v293, 0
    %v410 = vsel %vm321, %v294, 0
    %v413 = vsel %vm321, %v295, 0
    %v416 = vsel %vm321, %v296, 0
    %418 = vmatprep.subr.bf16.mxu0 0
    %419 = vmatpush1.bf16.msra.mxu0 %v313
    %420 = vmatprep.subr.bf16.mxu0 0
    %421 = vmatpush1.bf16.msra.mxu0 %v314
    %422 = vmatprep.subr.bf16.mxu0 0
    %423 = vmatpush1.bf16.msra.mxu0 %v315
    %424 = vmatprep.subr.bf16.mxu0 0
    %425 = vmatpush1.bf16.msra.mxu0 %v316
    %426 = vmatprep.subr.bf16.mxu0 0
    %427 = vmatpush1.bf16.msra.mxu0 0
    %428 = vmatprep.subr.bf16.mxu0 0
    %429 = vmatpush1.bf16.msra.mxu0 0
    %430 = vmatprep.subr.bf16.mxu0 0
    %431 = vmatpush1.bf16.msra.mxu0 0
    %432 = vmatprep.subr.bf16.mxu0 0
    %433 = vmatpush1.bf16.msra.mxu0 0
    %434 = vmatprep.subr.bf16.mxu0 0
    %435 = vmatpush1.bf16.msra.mxu0 0
    %436 = vmatprep.subr.bf16.mxu0 0
    %437 = vmatpush1.bf16.msra.mxu0 0
    %438 = vmatprep.subr.bf16.mxu0 0
    %439 = vmatpush1.bf16.msra.mxu0 0
    %440 = vmatprep.subr.bf16.mxu0 0
    %441 = vmatpush1.bf16.msra.mxu0 0
    %442 = vmatprep.subr.bf16.mxu0 0
    %443 = vmatpush1.bf16.msra.mxu0 0
    %444 = vmatprep.subr.bf16.mxu0 0
    %445 = vmatpush1.bf16.msra.mxu0 0
    %446 = vmatprep.subr.bf16.mxu0 0
    %447 = vmatpush1.bf16.msra.mxu0 0
    %448 = vmatprep.subr.bf16.mxu0 0
    %449 = vmatpush1.bf16.msra.mxu0 0
    %450 = vmatprep.mubr.bf16.mxu0 0
    %451 = vmatmul.mubr.bf16.gmra.mrb[0].mxu0 %v323
    %v452 = vpop.f32.mrb[0].mxu0
    %v453 = vadd.f32 %v135, %v452
    %v454 = vpop.f32.mrb[0].mxu0
    %v455 = vpop.f32.mrb[0].mxu0
    %v456 = vadd.f32 %v135, %v455
    %v457 = vpop.f32.mrb[0].mxu0
    %458 = vmatprep.mubr.bf16.mxu0 0
    %459 = vmatmul.mubr.bf16.gmra.mrb[0].mxu0 %v326
    %v460 = vpop.f32.mrb[0].mxu0
    %v461 = vadd.f32 %v135, %v460
    %v462 = vpop.f32.mrb[0].mxu0
    %v463 = vpop.f32.mrb[0].mxu0
    %v464 = vadd.f32 %v135, %v463
    %v465 = vpop.f32.mrb[0].mxu0
    %466 = vmatprep.mubr.bf16.mxu0 0
    %467 = vmatmul.mubr.bf16.gmra.mrb[0].mxu0 %v329
    %v468 = vpop.f32.mrb[0].mxu0
    %v469 = vadd.f32 %v135, %v468
    %v470 = vpop.f32.mrb[0].mxu0
    %v471 = vpop.f32.mrb[0].mxu0
    %v472 = vadd.f32 %v135, %v471
    %v473 = vpop.f32.mrb[0].mxu0
    %474 = vmatprep.mubr.bf16.mxu0 0
    %475 = vmatmul.mubr.bf16.gmra.mrb[0].mxu0 %v332
    %v476 = vpop.f32.mrb[0].mxu0
    %v477 = vadd.f32 %v135, %v476
    %v478 = vpop.f32.mrb[0].mxu0
    %v479 = vpop.f32.mrb[0].mxu0
    %v480 = vadd.f32 %v135, %v479
    %v481 = vpop.f32.mrb[0].mxu0
    %482 = vmatprep.mubr.bf16.mxu0 0
    %483 = vmatmul.mubr.bf16.gmra.mrb[0].mxu0 %v335
    %v484 = vpop.f32.mrb[0].mxu0
    %v485 = vadd.f32 %v135, %v484
    %v486 = vpop.f32.mrb[0].mxu0
    %v487 = vpop.f32.mrb[0].mxu0
    %v488 = vadd.f32 %v135, %v487
    %v489 = vpop.f32.mrb[0].mxu0
    %490 = vmatprep.mubr.bf16.mxu0 0
    %491 = vmatmul.mubr.bf16.gmra.mrb[0].mxu0 %v338
    %v492 = vpop.f32.mrb[0].mxu0
    %v493 = vadd.f32 %v135, %v492
    %v494 = vpop.f32.mrb[0].mxu0
    %v495 = vpop.f32.mrb[0].mxu0
    %v496 = vadd.f32 %v135, %v495
    %v497 = vpop.f32.mrb[0].mxu0
    %498 = vmatprep.mubr.bf16.mxu0 0
    %499 = vmatmul.mubr.bf16.gmra.mrb[0].mxu0 %v341
    %v500 = vpop.f32.mrb[0].mxu0
    %v501 = vadd.f32 %v135, %v500
    %v502 = vpop.f32.mrb[0].mxu0
    %v503 = vpop.f32.mrb[0].mxu0
    %v504 = vadd.f32 %v135, %v503
    %v505 = vpop.f32.mrb[0].mxu0
    %506 = vmatprep.mubr.bf16.mxu0 0
    %507 = vmatmul.mubr.bf16.gmra.mrb[0].mxu0 %v344
    %v508 = vpop.f32.mrb[0].mxu0
    %v509 = vadd.f32 %v135, %v508
    %v510 = vpop.f32.mrb[0].mxu0
    %v511 = vpop.f32.mrb[0].mxu0
    %v512 = vadd.f32 %v135, %v511
    %v513 = vpop.f32.mrb[0].mxu0
    %514 = vmatprep.mubr.bf16.mxu0 0
    %515 = vmatmul.mubr.bf16.gmra.mrb[0].mxu0 %v347
    %v516 = vpop.f32.mrb[0].mxu0
    %v517 = vadd.f32 %v135, %v516
    %v518 = vpop.f32.mrb[0].mxu0
    %v519 = vpop.f32.mrb[0].mxu0
    %v520 = vadd.f32 %v135, %v519
    %v521 = vpop.f32.mrb[0].mxu0
    %522 = vmatprep.mubr.bf16.mxu0 0
    %523 = vmatmul.mubr.bf16.gmra.mrb[0].mxu0 %v350
    %v524 = vpop.f32.mrb[0].mxu0
    %v525 = vadd.f32 %v135, %v524
    %v526 = vpop.f32.mrb[0].mxu0
    %v527 = vpop.f32.mrb[0].mxu0
    %v528 = vadd.f32 %v135, %v527
    %v529 = vpop.f32.mrb[0].mxu0
    %530 = vmatprep.mubr.bf16.mxu0 0
    %531 = vmatmul.mubr.bf16.gmra.mrb[0].mxu0 %v353
    %v532 = vpop.f32.mrb[0].mxu0
    %v533 = vadd.f32 %v135, %v532
    %v534 = vpop.f32.mrb[0].mxu0
    %v535 = vpop.f32.mrb[0].mxu0
    %v536 = vadd.f32 %v135, %v535
    %v537 = vpop.f32.mrb[0].mxu0
    %538 = vmatprep.mubr.bf16.mxu0 0
    %539 = vmatmul.mubr.bf16.gmra.mrb[0].mxu0 %v356
    %v540 = vpop.f32.mrb[0].mxu0
    %v541 = vadd.f32 %v135, %v540
    %v542 = vpop.f32.mrb[0].mxu0
    %v543 = vpop.f32.mrb[0].mxu0
    %v544 = vadd.f32 %v135, %v543
    %v545 = vpop.f32.mrb[0].mxu0
    %546 = vmatprep.mubr.bf16.mxu0 0
    %547 = vmatmul.mubr.bf16.gmra.mrb[0].mxu0 %v359
    %v548 = vpop.f32.mrb[0].mxu0
    %v549 = vadd.f32 %v135, %v548
    %v550 = vpop.f32.mrb[0].mxu0
    %v551 = vpop.f32.mrb[0].mxu0
    %v552 = vadd.f32 %v135, %v551
    %v553 = vpop.f32.mrb[0].mxu0
    %554 = vmatprep.mubr.bf16.mxu0 0
    %555 = vmatmul.mubr.bf16.gmra.mrb[0].mxu0 %v362
    %v556 = vpop.f32.mrb[0].mxu0
    %v557 = vadd.f32 %v135, %v556
    %v558 = vpop.f32.mrb[0].mxu0
    %v559 = vpop.f32.mrb[0].mxu0
    %v560 = vadd.f32 %v135, %v559
    %v561 = vpop.f32.mrb[0].mxu0
    %562 = vmatprep.mubr.bf16.mxu0 0
    %563 = vmatmul.mubr.bf16.gmra.mrb[0].mxu0 %v365
    %v564 = vpop.f32.mrb[0].mxu0
    %v565 = vadd.f32 %v135, %v564
    %v566 = vpop.f32.mrb[0].mxu0
    %v567 = vpop.f32.mrb[0].mxu0
    %v568 = vadd.f32 %v135, %v567
    %v569 = vpop.f32.mrb[0].mxu0
    %570 = vmatprep.mubr.bf16.mxu0 0
    %571 = vmatmul.mubr.bf16.gmra.mrb[0].mxu0 %v368
    %v572 = vpop.f32.mrb[0].mxu0
    %v573 = vadd.f32 %v135, %v572
    %v574 = vpop.f32.mrb[0].mxu0
    %v575 = vpop.f32.mrb[0].mxu0
    %v576 = vadd.f32 %v135, %v575
    %v577 = vpop.f32.mrb[0].mxu0
    %578 = vmatprep.mubr.bf16.mxu0 0
    %579 = vmatmul.mubr.bf16.gmra.mrb[0].mxu0 %v371
    %v580 = vpop.f32.mrb[0].mxu0
    %v581 = vadd.f32 %v135, %v580
    %v582 = vpop.f32.mrb[0].mxu0
    %v583 = vpop.f32.mrb[0].mxu0
    %v584 = vadd.f32 %v135, %v583
    %v585 = vpop.f32.mrb[0].mxu0
    %586 = vmatprep.mubr.bf16.mxu0 0
    %587 = vmatmul.mubr.bf16.gmra.mrb[0].mxu0 %v374
    %v588 = vpop.f32.mrb[0].mxu0
    %v589 = vadd.f32 %v135, %v588
    %v590 = vpop.f32.mrb[0].mxu0
    %v591 = vpop.f32.mrb[0].mxu0
    %v592 = vadd.f32 %v135, %v591
    %v593 = vpop.f32.mrb[0].mxu0
    %594 = vmatprep.mubr.bf16.mxu0 0
    %595 = vmatmul.mubr.bf16.gmra.mrb[0].mxu0 %v377
    %v596 = vpop.f32.mrb[0].mxu0
    %v597 = vadd.f32 %v135, %v596
    %v598 = vpop.f32.mrb[0].mxu0
    %v599 = vpop.f32.mrb[0].mxu0
    %v600 = vadd.f32 %v135, %v599
    %v601 = vpop.f32.mrb[0].mxu0
    %602 = vmatprep.mubr.bf16.mxu0 0
    %603 = vmatmul.mubr.bf16.gmra.mrb[0].mxu0 %v380
    %v604 = vpop.f32.mrb[0].mxu0
    %v605 = vadd.f32 %v135, %v604
    %v606 = vpop.f32.mrb[0].mxu0
    %v607 = vpop.f32.mrb[0].mxu0
    %v608 = vadd.f32 %v135, %v607
    %v609 = vpop.f32.mrb[0].mxu0
    %610 = vmatprep.mubr.bf16.mxu0 0
    %611 = vmatmul.mubr.bf16.gmra.mrb[0].mxu0 %v383
    %v612 = vpop.f32.mrb[0].mxu0
    %v613 = vadd.f32 %v135, %v612
    %v614 = vpop.f32.mrb[0].mxu0
    %v615 = vpop.f32.mrb[0].mxu0
    %v616 = vadd.f32 %v135, %v615
    %v617 = vpop.f32.mrb[0].mxu0
    %618 = vmatprep.mubr.bf16.mxu0 0
    %619 = vmatmul.mubr.bf16.gmra.mrb[0].mxu0 %v386
    %v620 = vpop.f32.mrb[0].mxu0
    %v621 = vadd.f32 %v135, %v620
    %v622 = vpop.f32.mrb[0].mxu0
    %v623 = vpop.f32.mrb[0].mxu0
    %v624 = vadd.f32 %v135, %v623
    %v625 = vpop.f32.mrb[0].mxu0
    %626 = vmatprep.mubr.bf16.mxu0 0
    %627 = vmatmul.mubr.bf16.gmra.mrb[0].mxu0 %v389
    %v628 = vpop.f32.mrb[0].mxu0
    %v629 = vadd.f32 %v135, %v628
    %v630 = vpop.f32.mrb[0].mxu0
    %v631 = vpop.f32.mrb[0].mxu0
    %v632 = vadd.f32 %v135, %v631
    %v633 = vpop.f32.mrb[0].mxu0
    %634 = vmatprep.mubr.bf16.mxu0 0
    %635 = vmatmul.mubr.bf16.gmra.mrb[0].mxu0 %v392
    %v636 = vpop.f32.mrb[0].mxu0
    %v637 = vadd.f32 %v135, %v636
    %v638 = vpop.f32.mrb[0].mxu0
    %v639 = vpop.f32.mrb[0].mxu0
    %v640 = vadd.f32 %v135, %v639
    %v641 = vpop.f32.mrb[0].mxu0
    %642 = vmatprep.mubr.bf16.mxu0 0
    %643 = vmatmul.mubr.bf16.gmra.mrb[0].mxu0 %v395
    %v644 = vpop.f32.mrb[0].mxu0
    %v645 = vadd.f32 %v135, %v644
    %v646 = vpop.f32.mrb[0].mxu0
    %v647 = vpop.f32.mrb[0].mxu0
    %v648 = vadd.f32 %v135, %v647
    %v649 = vpop.f32.mrb[0].mxu0
    %650 = vmatprep.mubr.bf16.mxu0 0
    %651 = vmatmul.mubr.bf16.gmra.mrb[0].mxu0 %v398
    %v652 = vpop.f32.mrb[0].mxu0
    %v653 = vadd.f32 %v135, %v652
    %v654 = vpop.f32.mrb[0].mxu0
    %v655 = vpop.f32.mrb[0].mxu0
    %v656 = vadd.f32 %v135, %v655
    %v657 = vpop.f32.mrb[0].mxu0
    %658 = vmatprep.mubr.bf16.mxu0 0
    %659 = vmatmul.mubr.bf16.gmra.mrb[0].mxu0 %v401
    %v660 = vpop.f32.mrb[0].mxu0
    %v661 = vadd.f32 %v135, %v660
    %v662 = vpop.f32.mrb[0].mxu0
    %v663 = vpop.f32.mrb[0].mxu0
    %v664 = vadd.f32 %v135, %v663
    %v665 = vpop.f32.mrb[0].mxu0
    %666 = vmatprep.mubr.bf16.mxu0 0
    %667 = vmatmul.mubr.bf16.gmra.mrb[0].mxu0 %v404
    %v668 = vpop.f32.mrb[0].mxu0
    %v669 = vadd.f32 %v135, %v668
    %v670 = vpop.f32.mrb[0].mxu0
    %v671 = vpop.f32.mrb[0].mxu0
    %v672 = vadd.f32 %v135, %v671
    %v673 = vpop.f32.mrb[0].mxu0
    %674 = vmatprep.mubr.bf16.mxu0 0
    %675 = vmatmul.mubr.bf16.gmra.mrb[0].mxu0 %v407
    %v676 = vpop.f32.mrb[0].mxu0
    %v677 = vadd.f32 %v135, %v676
    %v678 = vpop.f32.mrb[0].mxu0
    %v679 = vpop.f32.mrb[0].mxu0
    %v680 = vadd.f32 %v135, %v679
    %v681 = vpop.f32.mrb[0].mxu0
    %682 = vmatprep.mubr.bf16.mxu0 0
    %683 = vmatmul.mubr.bf16.gmra.mrb[0].mxu0 %v410
    %v684 = vpop.f32.mrb[0].mxu0
    %v685 = vadd.f32 %v135, %v684
    %v686 = vpop.f32.mrb[0].mxu0
    %v687 = vpop.f32.mrb[0].mxu0
    %v688 = vadd.f32 %v135, %v687
    %v689 = vpop.f32.mrb[0].mxu0
    %690 = vmatprep.mubr.bf16.mxu0 0
    %691 = vmatmul.mubr.bf16.gmra.mrb[0].mxu0 %v413
    %v692 = vpop.f32.mrb[0].mxu0
    %v693 = vadd.f32 %v135, %v692
    %v694 = vpop.f32.mrb[0].mxu0
    %v695 = vpop.f32.mrb[0].mxu0
    %v696 = vadd.f32 %v135, %v695
    %v697 = vpop.f32.mrb[0].mxu0
    %698 = vmatprep.mubr.bf16.mxu0 0
    %699 = vmatmul.mubr.bf16.gmra.mrb[0].mxu0 %v416
    %v700 = vpop.f32.mrb[0].mxu0
    %v701 = vadd.f32 %v135, %v700
    %v702 = vpop.f32.mrb[0].mxu0
    %v703 = vpop.f32.mrb[0].mxu0
    %v704 = vadd.f32 %v135, %v703
    %v705 = vpop.f32.mrb[0].mxu0
    %706 = vdwg.mxu0
    %v707 = vadd.f32 %v453, %v456
    %v708 = vadd.f32 %v707, %v461
    %v709 = vadd.f32 %v708, %v464
    %v710 = vadd.f32 %v709, %v469
    %v711 = vadd.f32 %v710, %v472
    %v712 = vadd.f32 %v711, %v477
    %v713 = vadd.f32 %v712, %v480
    %v714 = vadd.f32 %v713, %v485
    %v715 = vadd.f32 %v714, %v488
    %v716 = vadd.f32 %v715, %v493
    %v717 = vadd.f32 %v716, %v496
    %v718 = vadd.f32 %v717, %v501
    %v719 = vadd.f32 %v718, %v504
    %v720 = vadd.f32 %v719, %v509
    %v721 = vadd.f32 %v720, %v512
    %v722 = vadd.f32 %v721, %v517
    %v723 = vadd.f32 %v722, %v520
    %v724 = vadd.f32 %v723, %v525
    %v725 = vadd.f32 %v724, %v528
    %v726 = vadd.f32 %v725, %v533
    %v727 = vadd.f32 %v726, %v536
    %v728 = vadd.f32 %v727, %v541
    %v729 = vadd.f32 %v728, %v544
    %v730 = vadd.f32 %v729, %v549
    %v731 = vadd.f32 %v730, %v552
    %v732 = vadd.f32 %v731, %v557
    %v733 = vadd.f32 %v732, %v560
    %v734 = vadd.f32 %v733, %v565
    %v735 = vadd.f32 %v734, %v568
    %v736 = vadd.f32 %v735, %v573
    %v737 = vadd.f32 %v736, %v576
    %v738 = vadd.f32 %v737, %v581
    %v739 = vadd.f32 %v738, %v584
    %v740 = vadd.f32 %v739, %v589
    %v741 = vadd.f32 %v740, %v592
    %v742 = vadd.f32 %v741, %v597
    %v743 = vadd.f32 %v742, %v600
    %v744 = vadd.f32 %v743, %v605
    %v745 = vadd.f32 %v744, %v608
    %v746 = vadd.f32 %v745, %v613
    %v747 = vadd.f32 %v746, %v616
    %v748 = vadd.f32 %v747, %v621
    %v749 = vadd.f32 %v748, %v624
    %v750 = vadd.f32 %v749, %v629
    %v751 = vadd.f32 %v750, %v632
    %v752 = vadd.f32 %v751, %v637
    %v753 = vadd.f32 %v752, %v640
    %v754 = vadd.f32 %v753, %v645
    %v755 = vadd.f32 %v754, %v648
    %v756 = vadd.f32 %v755, %v653
    %v757 = vadd.f32 %v756, %v656
    %v758 = vadd.f32 %v757, %v661
    %v759 = vadd.f32 %v758, %v664
    %v760 = vadd.f32 %v759, %v669
    %v761 = vadd.f32 %v760, %v672
    %v762 = vadd.f32 %v761, %v677
    %v763 = vadd.f32 %v762, %v680
    %v764 = vadd.f32 %v763, %v685
    %v765 = vadd.f32 %v764, %v688
    %v766 = vadd.f32 %v765, %v693
    %v767 = vadd.f32 %v766, %v696
    %v768 = vadd.f32 %v767, %v701
    %v769 = vadd.f32 %v768, %v704
    %v770 = vrot.slane %v769, 4
    %v771 = vadd.f32 %v769, %v770
    %v772 = vrot.slane %v771, 2
    %v773 = vadd.f32 %v771, %v772
    %v774 = vrot.slane %v773, 1
    %v775 = vadd.f32 %v773, %v774
    %v776 = vmul.f32 %v775, 0.001953125
    %v777 = vmul.f32 %v453, %v453
    %v778 = vmul.f32 %v456, %v456
    %v779 = vmul.f32 %v461, %v461
    %v780 = vmul.f32 %v464, %v464
    %v781 = vmul.f32 %v469, %v469
    %v782 = vmul.f32 %v472, %v472
    %v783 = vmul.f32 %v477, %v477
    %v784 = vmul.f32 %v480, %v480
    %v785 = vmul.f32 %v485, %v485
    %v786 = vmul.f32 %v488, %v488
    %v787 = vmul.f32 %v493, %v493
    %v788 = vmul.f32 %v496, %v496
    %v789 = vmul.f32 %v501, %v501
    %v790 = vmul.f32 %v504, %v504
    %v791 = vmul.f32 %v509, %v509
    %v792 = vmul.f32 %v512, %v512
    %v793 = vmul.f32 %v517, %v517
    %v794 = vmul.f32 %v520, %v520
    %v795 = vmul.f32 %v525, %v525
    %v796 = vmul.f32 %v528, %v528
    %v797 = vmul.f32 %v533, %v533
    %v798 = vmul.f32 %v536, %v536
    %v799 = vmul.f32 %v541, %v541
    %v800 = vmul.f32 %v544, %v544
    %v801 = vmul.f32 %v549, %v549
    %v802 = vmul.f32 %v552, %v552
    %v803 = vmul.f32 %v557, %v557
    %v804 = vmul.f32 %v560, %v560
    %v805 = vmul.f32 %v565, %v565
    %v806 = vmul.f32 %v568, %v568
    %v807 = vmul.f32 %v573, %v573
    %v808 = vmul.f32 %v576, %v576
    %v809 = vmul.f32 %v581, %v581
    %v810 = vmul.f32 %v584, %v584
    %v811 = vmul.f32 %v589, %v589
    %v812 = vmul.f32 %v592, %v592
    %v813 = vmul.f32 %v597, %v597
    %v814 = vmul.f32 %v600, %v600
    %v815 = vmul.f32 %v605, %v605
    %v816 = vmul.f32 %v608, %v608
    %v817 = vmul.f32 %v613, %v613
    %v818 = vmul.f32 %v616, %v616
    %v819 = vmul.f32 %v621, %v621
    %v820 = vmul.f32 %v624, %v624
    %v821 = vmul.f32 %v629, %v629
    %v822 = vmul.f32 %v632, %v632
    %v823 = vmul.f32 %v637, %v637
    %v824 = vmul.f32 %v640, %v640
    %v825 = vmul.f32 %v645, %v645
    %v826 = vmul.f32 %v648, %v648
    %v827 = vmul.f32 %v653, %v653
    %v828 = vmul.f32 %v656, %v656
    %v829 = vmul.f32 %v661, %v661
    %v830 = vmul.f32 %v664, %v664
    %v831 = vmul.f32 %v669, %v669
    %v832 = vmul.f32 %v672, %v672
    %v833 = vmul.f32 %v677, %v677
    %v834 = vmul.f32 %v680, %v680
    %v835 = vmul.f32 %v685, %v685
    %v836 = vmul.f32 %v688, %v688
    %v837 = vmul.f32 %v693, %v693
    %v838 = vmul.f32 %v696, %v696
    %v839 = vmul.f32 %v701, %v701
    %v840 = vmul.f32 %v704, %v704
    %v841 = vadd.f32 %v777, %v778
    %v842 = vadd.f32 %v841, %v779
    %v843 = vadd.f32 %v842, %v780
    %v844 = vadd.f32 %v843, %v781
    %v845 = vadd.f32 %v844, %v782
    %v846 = vadd.f32 %v845, %v783
    %v847 = vadd.f32 %v846, %v784
    %v848 = vadd.f32 %v847, %v785
    %v849 = vadd.f32 %v848, %v786
    %v850 = vadd.f32 %v849, %v787
    %v851 = vadd.f32 %v850, %v788
    %v852 = vadd.f32 %v851, %v789
    %v853 = vadd.f32 %v852, %v790
    %v854 = vadd.f32 %v853, %v791
    %v855 = vadd.f32 %v854, %v792
    %v856 = vadd.f32 %v855, %v793
    %v857 = vadd.f32 %v856, %v794
    %v858 = vadd.f32 %v857, %v795
    %v859 = vadd.f32 %v858, %v796
    %v860 = vadd.f32 %v859, %v797
    %v861 = vadd.f32 %v860, %v798
    %v862 = vadd.f32 %v861, %v799
    %v863 = vadd.f32 %v862, %v800
    %v864 = vadd.f32 %v863, %v801
    %v865 = vadd.f32 %v864, %v802
    %v866 = vadd.f32 %v865, %v803
    %v867 = vadd.f32 %v866, %v804
    %v868 = vadd.f32 %v867, %v805
    %v869 = vadd.f32 %v868, %v806
    %v870 = vadd.f32 %v869, %v807
    %v871 = vadd.f32 %v870, %v808
    %v872 = vadd.f32 %v871, %v809
    %v873 = vadd.f32 %v872, %v810
    %v874 = vadd.f32 %v873, %v811
    %v875 = vadd.f32 %v874, %v812
    %v876 = vadd.f32 %v875, %v813
    %v877 = vadd.f32 %v876, %v814
    %v878 = vadd.f32 %v877, %v815
    %v879 = vadd.f32 %v878, %v816
    %v880 = vadd.f32 %v879, %v817
    %v881 = vadd.f32 %v880, %v818
    %v882 = vadd.f32 %v881, %v819
    %v883 = vadd.f32 %v882, %v820
    %v884 = vadd.f32 %v883, %v821
    %v885 = vadd.f32 %v884, %v822
    %v886 = vadd.f32 %v885, %v823
    %v887 = vadd.f32 %v886, %v824
    %v888 = vadd.f32 %v887, %v825
    %v889 = vadd.f32 %v888, %v826
    %v890 = vadd.f32 %v889, %v827
    %v891 = vadd.f32 %v890, %v828
    %v892 = vadd.f32 %v891, %v829
    %v893 = vadd.f32 %v892, %v830
    %v894 = vadd.f32 %v893, %v831
    %v895 = vadd.f32 %v894, %v832
    %v896 = vadd.f32 %v895, %v833
    %v897 = vadd.f32 %v896, %v834
    %v898 = vadd.f32 %v897, %v835
    %v899 = vadd.f32 %v898, %v836
    %v900 = vadd.f32 %v899, %v837
    %v901 = vadd.f32 %v900, %v838
    %v902 = vadd.f32 %v901, %v839
    %v903 = vadd.f32 %v902, %v840
    %v904 = vrot.slane %v903, 4
    %v905 = vadd.f32 %v903, %v904
    %v906 = vrot.slane %v905, 2
    %v907 = vadd.f32 %v905, %v906
    %v908 = vrot.slane %v907, 1
    %v909 = vadd.f32 %v907, %v908
    %v910 = vmul.f32 %v909, 0.001953125
    %v911 = vmul.f32 %v776, %v776
    %v912 = vsub.f32 %v910, %v911
    %v913 = vmax.f32 %v912, 0.0
    %v914 = vsub.f32 %v453, %v776
    %v915 = vsub.f32 %v456, %v776
    %v916 = vsub.f32 %v461, %v776
    %v917 = vsub.f32 %v464, %v776
    %v918 = vsub.f32 %v469, %v776
    %v919 = vsub.f32 %v472, %v776
    %v920 = vsub.f32 %v477, %v776
    %v921 = vsub.f32 %v480, %v776
    %v922 = vsub.f32 %v485, %v776
    %v923 = vsub.f32 %v488, %v776
    %v924 = vsub.f32 %v493, %v776
    %v925 = vsub.f32 %v496, %v776
    %v926 = vsub.f32 %v501, %v776
    %v927 = vsub.f32 %v504, %v776
    %v928 = vsub.f32 %v509, %v776
    %v929 = vsub.f32 %v512, %v776
    %v930 = vsub.f32 %v517, %v776
    %v931 = vsub.f32 %v520, %v776
    %v932 = vsub.f32 %v525, %v776
    %v933 = vsub.f32 %v528, %v776
    %v934 = vsub.f32 %v533, %v776
    %v935 = vsub.f32 %v536, %v776
    %v936 = vsub.f32 %v541, %v776
    %v937 = vsub.f32 %v544, %v776
    %v938 = vsub.f32 %v549, %v776
    %v939 = vsub.f32 %v552, %v776
    %v940 = vsub.f32 %v557, %v776
    %v941 = vsub.f32 %v560, %v776
    %v942 = vsub.f32 %v565, %v776
    %v943 = vsub.f32 %v568, %v776
    %v944 = vsub.f32 %v573, %v776
    %v945 = vsub.f32 %v576, %v776
    %v946 = vsub.f32 %v581, %v776
    %v947 = vsub.f32 %v584, %v776
    %v948 = vsub.f32 %v589, %v776
    %v949 = vsub.f32 %v592, %v776
    %v950 = vsub.f32 %v597, %v776
    %v951 = vsub.f32 %v600, %v776
    %v952 = vsub.f32 %v605, %v776
    %v953 = vsub.f32 %v608, %v776
    %v954 = vsub.f32 %v613, %v776
    %v955 = vsub.f32 %v616, %v776
    %v956 = vsub.f32 %v621, %v776
    %v957 = vsub.f32 %v624, %v776
    %v958 = vsub.f32 %v629, %v776
    %v959 = vsub.f32 %v632, %v776
    %v960 = vsub.f32 %v637, %v776
    %v961 = vsub.f32 %v640, %v776
    %v962 = vsub.f32 %v645, %v776
    %v963 = vsub.f32 %v648, %v776
    %v964 = vsub.f32 %v653, %v776
    %v965 = vsub.f32 %v656, %v776
    %v966 = vsub.f32 %v661, %v776
    %v967 = vsub.f32 %v664, %v776
    %v968 = vsub.f32 %v669, %v776
    %v969 = vsub.f32 %v672, %v776
    %v970 = vsub.f32 %v677, %v776
    %v971 = vsub.f32 %v680, %v776
    %v972 = vsub.f32 %v685, %v776
    %v973 = vsub.f32 %v688, %v776
    %v974 = vsub.f32 %v693, %v776
    %v975 = vsub.f32 %v696, %v776
    %v976 = vsub.f32 %v701, %v776
    %v977 = vsub.f32 %v704, %v776
    %v978 = vadd.f32 %v913, 1e-05
    %v979 = vrsqrt.pop %v978
    %v980 = vmul.f32 %v914, %v979
    %v981 = vmul.f32 %v915, %v979
    %v982 = vmul.f32 %v916, %v979
    %v983 = vmul.f32 %v917, %v979
    %v984 = vmul.f32 %v918, %v979
    %v985 = vmul.f32 %v919, %v979
    %v986 = vmul.f32 %v920, %v979
    %v987 = vmul.f32 %v921, %v979
    %v988 = vmul.f32 %v922, %v979
    %v989 = vmul.f32 %v923, %v979
    %v990 = vmul.f32 %v924, %v979
    %v991 = vmul.f32 %v925, %v979
    %v992 = vmul.f32 %v926, %v979
    %v993 = vmul.f32 %v927, %v979
    %v994 = vmul.f32 %v928, %v979
    %v995 = vmul.f32 %v929, %v979
    %v996 = vmul.f32 %v930, %v979
    %v997 = vmul.f32 %v931, %v979
    %v998 = vmul.f32 %v932, %v979
    %v999 = vmul.f32 %v933, %v979
    %v1000 = vmul.f32 %v934, %v979
    %v1001 = vmul.f32 %v935, %v979
    %v1002 = vmul.f32 %v936, %v979
    %v1003 = vmul.f32 %v937, %v979
    %v1004 = vmul.f32 %v938, %v979
    %v1005 = vmul.f32 %v939, %v979
    %v1006 = vmul.f32 %v940, %v979
    %v1007 = vmul.f32 %v941, %v979
    %v1008 = vmul.f32 %v942, %v979
    %v1009 = vmul.f32 %v943, %v979
    %v1010 = vmul.f32 %v944, %v979
    %v1011 = vmul.f32 %v945, %v979
    %v1012 = vmul.f32 %v946, %v979
    %v1013 = vmul.f32 %v947, %v979
    %v1014 = vmul.f32 %v948, %v979
    %v1015 = vmul.f32 %v949, %v979
    %v1016 = vmul.f32 %v950, %v979
    %v1017 = vmul.f32 %v951, %v979
    %v1018 = vmul.f32 %v952, %v979
    %v1019 = vmul.f32 %v953, %v979
    %v1020 = vmul.f32 %v954, %v979
    %v1021 = vmul.f32 %v955, %v979
    %v1022 = vmul.f32 %v956, %v979
    %v1023 = vmul.f32 %v957, %v979
    %v1024 = vmul.f32 %v958, %v979
    %v1025 = vmul.f32 %v959, %v979
    %v1026 = vmul.f32 %v960, %v979
    %v1027 = vmul.f32 %v961, %v979
    %v1028 = vmul.f32 %v962, %v979
    %v1029 = vmul.f32 %v963, %v979
    %v1030 = vmul.f32 %v964, %v979
    %v1031 = vmul.f32 %v965, %v979
    %v1032 = vmul.f32 %v966, %v979
    %v1033 = vmul.f32 %v967, %v979
    %v1034 = vmul.f32 %v968, %v979
    %v1035 = vmul.f32 %v969, %v979
    %v1036 = vmul.f32 %v970, %v979
    %v1037 = vmul.f32 %v971, %v979
    %v1038 = vmul.f32 %v972, %v979
    %v1039 = vmul.f32 %v973, %v979
    %v1040 = vmul.f32 %v974, %v979
    %v1041 = vmul.f32 %v975, %v979
    %v1042 = vmul.f32 %v976, %v979
    %v1043 = vmul.f32 %v977, %v979
    %v1044 = vld [vmem:[%s3] sm:$0x1]
    %v1046 = vlaneseq
    %v1047 = vshrl.u32 %v1046, 7
    %v1048 = vsub.s32 0, %v1047
    %v1049 = vrot.slane %v1044, %v1048
    %v1051 = vmul.f32 %v980, %v1049
    %v1052 = vmul.f32 %v981, %v1049
    %v1053 = vmul.f32 %v982, %v1049
    %v1054 = vmul.f32 %v983, %v1049
    %v1055 = vmul.f32 %v984, %v1049
    %v1056 = vmul.f32 %v985, %v1049
    %v1057 = vmul.f32 %v986, %v1049
    %v1058 = vmul.f32 %v987, %v1049
    %v1059 = vmul.f32 %v988, %v1049
    %v1060 = vmul.f32 %v989, %v1049
    %v1061 = vmul.f32 %v990, %v1049
    %v1062 = vmul.f32 %v991, %v1049
    %v1063 = vmul.f32 %v992, %v1049
    %v1064 = vmul.f32 %v993, %v1049
    %v1065 = vmul.f32 %v994, %v1049
    %v1066 = vmul.f32 %v995, %v1049
    %v1067 = vmul.f32 %v996, %v1049
    %v1068 = vmul.f32 %v997, %v1049
    %v1069 = vmul.f32 %v998, %v1049
    %v1070 = vmul.f32 %v999, %v1049
    %v1071 = vmul.f32 %v1000, %v1049
    %v1072 = vmul.f32 %v1001, %v1049
    %v1073 = vmul.f32 %v1002, %v1049
    %v1074 = vmul.f32 %v1003, %v1049
    %v1075 = vmul.f32 %v1004, %v1049
    %v1076 = vmul.f32 %v1005, %v1049
    %v1077 = vmul.f32 %v1006, %v1049
    %v1078 = vmul.f32 %v1007, %v1049
    %v1079 = vmul.f32 %v1008, %v1049
    %v1080 = vmul.f32 %v1009, %v1049
    %v1081 = vmul.f32 %v1010, %v1049
    %v1082 = vmul.f32 %v1011, %v1049
    %v1083 = vmul.f32 %v1012, %v1049
    %v1084 = vmul.f32 %v1013, %v1049
    %v1085 = vmul.f32 %v1014, %v1049
    %v1086 = vmul.f32 %v1015, %v1049
    %v1087 = vmul.f32 %v1016, %v1049
    %v1088 = vmul.f32 %v1017, %v1049
    %v1089 = vmul.f32 %v1018, %v1049
    %v1090 = vmul.f32 %v1019, %v1049
    %v1091 = vmul.f32 %v1020, %v1049
    %v1092 = vmul.f32 %v1021, %v1049
    %v1093 = vmul.f32 %v1022, %v1049
    %v1094 = vmul.f32 %v1023, %v1049
    %v1095 = vmul.f32 %v1024, %v1049
    %v1096 = vmul.f32 %v1025, %v1049
    %v1097 = vmul.f32 %v1026, %v1049
    %v1098 = vmul.f32 %v1027, %v1049
    %v1099 = vmul.f32 %v1028, %v1049
    %v1100 = vmul.f32 %v1029, %v1049
    %v1101 = vmul.f32 %v1030, %v1049
    %v1102 = vmul.f32 %v1031, %v1049
    %v1103 = vmul.f32 %v1032, %v1049
    %v1104 = vmul.f32 %v1033, %v1049
    %v1105 = vmul.f32 %v1034, %v1049
    %v1106 = vmul.f32 %v1035, %v1049
    %v1107 = vmul.f32 %v1036, %v1049
    %v1108 = vmul.f32 %v1037, %v1049
    %v1109 = vmul.f32 %v1038, %v1049
    %v1110 = vmul.f32 %v1039, %v1049
    %v1111 = vmul.f32 %v1040, %v1049
    %v1112 = vmul.f32 %v1041, %v1049
    %v1113 = vmul.f32 %v1042, %v1049
    %v1114 = vmul.f32 %v1043, %v1049
    %v1115 = vld [vmem:[%s4] sm:$0x1]
    %v1117 = vlaneseq
    %v1118 = vshrl.u32 %v1117, 7
    %v1119 = vsub.s32 0, %v1118
    %v1120 = vrot.slane %v1115, %v1119
    %v1122 = vadd.f32 %v1051, %v1120
    %v1123 = vadd.f32 %v1052, %v1120
    %v1124 = vadd.f32 %v1053, %v1120
    %v1125 = vadd.f32 %v1054, %v1120
    %v1126 = vadd.f32 %v1055, %v1120
    %v1127 = vadd.f32 %v1056, %v1120
    %v1128 = vadd.f32 %v1057, %v1120
    %v1129 = vadd.f32 %v1058, %v1120
    %v1130 = vadd.f32 %v1059, %v1120
    %v1131 = vadd.f32 %v1060, %v1120
    %v1132 = vadd.f32 %v1061, %v1120
    %v1133 = vadd.f32 %v1062, %v1120
    %v1134 = vadd.f32 %v1063, %v1120
    %v1135 = vadd.f32 %v1064, %v1120
    %v1136 = vadd.f32 %v1065, %v1120
    %v1137 = vadd.f32 %v1066, %v1120
    %v1138 = vadd.f32 %v1067, %v1120
    %v1139 = vadd.f32 %v1068, %v1120
    %v1140 = vadd.f32 %v1069, %v1120
    %v1141 = vadd.f32 %v1070, %v1120
    %v1142 = vadd.f32 %v1071, %v1120
    %v1143 = vadd.f32 %v1072, %v1120
    %v1144 = vadd.f32 %v1073, %v1120
    %v1145 = vadd.f32 %v1074, %v1120
    %v1146 = vadd.f32 %v1075, %v1120
    %v1147 = vadd.f32 %v1076, %v1120
    %v1148 = vadd.f32 %v1077, %v1120
    %v1149 = vadd.f32 %v1078, %v1120
    %v1150 = vadd.f32 %v1079, %v1120
    %v1151 = vadd.f32 %v1080, %v1120
    %v1152 = vadd.f32 %v1081, %v1120
    %v1153 = vadd.f32 %v1082, %v1120
    %v1154 = vadd.f32 %v1083, %v1120
    %v1155 = vadd.f32 %v1084, %v1120
    %v1156 = vadd.f32 %v1085, %v1120
    %v1157 = vadd.f32 %v1086, %v1120
    %v1158 = vadd.f32 %v1087, %v1120
    %v1159 = vadd.f32 %v1088, %v1120
    %v1160 = vadd.f32 %v1089, %v1120
    %v1161 = vadd.f32 %v1090, %v1120
    %v1162 = vadd.f32 %v1091, %v1120
    %v1163 = vadd.f32 %v1092, %v1120
    %v1164 = vadd.f32 %v1093, %v1120
    %v1165 = vadd.f32 %v1094, %v1120
    %v1166 = vadd.f32 %v1095, %v1120
    %v1167 = vadd.f32 %v1096, %v1120
    %v1168 = vadd.f32 %v1097, %v1120
    %v1169 = vadd.f32 %v1098, %v1120
    %v1170 = vadd.f32 %v1099, %v1120
    %v1171 = vadd.f32 %v1100, %v1120
    %v1172 = vadd.f32 %v1101, %v1120
    %v1173 = vadd.f32 %v1102, %v1120
    %v1174 = vadd.f32 %v1103, %v1120
    %v1175 = vadd.f32 %v1104, %v1120
    %v1176 = vadd.f32 %v1105, %v1120
    %v1177 = vadd.f32 %v1106, %v1120
    %v1178 = vadd.f32 %v1107, %v1120
    %v1179 = vadd.f32 %v1108, %v1120
    %v1180 = vadd.f32 %v1109, %v1120
    %v1181 = vadd.f32 %v1110, %v1120
    %v1182 = vadd.f32 %v1111, %v1120
    %v1183 = vadd.f32 %v1112, %v1120
    %v1184 = vadd.f32 %v1113, %v1120
    %v1185 = vadd.f32 %v1114, %v1120
    %vm1186 = vcmp.ge.f32.partialorder %v1122, 0.0
    %vm1187 = vcmp.ge.f32.partialorder %v1123, 0.0
    %vm1188 = vcmp.ge.f32.partialorder %v1124, 0.0
    %vm1189 = vcmp.ge.f32.partialorder %v1125, 0.0
    %vm1190 = vcmp.ge.f32.partialorder %v1126, 0.0
    %vm1191 = vcmp.ge.f32.partialorder %v1127, 0.0
    %vm1192 = vcmp.ge.f32.partialorder %v1128, 0.0
    %vm1193 = vcmp.ge.f32.partialorder %v1129, 0.0
    %vm1194 = vcmp.ge.f32.partialorder %v1130, 0.0
    %vm1195 = vcmp.ge.f32.partialorder %v1131, 0.0
    %vm1196 = vcmp.ge.f32.partialorder %v1132, 0.0
    %vm1197 = vcmp.ge.f32.partialorder %v1133, 0.0
    %vm1198 = vcmp.ge.f32.partialorder %v1134, 0.0
    %vm1199 = vcmp.ge.f32.partialorder %v1135, 0.0
    %vm1200 = vcmp.ge.f32.partialorder %v1136, 0.0
    %vm1201 = vcmp.ge.f32.partialorder %v1137, 0.0
    %vm1202 = vcmp.ge.f32.partialorder %v1138, 0.0
    %vm1203 = vcmp.ge.f32.partialorder %v1139, 0.0
    %vm1204 = vcmp.ge.f32.partialorder %v1140, 0.0
    %vm1205 = vcmp.ge.f32.partialorder %v1141, 0.0
    %vm1206 = vcmp.ge.f32.partialorder %v1142, 0.0
    %vm1207 = vcmp.ge.f32.partialorder %v1143, 0.0
    %vm1208 = vcmp.ge.f32.partialorder %v1144, 0.0
    %vm1209 = vcmp.ge.f32.partialorder %v1145, 0.0
    %vm1210 = vcmp.ge.f32.partialorder %v1146, 0.0
    %vm1211 = vcmp.ge.f32.partialorder %v1147, 0.0
    %vm1212 = vcmp.ge.f32.partialorder %v1148, 0.0
    %vm1213 = vcmp.ge.f32.partialorder %v1149, 0.0
    %vm1214 = vcmp.ge.f32.partialorder %v1150, 0.0
    %vm1215 = vcmp.ge.f32.partialorder %v1151, 0.0
    %vm1216 = vcmp.ge.f32.partialorder %v1152, 0.0
    %vm1217 = vcmp.ge.f32.partialorder %v1153, 0.0
    %vm1218 = vcmp.ge.f32.partialorder %v1154, 0.0
    %vm1219 = vcmp.ge.f32.partialorder %v1155, 0.0
    %vm1220 = vcmp.ge.f32.partialorder %v1156, 0.0
    %vm1221 = vcmp.ge.f32.partialorder %v1157, 0.0
    %vm1222 = vcmp.ge.f32.partialorder %v1158, 0.0
    %vm1223 = vcmp.ge.f32.partialorder %v1159, 0.0
    %vm1224 = vcmp.ge.f32.partialorder %v1160, 0.0
    %vm1225 = vcmp.ge.f32.partialorder %v1161, 0.0
    %vm1226 = vcmp.ge.f32.partialorder %v1162, 0.0
    %vm1227 = vcmp.ge.f32.partialorder %v1163, 0.0
    %vm1228 = vcmp.ge.f32.partialorder %v1164, 0.0
    %vm1229 = vcmp.ge.f32.partialorder %v1165, 0.0
    %vm1230 = vcmp.ge.f32.partialorder %v1166, 0.0
    %vm1231 = vcmp.ge.f32.partialorder %v1167, 0.0
    %vm1232 = vcmp.ge.f32.partialorder %v1168, 0.0
    %vm1233 = vcmp.ge.f32.partialorder %v1169, 0.0
    %vm1234 = vcmp.ge.f32.partialorder %v1170, 0.0
    %vm1235 = vcmp.ge.f32.partialorder %v1171, 0.0
    %vm1236 = vcmp.ge.f32.partialorder %v1172, 0.0
    %vm1237 = vcmp.ge.f32.partialorder %v1173, 0.0
    %vm1238 = vcmp.ge.f32.partialorder %v1174, 0.0
    %vm1239 = vcmp.ge.f32.partialorder %v1175, 0.0
    %vm1240 = vcmp.ge.f32.partialorder %v1176, 0.0
    %vm1241 = vcmp.ge.f32.partialorder %v1177, 0.0
    %vm1242 = vcmp.ge.f32.partialorder %v1178, 0.0
    %vm1243 = vcmp.ge.f32.partialorder %v1179, 0.0
    %vm1244 = vcmp.ge.f32.partialorder %v1180, 0.0
    %vm1245 = vcmp.ge.f32.partialorder %v1181, 0.0
    %vm1246 = vcmp.ge.f32.partialorder %v1182, 0.0
    %vm1247 = vcmp.ge.f32.partialorder %v1183, 0.0
    %vm1248 = vcmp.ge.f32.partialorder %v1184, 0.0
    %vm1249 = vcmp.ge.f32.partialorder %v1185, 0.0
    %v1250 = vmul.f32 %v1122, 0.1
    %v1251 = vmul.f32 %v1123, 0.1
    %v1252 = vmul.f32 %v1124, 0.1
    %v1253 = vmul.f32 %v1125, 0.1
    %v1254 = vmul.f32 %v1126, 0.1
    %v1255 = vmul.f32 %v1127, 0.1
    %v1256 = vmul.f32 %v1128, 0.1
    %v1257 = vmul.f32 %v1129, 0.1
    %v1258 = vmul.f32 %v1130, 0.1
    %v1259 = vmul.f32 %v1131, 0.1
    %v1260 = vmul.f32 %v1132, 0.1
    %v1261 = vmul.f32 %v1133, 0.1
    %v1262 = vmul.f32 %v1134, 0.1
    %v1263 = vmul.f32 %v1135, 0.1
    %v1264 = vmul.f32 %v1136, 0.1
    %v1265 = vmul.f32 %v1137, 0.1
    %v1266 = vmul.f32 %v1138, 0.1
    %v1267 = vmul.f32 %v1139, 0.1
    %v1268 = vmul.f32 %v1140, 0.1
    %v1269 = vmul.f32 %v1141, 0.1
    %v1270 = vmul.f32 %v1142, 0.1
    %v1271 = vmul.f32 %v1143, 0.1
    %v1272 = vmul.f32 %v1144, 0.1
    %v1273 = vmul.f32 %v1145, 0.1
    %v1274 = vmul.f32 %v1146, 0.1
    %v1275 = vmul.f32 %v1147, 0.1
    %v1276 = vmul.f32 %v1148, 0.1
    %v1277 = vmul.f32 %v1149, 0.1
    %v1278 = vmul.f32 %v1150, 0.1
    %v1279 = vmul.f32 %v1151, 0.1
    %v1280 = vmul.f32 %v1152, 0.1
    %v1281 = vmul.f32 %v1153, 0.1
    %v1282 = vmul.f32 %v1154, 0.1
    %v1283 = vmul.f32 %v1155, 0.1
    %v1284 = vmul.f32 %v1156, 0.1
    %v1285 = vmul.f32 %v1157, 0.1
    %v1286 = vmul.f32 %v1158, 0.1
    %v1287 = vmul.f32 %v1159, 0.1
    %v1288 = vmul.f32 %v1160, 0.1
    %v1289 = vmul.f32 %v1161, 0.1
    %v1290 = vmul.f32 %v1162, 0.1
    %v1291 = vmul.f32 %v1163, 0.1
    %v1292 = vmul.f32 %v1164, 0.1
    %v1293 = vmul.f32 %v1165, 0.1
    %v1294 = vmul.f32 %v1166, 0.1
    %v1295 = vmul.f32 %v1167, 0.1
    %v1296 = vmul.f32 %v1168, 0.1
    %v1297 = vmul.f32 %v1169, 0.1
    %v1298 = vmul.f32 %v1170, 0.1
    %v1299 = vmul.f32 %v1171, 0.1
    %v1300 = vmul.f32 %v1172, 0.1
    %v1301 = vmul.f32 %v1173, 0.1
    %v1302 = vmul.f32 %v1174, 0.1
    %v1303 = vmul.f32 %v1175, 0.1
    %v1304 = vmul.f32 %v1176, 0.1
    %v1305 = vmul.f32 %v1177, 0.1
    %v1306 = vmul.f32 %v1178, 0.1
    %v1307 = vmul.f32 %v1179, 0.1
    %v1308 = vmul.f32 %v1180, 0.1
    %v1309 = vmul.f32 %v1181, 0.1
    %v1310 = vmul.f32 %v1182, 0.1
    %v1311 = vmul.f32 %v1183, 0.1
    %v1312 = vmul.f32 %v1184, 0.1
    %v1313 = vmul.f32 %v1185, 0.1
    %v1314 = vsel %vm1186, %v1122, %v1250
    %v1315 = vsel %vm1187, %v1123, %v1251
    %v1316 = vsel %vm1188, %v1124, %v1252
    %v1317 = vsel %vm1189, %v1125, %v1253
    %v1318 = vsel %vm1190, %v1126, %v1254
    %v1319 = vsel %vm1191, %v1127, %v1255
    %v1320 = vsel %vm1192, %v1128, %v1256
    %v1321 = vsel %vm1193, %v1129, %v1257
    %v1322 = vsel %vm1194, %v1130, %v1258
    %v1323 = vsel %vm1195, %v1131, %v1259
    %v1324 = vsel %vm1196, %v1132, %v1260
    %v1325 = vsel %vm1197, %v1133, %v1261
    %v1326 = vsel %vm1198, %v1134, %v1262
    %v1327 = vsel %vm1199, %v1135, %v1263
    %v1328 = vsel %vm1200, %v1136, %v1264
    %v1329 = vsel %vm1201, %v1137, %v1265
    %v1330 = vsel %vm1202, %v1138, %v1266
    %v1331 = vsel %vm1203, %v1139, %v1267
    %v1332 = vsel %vm1204, %v1140, %v1268
    %v1333 = vsel %vm1205, %v1141, %v1269
    %v1334 = vsel %vm1206, %v1142, %v1270
    %v1335 = vsel %vm1207, %v1143, %v1271
    %v1336 = vsel %vm1208, %v1144, %v1272
    %v1337 = vsel %vm1209, %v1145, %v1273
    %v1338 = vsel %vm1210, %v1146, %v1274
    %v1339 = vsel %vm1211, %v1147, %v1275
    %v1340 = vsel %vm1212, %v1148, %v1276
    %v1341 = vsel %vm1213, %v1149, %v1277
    %v1342 = vsel %vm1214, %v1150, %v1278
    %v1343 = vsel %vm1215, %v1151, %v1279
    %v1344 = vsel %vm1216, %v1152, %v1280
    %v1345 = vsel %vm1217, %v1153, %v1281
    %v1346 = vsel %vm1218, %v1154, %v1282
    %v1347 = vsel %vm1219, %v1155, %v1283
    %v1348 = vsel %vm1220, %v1156, %v1284
    %v1349 = vsel %vm1221, %v1157, %v1285
    %v1350 = vsel %vm1222, %v1158, %v1286
    %v1351 = vsel %vm1223, %v1159, %v1287
    %v1352 = vsel %vm1224, %v1160, %v1288
    %v1353 = vsel %vm1225, %v1161, %v1289
    %v1354 = vsel %vm1226, %v1162, %v1290
    %v1355 = vsel %vm1227, %v1163, %v1291
    %v1356 = vsel %vm1228, %v1164, %v1292
    %v1357 = vsel %vm1229, %v1165, %v1293
    %v1358 = vsel %vm1230, %v1166, %v1294
    %v1359 = vsel %vm1231, %v1167, %v1295
    %v1360 = vsel %vm1232, %v1168, %v1296
    %v1361 = vsel %vm1233, %v1169, %v1297
    %v1362 = vsel %vm1234, %v1170, %v1298
    %v1363 = vsel %vm1235, %v1171, %v1299
    %v1364 = vsel %vm1236, %v1172, %v1300
    %v1365 = vsel %vm1237, %v1173, %v1301
    %v1366 = vsel %vm1238, %v1174, %v1302
    %v1367 = vsel %vm1239, %v1175, %v1303
    %v1368 = vsel %vm1240, %v1176, %v1304
    %v1369 = vsel %vm1241, %v1177, %v1305
    %v1370 = vsel %vm1242, %v1178, %v1306
    %v1371 = vsel %vm1243, %v1179, %v1307
    %v1372 = vsel %vm1244, %v1180, %v1308
    %v1373 = vsel %vm1245, %v1181, %v1309
    %v1374 = vsel %vm1246, %v1182, %v1310
    %v1375 = vsel %vm1247, %v1183, %v1311
    %v1376 = vsel %vm1248, %v1184, %v1312
    %v1377 = vsel %vm1249, %v1185, %v1313
    %v1378 = vpack.c.bf16 %v1315, %v1314
    %v1379 = vpack.c.bf16 %v1317, %v1316
    %v1380 = vpack.c.bf16 %v1319, %v1318
    %v1381 = vpack.c.bf16 %v1321, %v1320
    %v1382 = vpack.c.bf16 %v1323, %v1322
    %v1383 = vpack.c.bf16 %v1325, %v1324
    %v1384 = vpack.c.bf16 %v1327, %v1326
    %v1385 = vpack.c.bf16 %v1329, %v1328
    %v1386 = vpack.c.bf16 %v1331, %v1330
    %v1387 = vpack.c.bf16 %v1333, %v1332
    %v1388 = vpack.c.bf16 %v1335, %v1334
    %v1389 = vpack.c.bf16 %v1337, %v1336
    %v1390 = vpack.c.bf16 %v1339, %v1338
    %v1391 = vpack.c.bf16 %v1341, %v1340
    %v1392 = vpack.c.bf16 %v1343, %v1342
    %v1393 = vpack.c.bf16 %v1345, %v1344
    %v1394 = vpack.c.bf16 %v1347, %v1346
    %v1395 = vpack.c.bf16 %v1349, %v1348
    %v1396 = vpack.c.bf16 %v1351, %v1350
    %v1397 = vpack.c.bf16 %v1353, %v1352
    %v1398 = vpack.c.bf16 %v1355, %v1354
    %v1399 = vpack.c.bf16 %v1357, %v1356
    %v1400 = vpack.c.bf16 %v1359, %v1358
    %v1401 = vpack.c.bf16 %v1361, %v1360
    %v1402 = vpack.c.bf16 %v1363, %v1362
    %v1403 = vpack.c.bf16 %v1365, %v1364
    %v1404 = vpack.c.bf16 %v1367, %v1366
    %v1405 = vpack.c.bf16 %v1369, %v1368
    %v1406 = vpack.c.bf16 %v1371, %v1370
    %v1407 = vpack.c.bf16 %v1373, %v1372
    %v1408 = vpack.c.bf16 %v1375, %v1374
    %v1409 = vpack.c.bf16 %v1377, %v1376
    %v1410 = vld [vmem:[%s5] sm:$0xff]
    %v1411 = vld [vmem:[%s5 + $0x8] sm:$0xff]
    %v1412 = vld [vmem:[%s5 + $0x10] sm:$0xff]
    %v1413 = vld [vmem:[%s5 + $0x18] sm:$0xff]
    %v1414 = vld [vmem:[%s5 + $0x20] sm:$0xff]
    %v1415 = vld [vmem:[%s5 + $0x28] sm:$0xff]
    %v1416 = vld [vmem:[%s5 + $0x30] sm:$0xff]
    %v1417 = vld [vmem:[%s5 + $0x38] sm:$0xff]
    %v1418 = vld [vmem:[%s5 + $0x40] sm:$0xff]
    %v1419 = vld [vmem:[%s5 + $0x48] sm:$0xff]
    %v1420 = vld [vmem:[%s5 + $0x50] sm:$0xff]
    %v1421 = vld [vmem:[%s5 + $0x58] sm:$0xff]
    %v1422 = vld [vmem:[%s5 + $0x60] sm:$0xff]
    %v1423 = vld [vmem:[%s5 + $0x68] sm:$0xff]
    %v1424 = vld [vmem:[%s5 + $0x70] sm:$0xff]
    %v1425 = vld [vmem:[%s5 + $0x78] sm:$0xff]
    %v1426 = vld [vmem:[%s6] sm:$0x3]
    %v1428 = vlaneseq
    %v1429 = vshrl.u32 %v1428, 7
    %v1430 = vsub.s32 0, %v1429
    %v1431 = vrot.slane %v1426, %v1430
    %v1432 = vlaneseq
    %v1433 = vshrl.u32 %v1432, 7
    %v1434 = vsub.s32 1, %v1433
    %v1435 = vrot.slane %v1426, %v1434
    %v1454 = vunpack.c.l.b16 %v1410
    %v1455 = vunpack.c.h.b16 %v1410
    %v1456 = vunpack.c.l.b16 %v1411
    %v1457 = vunpack.c.h.b16 %v1411
    %v1458 = vunpack.c.l.b16 %v1412
    %v1459 = vunpack.c.h.b16 %v1412
    %v1460 = vunpack.c.l.b16 %v1413
    %v1461 = vunpack.c.h.b16 %v1413
    %v1462 = vunpack.c.l.b16 %v1414
    %v1463 = vunpack.c.h.b16 %v1414
    %v1464 = vunpack.c.l.b16 %v1415
    %v1465 = vunpack.c.h.b16 %v1415
    %v1466 = vunpack.c.l.b16 %v1416
    %v1467 = vunpack.c.h.b16 %v1416
    %v1468 = vunpack.c.l.b16 %v1417
    %v1469 = vunpack.c.h.b16 %v1417
    %v1470 = vunpack.c.l.b16 %v1418
    %v1471 = vunpack.c.h.b16 %v1418
    %v1472 = vunpack.c.l.b16 %v1419
    %v1473 = vunpack.c.h.b16 %v1419
    %v1474 = vunpack.c.l.b16 %v1420
    %v1475 = vunpack.c.h.b16 %v1420
    %v1476 = vunpack.c.l.b16 %v1421
    %v1477 = vunpack.c.h.b16 %v1421
    %v1478 = vunpack.c.l.b16 %v1422
    %v1479 = vunpack.c.h.b16 %v1422
    %v1480 = vunpack.c.l.b16 %v1423
    %v1481 = vunpack.c.h.b16 %v1423
    %v1482 = vunpack.c.l.b16 %v1424
    %v1483 = vunpack.c.h.b16 %v1424
    %v1484 = vunpack.c.l.b16 %v1425
    %v1485 = vunpack.c.h.b16 %v1425
    %v1486 = vpack.c.b16 %v1456, %v1454
    %v1487 = vpack.c.b16 %v1457, %v1455
    %v1488 = vpack.c.b16 %v1460, %v1458
    %v1489 = vpack.c.b16 %v1461, %v1459
    %v1490 = vpack.c.b16 %v1464, %v1462
    %v1491 = vpack.c.b16 %v1465, %v1463
    %v1492 = vpack.c.b16 %v1468, %v1466
    %v1493 = vpack.c.b16 %v1469, %v1467
    %v1494 = vpack.c.b16 %v1472, %v1470
    %v1495 = vpack.c.b16 %v1473, %v1471
    %v1496 = vpack.c.b16 %v1476, %v1474
    %v1497 = vpack.c.b16 %v1477, %v1475
    %v1498 = vpack.c.b16 %v1480, %v1478
    %v1499 = vpack.c.b16 %v1481, %v1479
    %v1500 = vpack.c.b16 %v1484, %v1482
    %v1501 = vpack.c.b16 %v1485, %v1483
    %1518 = vmatprep.subr.bf16.mxu0 %v1487
    %1519 = vmatpush1.bf16.msra.mxu0 %v1486
    %1520 = vmatprep.subr.bf16.mxu0 %v1489
    %1521 = vmatpush1.bf16.msra.mxu0 %v1488
    %1522 = vmatprep.subr.bf16.mxu0 %v1491
    %1523 = vmatpush1.bf16.msra.mxu0 %v1490
    %1524 = vmatprep.subr.bf16.mxu0 %v1493
    %1525 = vmatpush1.bf16.msra.mxu0 %v1492
    %1526 = vmatprep.subr.bf16.mxu0 %v1495
    %1527 = vmatpush1.bf16.msra.mxu0 %v1494
    %1528 = vmatprep.subr.bf16.mxu0 %v1497
    %1529 = vmatpush1.bf16.msra.mxu0 %v1496
    %1530 = vmatprep.subr.bf16.mxu0 %v1499
    %1531 = vmatpush1.bf16.msra.mxu0 %v1498
    %1532 = vmatprep.subr.bf16.mxu0 %v1501
    %1533 = vmatpush1.bf16.msra.mxu0 %v1500
    %1534 = vmatprep.subr.bf16.mxu0 0
    %1535 = vmatpush1.bf16.msra.mxu0 0
    %1536 = vmatprep.subr.bf16.mxu0 0
    %1537 = vmatpush1.bf16.msra.mxu0 0
    %1538 = vmatprep.subr.bf16.mxu0 0
    %1539 = vmatpush1.bf16.msra.mxu0 0
    %1540 = vmatprep.subr.bf16.mxu0 0
    %1541 = vmatpush1.bf16.msra.mxu0 0
    %1542 = vmatprep.subr.bf16.mxu0 0
    %1543 = vmatpush1.bf16.msra.mxu0 0
    %1544 = vmatprep.subr.bf16.mxu0 0
    %1545 = vmatpush1.bf16.msra.mxu0 0
    %1546 = vmatprep.subr.bf16.mxu0 0
    %1547 = vmatpush1.bf16.msra.mxu0 0
    %1548 = vmatprep.subr.bf16.mxu0 0
    %1549 = vmatpush1.bf16.msra.mxu0 0
    %1550 = vmatprep.mubr.bf16.mxu0 0
    %1551 = vmatmul.mubr.bf16.gmra.mrb[0].mxu0 %v1378
    %v1552 = vpop.f32.mrb[0].mxu0
    %v1553 = vadd.f32 %v1431, %v1552
    %v1554 = vpop.f32.mrb[0].mxu0
    %v1555 = vadd.f32 %v1435, %v1554
    %v1556 = vpop.f32.mrb[0].mxu0
    %v1557 = vadd.f32 %v1431, %v1556
    %v1558 = vpop.f32.mrb[0].mxu0
    %v1559 = vadd.f32 %v1435, %v1558
    %1560 = vmatprep.mubr.bf16.mxu0 0
    %1561 = vmatmul.mubr.bf16.gmra.mrb[0].mxu0 %v1379
    %v1562 = vpop.f32.mrb[0].mxu0
    %v1563 = vadd.f32 %v1431, %v1562
    %v1564 = vpop.f32.mrb[0].mxu0
    %v1565 = vadd.f32 %v1435, %v1564
    %v1566 = vpop.f32.mrb[0].mxu0
    %v1567 = vadd.f32 %v1431, %v1566
    %v1568 = vpop.f32.mrb[0].mxu0
    %v1569 = vadd.f32 %v1435, %v1568
    %1570 = vmatprep.mubr.bf16.mxu0 0
    %1571 = vmatmul.mubr.bf16.gmra.mrb[0].mxu0 %v1380
    %v1572 = vpop.f32.mrb[0].mxu0
    %v1573 = vadd.f32 %v1431, %v1572
    %v1574 = vpop.f32.mrb[0].mxu0
    %v1575 = vadd.f32 %v1435, %v1574
    %v1576 = vpop.f32.mrb[0].mxu0
    %v1577 = vadd.f32 %v1431, %v1576
    %v1578 = vpop.f32.mrb[0].mxu0
    %v1579 = vadd.f32 %v1435, %v1578
    %1580 = vmatprep.mubr.bf16.mxu0 0
    %1581 = vmatmul.mubr.bf16.gmra.mrb[0].mxu0 %v1381
    %v1582 = vpop.f32.mrb[0].mxu0
    %v1583 = vadd.f32 %v1431, %v1582
    %v1584 = vpop.f32.mrb[0].mxu0
    %v1585 = vadd.f32 %v1435, %v1584
    %v1586 = vpop.f32.mrb[0].mxu0
    %v1587 = vadd.f32 %v1431, %v1586
    %v1588 = vpop.f32.mrb[0].mxu0
    %v1589 = vadd.f32 %v1435, %v1588
    %1590 = vmatprep.mubr.bf16.mxu0 0
    %1591 = vmatmul.mubr.bf16.gmra.mrb[0].mxu0 %v1382
    %v1592 = vpop.f32.mrb[0].mxu0
    %v1593 = vadd.f32 %v1431, %v1592
    %v1594 = vpop.f32.mrb[0].mxu0
    %v1595 = vadd.f32 %v1435, %v1594
    %v1596 = vpop.f32.mrb[0].mxu0
    %v1597 = vadd.f32 %v1431, %v1596
    %v1598 = vpop.f32.mrb[0].mxu0
    %v1599 = vadd.f32 %v1435, %v1598
    %1600 = vmatprep.mubr.bf16.mxu0 0
    %1601 = vmatmul.mubr.bf16.gmra.mrb[0].mxu0 %v1383
    %v1602 = vpop.f32.mrb[0].mxu0
    %v1603 = vadd.f32 %v1431, %v1602
    %v1604 = vpop.f32.mrb[0].mxu0
    %v1605 = vadd.f32 %v1435, %v1604
    %v1606 = vpop.f32.mrb[0].mxu0
    %v1607 = vadd.f32 %v1431, %v1606
    %v1608 = vpop.f32.mrb[0].mxu0
    %v1609 = vadd.f32 %v1435, %v1608
    %1610 = vmatprep.mubr.bf16.mxu0 0
    %1611 = vmatmul.mubr.bf16.gmra.mrb[0].mxu0 %v1384
    %v1612 = vpop.f32.mrb[0].mxu0
    %v1613 = vadd.f32 %v1431, %v1612
    %v1614 = vpop.f32.mrb[0].mxu0
    %v1615 = vadd.f32 %v1435, %v1614
    %v1616 = vpop.f32.mrb[0].mxu0
    %v1617 = vadd.f32 %v1431, %v1616
    %v1618 = vpop.f32.mrb[0].mxu0
    %v1619 = vadd.f32 %v1435, %v1618
    %1620 = vmatprep.mubr.bf16.mxu0 0
    %1621 = vmatmul.mubr.bf16.gmra.mrb[0].mxu0 %v1385
    %v1622 = vpop.f32.mrb[0].mxu0
    %v1623 = vadd.f32 %v1431, %v1622
    %v1624 = vpop.f32.mrb[0].mxu0
    %v1625 = vadd.f32 %v1435, %v1624
    %v1626 = vpop.f32.mrb[0].mxu0
    %v1627 = vadd.f32 %v1431, %v1626
    %v1628 = vpop.f32.mrb[0].mxu0
    %v1629 = vadd.f32 %v1435, %v1628
    %1630 = vmatprep.mubr.bf16.mxu0 0
    %1631 = vmatmul.mubr.bf16.gmra.mrb[0].mxu0 %v1386
    %v1632 = vpop.f32.mrb[0].mxu0
    %v1633 = vadd.f32 %v1431, %v1632
    %v1634 = vpop.f32.mrb[0].mxu0
    %v1635 = vadd.f32 %v1435, %v1634
    %v1636 = vpop.f32.mrb[0].mxu0
    %v1637 = vadd.f32 %v1431, %v1636
    %v1638 = vpop.f32.mrb[0].mxu0
    %v1639 = vadd.f32 %v1435, %v1638
    %1640 = vmatprep.mubr.bf16.mxu0 0
    %1641 = vmatmul.mubr.bf16.gmra.mrb[0].mxu0 %v1387
    %v1642 = vpop.f32.mrb[0].mxu0
    %v1643 = vadd.f32 %v1431, %v1642
    %v1644 = vpop.f32.mrb[0].mxu0
    %v1645 = vadd.f32 %v1435, %v1644
    %v1646 = vpop.f32.mrb[0].mxu0
    %v1647 = vadd.f32 %v1431, %v1646
    %v1648 = vpop.f32.mrb[0].mxu0
    %v1649 = vadd.f32 %v1435, %v1648
    %1650 = vmatprep.mubr.bf16.mxu0 0
    %1651 = vmatmul.mubr.bf16.gmra.mrb[0].mxu0 %v1388
    %v1652 = vpop.f32.mrb[0].mxu0
    %v1653 = vadd.f32 %v1431, %v1652
    %v1654 = vpop.f32.mrb[0].mxu0
    %v1655 = vadd.f32 %v1435, %v1654
    %v1656 = vpop.f32.mrb[0].mxu0
    %v1657 = vadd.f32 %v1431, %v1656
    %v1658 = vpop.f32.mrb[0].mxu0
    %v1659 = vadd.f32 %v1435, %v1658
    %1660 = vmatprep.mubr.bf16.mxu0 0
    %1661 = vmatmul.mubr.bf16.gmra.mrb[0].mxu0 %v1389
    %v1662 = vpop.f32.mrb[0].mxu0
    %v1663 = vadd.f32 %v1431, %v1662
    %v1664 = vpop.f32.mrb[0].mxu0
    %v1665 = vadd.f32 %v1435, %v1664
    %v1666 = vpop.f32.mrb[0].mxu0
    %v1667 = vadd.f32 %v1431, %v1666
    %v1668 = vpop.f32.mrb[0].mxu0
    %v1669 = vadd.f32 %v1435, %v1668
    %1670 = vmatprep.mubr.bf16.mxu0 0
    %1671 = vmatmul.mubr.bf16.gmra.mrb[0].mxu0 %v1390
    %v1672 = vpop.f32.mrb[0].mxu0
    %v1673 = vadd.f32 %v1431, %v1672
    %v1674 = vpop.f32.mrb[0].mxu0
    %v1675 = vadd.f32 %v1435, %v1674
    %v1676 = vpop.f32.mrb[0].mxu0
    %v1677 = vadd.f32 %v1431, %v1676
    %v1678 = vpop.f32.mrb[0].mxu0
    %v1679 = vadd.f32 %v1435, %v1678
    %1680 = vmatprep.mubr.bf16.mxu0 0
    %1681 = vmatmul.mubr.bf16.gmra.mrb[0].mxu0 %v1391
    %v1682 = vpop.f32.mrb[0].mxu0
    %v1683 = vadd.f32 %v1431, %v1682
    %v1684 = vpop.f32.mrb[0].mxu0
    %v1685 = vadd.f32 %v1435, %v1684
    %v1686 = vpop.f32.mrb[0].mxu0
    %v1687 = vadd.f32 %v1431, %v1686
    %v1688 = vpop.f32.mrb[0].mxu0
    %v1689 = vadd.f32 %v1435, %v1688
    %1690 = vmatprep.mubr.bf16.mxu0 0
    %1691 = vmatmul.mubr.bf16.gmra.mrb[0].mxu0 %v1392
    %v1692 = vpop.f32.mrb[0].mxu0
    %v1693 = vadd.f32 %v1431, %v1692
    %v1694 = vpop.f32.mrb[0].mxu0
    %v1695 = vadd.f32 %v1435, %v1694
    %v1696 = vpop.f32.mrb[0].mxu0
    %v1697 = vadd.f32 %v1431, %v1696
    %v1698 = vpop.f32.mrb[0].mxu0
    %v1699 = vadd.f32 %v1435, %v1698
    %1700 = vmatprep.mubr.bf16.mxu0 0
    %1701 = vmatmul.mubr.bf16.gmra.mrb[0].mxu0 %v1393
    %v1702 = vpop.f32.mrb[0].mxu0
    %v1703 = vadd.f32 %v1431, %v1702
    %v1704 = vpop.f32.mrb[0].mxu0
    %v1705 = vadd.f32 %v1435, %v1704
    %v1706 = vpop.f32.mrb[0].mxu0
    %v1707 = vadd.f32 %v1431, %v1706
    %v1708 = vpop.f32.mrb[0].mxu0
    %v1709 = vadd.f32 %v1435, %v1708
    %1710 = vmatprep.mubr.bf16.mxu0 0
    %1711 = vmatmul.mubr.bf16.gmra.mrb[0].mxu0 %v1394
    %v1712 = vpop.f32.mrb[0].mxu0
    %v1713 = vadd.f32 %v1431, %v1712
    %v1714 = vpop.f32.mrb[0].mxu0
    %v1715 = vadd.f32 %v1435, %v1714
    %v1716 = vpop.f32.mrb[0].mxu0
    %v1717 = vadd.f32 %v1431, %v1716
    %v1718 = vpop.f32.mrb[0].mxu0
    %v1719 = vadd.f32 %v1435, %v1718
    %1720 = vmatprep.mubr.bf16.mxu0 0
    %1721 = vmatmul.mubr.bf16.gmra.mrb[0].mxu0 %v1395
    %v1722 = vpop.f32.mrb[0].mxu0
    %v1723 = vadd.f32 %v1431, %v1722
    %v1724 = vpop.f32.mrb[0].mxu0
    %v1725 = vadd.f32 %v1435, %v1724
    %v1726 = vpop.f32.mrb[0].mxu0
    %v1727 = vadd.f32 %v1431, %v1726
    %v1728 = vpop.f32.mrb[0].mxu0
    %v1729 = vadd.f32 %v1435, %v1728
    %1730 = vmatprep.mubr.bf16.mxu0 0
    %1731 = vmatmul.mubr.bf16.gmra.mrb[0].mxu0 %v1396
    %v1732 = vpop.f32.mrb[0].mxu0
    %v1733 = vadd.f32 %v1431, %v1732
    %v1734 = vpop.f32.mrb[0].mxu0
    %v1735 = vadd.f32 %v1435, %v1734
    %v1736 = vpop.f32.mrb[0].mxu0
    %v1737 = vadd.f32 %v1431, %v1736
    %v1738 = vpop.f32.mrb[0].mxu0
    %v1739 = vadd.f32 %v1435, %v1738
    %1740 = vmatprep.mubr.bf16.mxu0 0
    %1741 = vmatmul.mubr.bf16.gmra.mrb[0].mxu0 %v1397
    %v1742 = vpop.f32.mrb[0].mxu0
    %v1743 = vadd.f32 %v1431, %v1742
    %v1744 = vpop.f32.mrb[0].mxu0
    %v1745 = vadd.f32 %v1435, %v1744
    %v1746 = vpop.f32.mrb[0].mxu0
    %v1747 = vadd.f32 %v1431, %v1746
    %v1748 = vpop.f32.mrb[0].mxu0
    %v1749 = vadd.f32 %v1435, %v1748
    %1750 = vmatprep.mubr.bf16.mxu0 0
    %1751 = vmatmul.mubr.bf16.gmra.mrb[0].mxu0 %v1398
    %v1752 = vpop.f32.mrb[0].mxu0
    %v1753 = vadd.f32 %v1431, %v1752
    %v1754 = vpop.f32.mrb[0].mxu0
    %v1755 = vadd.f32 %v1435, %v1754
    %v1756 = vpop.f32.mrb[0].mxu0
    %v1757 = vadd.f32 %v1431, %v1756
    %v1758 = vpop.f32.mrb[0].mxu0
    %v1759 = vadd.f32 %v1435, %v1758
    %1760 = vmatprep.mubr.bf16.mxu0 0
    %1761 = vmatmul.mubr.bf16.gmra.mrb[0].mxu0 %v1399
    %v1762 = vpop.f32.mrb[0].mxu0
    %v1763 = vadd.f32 %v1431, %v1762
    %v1764 = vpop.f32.mrb[0].mxu0
    %v1765 = vadd.f32 %v1435, %v1764
    %v1766 = vpop.f32.mrb[0].mxu0
    %v1767 = vadd.f32 %v1431, %v1766
    %v1768 = vpop.f32.mrb[0].mxu0
    %v1769 = vadd.f32 %v1435, %v1768
    %1770 = vmatprep.mubr.bf16.mxu0 0
    %1771 = vmatmul.mubr.bf16.gmra.mrb[0].mxu0 %v1400
    %v1772 = vpop.f32.mrb[0].mxu0
    %v1773 = vadd.f32 %v1431, %v1772
    %v1774 = vpop.f32.mrb[0].mxu0
    %v1775 = vadd.f32 %v1435, %v1774
    %v1776 = vpop.f32.mrb[0].mxu0
    %v1777 = vadd.f32 %v1431, %v1776
    %v1778 = vpop.f32.mrb[0].mxu0
    %v1779 = vadd.f32 %v1435, %v1778
    %1780 = vmatprep.mubr.bf16.mxu0 0
    %1781 = vmatmul.mubr.bf16.gmra.mrb[0].mxu0 %v1401
    %v1782 = vpop.f32.mrb[0].mxu0
    %v1783 = vadd.f32 %v1431, %v1782
    %v1784 = vpop.f32.mrb[0].mxu0
    %v1785 = vadd.f32 %v1435, %v1784
    %v1786 = vpop.f32.mrb[0].mxu0
    %v1787 = vadd.f32 %v1431, %v1786
    %v1788 = vpop.f32.mrb[0].mxu0
    %v1789 = vadd.f32 %v1435, %v1788
    %1790 = vmatprep.mubr.bf16.mxu0 0
    %1791 = vmatmul.mubr.bf16.gmra.mrb[0].mxu0 %v1402
    %v1792 = vpop.f32.mrb[0].mxu0
    %v1793 = vadd.f32 %v1431, %v1792
    %v1794 = vpop.f32.mrb[0].mxu0
    %v1795 = vadd.f32 %v1435, %v1794
    %v1796 = vpop.f32.mrb[0].mxu0
    %v1797 = vadd.f32 %v1431, %v1796
    %v1798 = vpop.f32.mrb[0].mxu0
    %v1799 = vadd.f32 %v1435, %v1798
    %1800 = vmatprep.mubr.bf16.mxu0 0
    %1801 = vmatmul.mubr.bf16.gmra.mrb[0].mxu0 %v1403
    %v1802 = vpop.f32.mrb[0].mxu0
    %v1803 = vadd.f32 %v1431, %v1802
    %v1804 = vpop.f32.mrb[0].mxu0
    %v1805 = vadd.f32 %v1435, %v1804
    %v1806 = vpop.f32.mrb[0].mxu0
    %v1807 = vadd.f32 %v1431, %v1806
    %v1808 = vpop.f32.mrb[0].mxu0
    %v1809 = vadd.f32 %v1435, %v1808
    %1810 = vmatprep.mubr.bf16.mxu0 0
    %1811 = vmatmul.mubr.bf16.gmra.mrb[0].mxu0 %v1404
    %v1812 = vpop.f32.mrb[0].mxu0
    %v1813 = vadd.f32 %v1431, %v1812
    %v1814 = vpop.f32.mrb[0].mxu0
    %v1815 = vadd.f32 %v1435, %v1814
    %v1816 = vpop.f32.mrb[0].mxu0
    %v1817 = vadd.f32 %v1431, %v1816
    %v1818 = vpop.f32.mrb[0].mxu0
    %v1819 = vadd.f32 %v1435, %v1818
    %1820 = vmatprep.mubr.bf16.mxu0 0
    %1821 = vmatmul.mubr.bf16.gmra.mrb[0].mxu0 %v1405
    %v1822 = vpop.f32.mrb[0].mxu0
    %v1823 = vadd.f32 %v1431, %v1822
    %v1824 = vpop.f32.mrb[0].mxu0
    %v1825 = vadd.f32 %v1435, %v1824
    %v1826 = vpop.f32.mrb[0].mxu0
    %v1827 = vadd.f32 %v1431, %v1826
    %v1828 = vpop.f32.mrb[0].mxu0
    %v1829 = vadd.f32 %v1435, %v1828
    %1830 = vmatprep.mubr.bf16.mxu0 0
    %1831 = vmatmul.mubr.bf16.gmra.mrb[0].mxu0 %v1406
    %v1832 = vpop.f32.mrb[0].mxu0
    %v1833 = vadd.f32 %v1431, %v1832
    %v1834 = vpop.f32.mrb[0].mxu0
    %v1835 = vadd.f32 %v1435, %v1834
    %v1836 = vpop.f32.mrb[0].mxu0
    %v1837 = vadd.f32 %v1431, %v1836
    %v1838 = vpop.f32.mrb[0].mxu0
    %v1839 = vadd.f32 %v1435, %v1838
    %1840 = vmatprep.mubr.bf16.mxu0 0
    %1841 = vmatmul.mubr.bf16.gmra.mrb[0].mxu0 %v1407
    %v1842 = vpop.f32.mrb[0].mxu0
    %v1843 = vadd.f32 %v1431, %v1842
    %v1844 = vpop.f32.mrb[0].mxu0
    %v1845 = vadd.f32 %v1435, %v1844
    %v1846 = vpop.f32.mrb[0].mxu0
    %v1847 = vadd.f32 %v1431, %v1846
    %v1848 = vpop.f32.mrb[0].mxu0
    %v1849 = vadd.f32 %v1435, %v1848
    %1850 = vmatprep.mubr.bf16.mxu0 0
    %1851 = vmatmul.mubr.bf16.gmra.mrb[0].mxu0 %v1408
    %v1852 = vpop.f32.mrb[0].mxu0
    %v1853 = vadd.f32 %v1431, %v1852
    %v1854 = vpop.f32.mrb[0].mxu0
    %v1855 = vadd.f32 %v1435, %v1854
    %v1856 = vpop.f32.mrb[0].mxu0
    %v1857 = vadd.f32 %v1431, %v1856
    %v1858 = vpop.f32.mrb[0].mxu0
    %v1859 = vadd.f32 %v1435, %v1858
    %1860 = vmatprep.mubr.bf16.mxu0 0
    %1861 = vmatmul.mubr.bf16.gmra.mrb[0].mxu0 %v1409
    %v1862 = vpop.f32.mrb[0].mxu0
    %v1863 = vadd.f32 %v1431, %v1862
    %v1864 = vpop.f32.mrb[0].mxu0
    %v1865 = vadd.f32 %v1435, %v1864
    %v1866 = vpop.f32.mrb[0].mxu0
    %v1867 = vadd.f32 %v1431, %v1866
    %v1868 = vpop.f32.mrb[0].mxu0
    %v1869 = vadd.f32 %v1435, %v1868
    %1870 = vdwg.mxu0
    %v1871 = vadd.f32 %v1553, %v1557
    %v1872 = vadd.f32 %v1871, %v1563
    %v1873 = vadd.f32 %v1872, %v1567
    %v1874 = vadd.f32 %v1873, %v1573
    %v1875 = vadd.f32 %v1874, %v1577
    %v1876 = vadd.f32 %v1875, %v1583
    %v1877 = vadd.f32 %v1876, %v1587
    %v1878 = vadd.f32 %v1877, %v1593
    %v1879 = vadd.f32 %v1878, %v1597
    %v1880 = vadd.f32 %v1879, %v1603
    %v1881 = vadd.f32 %v1880, %v1607
    %v1882 = vadd.f32 %v1881, %v1613
    %v1883 = vadd.f32 %v1882, %v1617
    %v1884 = vadd.f32 %v1883, %v1623
    %v1885 = vadd.f32 %v1884, %v1627
    %v1886 = vadd.f32 %v1885, %v1633
    %v1887 = vadd.f32 %v1886, %v1637
    %v1888 = vadd.f32 %v1887, %v1643
    %v1889 = vadd.f32 %v1888, %v1647
    %v1890 = vadd.f32 %v1889, %v1653
    %v1891 = vadd.f32 %v1890, %v1657
    %v1892 = vadd.f32 %v1891, %v1663
    %v1893 = vadd.f32 %v1892, %v1667
    %v1894 = vadd.f32 %v1893, %v1673
    %v1895 = vadd.f32 %v1894, %v1677
    %v1896 = vadd.f32 %v1895, %v1683
    %v1897 = vadd.f32 %v1896, %v1687
    %v1898 = vadd.f32 %v1897, %v1693
    %v1899 = vadd.f32 %v1898, %v1697
    %v1900 = vadd.f32 %v1899, %v1703
    %v1901 = vadd.f32 %v1900, %v1707
    %v1902 = vadd.f32 %v1901, %v1713
    %v1903 = vadd.f32 %v1902, %v1717
    %v1904 = vadd.f32 %v1903, %v1723
    %v1905 = vadd.f32 %v1904, %v1727
    %v1906 = vadd.f32 %v1905, %v1733
    %v1907 = vadd.f32 %v1906, %v1737
    %v1908 = vadd.f32 %v1907, %v1743
    %v1909 = vadd.f32 %v1908, %v1747
    %v1910 = vadd.f32 %v1909, %v1753
    %v1911 = vadd.f32 %v1910, %v1757
    %v1912 = vadd.f32 %v1911, %v1763
    %v1913 = vadd.f32 %v1912, %v1767
    %v1914 = vadd.f32 %v1913, %v1773
    %v1915 = vadd.f32 %v1914, %v1777
    %v1916 = vadd.f32 %v1915, %v1783
    %v1917 = vadd.f32 %v1916, %v1787
    %v1918 = vadd.f32 %v1917, %v1793
    %v1919 = vadd.f32 %v1918, %v1797
    %v1920 = vadd.f32 %v1919, %v1803
    %v1921 = vadd.f32 %v1920, %v1807
    %v1922 = vadd.f32 %v1921, %v1813
    %v1923 = vadd.f32 %v1922, %v1817
    %v1924 = vadd.f32 %v1923, %v1823
    %v1925 = vadd.f32 %v1924, %v1827
    %v1926 = vadd.f32 %v1925, %v1833
    %v1927 = vadd.f32 %v1926, %v1837
    %v1928 = vadd.f32 %v1927, %v1843
    %v1929 = vadd.f32 %v1928, %v1847
    %v1930 = vadd.f32 %v1929, %v1853
    %v1931 = vadd.f32 %v1930, %v1857
    %v1932 = vadd.f32 %v1931, %v1863
    %v1933 = vadd.f32 %v1932, %v1867
    %v1934 = vrot.slane %v1933, 4
    %v1935 = vadd.f32 %v1933, %v1934
    %v1936 = vrot.slane %v1935, 2
    %v1937 = vadd.f32 %v1935, %v1936
    %v1938 = vrot.slane %v1937, 1
    %v1939 = vadd.f32 %v1937, %v1938
    %v1940 = vadd.f32 %v1555, %v1559
    %v1941 = vadd.f32 %v1940, %v1565
    %v1942 = vadd.f32 %v1941, %v1569
    %v1943 = vadd.f32 %v1942, %v1575
    %v1944 = vadd.f32 %v1943, %v1579
    %v1945 = vadd.f32 %v1944, %v1585
    %v1946 = vadd.f32 %v1945, %v1589
    %v1947 = vadd.f32 %v1946, %v1595
    %v1948 = vadd.f32 %v1947, %v1599
    %v1949 = vadd.f32 %v1948, %v1605
    %v1950 = vadd.f32 %v1949, %v1609
    %v1951 = vadd.f32 %v1950, %v1615
    %v1952 = vadd.f32 %v1951, %v1619
    %v1953 = vadd.f32 %v1952, %v1625
    %v1954 = vadd.f32 %v1953, %v1629
    %v1955 = vadd.f32 %v1954, %v1635
    %v1956 = vadd.f32 %v1955, %v1639
    %v1957 = vadd.f32 %v1956, %v1645
    %v1958 = vadd.f32 %v1957, %v1649
    %v1959 = vadd.f32 %v1958, %v1655
    %v1960 = vadd.f32 %v1959, %v1659
    %v1961 = vadd.f32 %v1960, %v1665
    %v1962 = vadd.f32 %v1961, %v1669
    %v1963 = vadd.f32 %v1962, %v1675
    %v1964 = vadd.f32 %v1963, %v1679
    %v1965 = vadd.f32 %v1964, %v1685
    %v1966 = vadd.f32 %v1965, %v1689
    %v1967 = vadd.f32 %v1966, %v1695
    %v1968 = vadd.f32 %v1967, %v1699
    %v1969 = vadd.f32 %v1968, %v1705
    %v1970 = vadd.f32 %v1969, %v1709
    %v1971 = vadd.f32 %v1970, %v1715
    %v1972 = vadd.f32 %v1971, %v1719
    %v1973 = vadd.f32 %v1972, %v1725
    %v1974 = vadd.f32 %v1973, %v1729
    %v1975 = vadd.f32 %v1974, %v1735
    %v1976 = vadd.f32 %v1975, %v1739
    %v1977 = vadd.f32 %v1976, %v1745
    %v1978 = vadd.f32 %v1977, %v1749
    %v1979 = vadd.f32 %v1978, %v1755
    %v1980 = vadd.f32 %v1979, %v1759
    %v1981 = vadd.f32 %v1980, %v1765
    %v1982 = vadd.f32 %v1981, %v1769
    %v1983 = vadd.f32 %v1982, %v1775
    %v1984 = vadd.f32 %v1983, %v1779
    %v1985 = vadd.f32 %v1984, %v1785
    %v1986 = vadd.f32 %v1985, %v1789
    %v1987 = vadd.f32 %v1986, %v1795
    %v1988 = vadd.f32 %v1987, %v1799
    %v1989 = vadd.f32 %v1988, %v1805
    %v1990 = vadd.f32 %v1989, %v1809
    %v1991 = vadd.f32 %v1990, %v1815
    %v1992 = vadd.f32 %v1991, %v1819
    %v1993 = vadd.f32 %v1992, %v1825
    %v1994 = vadd.f32 %v1993, %v1829
    %v1995 = vadd.f32 %v1994, %v1835
    %v1996 = vadd.f32 %v1995, %v1839
    %v1997 = vadd.f32 %v1996, %v1845
    %v1998 = vadd.f32 %v1997, %v1849
    %v1999 = vadd.f32 %v1998, %v1855
    %v2000 = vadd.f32 %v1999, %v1859
    %v2001 = vadd.f32 %v2000, %v1865
    %v2002 = vadd.f32 %v2001, %v1869
    %v2003 = vrot.slane %v2002, 4
    %v2004 = vadd.f32 %v2002, %v2003
    %v2005 = vrot.slane %v2004, 2
    %v2006 = vadd.f32 %v2004, %v2005
    %v2007 = vrot.slane %v2006, 1
    %v2008 = vadd.f32 %v2006, %v2007
    %v2009 = vmul.f32 %v1939, 0.001953125
    %v2010 = vmul.f32 %v2008, 0.001953125
    %v2011 = vmul.f32 %v1553, %v1553
    %v2012 = vmul.f32 %v1555, %v1555
    %v2013 = vmul.f32 %v1557, %v1557
    %v2014 = vmul.f32 %v1559, %v1559
    %v2015 = vmul.f32 %v1563, %v1563
    %v2016 = vmul.f32 %v1565, %v1565
    %v2017 = vmul.f32 %v1567, %v1567
    %v2018 = vmul.f32 %v1569, %v1569
    %v2019 = vmul.f32 %v1573, %v1573
    %v2020 = vmul.f32 %v1575, %v1575
    %v2021 = vmul.f32 %v1577, %v1577
    %v2022 = vmul.f32 %v1579, %v1579
    %v2023 = vmul.f32 %v1583, %v1583
    %v2024 = vmul.f32 %v1585, %v1585
    %v2025 = vmul.f32 %v1587, %v1587
    %v2026 = vmul.f32 %v1589, %v1589
    %v2027 = vmul.f32 %v1593, %v1593
    %v2028 = vmul.f32 %v1595, %v1595
    %v2029 = vmul.f32 %v1597, %v1597
    %v2030 = vmul.f32 %v1599, %v1599
    %v2031 = vmul.f32 %v1603, %v1603
    %v2032 = vmul.f32 %v1605, %v1605
    %v2033 = vmul.f32 %v1607, %v1607
    %v2034 = vmul.f32 %v1609, %v1609
    %v2035 = vmul.f32 %v1613, %v1613
    %v2036 = vmul.f32 %v1615, %v1615
    %v2037 = vmul.f32 %v1617, %v1617
    %v2038 = vmul.f32 %v1619, %v1619
    %v2039 = vmul.f32 %v1623, %v1623
    %v2040 = vmul.f32 %v1625, %v1625
    %v2041 = vmul.f32 %v1627, %v1627
    %v2042 = vmul.f32 %v1629, %v1629
    %v2043 = vmul.f32 %v1633, %v1633
    %v2044 = vmul.f32 %v1635, %v1635
    %v2045 = vmul.f32 %v1637, %v1637
    %v2046 = vmul.f32 %v1639, %v1639
    %v2047 = vmul.f32 %v1643, %v1643
    %v2048 = vmul.f32 %v1645, %v1645
    %v2049 = vmul.f32 %v1647, %v1647
    %v2050 = vmul.f32 %v1649, %v1649
    %v2051 = vmul.f32 %v1653, %v1653
    %v2052 = vmul.f32 %v1655, %v1655
    %v2053 = vmul.f32 %v1657, %v1657
    %v2054 = vmul.f32 %v1659, %v1659
    %v2055 = vmul.f32 %v1663, %v1663
    %v2056 = vmul.f32 %v1665, %v1665
    %v2057 = vmul.f32 %v1667, %v1667
    %v2058 = vmul.f32 %v1669, %v1669
    %v2059 = vmul.f32 %v1673, %v1673
    %v2060 = vmul.f32 %v1675, %v1675
    %v2061 = vmul.f32 %v1677, %v1677
    %v2062 = vmul.f32 %v1679, %v1679
    %v2063 = vmul.f32 %v1683, %v1683
    %v2064 = vmul.f32 %v1685, %v1685
    %v2065 = vmul.f32 %v1687, %v1687
    %v2066 = vmul.f32 %v1689, %v1689
    %v2067 = vmul.f32 %v1693, %v1693
    %v2068 = vmul.f32 %v1695, %v1695
    %v2069 = vmul.f32 %v1697, %v1697
    %v2070 = vmul.f32 %v1699, %v1699
    %v2071 = vmul.f32 %v1703, %v1703
    %v2072 = vmul.f32 %v1705, %v1705
    %v2073 = vmul.f32 %v1707, %v1707
    %v2074 = vmul.f32 %v1709, %v1709
    %v2075 = vmul.f32 %v1713, %v1713
    %v2076 = vmul.f32 %v1715, %v1715
    %v2077 = vmul.f32 %v1717, %v1717
    %v2078 = vmul.f32 %v1719, %v1719
    %v2079 = vmul.f32 %v1723, %v1723
    %v2080 = vmul.f32 %v1725, %v1725
    %v2081 = vmul.f32 %v1727, %v1727
    %v2082 = vmul.f32 %v1729, %v1729
    %v2083 = vmul.f32 %v1733, %v1733
    %v2084 = vmul.f32 %v1735, %v1735
    %v2085 = vmul.f32 %v1737, %v1737
    %v2086 = vmul.f32 %v1739, %v1739
    %v2087 = vmul.f32 %v1743, %v1743
    %v2088 = vmul.f32 %v1745, %v1745
    %v2089 = vmul.f32 %v1747, %v1747
    %v2090 = vmul.f32 %v1749, %v1749
    %v2091 = vmul.f32 %v1753, %v1753
    %v2092 = vmul.f32 %v1755, %v1755
    %v2093 = vmul.f32 %v1757, %v1757
    %v2094 = vmul.f32 %v1759, %v1759
    %v2095 = vmul.f32 %v1763, %v1763
    %v2096 = vmul.f32 %v1765, %v1765
    %v2097 = vmul.f32 %v1767, %v1767
    %v2098 = vmul.f32 %v1769, %v1769
    %v2099 = vmul.f32 %v1773, %v1773
    %v2100 = vmul.f32 %v1775, %v1775
    %v2101 = vmul.f32 %v1777, %v1777
    %v2102 = vmul.f32 %v1779, %v1779
    %v2103 = vmul.f32 %v1783, %v1783
    %v2104 = vmul.f32 %v1785, %v1785
    %v2105 = vmul.f32 %v1787, %v1787
    %v2106 = vmul.f32 %v1789, %v1789
    %v2107 = vmul.f32 %v1793, %v1793
    %v2108 = vmul.f32 %v1795, %v1795
    %v2109 = vmul.f32 %v1797, %v1797
    %v2110 = vmul.f32 %v1799, %v1799
    %v2111 = vmul.f32 %v1803, %v1803
    %v2112 = vmul.f32 %v1805, %v1805
    %v2113 = vmul.f32 %v1807, %v1807
    %v2114 = vmul.f32 %v1809, %v1809
    %v2115 = vmul.f32 %v1813, %v1813
    %v2116 = vmul.f32 %v1815, %v1815
    %v2117 = vmul.f32 %v1817, %v1817
    %v2118 = vmul.f32 %v1819, %v1819
    %v2119 = vmul.f32 %v1823, %v1823
    %v2120 = vmul.f32 %v1825, %v1825
    %v2121 = vmul.f32 %v1827, %v1827
    %v2122 = vmul.f32 %v1829, %v1829
    %v2123 = vmul.f32 %v1833, %v1833
    %v2124 = vmul.f32 %v1835, %v1835
    %v2125 = vmul.f32 %v1837, %v1837
    %v2126 = vmul.f32 %v1839, %v1839
    %v2127 = vmul.f32 %v1843, %v1843
    %v2128 = vmul.f32 %v1845, %v1845
    %v2129 = vmul.f32 %v1847, %v1847
    %v2130 = vmul.f32 %v1849, %v1849
    %v2131 = vmul.f32 %v1853, %v1853
    %v2132 = vmul.f32 %v1855, %v1855
    %v2133 = vmul.f32 %v1857, %v1857
    %v2134 = vmul.f32 %v1859, %v1859
    %v2135 = vmul.f32 %v1863, %v1863
    %v2136 = vmul.f32 %v1865, %v1865
    %v2137 = vmul.f32 %v1867, %v1867
    %v2138 = vmul.f32 %v1869, %v1869
    %v2139 = vadd.f32 %v2011, %v2013
    %v2140 = vadd.f32 %v2139, %v2015
    %v2141 = vadd.f32 %v2140, %v2017
    %v2142 = vadd.f32 %v2141, %v2019
    %v2143 = vadd.f32 %v2142, %v2021
    %v2144 = vadd.f32 %v2143, %v2023
    %v2145 = vadd.f32 %v2144, %v2025
    %v2146 = vadd.f32 %v2145, %v2027
    %v2147 = vadd.f32 %v2146, %v2029
    %v2148 = vadd.f32 %v2147, %v2031
    %v2149 = vadd.f32 %v2148, %v2033
    %v2150 = vadd.f32 %v2149, %v2035
    %v2151 = vadd.f32 %v2150, %v2037
    %v2152 = vadd.f32 %v2151, %v2039
    %v2153 = vadd.f32 %v2152, %v2041
    %v2154 = vadd.f32 %v2153, %v2043
    %v2155 = vadd.f32 %v2154, %v2045
    %v2156 = vadd.f32 %v2155, %v2047
    %v2157 = vadd.f32 %v2156, %v2049
    %v2158 = vadd.f32 %v2157, %v2051
    %v2159 = vadd.f32 %v2158, %v2053
    %v2160 = vadd.f32 %v2159, %v2055
    %v2161 = vadd.f32 %v2160, %v2057
    %v2162 = vadd.f32 %v2161, %v2059
    %v2163 = vadd.f32 %v2162, %v2061
    %v2164 = vadd.f32 %v2163, %v2063
    %v2165 = vadd.f32 %v2164, %v2065
    %v2166 = vadd.f32 %v2165, %v2067
    %v2167 = vadd.f32 %v2166, %v2069
    %v2168 = vadd.f32 %v2167, %v2071
    %v2169 = vadd.f32 %v2168, %v2073
    %v2170 = vadd.f32 %v2169, %v2075
    %v2171 = vadd.f32 %v2170, %v2077
    %v2172 = vadd.f32 %v2171, %v2079
    %v2173 = vadd.f32 %v2172, %v2081
    %v2174 = vadd.f32 %v2173, %v2083
    %v2175 = vadd.f32 %v2174, %v2085
    %v2176 = vadd.f32 %v2175, %v2087
    %v2177 = vadd.f32 %v2176, %v2089
    %v2178 = vadd.f32 %v2177, %v2091
    %v2179 = vadd.f32 %v2178, %v2093
    %v2180 = vadd.f32 %v2179, %v2095
    %v2181 = vadd.f32 %v2180, %v2097
    %v2182 = vadd.f32 %v2181, %v2099
    %v2183 = vadd.f32 %v2182, %v2101
    %v2184 = vadd.f32 %v2183, %v2103
    %v2185 = vadd.f32 %v2184, %v2105
    %v2186 = vadd.f32 %v2185, %v2107
    %v2187 = vadd.f32 %v2186, %v2109
    %v2188 = vadd.f32 %v2187, %v2111
    %v2189 = vadd.f32 %v2188, %v2113
    %v2190 = vadd.f32 %v2189, %v2115
    %v2191 = vadd.f32 %v2190, %v2117
    %v2192 = vadd.f32 %v2191, %v2119
    %v2193 = vadd.f32 %v2192, %v2121
    %v2194 = vadd.f32 %v2193, %v2123
    %v2195 = vadd.f32 %v2194, %v2125
    %v2196 = vadd.f32 %v2195, %v2127
    %v2197 = vadd.f32 %v2196, %v2129
    %v2198 = vadd.f32 %v2197, %v2131
    %v2199 = vadd.f32 %v2198, %v2133
    %v2200 = vadd.f32 %v2199, %v2135
    %v2201 = vadd.f32 %v2200, %v2137
    %v2202 = vrot.slane %v2201, 4
    %v2203 = vadd.f32 %v2201, %v2202
    %v2204 = vrot.slane %v2203, 2
    %v2205 = vadd.f32 %v2203, %v2204
    %v2206 = vrot.slane %v2205, 1
    %v2207 = vadd.f32 %v2205, %v2206
    %v2208 = vadd.f32 %v2012, %v2014
    %v2209 = vadd.f32 %v2208, %v2016
    %v2210 = vadd.f32 %v2209, %v2018
    %v2211 = vadd.f32 %v2210, %v2020
    %v2212 = vadd.f32 %v2211, %v2022
    %v2213 = vadd.f32 %v2212, %v2024
    %v2214 = vadd.f32 %v2213, %v2026
    %v2215 = vadd.f32 %v2214, %v2028
    %v2216 = vadd.f32 %v2215, %v2030
    %v2217 = vadd.f32 %v2216, %v2032
    %v2218 = vadd.f32 %v2217, %v2034
    %v2219 = vadd.f32 %v2218, %v2036
    %v2220 = vadd.f32 %v2219, %v2038
    %v2221 = vadd.f32 %v2220, %v2040
    %v2222 = vadd.f32 %v2221, %v2042
    %v2223 = vadd.f32 %v2222, %v2044
    %v2224 = vadd.f32 %v2223, %v2046
    %v2225 = vadd.f32 %v2224, %v2048
    %v2226 = vadd.f32 %v2225, %v2050
    %v2227 = vadd.f32 %v2226, %v2052
    %v2228 = vadd.f32 %v2227, %v2054
    %v2229 = vadd.f32 %v2228, %v2056
    %v2230 = vadd.f32 %v2229, %v2058
    %v2231 = vadd.f32 %v2230, %v2060
    %v2232 = vadd.f32 %v2231, %v2062
    %v2233 = vadd.f32 %v2232, %v2064
    %v2234 = vadd.f32 %v2233, %v2066
    %v2235 = vadd.f32 %v2234, %v2068
    %v2236 = vadd.f32 %v2235, %v2070
    %v2237 = vadd.f32 %v2236, %v2072
    %v2238 = vadd.f32 %v2237, %v2074
    %v2239 = vadd.f32 %v2238, %v2076
    %v2240 = vadd.f32 %v2239, %v2078
    %v2241 = vadd.f32 %v2240, %v2080
    %v2242 = vadd.f32 %v2241, %v2082
    %v2243 = vadd.f32 %v2242, %v2084
    %v2244 = vadd.f32 %v2243, %v2086
    %v2245 = vadd.f32 %v2244, %v2088
    %v2246 = vadd.f32 %v2245, %v2090
    %v2247 = vadd.f32 %v2246, %v2092
    %v2248 = vadd.f32 %v2247, %v2094
    %v2249 = vadd.f32 %v2248, %v2096
    %v2250 = vadd.f32 %v2249, %v2098
    %v2251 = vadd.f32 %v2250, %v2100
    %v2252 = vadd.f32 %v2251, %v2102
    %v2253 = vadd.f32 %v2252, %v2104
    %v2254 = vadd.f32 %v2253, %v2106
    %v2255 = vadd.f32 %v2254, %v2108
    %v2256 = vadd.f32 %v2255, %v2110
    %v2257 = vadd.f32 %v2256, %v2112
    %v2258 = vadd.f32 %v2257, %v2114
    %v2259 = vadd.f32 %v2258, %v2116
    %v2260 = vadd.f32 %v2259, %v2118
    %v2261 = vadd.f32 %v2260, %v2120
    %v2262 = vadd.f32 %v2261, %v2122
    %v2263 = vadd.f32 %v2262, %v2124
    %v2264 = vadd.f32 %v2263, %v2126
    %v2265 = vadd.f32 %v2264, %v2128
    %v2266 = vadd.f32 %v2265, %v2130
    %v2267 = vadd.f32 %v2266, %v2132
    %v2268 = vadd.f32 %v2267, %v2134
    %v2269 = vadd.f32 %v2268, %v2136
    %v2270 = vadd.f32 %v2269, %v2138
    %v2271 = vrot.slane %v2270, 4
    %v2272 = vadd.f32 %v2270, %v2271
    %v2273 = vrot.slane %v2272, 2
    %v2274 = vadd.f32 %v2272, %v2273
    %v2275 = vrot.slane %v2274, 1
    %v2276 = vadd.f32 %v2274, %v2275
    %v2277 = vmul.f32 %v2207, 0.001953125
    %v2278 = vmul.f32 %v2276, 0.001953125
    %v2279 = vmul.f32 %v2009, %v2009
    %v2280 = vmul.f32 %v2010, %v2010
    %v2281 = vsub.f32 %v2277, %v2279
    %v2282 = vsub.f32 %v2278, %v2280
    %v2283 = vmax.f32 %v2281, 0.0
    %v2284 = vmax.f32 %v2282, 0.0
    %v2285 = vsub.f32 %v1553, %v2009
    %v2286 = vsub.f32 %v1555, %v2010
    %v2287 = vsub.f32 %v1557, %v2009
    %v2288 = vsub.f32 %v1559, %v2010
    %v2289 = vsub.f32 %v1563, %v2009
    %v2290 = vsub.f32 %v1565, %v2010
    %v2291 = vsub.f32 %v1567, %v2009
    %v2292 = vsub.f32 %v1569, %v2010
    %v2293 = vsub.f32 %v1573, %v2009
    %v2294 = vsub.f32 %v1575, %v2010
    %v2295 = vsub.f32 %v1577, %v2009
    %v2296 = vsub.f32 %v1579, %v2010
    %v2297 = vsub.f32 %v1583, %v2009
    %v2298 = vsub.f32 %v1585, %v2010
    %v2299 = vsub.f32 %v1587, %v2009
    %v2300 = vsub.f32 %v1589, %v2010
    %v2301 = vsub.f32 %v1593, %v2009
    %v2302 = vsub.f32 %v1595, %v2010
    %v2303 = vsub.f32 %v1597, %v2009
    %v2304 = vsub.f32 %v1599, %v2010
    %v2305 = vsub.f32 %v1603, %v2009
    %v2306 = vsub.f32 %v1605, %v2010
    %v2307 = vsub.f32 %v1607, %v2009
    %v2308 = vsub.f32 %v1609, %v2010
    %v2309 = vsub.f32 %v1613, %v2009
    %v2310 = vsub.f32 %v1615, %v2010
    %v2311 = vsub.f32 %v1617, %v2009
    %v2312 = vsub.f32 %v1619, %v2010
    %v2313 = vsub.f32 %v1623, %v2009
    %v2314 = vsub.f32 %v1625, %v2010
    %v2315 = vsub.f32 %v1627, %v2009
    %v2316 = vsub.f32 %v1629, %v2010
    %v2317 = vsub.f32 %v1633, %v2009
    %v2318 = vsub.f32 %v1635, %v2010
    %v2319 = vsub.f32 %v1637, %v2009
    %v2320 = vsub.f32 %v1639, %v2010
    %v2321 = vsub.f32 %v1643, %v2009
    %v2322 = vsub.f32 %v1645, %v2010
    %v2323 = vsub.f32 %v1647, %v2009
    %v2324 = vsub.f32 %v1649, %v2010
    %v2325 = vsub.f32 %v1653, %v2009
    %v2326 = vsub.f32 %v1655, %v2010
    %v2327 = vsub.f32 %v1657, %v2009
    %v2328 = vsub.f32 %v1659, %v2010
    %v2329 = vsub.f32 %v1663, %v2009
    %v2330 = vsub.f32 %v1665, %v2010
    %v2331 = vsub.f32 %v1667, %v2009
    %v2332 = vsub.f32 %v1669, %v2010
    %v2333 = vsub.f32 %v1673, %v2009
    %v2334 = vsub.f32 %v1675, %v2010
    %v2335 = vsub.f32 %v1677, %v2009
    %v2336 = vsub.f32 %v1679, %v2010
    %v2337 = vsub.f32 %v1683, %v2009
    %v2338 = vsub.f32 %v1685, %v2010
    %v2339 = vsub.f32 %v1687, %v2009
    %v2340 = vsub.f32 %v1689, %v2010
    %v2341 = vsub.f32 %v1693, %v2009
    %v2342 = vsub.f32 %v1695, %v2010
    %v2343 = vsub.f32 %v1697, %v2009
    %v2344 = vsub.f32 %v1699, %v2010
    %v2345 = vsub.f32 %v1703, %v2009
    %v2346 = vsub.f32 %v1705, %v2010
    %v2347 = vsub.f32 %v1707, %v2009
    %v2348 = vsub.f32 %v1709, %v2010
    %v2349 = vsub.f32 %v1713, %v2009
    %v2350 = vsub.f32 %v1715, %v2010
    %v2351 = vsub.f32 %v1717, %v2009
    %v2352 = vsub.f32 %v1719, %v2010
    %v2353 = vsub.f32 %v1723, %v2009
    %v2354 = vsub.f32 %v1725, %v2010
    %v2355 = vsub.f32 %v1727, %v2009
    %v2356 = vsub.f32 %v1729, %v2010
    %v2357 = vsub.f32 %v1733, %v2009
    %v2358 = vsub.f32 %v1735, %v2010
    %v2359 = vsub.f32 %v1737, %v2009
    %v2360 = vsub.f32 %v1739, %v2010
    %v2361 = vsub.f32 %v1743, %v2009
    %v2362 = vsub.f32 %v1745, %v2010
    %v2363 = vsub.f32 %v1747, %v2009
    %v2364 = vsub.f32 %v1749, %v2010
    %v2365 = vsub.f32 %v1753, %v2009
    %v2366 = vsub.f32 %v1755, %v2010
    %v2367 = vsub.f32 %v1757, %v2009
    %v2368 = vsub.f32 %v1759, %v2010
    %v2369 = vsub.f32 %v1763, %v2009
    %v2370 = vsub.f32 %v1765, %v2010
    %v2371 = vsub.f32 %v1767, %v2009
    %v2372 = vsub.f32 %v1769, %v2010
    %v2373 = vsub.f32 %v1773, %v2009
    %v2374 = vsub.f32 %v1775, %v2010
    %v2375 = vsub.f32 %v1777, %v2009
    %v2376 = vsub.f32 %v1779, %v2010
    %v2377 = vsub.f32 %v1783, %v2009
    %v2378 = vsub.f32 %v1785, %v2010
    %v2379 = vsub.f32 %v1787, %v2009
    %v2380 = vsub.f32 %v1789, %v2010
    %v2381 = vsub.f32 %v1793, %v2009
    %v2382 = vsub.f32 %v1795, %v2010
    %v2383 = vsub.f32 %v1797, %v2009
    %v2384 = vsub.f32 %v1799, %v2010
    %v2385 = vsub.f32 %v1803, %v2009
    %v2386 = vsub.f32 %v1805, %v2010
    %v2387 = vsub.f32 %v1807, %v2009
    %v2388 = vsub.f32 %v1809, %v2010
    %v2389 = vsub.f32 %v1813, %v2009
    %v2390 = vsub.f32 %v1815, %v2010
    %v2391 = vsub.f32 %v1817, %v2009
    %v2392 = vsub.f32 %v1819, %v2010
    %v2393 = vsub.f32 %v1823, %v2009
    %v2394 = vsub.f32 %v1825, %v2010
    %v2395 = vsub.f32 %v1827, %v2009
    %v2396 = vsub.f32 %v1829, %v2010
    %v2397 = vsub.f32 %v1833, %v2009
    %v2398 = vsub.f32 %v1835, %v2010
    %v2399 = vsub.f32 %v1837, %v2009
    %v2400 = vsub.f32 %v1839, %v2010
    %v2401 = vsub.f32 %v1843, %v2009
    %v2402 = vsub.f32 %v1845, %v2010
    %v2403 = vsub.f32 %v1847, %v2009
    %v2404 = vsub.f32 %v1849, %v2010
    %v2405 = vsub.f32 %v1853, %v2009
    %v2406 = vsub.f32 %v1855, %v2010
    %v2407 = vsub.f32 %v1857, %v2009
    %v2408 = vsub.f32 %v1859, %v2010
    %v2409 = vsub.f32 %v1863, %v2009
    %v2410 = vsub.f32 %v1865, %v2010
    %v2411 = vsub.f32 %v1867, %v2009
    %v2412 = vsub.f32 %v1869, %v2010
    %v2413 = vadd.f32 %v2283, 1e-05
    %v2414 = vadd.f32 %v2284, 1e-05
    %v2415 = vrsqrt.pop %v2413
    %v2416 = vrsqrt.pop %v2414
    %v2417 = vmul.f32 %v2285, %v2415
    %v2418 = vmul.f32 %v2286, %v2416
    %v2419 = vmul.f32 %v2287, %v2415
    %v2420 = vmul.f32 %v2288, %v2416
    %v2421 = vmul.f32 %v2289, %v2415
    %v2422 = vmul.f32 %v2290, %v2416
    %v2423 = vmul.f32 %v2291, %v2415
    %v2424 = vmul.f32 %v2292, %v2416
    %v2425 = vmul.f32 %v2293, %v2415
    %v2426 = vmul.f32 %v2294, %v2416
    %v2427 = vmul.f32 %v2295, %v2415
    %v2428 = vmul.f32 %v2296, %v2416
    %v2429 = vmul.f32 %v2297, %v2415
    %v2430 = vmul.f32 %v2298, %v2416
    %v2431 = vmul.f32 %v2299, %v2415
    %v2432 = vmul.f32 %v2300, %v2416
    %v2433 = vmul.f32 %v2301, %v2415
    %v2434 = vmul.f32 %v2302, %v2416
    %v2435 = vmul.f32 %v2303, %v2415
    %v2436 = vmul.f32 %v2304, %v2416
    %v2437 = vmul.f32 %v2305, %v2415
    %v2438 = vmul.f32 %v2306, %v2416
    %v2439 = vmul.f32 %v2307, %v2415
    %v2440 = vmul.f32 %v2308, %v2416
    %v2441 = vmul.f32 %v2309, %v2415
    %v2442 = vmul.f32 %v2310, %v2416
    %v2443 = vmul.f32 %v2311, %v2415
    %v2444 = vmul.f32 %v2312, %v2416
    %v2445 = vmul.f32 %v2313, %v2415
    %v2446 = vmul.f32 %v2314, %v2416
    %v2447 = vmul.f32 %v2315, %v2415
    %v2448 = vmul.f32 %v2316, %v2416
    %v2449 = vmul.f32 %v2317, %v2415
    %v2450 = vmul.f32 %v2318, %v2416
    %v2451 = vmul.f32 %v2319, %v2415
    %v2452 = vmul.f32 %v2320, %v2416
    %v2453 = vmul.f32 %v2321, %v2415
    %v2454 = vmul.f32 %v2322, %v2416
    %v2455 = vmul.f32 %v2323, %v2415
    %v2456 = vmul.f32 %v2324, %v2416
    %v2457 = vmul.f32 %v2325, %v2415
    %v2458 = vmul.f32 %v2326, %v2416
    %v2459 = vmul.f32 %v2327, %v2415
    %v2460 = vmul.f32 %v2328, %v2416
    %v2461 = vmul.f32 %v2329, %v2415
    %v2462 = vmul.f32 %v2330, %v2416
    %v2463 = vmul.f32 %v2331, %v2415
    %v2464 = vmul.f32 %v2332, %v2416
    %v2465 = vmul.f32 %v2333, %v2415
    %v2466 = vmul.f32 %v2334, %v2416
    %v2467 = vmul.f32 %v2335, %v2415
    %v2468 = vmul.f32 %v2336, %v2416
    %v2469 = vmul.f32 %v2337, %v2415
    %v2470 = vmul.f32 %v2338, %v2416
    %v2471 = vmul.f32 %v2339, %v2415
    %v2472 = vmul.f32 %v2340, %v2416
    %v2473 = vmul.f32 %v2341, %v2415
    %v2474 = vmul.f32 %v2342, %v2416
    %v2475 = vmul.f32 %v2343, %v2415
    %v2476 = vmul.f32 %v2344, %v2416
    %v2477 = vmul.f32 %v2345, %v2415
    %v2478 = vmul.f32 %v2346, %v2416
    %v2479 = vmul.f32 %v2347, %v2415
    %v2480 = vmul.f32 %v2348, %v2416
    %v2481 = vmul.f32 %v2349, %v2415
    %v2482 = vmul.f32 %v2350, %v2416
    %v2483 = vmul.f32 %v2351, %v2415
    %v2484 = vmul.f32 %v2352, %v2416
    %v2485 = vmul.f32 %v2353, %v2415
    %v2486 = vmul.f32 %v2354, %v2416
    %v2487 = vmul.f32 %v2355, %v2415
    %v2488 = vmul.f32 %v2356, %v2416
    %v2489 = vmul.f32 %v2357, %v2415
    %v2490 = vmul.f32 %v2358, %v2416
    %v2491 = vmul.f32 %v2359, %v2415
    %v2492 = vmul.f32 %v2360, %v2416
    %v2493 = vmul.f32 %v2361, %v2415
    %v2494 = vmul.f32 %v2362, %v2416
    %v2495 = vmul.f32 %v2363, %v2415
    %v2496 = vmul.f32 %v2364, %v2416
    %v2497 = vmul.f32 %v2365, %v2415
    %v2498 = vmul.f32 %v2366, %v2416
    %v2499 = vmul.f32 %v2367, %v2415
    %v2500 = vmul.f32 %v2368, %v2416
    %v2501 = vmul.f32 %v2369, %v2415
    %v2502 = vmul.f32 %v2370, %v2416
    %v2503 = vmul.f32 %v2371, %v2415
    %v2504 = vmul.f32 %v2372, %v2416
    %v2505 = vmul.f32 %v2373, %v2415
    %v2506 = vmul.f32 %v2374, %v2416
    %v2507 = vmul.f32 %v2375, %v2415
    %v2508 = vmul.f32 %v2376, %v2416
    %v2509 = vmul.f32 %v2377, %v2415
    %v2510 = vmul.f32 %v2378, %v2416
    %v2511 = vmul.f32 %v2379, %v2415
    %v2512 = vmul.f32 %v2380, %v2416
    %v2513 = vmul.f32 %v2381, %v2415
    %v2514 = vmul.f32 %v2382, %v2416
    %v2515 = vmul.f32 %v2383, %v2415
    %v2516 = vmul.f32 %v2384, %v2416
    %v2517 = vmul.f32 %v2385, %v2415
    %v2518 = vmul.f32 %v2386, %v2416
    %v2519 = vmul.f32 %v2387, %v2415
    %v2520 = vmul.f32 %v2388, %v2416
    %v2521 = vmul.f32 %v2389, %v2415
    %v2522 = vmul.f32 %v2390, %v2416
    %v2523 = vmul.f32 %v2391, %v2415
    %v2524 = vmul.f32 %v2392, %v2416
    %v2525 = vmul.f32 %v2393, %v2415
    %v2526 = vmul.f32 %v2394, %v2416
    %v2527 = vmul.f32 %v2395, %v2415
    %v2528 = vmul.f32 %v2396, %v2416
    %v2529 = vmul.f32 %v2397, %v2415
    %v2530 = vmul.f32 %v2398, %v2416
    %v2531 = vmul.f32 %v2399, %v2415
    %v2532 = vmul.f32 %v2400, %v2416
    %v2533 = vmul.f32 %v2401, %v2415
    %v2534 = vmul.f32 %v2402, %v2416
    %v2535 = vmul.f32 %v2403, %v2415
    %v2536 = vmul.f32 %v2404, %v2416
    %v2537 = vmul.f32 %v2405, %v2415
    %v2538 = vmul.f32 %v2406, %v2416
    %v2539 = vmul.f32 %v2407, %v2415
    %v2540 = vmul.f32 %v2408, %v2416
    %v2541 = vmul.f32 %v2409, %v2415
    %v2542 = vmul.f32 %v2410, %v2416
    %v2543 = vmul.f32 %v2411, %v2415
    %v2544 = vmul.f32 %v2412, %v2416
    %v2545 = vld [vmem:[%s7] sm:$0x3]
    %v2547 = vlaneseq
    %v2548 = vshrl.u32 %v2547, 7
    %v2549 = vsub.s32 0, %v2548
    %v2550 = vrot.slane %v2545, %v2549
    %v2551 = vlaneseq
    %v2552 = vshrl.u32 %v2551, 7
    %v2553 = vsub.s32 1, %v2552
    %v2554 = vrot.slane %v2545, %v2553
    %v2557 = vmul.f32 %v2417, %v2550
    %v2558 = vmul.f32 %v2418, %v2554
    %v2559 = vmul.f32 %v2419, %v2550
    %v2560 = vmul.f32 %v2420, %v2554
    %v2561 = vmul.f32 %v2421, %v2550
    %v2562 = vmul.f32 %v2422, %v2554
    %v2563 = vmul.f32 %v2423, %v2550
    %v2564 = vmul.f32 %v2424, %v2554
    %v2565 = vmul.f32 %v2425, %v2550
    %v2566 = vmul.f32 %v2426, %v2554
    %v2567 = vmul.f32 %v2427, %v2550
    %v2568 = vmul.f32 %v2428, %v2554
    %v2569 = vmul.f32 %v2429, %v2550
    %v2570 = vmul.f32 %v2430, %v2554
    %v2571 = vmul.f32 %v2431, %v2550
    %v2572 = vmul.f32 %v2432, %v2554
    %v2573 = vmul.f32 %v2433, %v2550
    %v2574 = vmul.f32 %v2434, %v2554
    %v2575 = vmul.f32 %v2435, %v2550
    %v2576 = vmul.f32 %v2436, %v2554
    %v2577 = vmul.f32 %v2437, %v2550
    %v2578 = vmul.f32 %v2438, %v2554
    %v2579 = vmul.f32 %v2439, %v2550
    %v2580 = vmul.f32 %v2440, %v2554
    %v2581 = vmul.f32 %v2441, %v2550
    %v2582 = vmul.f32 %v2442, %v2554
    %v2583 = vmul.f32 %v2443, %v2550
    %v2584 = vmul.f32 %v2444, %v2554
    %v2585 = vmul.f32 %v2445, %v2550
    %v2586 = vmul.f32 %v2446, %v2554
    %v2587 = vmul.f32 %v2447, %v2550
    %v2588 = vmul.f32 %v2448, %v2554
    %v2589 = vmul.f32 %v2449, %v2550
    %v2590 = vmul.f32 %v2450, %v2554
    %v2591 = vmul.f32 %v2451, %v2550
    %v2592 = vmul.f32 %v2452, %v2554
    %v2593 = vmul.f32 %v2453, %v2550
    %v2594 = vmul.f32 %v2454, %v2554
    %v2595 = vmul.f32 %v2455, %v2550
    %v2596 = vmul.f32 %v2456, %v2554
    %v2597 = vmul.f32 %v2457, %v2550
    %v2598 = vmul.f32 %v2458, %v2554
    %v2599 = vmul.f32 %v2459, %v2550
    %v2600 = vmul.f32 %v2460, %v2554
    %v2601 = vmul.f32 %v2461, %v2550
    %v2602 = vmul.f32 %v2462, %v2554
    %v2603 = vmul.f32 %v2463, %v2550
    %v2604 = vmul.f32 %v2464, %v2554
    %v2605 = vmul.f32 %v2465, %v2550
    %v2606 = vmul.f32 %v2466, %v2554
    %v2607 = vmul.f32 %v2467, %v2550
    %v2608 = vmul.f32 %v2468, %v2554
    %v2609 = vmul.f32 %v2469, %v2550
    %v2610 = vmul.f32 %v2470, %v2554
    %v2611 = vmul.f32 %v2471, %v2550
    %v2612 = vmul.f32 %v2472, %v2554
    %v2613 = vmul.f32 %v2473, %v2550
    %v2614 = vmul.f32 %v2474, %v2554
    %v2615 = vmul.f32 %v2475, %v2550
    %v2616 = vmul.f32 %v2476, %v2554
    %v2617 = vmul.f32 %v2477, %v2550
    %v2618 = vmul.f32 %v2478, %v2554
    %v2619 = vmul.f32 %v2479, %v2550
    %v2620 = vmul.f32 %v2480, %v2554
    %v2621 = vmul.f32 %v2481, %v2550
    %v2622 = vmul.f32 %v2482, %v2554
    %v2623 = vmul.f32 %v2483, %v2550
    %v2624 = vmul.f32 %v2484, %v2554
    %v2625 = vmul.f32 %v2485, %v2550
    %v2626 = vmul.f32 %v2486, %v2554
    %v2627 = vmul.f32 %v2487, %v2550
    %v2628 = vmul.f32 %v2488, %v2554
    %v2629 = vmul.f32 %v2489, %v2550
    %v2630 = vmul.f32 %v2490, %v2554
    %v2631 = vmul.f32 %v2491, %v2550
    %v2632 = vmul.f32 %v2492, %v2554
    %v2633 = vmul.f32 %v2493, %v2550
    %v2634 = vmul.f32 %v2494, %v2554
    %v2635 = vmul.f32 %v2495, %v2550
    %v2636 = vmul.f32 %v2496, %v2554
    %v2637 = vmul.f32 %v2497, %v2550
    %v2638 = vmul.f32 %v2498, %v2554
    %v2639 = vmul.f32 %v2499, %v2550
    %v2640 = vmul.f32 %v2500, %v2554
    %v2641 = vmul.f32 %v2501, %v2550
    %v2642 = vmul.f32 %v2502, %v2554
    %v2643 = vmul.f32 %v2503, %v2550
    %v2644 = vmul.f32 %v2504, %v2554
    %v2645 = vmul.f32 %v2505, %v2550
    %v2646 = vmul.f32 %v2506, %v2554
    %v2647 = vmul.f32 %v2507, %v2550
    %v2648 = vmul.f32 %v2508, %v2554
    %v2649 = vmul.f32 %v2509, %v2550
    %v2650 = vmul.f32 %v2510, %v2554
    %v2651 = vmul.f32 %v2511, %v2550
    %v2652 = vmul.f32 %v2512, %v2554
    %v2653 = vmul.f32 %v2513, %v2550
    %v2654 = vmul.f32 %v2514, %v2554
    %v2655 = vmul.f32 %v2515, %v2550
    %v2656 = vmul.f32 %v2516, %v2554
    %v2657 = vmul.f32 %v2517, %v2550
    %v2658 = vmul.f32 %v2518, %v2554
    %v2659 = vmul.f32 %v2519, %v2550
    %v2660 = vmul.f32 %v2520, %v2554
    %v2661 = vmul.f32 %v2521, %v2550
    %v2662 = vmul.f32 %v2522, %v2554
    %v2663 = vmul.f32 %v2523, %v2550
    %v2664 = vmul.f32 %v2524, %v2554
    %v2665 = vmul.f32 %v2525, %v2550
    %v2666 = vmul.f32 %v2526, %v2554
    %v2667 = vmul.f32 %v2527, %v2550
    %v2668 = vmul.f32 %v2528, %v2554
    %v2669 = vmul.f32 %v2529, %v2550
    %v2670 = vmul.f32 %v2530, %v2554
    %v2671 = vmul.f32 %v2531, %v2550
    %v2672 = vmul.f32 %v2532, %v2554
    %v2673 = vmul.f32 %v2533, %v2550
    %v2674 = vmul.f32 %v2534, %v2554
    %v2675 = vmul.f32 %v2535, %v2550
    %v2676 = vmul.f32 %v2536, %v2554
    %v2677 = vmul.f32 %v2537, %v2550
    %v2678 = vmul.f32 %v2538, %v2554
    %v2679 = vmul.f32 %v2539, %v2550
    %v2680 = vmul.f32 %v2540, %v2554
    %v2681 = vmul.f32 %v2541, %v2550
    %v2682 = vmul.f32 %v2542, %v2554
    %v2683 = vmul.f32 %v2543, %v2550
    %v2684 = vmul.f32 %v2544, %v2554
    %v2685 = vld [vmem:[%s8] sm:$0x3]
    %v2687 = vlaneseq
    %v2688 = vshrl.u32 %v2687, 7
    %v2689 = vsub.s32 0, %v2688
    %v2690 = vrot.slane %v2685, %v2689
    %v2691 = vlaneseq
    %v2692 = vshrl.u32 %v2691, 7
    %v2693 = vsub.s32 1, %v2692
    %v2694 = vrot.slane %v2685, %v2693
    %v2697 = vadd.f32 %v2557, %v2690
    %v2698 = vadd.f32 %v2558, %v2694
    %v2699 = vadd.f32 %v2559, %v2690
    %v2700 = vadd.f32 %v2560, %v2694
    %v2701 = vadd.f32 %v2561, %v2690
    %v2702 = vadd.f32 %v2562, %v2694
    %v2703 = vadd.f32 %v2563, %v2690
    %v2704 = vadd.f32 %v2564, %v2694
    %v2705 = vadd.f32 %v2565, %v2690
    %v2706 = vadd.f32 %v2566, %v2694
    %v2707 = vadd.f32 %v2567, %v2690
    %v2708 = vadd.f32 %v2568, %v2694
    %v2709 = vadd.f32 %v2569, %v2690
    %v2710 = vadd.f32 %v2570, %v2694
    %v2711 = vadd.f32 %v2571, %v2690
    %v2712 = vadd.f32 %v2572, %v2694
    %v2713 = vadd.f32 %v2573, %v2690
    %v2714 = vadd.f32 %v2574, %v2694
    %v2715 = vadd.f32 %v2575, %v2690
    %v2716 = vadd.f32 %v2576, %v2694
    %v2717 = vadd.f32 %v2577, %v2690
    %v2718 = vadd.f32 %v2578, %v2694
    %v2719 = vadd.f32 %v2579, %v2690
    %v2720 = vadd.f32 %v2580, %v2694
    %v2721 = vadd.f32 %v2581, %v2690
    %v2722 = vadd.f32 %v2582, %v2694
    %v2723 = vadd.f32 %v2583, %v2690
    %v2724 = vadd.f32 %v2584, %v2694
    %v2725 = vadd.f32 %v2585, %v2690
    %v2726 = vadd.f32 %v2586, %v2694
    %v2727 = vadd.f32 %v2587, %v2690
    %v2728 = vadd.f32 %v2588, %v2694
    %v2729 = vadd.f32 %v2589, %v2690
    %v2730 = vadd.f32 %v2590, %v2694
    %v2731 = vadd.f32 %v2591, %v2690
    %v2732 = vadd.f32 %v2592, %v2694
    %v2733 = vadd.f32 %v2593, %v2690
    %v2734 = vadd.f32 %v2594, %v2694
    %v2735 = vadd.f32 %v2595, %v2690
    %v2736 = vadd.f32 %v2596, %v2694
    %v2737 = vadd.f32 %v2597, %v2690
    %v2738 = vadd.f32 %v2598, %v2694
    %v2739 = vadd.f32 %v2599, %v2690
    %v2740 = vadd.f32 %v2600, %v2694
    %v2741 = vadd.f32 %v2601, %v2690
    %v2742 = vadd.f32 %v2602, %v2694
    %v2743 = vadd.f32 %v2603, %v2690
    %v2744 = vadd.f32 %v2604, %v2694
    %v2745 = vadd.f32 %v2605, %v2690
    %v2746 = vadd.f32 %v2606, %v2694
    %v2747 = vadd.f32 %v2607, %v2690
    %v2748 = vadd.f32 %v2608, %v2694
    %v2749 = vadd.f32 %v2609, %v2690
    %v2750 = vadd.f32 %v2610, %v2694
    %v2751 = vadd.f32 %v2611, %v2690
    %v2752 = vadd.f32 %v2612, %v2694
    %v2753 = vadd.f32 %v2613, %v2690
    %v2754 = vadd.f32 %v2614, %v2694
    %v2755 = vadd.f32 %v2615, %v2690
    %v2756 = vadd.f32 %v2616, %v2694
    %v2757 = vadd.f32 %v2617, %v2690
    %v2758 = vadd.f32 %v2618, %v2694
    %v2759 = vadd.f32 %v2619, %v2690
    %v2760 = vadd.f32 %v2620, %v2694
    %v2761 = vadd.f32 %v2621, %v2690
    %v2762 = vadd.f32 %v2622, %v2694
    %v2763 = vadd.f32 %v2623, %v2690
    %v2764 = vadd.f32 %v2624, %v2694
    %v2765 = vadd.f32 %v2625, %v2690
    %v2766 = vadd.f32 %v2626, %v2694
    %v2767 = vadd.f32 %v2627, %v2690
    %v2768 = vadd.f32 %v2628, %v2694
    %v2769 = vadd.f32 %v2629, %v2690
    %v2770 = vadd.f32 %v2630, %v2694
    %v2771 = vadd.f32 %v2631, %v2690
    %v2772 = vadd.f32 %v2632, %v2694
    %v2773 = vadd.f32 %v2633, %v2690
    %v2774 = vadd.f32 %v2634, %v2694
    %v2775 = vadd.f32 %v2635, %v2690
    %v2776 = vadd.f32 %v2636, %v2694
    %v2777 = vadd.f32 %v2637, %v2690
    %v2778 = vadd.f32 %v2638, %v2694
    %v2779 = vadd.f32 %v2639, %v2690
    %v2780 = vadd.f32 %v2640, %v2694
    %v2781 = vadd.f32 %v2641, %v2690
    %v2782 = vadd.f32 %v2642, %v2694
    %v2783 = vadd.f32 %v2643, %v2690
    %v2784 = vadd.f32 %v2644, %v2694
    %v2785 = vadd.f32 %v2645, %v2690
    %v2786 = vadd.f32 %v2646, %v2694
    %v2787 = vadd.f32 %v2647, %v2690
    %v2788 = vadd.f32 %v2648, %v2694
    %v2789 = vadd.f32 %v2649, %v2690
    %v2790 = vadd.f32 %v2650, %v2694
    %v2791 = vadd.f32 %v2651, %v2690
    %v2792 = vadd.f32 %v2652, %v2694
    %v2793 = vadd.f32 %v2653, %v2690
    %v2794 = vadd.f32 %v2654, %v2694
    %v2795 = vadd.f32 %v2655, %v2690
    %v2796 = vadd.f32 %v2656, %v2694
    %v2797 = vadd.f32 %v2657, %v2690
    %v2798 = vadd.f32 %v2658, %v2694
    %v2799 = vadd.f32 %v2659, %v2690
    %v2800 = vadd.f32 %v2660, %v2694
    %v2801 = vadd.f32 %v2661, %v2690
    %v2802 = vadd.f32 %v2662, %v2694
    %v2803 = vadd.f32 %v2663, %v2690
    %v2804 = vadd.f32 %v2664, %v2694
    %v2805 = vadd.f32 %v2665, %v2690
    %v2806 = vadd.f32 %v2666, %v2694
    %v2807 = vadd.f32 %v2667, %v2690
    %v2808 = vadd.f32 %v2668, %v2694
    %v2809 = vadd.f32 %v2669, %v2690
    %v2810 = vadd.f32 %v2670, %v2694
    %v2811 = vadd.f32 %v2671, %v2690
    %v2812 = vadd.f32 %v2672, %v2694
    %v2813 = vadd.f32 %v2673, %v2690
    %v2814 = vadd.f32 %v2674, %v2694
    %v2815 = vadd.f32 %v2675, %v2690
    %v2816 = vadd.f32 %v2676, %v2694
    %v2817 = vadd.f32 %v2677, %v2690
    %v2818 = vadd.f32 %v2678, %v2694
    %v2819 = vadd.f32 %v2679, %v2690
    %v2820 = vadd.f32 %v2680, %v2694
    %v2821 = vadd.f32 %v2681, %v2690
    %v2822 = vadd.f32 %v2682, %v2694
    %v2823 = vadd.f32 %v2683, %v2690
    %v2824 = vadd.f32 %v2684, %v2694
    %vm2825 = vcmp.ge.f32.partialorder %v2697, 0.0
    %vm2826 = vcmp.ge.f32.partialorder %v2698, 0.0
    %vm2827 = vcmp.ge.f32.partialorder %v2699, 0.0
    %vm2828 = vcmp.ge.f32.partialorder %v2700, 0.0
    %vm2829 = vcmp.ge.f32.partialorder %v2701, 0.0
    %vm2830 = vcmp.ge.f32.partialorder %v2702, 0.0
    %vm2831 = vcmp.ge.f32.partialorder %v2703, 0.0
    %vm2832 = vcmp.ge.f32.partialorder %v2704, 0.0
    %vm2833 = vcmp.ge.f32.partialorder %v2705, 0.0
    %vm2834 = vcmp.ge.f32.partialorder %v2706, 0.0
    %vm2835 = vcmp.ge.f32.partialorder %v2707, 0.0
    %vm2836 = vcmp.ge.f32.partialorder %v2708, 0.0
    %vm2837 = vcmp.ge.f32.partialorder %v2709, 0.0
    %vm2838 = vcmp.ge.f32.partialorder %v2710, 0.0
    %vm2839 = vcmp.ge.f32.partialorder %v2711, 0.0
    %vm2840 = vcmp.ge.f32.partialorder %v2712, 0.0
    %vm2841 = vcmp.ge.f32.partialorder %v2713, 0.0
    %vm2842 = vcmp.ge.f32.partialorder %v2714, 0.0
    %vm2843 = vcmp.ge.f32.partialorder %v2715, 0.0
    %vm2844 = vcmp.ge.f32.partialorder %v2716, 0.0
    %vm2845 = vcmp.ge.f32.partialorder %v2717, 0.0
    %vm2846 = vcmp.ge.f32.partialorder %v2718, 0.0
    %vm2847 = vcmp.ge.f32.partialorder %v2719, 0.0
    %vm2848 = vcmp.ge.f32.partialorder %v2720, 0.0
    %vm2849 = vcmp.ge.f32.partialorder %v2721, 0.0
    %vm2850 = vcmp.ge.f32.partialorder %v2722, 0.0
    %vm2851 = vcmp.ge.f32.partialorder %v2723, 0.0
    %vm2852 = vcmp.ge.f32.partialorder %v2724, 0.0
    %vm2853 = vcmp.ge.f32.partialorder %v2725, 0.0
    %vm2854 = vcmp.ge.f32.partialorder %v2726, 0.0
    %vm2855 = vcmp.ge.f32.partialorder %v2727, 0.0
    %vm2856 = vcmp.ge.f32.partialorder %v2728, 0.0
    %vm2857 = vcmp.ge.f32.partialorder %v2729, 0.0
    %vm2858 = vcmp.ge.f32.partialorder %v2730, 0.0
    %vm2859 = vcmp.ge.f32.partialorder %v2731, 0.0
    %vm2860 = vcmp.ge.f32.partialorder %v2732, 0.0
    %vm2861 = vcmp.ge.f32.partialorder %v2733, 0.0
    %vm2862 = vcmp.ge.f32.partialorder %v2734, 0.0
    %vm2863 = vcmp.ge.f32.partialorder %v2735, 0.0
    %vm2864 = vcmp.ge.f32.partialorder %v2736, 0.0
    %vm2865 = vcmp.ge.f32.partialorder %v2737, 0.0
    %vm2866 = vcmp.ge.f32.partialorder %v2738, 0.0
    %vm2867 = vcmp.ge.f32.partialorder %v2739, 0.0
    %vm2868 = vcmp.ge.f32.partialorder %v2740, 0.0
    %vm2869 = vcmp.ge.f32.partialorder %v2741, 0.0
    %vm2870 = vcmp.ge.f32.partialorder %v2742, 0.0
    %vm2871 = vcmp.ge.f32.partialorder %v2743, 0.0
    %vm2872 = vcmp.ge.f32.partialorder %v2744, 0.0
    %vm2873 = vcmp.ge.f32.partialorder %v2745, 0.0
    %vm2874 = vcmp.ge.f32.partialorder %v2746, 0.0
    %vm2875 = vcmp.ge.f32.partialorder %v2747, 0.0
    %vm2876 = vcmp.ge.f32.partialorder %v2748, 0.0
    %vm2877 = vcmp.ge.f32.partialorder %v2749, 0.0
    %vm2878 = vcmp.ge.f32.partialorder %v2750, 0.0
    %vm2879 = vcmp.ge.f32.partialorder %v2751, 0.0
    %vm2880 = vcmp.ge.f32.partialorder %v2752, 0.0
    %vm2881 = vcmp.ge.f32.partialorder %v2753, 0.0
    %vm2882 = vcmp.ge.f32.partialorder %v2754, 0.0
    %vm2883 = vcmp.ge.f32.partialorder %v2755, 0.0
    %vm2884 = vcmp.ge.f32.partialorder %v2756, 0.0
    %vm2885 = vcmp.ge.f32.partialorder %v2757, 0.0
    %vm2886 = vcmp.ge.f32.partialorder %v2758, 0.0
    %vm2887 = vcmp.ge.f32.partialorder %v2759, 0.0
    %vm2888 = vcmp.ge.f32.partialorder %v2760, 0.0
    %vm2889 = vcmp.ge.f32.partialorder %v2761, 0.0
    %vm2890 = vcmp.ge.f32.partialorder %v2762, 0.0
    %vm2891 = vcmp.ge.f32.partialorder %v2763, 0.0
    %vm2892 = vcmp.ge.f32.partialorder %v2764, 0.0
    %vm2893 = vcmp.ge.f32.partialorder %v2765, 0.0
    %vm2894 = vcmp.ge.f32.partialorder %v2766, 0.0
    %vm2895 = vcmp.ge.f32.partialorder %v2767, 0.0
    %vm2896 = vcmp.ge.f32.partialorder %v2768, 0.0
    %vm2897 = vcmp.ge.f32.partialorder %v2769, 0.0
    %vm2898 = vcmp.ge.f32.partialorder %v2770, 0.0
    %vm2899 = vcmp.ge.f32.partialorder %v2771, 0.0
    %vm2900 = vcmp.ge.f32.partialorder %v2772, 0.0
    %vm2901 = vcmp.ge.f32.partialorder %v2773, 0.0
    %vm2902 = vcmp.ge.f32.partialorder %v2774, 0.0
    %vm2903 = vcmp.ge.f32.partialorder %v2775, 0.0
    %vm2904 = vcmp.ge.f32.partialorder %v2776, 0.0
    %vm2905 = vcmp.ge.f32.partialorder %v2777, 0.0
    %vm2906 = vcmp.ge.f32.partialorder %v2778, 0.0
    %vm2907 = vcmp.ge.f32.partialorder %v2779, 0.0
    %vm2908 = vcmp.ge.f32.partialorder %v2780, 0.0
    %vm2909 = vcmp.ge.f32.partialorder %v2781, 0.0
    %vm2910 = vcmp.ge.f32.partialorder %v2782, 0.0
    %vm2911 = vcmp.ge.f32.partialorder %v2783, 0.0
    %vm2912 = vcmp.ge.f32.partialorder %v2784, 0.0
    %vm2913 = vcmp.ge.f32.partialorder %v2785, 0.0
    %vm2914 = vcmp.ge.f32.partialorder %v2786, 0.0
    %vm2915 = vcmp.ge.f32.partialorder %v2787, 0.0
    %vm2916 = vcmp.ge.f32.partialorder %v2788, 0.0
    %vm2917 = vcmp.ge.f32.partialorder %v2789, 0.0
    %vm2918 = vcmp.ge.f32.partialorder %v2790, 0.0
    %vm2919 = vcmp.ge.f32.partialorder %v2791, 0.0
    %vm2920 = vcmp.ge.f32.partialorder %v2792, 0.0
    %vm2921 = vcmp.ge.f32.partialorder %v2793, 0.0
    %vm2922 = vcmp.ge.f32.partialorder %v2794, 0.0
    %vm2923 = vcmp.ge.f32.partialorder %v2795, 0.0
    %vm2924 = vcmp.ge.f32.partialorder %v2796, 0.0
    %vm2925 = vcmp.ge.f32.partialorder %v2797, 0.0
    %vm2926 = vcmp.ge.f32.partialorder %v2798, 0.0
    %vm2927 = vcmp.ge.f32.partialorder %v2799, 0.0
    %vm2928 = vcmp.ge.f32.partialorder %v2800, 0.0
    %vm2929 = vcmp.ge.f32.partialorder %v2801, 0.0
    %vm2930 = vcmp.ge.f32.partialorder %v2802, 0.0
    %vm2931 = vcmp.ge.f32.partialorder %v2803, 0.0
    %vm2932 = vcmp.ge.f32.partialorder %v2804, 0.0
    %vm2933 = vcmp.ge.f32.partialorder %v2805, 0.0
    %vm2934 = vcmp.ge.f32.partialorder %v2806, 0.0
    %vm2935 = vcmp.ge.f32.partialorder %v2807, 0.0
    %vm2936 = vcmp.ge.f32.partialorder %v2808, 0.0
    %vm2937 = vcmp.ge.f32.partialorder %v2809, 0.0
    %vm2938 = vcmp.ge.f32.partialorder %v2810, 0.0
    %vm2939 = vcmp.ge.f32.partialorder %v2811, 0.0
    %vm2940 = vcmp.ge.f32.partialorder %v2812, 0.0
    %vm2941 = vcmp.ge.f32.partialorder %v2813, 0.0
    %vm2942 = vcmp.ge.f32.partialorder %v2814, 0.0
    %vm2943 = vcmp.ge.f32.partialorder %v2815, 0.0
    %vm2944 = vcmp.ge.f32.partialorder %v2816, 0.0
    %vm2945 = vcmp.ge.f32.partialorder %v2817, 0.0
    %vm2946 = vcmp.ge.f32.partialorder %v2818, 0.0
    %vm2947 = vcmp.ge.f32.partialorder %v2819, 0.0
    %vm2948 = vcmp.ge.f32.partialorder %v2820, 0.0
    %vm2949 = vcmp.ge.f32.partialorder %v2821, 0.0
    %vm2950 = vcmp.ge.f32.partialorder %v2822, 0.0
    %vm2951 = vcmp.ge.f32.partialorder %v2823, 0.0
    %vm2952 = vcmp.ge.f32.partialorder %v2824, 0.0
    %v2953 = vmul.f32 %v2697, 0.1
    %v2954 = vmul.f32 %v2698, 0.1
    %v2955 = vmul.f32 %v2699, 0.1
    %v2956 = vmul.f32 %v2700, 0.1
    %v2957 = vmul.f32 %v2701, 0.1
    %v2958 = vmul.f32 %v2702, 0.1
    %v2959 = vmul.f32 %v2703, 0.1
    %v2960 = vmul.f32 %v2704, 0.1
    %v2961 = vmul.f32 %v2705, 0.1
    %v2962 = vmul.f32 %v2706, 0.1
    %v2963 = vmul.f32 %v2707, 0.1
    %v2964 = vmul.f32 %v2708, 0.1
    %v2965 = vmul.f32 %v2709, 0.1
    %v2966 = vmul.f32 %v2710, 0.1
    %v2967 = vmul.f32 %v2711, 0.1
    %v2968 = vmul.f32 %v2712, 0.1
    %v2969 = vmul.f32 %v2713, 0.1
    %v2970 = vmul.f32 %v2714, 0.1
    %v2971 = vmul.f32 %v2715, 0.1
    %v2972 = vmul.f32 %v2716, 0.1
    %v2973 = vmul.f32 %v2717, 0.1
    %v2974 = vmul.f32 %v2718, 0.1
    %v2975 = vmul.f32 %v2719, 0.1
    %v2976 = vmul.f32 %v2720, 0.1
    %v2977 = vmul.f32 %v2721, 0.1
    %v2978 = vmul.f32 %v2722, 0.1
    %v2979 = vmul.f32 %v2723, 0.1
    %v2980 = vmul.f32 %v2724, 0.1
    %v2981 = vmul.f32 %v2725, 0.1
    %v2982 = vmul.f32 %v2726, 0.1
    %v2983 = vmul.f32 %v2727, 0.1
    %v2984 = vmul.f32 %v2728, 0.1
    %v2985 = vmul.f32 %v2729, 0.1
    %v2986 = vmul.f32 %v2730, 0.1
    %v2987 = vmul.f32 %v2731, 0.1
    %v2988 = vmul.f32 %v2732, 0.1
    %v2989 = vmul.f32 %v2733, 0.1
    %v2990 = vmul.f32 %v2734, 0.1
    %v2991 = vmul.f32 %v2735, 0.1
    %v2992 = vmul.f32 %v2736, 0.1
    %v2993 = vmul.f32 %v2737, 0.1
    %v2994 = vmul.f32 %v2738, 0.1
    %v2995 = vmul.f32 %v2739, 0.1
    %v2996 = vmul.f32 %v2740, 0.1
    %v2997 = vmul.f32 %v2741, 0.1
    %v2998 = vmul.f32 %v2742, 0.1
    %v2999 = vmul.f32 %v2743, 0.1
    %v3000 = vmul.f32 %v2744, 0.1
    %v3001 = vmul.f32 %v2745, 0.1
    %v3002 = vmul.f32 %v2746, 0.1
    %v3003 = vmul.f32 %v2747, 0.1
    %v3004 = vmul.f32 %v2748, 0.1
    %v3005 = vmul.f32 %v2749, 0.1
    %v3006 = vmul.f32 %v2750, 0.1
    %v3007 = vmul.f32 %v2751, 0.1
    %v3008 = vmul.f32 %v2752, 0.1
    %v3009 = vmul.f32 %v2753, 0.1
    %v3010 = vmul.f32 %v2754, 0.1
    %v3011 = vmul.f32 %v2755, 0.1
    %v3012 = vmul.f32 %v2756, 0.1
    %v3013 = vmul.f32 %v2757, 0.1
    %v3014 = vmul.f32 %v2758, 0.1
    %v3015 = vmul.f32 %v2759, 0.1
    %v3016 = vmul.f32 %v2760, 0.1
    %v3017 = vmul.f32 %v2761, 0.1
    %v3018 = vmul.f32 %v2762, 0.1
    %v3019 = vmul.f32 %v2763, 0.1
    %v3020 = vmul.f32 %v2764, 0.1
    %v3021 = vmul.f32 %v2765, 0.1
    %v3022 = vmul.f32 %v2766, 0.1
    %v3023 = vmul.f32 %v2767, 0.1
    %v3024 = vmul.f32 %v2768, 0.1
    %v3025 = vmul.f32 %v2769, 0.1
    %v3026 = vmul.f32 %v2770, 0.1
    %v3027 = vmul.f32 %v2771, 0.1
    %v3028 = vmul.f32 %v2772, 0.1
    %v3029 = vmul.f32 %v2773, 0.1
    %v3030 = vmul.f32 %v2774, 0.1
    %v3031 = vmul.f32 %v2775, 0.1
    %v3032 = vmul.f32 %v2776, 0.1
    %v3033 = vmul.f32 %v2777, 0.1
    %v3034 = vmul.f32 %v2778, 0.1
    %v3035 = vmul.f32 %v2779, 0.1
    %v3036 = vmul.f32 %v2780, 0.1
    %v3037 = vmul.f32 %v2781, 0.1
    %v3038 = vmul.f32 %v2782, 0.1
    %v3039 = vmul.f32 %v2783, 0.1
    %v3040 = vmul.f32 %v2784, 0.1
    %v3041 = vmul.f32 %v2785, 0.1
    %v3042 = vmul.f32 %v2786, 0.1
    %v3043 = vmul.f32 %v2787, 0.1
    %v3044 = vmul.f32 %v2788, 0.1
    %v3045 = vmul.f32 %v2789, 0.1
    %v3046 = vmul.f32 %v2790, 0.1
    %v3047 = vmul.f32 %v2791, 0.1
    %v3048 = vmul.f32 %v2792, 0.1
    %v3049 = vmul.f32 %v2793, 0.1
    %v3050 = vmul.f32 %v2794, 0.1
    %v3051 = vmul.f32 %v2795, 0.1
    %v3052 = vmul.f32 %v2796, 0.1
    %v3053 = vmul.f32 %v2797, 0.1
    %v3054 = vmul.f32 %v2798, 0.1
    %v3055 = vmul.f32 %v2799, 0.1
    %v3056 = vmul.f32 %v2800, 0.1
    %v3057 = vmul.f32 %v2801, 0.1
    %v3058 = vmul.f32 %v2802, 0.1
    %v3059 = vmul.f32 %v2803, 0.1
    %v3060 = vmul.f32 %v2804, 0.1
    %v3061 = vmul.f32 %v2805, 0.1
    %v3062 = vmul.f32 %v2806, 0.1
    %v3063 = vmul.f32 %v2807, 0.1
    %v3064 = vmul.f32 %v2808, 0.1
    %v3065 = vmul.f32 %v2809, 0.1
    %v3066 = vmul.f32 %v2810, 0.1
    %v3067 = vmul.f32 %v2811, 0.1
    %v3068 = vmul.f32 %v2812, 0.1
    %v3069 = vmul.f32 %v2813, 0.1
    %v3070 = vmul.f32 %v2814, 0.1
    %v3071 = vmul.f32 %v2815, 0.1
    %v3072 = vmul.f32 %v2816, 0.1
    %v3073 = vmul.f32 %v2817, 0.1
    %v3074 = vmul.f32 %v2818, 0.1
    %v3075 = vmul.f32 %v2819, 0.1
    %v3076 = vmul.f32 %v2820, 0.1
    %v3077 = vmul.f32 %v2821, 0.1
    %v3078 = vmul.f32 %v2822, 0.1
    %v3079 = vmul.f32 %v2823, 0.1
    %v3080 = vmul.f32 %v2824, 0.1
    %v3081 = vsel %vm2825, %v2697, %v2953
    %v3082 = vsel %vm2826, %v2698, %v2954
    %v3083 = vsel %vm2827, %v2699, %v2955
    %v3084 = vsel %vm2828, %v2700, %v2956
    %v3085 = vsel %vm2829, %v2701, %v2957
    %v3086 = vsel %vm2830, %v2702, %v2958
    %v3087 = vsel %vm2831, %v2703, %v2959
    %v3088 = vsel %vm2832, %v2704, %v2960
    %v3089 = vsel %vm2833, %v2705, %v2961
    %v3090 = vsel %vm2834, %v2706, %v2962
    %v3091 = vsel %vm2835, %v2707, %v2963
    %v3092 = vsel %vm2836, %v2708, %v2964
    %v3093 = vsel %vm2837, %v2709, %v2965
    %v3094 = vsel %vm2838, %v2710, %v2966
    %v3095 = vsel %vm2839, %v2711, %v2967
    %v3096 = vsel %vm2840, %v2712, %v2968
    %v3097 = vsel %vm2841, %v2713, %v2969
    %v3098 = vsel %vm2842, %v2714, %v2970
    %v3099 = vsel %vm2843, %v2715, %v2971
    %v3100 = vsel %vm2844, %v2716, %v2972
    %v3101 = vsel %vm2845, %v2717, %v2973
    %v3102 = vsel %vm2846, %v2718, %v2974
    %v3103 = vsel %vm2847, %v2719, %v2975
    %v3104 = vsel %vm2848, %v2720, %v2976
    %v3105 = vsel %vm2849, %v2721, %v2977
    %v3106 = vsel %vm2850, %v2722, %v2978
    %v3107 = vsel %vm2851, %v2723, %v2979
    %v3108 = vsel %vm2852, %v2724, %v2980
    %v3109 = vsel %vm2853, %v2725, %v2981
    %v3110 = vsel %vm2854, %v2726, %v2982
    %v3111 = vsel %vm2855, %v2727, %v2983
    %v3112 = vsel %vm2856, %v2728, %v2984
    %v3113 = vsel %vm2857, %v2729, %v2985
    %v3114 = vsel %vm2858, %v2730, %v2986
    %v3115 = vsel %vm2859, %v2731, %v2987
    %v3116 = vsel %vm2860, %v2732, %v2988
    %v3117 = vsel %vm2861, %v2733, %v2989
    %v3118 = vsel %vm2862, %v2734, %v2990
    %v3119 = vsel %vm2863, %v2735, %v2991
    %v3120 = vsel %vm2864, %v2736, %v2992
    %v3121 = vsel %vm2865, %v2737, %v2993
    %v3122 = vsel %vm2866, %v2738, %v2994
    %v3123 = vsel %vm2867, %v2739, %v2995
    %v3124 = vsel %vm2868, %v2740, %v2996
    %v3125 = vsel %vm2869, %v2741, %v2997
    %v3126 = vsel %vm2870, %v2742, %v2998
    %v3127 = vsel %vm2871, %v2743, %v2999
    %v3128 = vsel %vm2872, %v2744, %v3000
    %v3129 = vsel %vm2873, %v2745, %v3001
    %v3130 = vsel %vm2874, %v2746, %v3002
    %v3131 = vsel %vm2875, %v2747, %v3003
    %v3132 = vsel %vm2876, %v2748, %v3004
    %v3133 = vsel %vm2877, %v2749, %v3005
    %v3134 = vsel %vm2878, %v2750, %v3006
    %v3135 = vsel %vm2879, %v2751, %v3007
    %v3136 = vsel %vm2880, %v2752, %v3008
    %v3137 = vsel %vm2881, %v2753, %v3009
    %v3138 = vsel %vm2882, %v2754, %v3010
    %v3139 = vsel %vm2883, %v2755, %v3011
    %v3140 = vsel %vm2884, %v2756, %v3012
    %v3141 = vsel %vm2885, %v2757, %v3013
    %v3142 = vsel %vm2886, %v2758, %v3014
    %v3143 = vsel %vm2887, %v2759, %v3015
    %v3144 = vsel %vm2888, %v2760, %v3016
    %v3145 = vsel %vm2889, %v2761, %v3017
    %v3146 = vsel %vm2890, %v2762, %v3018
    %v3147 = vsel %vm2891, %v2763, %v3019
    %v3148 = vsel %vm2892, %v2764, %v3020
    %v3149 = vsel %vm2893, %v2765, %v3021
    %v3150 = vsel %vm2894, %v2766, %v3022
    %v3151 = vsel %vm2895, %v2767, %v3023
    %v3152 = vsel %vm2896, %v2768, %v3024
    %v3153 = vsel %vm2897, %v2769, %v3025
    %v3154 = vsel %vm2898, %v2770, %v3026
    %v3155 = vsel %vm2899, %v2771, %v3027
    %v3156 = vsel %vm2900, %v2772, %v3028
    %v3157 = vsel %vm2901, %v2773, %v3029
    %v3158 = vsel %vm2902, %v2774, %v3030
    %v3159 = vsel %vm2903, %v2775, %v3031
    %v3160 = vsel %vm2904, %v2776, %v3032
    %v3161 = vsel %vm2905, %v2777, %v3033
    %v3162 = vsel %vm2906, %v2778, %v3034
    %v3163 = vsel %vm2907, %v2779, %v3035
    %v3164 = vsel %vm2908, %v2780, %v3036
    %v3165 = vsel %vm2909, %v2781, %v3037
    %v3166 = vsel %vm2910, %v2782, %v3038
    %v3167 = vsel %vm2911, %v2783, %v3039
    %v3168 = vsel %vm2912, %v2784, %v3040
    %v3169 = vsel %vm2913, %v2785, %v3041
    %v3170 = vsel %vm2914, %v2786, %v3042
    %v3171 = vsel %vm2915, %v2787, %v3043
    %v3172 = vsel %vm2916, %v2788, %v3044
    %v3173 = vsel %vm2917, %v2789, %v3045
    %v3174 = vsel %vm2918, %v2790, %v3046
    %v3175 = vsel %vm2919, %v2791, %v3047
    %v3176 = vsel %vm2920, %v2792, %v3048
    %v3177 = vsel %vm2921, %v2793, %v3049
    %v3178 = vsel %vm2922, %v2794, %v3050
    %v3179 = vsel %vm2923, %v2795, %v3051
    %v3180 = vsel %vm2924, %v2796, %v3052
    %v3181 = vsel %vm2925, %v2797, %v3053
    %v3182 = vsel %vm2926, %v2798, %v3054
    %v3183 = vsel %vm2927, %v2799, %v3055
    %v3184 = vsel %vm2928, %v2800, %v3056
    %v3185 = vsel %vm2929, %v2801, %v3057
    %v3186 = vsel %vm2930, %v2802, %v3058
    %v3187 = vsel %vm2931, %v2803, %v3059
    %v3188 = vsel %vm2932, %v2804, %v3060
    %v3189 = vsel %vm2933, %v2805, %v3061
    %v3190 = vsel %vm2934, %v2806, %v3062
    %v3191 = vsel %vm2935, %v2807, %v3063
    %v3192 = vsel %vm2936, %v2808, %v3064
    %v3193 = vsel %vm2937, %v2809, %v3065
    %v3194 = vsel %vm2938, %v2810, %v3066
    %v3195 = vsel %vm2939, %v2811, %v3067
    %v3196 = vsel %vm2940, %v2812, %v3068
    %v3197 = vsel %vm2941, %v2813, %v3069
    %v3198 = vsel %vm2942, %v2814, %v3070
    %v3199 = vsel %vm2943, %v2815, %v3071
    %v3200 = vsel %vm2944, %v2816, %v3072
    %v3201 = vsel %vm2945, %v2817, %v3073
    %v3202 = vsel %vm2946, %v2818, %v3074
    %v3203 = vsel %vm2947, %v2819, %v3075
    %v3204 = vsel %vm2948, %v2820, %v3076
    %v3205 = vsel %vm2949, %v2821, %v3077
    %v3206 = vsel %vm2950, %v2822, %v3078
    %v3207 = vsel %vm2951, %v2823, %v3079
    %v3208 = vsel %vm2952, %v2824, %v3080
    %v3209 = vpack.c.bf16 %v3083, %v3081
    %v3210 = vpack.c.bf16 %v3084, %v3082
    %v3211 = vpack.c.bf16 %v3087, %v3085
    %v3212 = vpack.c.bf16 %v3088, %v3086
    %v3213 = vpack.c.bf16 %v3091, %v3089
    %v3214 = vpack.c.bf16 %v3092, %v3090
    %v3215 = vpack.c.bf16 %v3095, %v3093
    %v3216 = vpack.c.bf16 %v3096, %v3094
    %v3217 = vpack.c.bf16 %v3099, %v3097
    %v3218 = vpack.c.bf16 %v3100, %v3098
    %v3219 = vpack.c.bf16 %v3103, %v3101
    %v3220 = vpack.c.bf16 %v3104, %v3102
    %v3221 = vpack.c.bf16 %v3107, %v3105
    %v3222 = vpack.c.bf16 %v3108, %v3106
    %v3223 = vpack.c.bf16 %v3111, %v3109
    %v3224 = vpack.c.bf16 %v3112, %v3110
    %v3225 = vpack.c.bf16 %v3115, %v3113
    %v3226 = vpack.c.bf16 %v3116, %v3114
    %v3227 = vpack.c.bf16 %v3119, %v3117
    %v3228 = vpack.c.bf16 %v3120, %v3118
    %v3229 = vpack.c.bf16 %v3123, %v3121
    %v3230 = vpack.c.bf16 %v3124, %v3122
    %v3231 = vpack.c.bf16 %v3127, %v3125
    %v3232 = vpack.c.bf16 %v3128, %v3126
    %v3233 = vpack.c.bf16 %v3131, %v3129
    %v3234 = vpack.c.bf16 %v3132, %v3130
    %v3235 = vpack.c.bf16 %v3135, %v3133
    %v3236 = vpack.c.bf16 %v3136, %v3134
    %v3237 = vpack.c.bf16 %v3139, %v3137
    %v3238 = vpack.c.bf16 %v3140, %v3138
    %v3239 = vpack.c.bf16 %v3143, %v3141
    %v3240 = vpack.c.bf16 %v3144, %v3142
    %v3241 = vpack.c.bf16 %v3147, %v3145
    %v3242 = vpack.c.bf16 %v3148, %v3146
    %v3243 = vpack.c.bf16 %v3151, %v3149
    %v3244 = vpack.c.bf16 %v3152, %v3150
    %v3245 = vpack.c.bf16 %v3155, %v3153
    %v3246 = vpack.c.bf16 %v3156, %v3154
    %v3247 = vpack.c.bf16 %v3159, %v3157
    %v3248 = vpack.c.bf16 %v3160, %v3158
    %v3249 = vpack.c.bf16 %v3163, %v3161
    %v3250 = vpack.c.bf16 %v3164, %v3162
    %v3251 = vpack.c.bf16 %v3167, %v3165
    %v3252 = vpack.c.bf16 %v3168, %v3166
    %v3253 = vpack.c.bf16 %v3171, %v3169
    %v3254 = vpack.c.bf16 %v3172, %v3170
    %v3255 = vpack.c.bf16 %v3175, %v3173
    %v3256 = vpack.c.bf16 %v3176, %v3174
    %v3257 = vpack.c.bf16 %v3179, %v3177
    %v3258 = vpack.c.bf16 %v3180, %v3178
    %v3259 = vpack.c.bf16 %v3183, %v3181
    %v3260 = vpack.c.bf16 %v3184, %v3182
    %v3261 = vpack.c.bf16 %v3187, %v3185
    %v3262 = vpack.c.bf16 %v3188, %v3186
    %v3263 = vpack.c.bf16 %v3191, %v3189
    %v3264 = vpack.c.bf16 %v3192, %v3190
    %v3265 = vpack.c.bf16 %v3195, %v3193
    %v3266 = vpack.c.bf16 %v3196, %v3194
    %v3267 = vpack.c.bf16 %v3199, %v3197
    %v3268 = vpack.c.bf16 %v3200, %v3198
    %v3269 = vpack.c.bf16 %v3203, %v3201
    %v3270 = vpack.c.bf16 %v3204, %v3202
    %v3271 = vpack.c.bf16 %v3207, %v3205
    %v3272 = vpack.c.bf16 %v3208, %v3206
    %v3273 = vld [vmem:[%s9] sm:$0xff]
    %v3274 = vld [vmem:[%s9 + $0x8] sm:$0xff]
    %v3275 = vld [vmem:[%s9 + $0x10] sm:$0xff]
    %v3276 = vld [vmem:[%s9 + $0x18] sm:$0xff]
    %v3277 = vld [vmem:[%s9 + $0x20] sm:$0xff]
    %v3278 = vld [vmem:[%s9 + $0x28] sm:$0xff]
    %v3279 = vld [vmem:[%s9 + $0x30] sm:$0xff]
    %v3280 = vld [vmem:[%s9 + $0x38] sm:$0xff]
    %v3281 = vld [vmem:[%s9 + $0x40] sm:$0xff]
    %v3282 = vld [vmem:[%s9 + $0x48] sm:$0xff]
    %v3283 = vld [vmem:[%s9 + $0x50] sm:$0xff]
    %v3284 = vld [vmem:[%s9 + $0x58] sm:$0xff]
    %v3285 = vld [vmem:[%s9 + $0x60] sm:$0xff]
    %v3286 = vld [vmem:[%s9 + $0x68] sm:$0xff]
    %v3287 = vld [vmem:[%s9 + $0x70] sm:$0xff]
    %v3288 = vld [vmem:[%s9 + $0x78] sm:$0xff]
    %v3289 = vld [vmem:[%s9 + $0x80] sm:$0xff]
    %v3290 = vld [vmem:[%s9 + $0x88] sm:$0xff]
    %v3291 = vld [vmem:[%s9 + $0x90] sm:$0xff]
    %v3292 = vld [vmem:[%s9 + $0x98] sm:$0xff]
    %v3293 = vld [vmem:[%s9 + $0xa0] sm:$0xff]
    %v3294 = vld [vmem:[%s9 + $0xa8] sm:$0xff]
    %v3295 = vld [vmem:[%s9 + $0xb0] sm:$0xff]
    %v3296 = vld [vmem:[%s9 + $0xb8] sm:$0xff]
    %v3297 = vld [vmem:[%s9 + $0xc0] sm:$0xff]
    %v3298 = vld [vmem:[%s9 + $0xc8] sm:$0xff]
    %v3299 = vld [vmem:[%s9 + $0xd0] sm:$0xff]
    %v3300 = vld [vmem:[%s9 + $0xd8] sm:$0xff]
    %v3301 = vld [vmem:[%s9 + $0xe0] sm:$0xff]
    %v3302 = vld [vmem:[%s9 + $0xe8] sm:$0xff]
    %v3303 = vld [vmem:[%s9 + $0xf0] sm:$0xff]
    %v3304 = vld [vmem:[%s9 + $0xf8] sm:$0xff]
    %v3305 = vld [vmem:[%s9 + $0x100] sm:$0xff]
    %v3306 = vld [vmem:[%s9 + $0x108] sm:$0xff]
    %v3307 = vld [vmem:[%s9 + $0x110] sm:$0xff]
    %v3308 = vld [vmem:[%s9 + $0x118] sm:$0xff]
    %v3309 = vld [vmem:[%s9 + $0x120] sm:$0xff]
    %v3310 = vld [vmem:[%s9 + $0x128] sm:$0xff]
    %v3311 = vld [vmem:[%s9 + $0x130] sm:$0xff]
    %v3312 = vld [vmem:[%s9 + $0x138] sm:$0xff]
    %v3313 = vld [vmem:[%s9 + $0x140] sm:$0xff]
    %v3314 = vld [vmem:[%s9 + $0x148] sm:$0xff]
    %v3315 = vld [vmem:[%s9 + $0x150] sm:$0xff]
    %v3316 = vld [vmem:[%s9 + $0x158] sm:$0xff]
    %v3317 = vld [vmem:[%s9 + $0x160] sm:$0xff]
    %v3318 = vld [vmem:[%s9 + $0x168] sm:$0xff]
    %v3319 = vld [vmem:[%s9 + $0x170] sm:$0xff]
    %v3320 = vld [vmem:[%s9 + $0x178] sm:$0xff]
    %v3321 = vld [vmem:[%s9 + $0x180] sm:$0xff]
    %v3322 = vld [vmem:[%s9 + $0x188] sm:$0xff]
    %v3323 = vld [vmem:[%s9 + $0x190] sm:$0xff]
    %v3324 = vld [vmem:[%s9 + $0x198] sm:$0xff]
    %v3325 = vld [vmem:[%s9 + $0x1a0] sm:$0xff]
    %v3326 = vld [vmem:[%s9 + $0x1a8] sm:$0xff]
    %v3327 = vld [vmem:[%s9 + $0x1b0] sm:$0xff]
    %v3328 = vld [vmem:[%s9 + $0x1b8] sm:$0xff]
    %v3329 = vld [vmem:[%s9 + $0x1c0] sm:$0xff]
    %v3330 = vld [vmem:[%s9 + $0x1c8] sm:$0xff]
    %v3331 = vld [vmem:[%s9 + $0x1d0] sm:$0xff]
    %v3332 = vld [vmem:[%s9 + $0x1d8] sm:$0xff]
    %v3333 = vld [vmem:[%s9 + $0x1e0] sm:$0xff]
    %v3334 = vld [vmem:[%s9 + $0x1e8] sm:$0xff]
    %v3335 = vld [vmem:[%s9 + $0x1f0] sm:$0xff]
    %v3336 = vld [vmem:[%s9 + $0x1f8] sm:$0xff]
    %v3337 = vld [vmem:[%s10] sm:$0xf]
    %v3339 = vlaneseq
    %v3340 = vshrl.u32 %v3339, 7
    %v3341 = vsub.s32 0, %v3340
    %v3342 = vrot.slane %v3337, %v3341
    %v3343 = vlaneseq
    %v3344 = vshrl.u32 %v3343, 7
    %v3345 = vsub.s32 1, %v3344
    %v3346 = vrot.slane %v3337, %v3345
    %v3347 = vlaneseq
    %v3348 = vshrl.u32 %v3347, 7
    %v3349 = vsub.s32 2, %v3348
    %v3350 = vrot.slane %v3337, %v3349
    %v3351 = vlaneseq
    %v3352 = vshrl.u32 %v3351, 7
    %v3353 = vsub.s32 3, %v3352
    %v3354 = vrot.slane %v3337, %v3353
    %v3423 = vunpack.c.l.b16 %v3273
    %v3424 = vunpack.c.h.b16 %v3273
    %v3425 = vunpack.c.l.b16 %v3274
    %v3426 = vunpack.c.h.b16 %v3274
    %v3427 = vunpack.c.l.b16 %v3275
    %v3428 = vunpack.c.h.b16 %v3275
    %v3429 = vunpack.c.l.b16 %v3276
    %v3430 = vunpack.c.h.b16 %v3276
    %v3431 = vunpack.c.l.b16 %v3277
    %v3432 = vunpack.c.h.b16 %v3277
    %v3433 = vunpack.c.l.b16 %v3278
    %v3434 = vunpack.c.h.b16 %v3278
    %v3435 = vunpack.c.l.b16 %v3279
    %v3436 = vunpack.c.h.b16 %v3279
    %v3437 = vunpack.c.l.b16 %v3280
    %v3438 = vunpack.c.h.b16 %v3280
    %v3439 = vunpack.c.l.b16 %v3281
    %v3440 = vunpack.c.h.b16 %v3281
    %v3441 = vunpack.c.l.b16 %v3282
    %v3442 = vunpack.c.h.b16 %v3282
    %v3443 = vunpack.c.l.b16 %v3283
    %v3444 = vunpack.c.h.b16 %v3283
    %v3445 = vunpack.c.l.b16 %v3284
    %v3446 = vunpack.c.h.b16 %v3284
    %v3447 = vunpack.c.l.b16 %v3285
    %v3448 = vunpack.c.h.b16 %v3285
    %v3449 = vunpack.c.l.b16 %v3286
    %v3450 = vunpack.c.h.b16 %v3286
    %v3451 = vunpack.c.l.b16 %v3287
    %v3452 = vunpack.c.h.b16 %v3287
    %v3453 = vunpack.c.l.b16 %v3288
    %v3454 = vunpack.c.h.b16 %v3288
    %v3455 = vunpack.c.l.b16 %v3289
    %v3456 = vunpack.c.h.b16 %v3289
    %v3457 = vunpack.c.l.b16 %v3290
    %v3458 = vunpack.c.h.b16 %v3290
    %v3459 = vunpack.c.l.b16 %v3291
    %v3460 = vunpack.c.h.b16 %v3291
    %v3461 = vunpack.c.l.b16 %v3292
    %v3462 = vunpack.c.h.b16 %v3292
    %v3463 = vunpack.c.l.b16 %v3293
    %v3464 = vunpack.c.h.b16 %v3293
    %v3465 = vunpack.c.l.b16 %v3294
    %v3466 = vunpack.c.h.b16 %v3294
    %v3467 = vunpack.c.l.b16 %v3295
    %v3468 = vunpack.c.h.b16 %v3295
    %v3469 = vunpack.c.l.b16 %v3296
    %v3470 = vunpack.c.h.b16 %v3296
    %v3471 = vunpack.c.l.b16 %v3297
    %v3472 = vunpack.c.h.b16 %v3297
    %v3473 = vunpack.c.l.b16 %v3298
    %v3474 = vunpack.c.h.b16 %v3298
    %v3475 = vunpack.c.l.b16 %v3299
    %v3476 = vunpack.c.h.b16 %v3299
    %v3477 = vunpack.c.l.b16 %v3300
    %v3478 = vunpack.c.h.b16 %v3300
    %v3479 = vunpack.c.l.b16 %v3301
    %v3480 = vunpack.c.h.b16 %v3301
    %v3481 = vunpack.c.l.b16 %v3302
    %v3482 = vunpack.c.h.b16 %v3302
    %v3483 = vunpack.c.l.b16 %v3303
    %v3484 = vunpack.c.h.b16 %v3303
    %v3485 = vunpack.c.l.b16 %v3304
    %v3486 = vunpack.c.h.b16 %v3304
    %v3487 = vunpack.c.l.b16 %v3305
    %v3488 = vunpack.c.h.b16 %v3305
    %v3489 = vunpack.c.l.b16 %v3306
    %v3490 = vunpack.c.h.b16 %v3306
    %v3491 = vunpack.c.l.b16 %v3307
    %v3492 = vunpack.c.h.b16 %v3307
    %v3493 = vunpack.c.l.b16 %v3308
    %v3494 = vunpack.c.h.b16 %v3308
    %v3495 = vunpack.c.l.b16 %v3309
    %v3496 = vunpack.c.h.b16 %v3309
    %v3497 = vunpack.c.l.b16 %v3310
    %v3498 = vunpack.c.h.b16 %v3310
    %v3499 = vunpack.c.l.b16 %v3311
    %v3500 = vunpack.c.h.b16 %v3311
    %v3501 = vunpack.c.l.b16 %v3312
    %v3502 = vunpack.c.h.b16 %v3312
    %v3503 = vunpack.c.l.b16 %v3313
    %v3504 = vunpack.c.h.b16 %v3313
    %v3505 = vunpack.c.l.b16 %v3314
    %v3506 = vunpack.c.h.b16 %v3314
    %v3507 = vunpack.c.l.b16 %v3315
    %v3508 = vunpack.c.h.b16 %v3315
    %v3509 = vunpack.c.l.b16 %v3316
    %v3510 = vunpack.c.h.b16 %v3316
    %v3511 = vunpack.c.l.b16 %v3317
    %v3512 = vunpack.c.h.b16 %v3317
    %v3513 = vunpack.c.l.b16 %v3318
    %v3514 = vunpack.c.h.b16 %v3318
    %v3515 = vunpack.c.l.b16 %v3319
    %v3516 = vunpack.c.h.b16 %v3319
    %v3517 = vunpack.c.l.b16 %v3320
    %v3518 = vunpack.c.h.b16 %v3320
    %v3519 = vunpack.c.l.b16 %v3321
    %v3520 = vunpack.c.h.b16 %v3321
    %v3521 = vunpack.c.l.b16 %v3322
    %v3522 = vunpack.c.h.b16 %v3322
    %v3523 = vunpack.c.l.b16 %v3323
    %v3524 = vunpack.c.h.b16 %v3323
    %v3525 = vunpack.c.l.b16 %v3324
    %v3526 = vunpack.c.h.b16 %v3324
    %v3527 = vunpack.c.l.b16 %v3325
    %v3528 = vunpack.c.h.b16 %v3325
    %v3529 = vunpack.c.l.b16 %v3326
    %v3530 = vunpack.c.h.b16 %v3326
    %v3531 = vunpack.c.l.b16 %v3327
    %v3532 = vunpack.c.h.b16 %v3327
    %v3533 = vunpack.c.l.b16 %v3328
    %v3534 = vunpack.c.h.b16 %v3328
    %v3535 = vunpack.c.l.b16 %v3329
    %v3536 = vunpack.c.h.b16 %v3329
    %v3537 = vunpack.c.l.b16 %v3330
    %v3538 = vunpack.c.h.b16 %v3330
    %v3539 = vunpack.c.l.b16 %v3331
    %v3540 = vunpack.c.h.b16 %v3331
    %v3541 = vunpack.c.l.b16 %v3332
    %v3542 = vunpack.c.h.b16 %v3332
    %v3543 = vunpack.c.l.b16 %v3333
    %v3544 = vunpack.c.h.b16 %v3333
    %v3545 = vunpack.c.l.b16 %v3334
    %v3546 = vunpack.c.h.b16 %v3334
    %v3547 = vunpack.c.l.b16 %v3335
    %v3548 = vunpack.c.h.b16 %v3335
    %v3549 = vunpack.c.l.b16 %v3336
    %v3550 = vunpack.c.h.b16 %v3336
    %v3551 = vpack.c.b16 %v3427, %v3423
    %v3552 = vpack.c.b16 %v3428, %v3424
    %v3553 = vpack.c.b16 %v3429, %v3425
    %v3554 = vpack.c.b16 %v3430, %v3426
    %v3555 = vpack.c.b16 %v3435, %v3431
    %v3556 = vpack.c.b16 %v3436, %v3432
    %v3557 = vpack.c.b16 %v3437, %v3433
    %v3558 = vpack.c.b16 %v3438, %v3434
    %v3559 = vpack.c.b16 %v3443, %v3439
    %v3560 = vpack.c.b16 %v3444, %v3440
    %v3561 = vpack.c.b16 %v3445, %v3441
    %v3562 = vpack.c.b16 %v3446, %v3442
    %v3563 = vpack.c.b16 %v3451, %v3447
    %v3564 = vpack.c.b16 %v3452, %v3448
    %v3565 = vpack.c.b16 %v3453, %v3449
    %v3566 = vpack.c.b16 %v3454, %v3450
    %v3567 = vpack.c.b16 %v3459, %v3455
    %v3568 = vpack.c.b16 %v3460, %v3456
    %v3569 = vpack.c.b16 %v3461, %v3457
    %v3570 = vpack.c.b16 %v3462, %v3458
    %v3571 = vpack.c.b16 %v3467, %v3463
    %v3572 = vpack.c.b16 %v3468, %v3464
    %v3573 = vpack.c.b16 %v3469, %v3465
    %v3574 = vpack.c.b16 %v3470, %v3466
    %v3575 = vpack.c.b16 %v3475, %v3471
    %v3576 = vpack.c.b16 %v3476, %v3472
    %v3577 = vpack.c.b16 %v3477, %v3473
    %v3578 = vpack.c.b16 %v3478, %v3474
    %v3579 = vpack.c.b16 %v3483, %v3479
    %v3580 = vpack.c.b16 %v3484, %v3480
    %v3581 = vpack.c.b16 %v3485, %v3481
    %v3582 = vpack.c.b16 %v3486, %v3482
    %v3583 = vpack.c.b16 %v3491, %v3487
    %v3584 = vpack.c.b16 %v3492, %v3488
    %v3585 = vpack.c.b16 %v3493, %v3489
    %v3586 = vpack.c.b16 %v3494, %v3490
    %v3587 = vpack.c.b16 %v3499, %v3495
    %v3588 = vpack.c.b16 %v3500, %v3496
    %v3589 = vpack.c.b16 %v3501, %v3497
    %v3590 = vpack.c.b16 %v3502, %v3498
    %v3591 = vpack.c.b16 %v3507, %v3503
    %v3592 = vpack.c.b16 %v3508, %v3504
    %v3593 = vpack.c.b16 %v3509, %v3505
    %v3594 = vpack.c.b16 %v3510, %v3506
    %v3595 = vpack.c.b16 %v3515, %v3511
    %v3596 = vpack.c.b16 %v3516, %v3512
    %v3597 = vpack.c.b16 %v3517, %v3513
    %v3598 = vpack.c.b16 %v3518, %v3514
    %v3599 = vpack.c.b16 %v3523, %v3519
    %v3600 = vpack.c.b16 %v3524, %v3520
    %v3601 = vpack.c.b16 %v3525, %v3521
    %v3602 = vpack.c.b16 %v3526, %v3522
    %v3603 = vpack.c.b16 %v3531, %v3527
    %v3604 = vpack.c.b16 %v3532, %v3528
    %v3605 = vpack.c.b16 %v3533, %v3529
    %v3606 = vpack.c.b16 %v3534, %v3530
    %v3607 = vpack.c.b16 %v3539, %v3535
    %v3608 = vpack.c.b16 %v3540, %v3536
    %v3609 = vpack.c.b16 %v3541, %v3537
    %v3610 = vpack.c.b16 %v3542, %v3538
    %v3611 = vpack.c.b16 %v3547, %v3543
    %v3612 = vpack.c.b16 %v3548, %v3544
    %v3613 = vpack.c.b16 %v3549, %v3545
    %v3614 = vpack.c.b16 %v3550, %v3546
    %3679 = vmatprep.subr.bf16.mxu0 %v3552
    %3680 = vmatpush1.bf16.msra.mxu0 %v3551
    %3681 = vmatprep.subr.bf16.mxu0 %v3556
    %3682 = vmatpush1.bf16.msra.mxu0 %v3555
    %3683 = vmatprep.subr.bf16.mxu0 %v3560
    %3684 = vmatpush1.bf16.msra.mxu0 %v3559
    %3685 = vmatprep.subr.bf16.mxu0 %v3564
    %3686 = vmatpush1.bf16.msra.mxu0 %v3563
    %3687 = vmatprep.subr.bf16.mxu0 %v3568
    %3688 = vmatpush1.bf16.msra.mxu0 %v3567
    %3689 = vmatprep.subr.bf16.mxu0 %v3572
    %3690 = vmatpush1.bf16.msra.mxu0 %v3571
    %3691 = vmatprep.subr.bf16.mxu0 %v3576
    %3692 = vmatpush1.bf16.msra.mxu0 %v3575
    %3693 = vmatprep.subr.bf16.mxu0 %v3580
    %3694 = vmatpush1.bf16.msra.mxu0 %v3579
    %3695 = vmatprep.subr.bf16.mxu0 %v3584
    %3696 = vmatpush1.bf16.msra.mxu0 %v3583
    %3697 = vmatprep.subr.bf16.mxu0 %v3588
    %3698 = vmatpush1.bf16.msra.mxu0 %v3587
    %3699 = vmatprep.subr.bf16.mxu0 %v3592
    %3700 = vmatpush1.bf16.msra.mxu0 %v3591
    %3701 = vmatprep.subr.bf16.mxu0 %v3596
    %3702 = vmatpush1.bf16.msra.mxu0 %v3595
    %3703 = vmatprep.subr.bf16.mxu0 %v3600
    %3704 = vmatpush1.bf16.msra.mxu0 %v3599
    %3705 = vmatprep.subr.bf16.mxu0 %v3604
    %3706 = vmatpush1.bf16.msra.mxu0 %v3603
    %3707 = vmatprep.subr.bf16.mxu0 %v3608
    %3708 = vmatpush1.bf16.msra.mxu0 %v3607
    %3709 = vmatprep.subr.bf16.mxu0 %v3612
    %3710 = vmatpush1.bf16.msra.mxu0 %v3611
    %3711 = vmatprep.mubr.bf16.mxu0 %v3210
    %3712 = vmatmul.mubr.bf16.gmra.mrb[0].mxu0 %v3209
    %v3713 = vpop.f32.mrb[0].mxu0
    %v3714 = vadd.f32 %v3342, %v3713
    %v3715 = vpop.f32.mrb[0].mxu0
    %v3716 = vadd.f32 %v3346, %v3715
    %v3717 = vpop.f32.mrb[0].mxu0
    %v3718 = vadd.f32 %v3342, %v3717
    %v3719 = vpop.f32.mrb[0].mxu0
    %v3720 = vadd.f32 %v3346, %v3719
    %3721 = vmatprep.mubr.bf16.mxu0 %v3212
    %3722 = vmatmul.mubr.bf16.gmra.mrb[0].mxu0 %v3211
    %v3723 = vpop.f32.mrb[0].mxu0
    %v3724 = vadd.f32 %v3342, %v3723
    %v3725 = vpop.f32.mrb[0].mxu0
    %v3726 = vadd.f32 %v3346, %v3725
    %v3727 = vpop.f32.mrb[0].mxu0
    %v3728 = vadd.f32 %v3342, %v3727
    %v3729 = vpop.f32.mrb[0].mxu0
    %v3730 = vadd.f32 %v3346, %v3729
    %3731 = vmatprep.mubr.bf16.mxu0 %v3214
    %3732 = vmatmul.mubr.bf16.gmra.mrb[0].mxu0 %v3213
    %v3733 = vpop.f32.mrb[0].mxu0
    %v3734 = vadd.f32 %v3342, %v3733
    %v3735 = vpop.f32.mrb[0].mxu0
    %v3736 = vadd.f32 %v3346, %v3735
    %v3737 = vpop.f32.mrb[0].mxu0
    %v3738 = vadd.f32 %v3342, %v3737
    %v3739 = vpop.f32.mrb[0].mxu0
    %v3740 = vadd.f32 %v3346, %v3739
    %3741 = vmatprep.mubr.bf16.mxu0 %v3216
    %3742 = vmatmul.mubr.bf16.gmra.mrb[0].mxu0 %v3215
    %v3743 = vpop.f32.mrb[0].mxu0
    %v3744 = vadd.f32 %v3342, %v3743
    %v3745 = vpop.f32.mrb[0].mxu0
    %v3746 = vadd.f32 %v3346, %v3745
    %v3747 = vpop.f32.mrb[0].mxu0
    %v3748 = vadd.f32 %v3342, %v3747
    %v3749 = vpop.f32.mrb[0].mxu0
    %v3750 = vadd.f32 %v3346, %v3749
    %3751 = vmatprep.mubr.bf16.mxu0 %v3218
    %3752 = vmatmul.mubr.bf16.gmra.mrb[0].mxu0 %v3217
    %v3753 = vpop.f32.mrb[0].mxu0
    %v3754 = vadd.f32 %v3342, %v3753
    %v3755 = vpop.f32.mrb[0].mxu0
    %v3756 = vadd.f32 %v3346, %v3755
    %v3757 = vpop.f32.mrb[0].mxu0
    %v3758 = vadd.f32 %v3342, %v3757
    %v3759 = vpop.f32.mrb[0].mxu0
    %v3760 = vadd.f32 %v3346, %v3759
    %3761 = vmatprep.mubr.bf16.mxu0 %v3220
    %3762 = vmatmul.mubr.bf16.gmra.mrb[0].mxu0 %v3219
    %v3763 = vpop.f32.mrb[0].mxu0
    %v3764 = vadd.f32 %v3342, %v3763
    %v3765 = vpop.f32.mrb[0].mxu0
    %v3766 = vadd.f32 %v3346, %v3765
    %v3767 = vpop.f32.mrb[0].mxu0
    %v3768 = vadd.f32 %v3342, %v3767
    %v3769 = vpop.f32.mrb[0].mxu0
    %v3770 = vadd.f32 %v3346, %v3769
    %3771 = vmatprep.mubr.bf16.mxu0 %v3222
    %3772 = vmatmul.mubr.bf16.gmra.mrb[0].mxu0 %v3221
    %v3773 = vpop.f32.mrb[0].mxu0
    %v3774 = vadd.f32 %v3342, %v3773
    %v3775 = vpop.f32.mrb[0].mxu0
    %v3776 = vadd.f32 %v3346, %v3775
    %v3777 = vpop.f32.mrb[0].mxu0
    %v3778 = vadd.f32 %v3342, %v3777
    %v3779 = vpop.f32.mrb[0].mxu0
    %v3780 = vadd.f32 %v3346, %v3779
    %3781 = vmatprep.mubr.bf16.mxu0 %v3224
    %3782 = vmatmul.mubr.bf16.gmra.mrb[0].mxu0 %v3223
    %v3783 = vpop.f32.mrb[0].mxu0
    %v3784 = vadd.f32 %v3342, %v3783
    %v3785 = vpop.f32.mrb[0].mxu0
    %v3786 = vadd.f32 %v3346, %v3785
    %v3787 = vpop.f32.mrb[0].mxu0
    %v3788 = vadd.f32 %v3342, %v3787
    %v3789 = vpop.f32.mrb[0].mxu0
    %v3790 = vadd.f32 %v3346, %v3789
    %3791 = vmatprep.mubr.bf16.mxu0 %v3226
    %3792 = vmatmul.mubr.bf16.gmra.mrb[0].mxu0 %v3225
    %v3793 = vpop.f32.mrb[0].mxu0
    %v3794 = vadd.f32 %v3342, %v3793
    %v3795 = vpop.f32.mrb[0].mxu0
    %v3796 = vadd.f32 %v3346, %v3795
    %v3797 = vpop.f32.mrb[0].mxu0
    %v3798 = vadd.f32 %v3342, %v3797
    %v3799 = vpop.f32.mrb[0].mxu0
    %v3800 = vadd.f32 %v3346, %v3799
    %3801 = vmatprep.mubr.bf16.mxu0 %v3228
    %3802 = vmatmul.mubr.bf16.gmra.mrb[0].mxu0 %v3227
    %v3803 = vpop.f32.mrb[0].mxu0
    %v3804 = vadd.f32 %v3342, %v3803
    %v3805 = vpop.f32.mrb[0].mxu0
    %v3806 = vadd.f32 %v3346, %v3805
    %v3807 = vpop.f32.mrb[0].mxu0
    %v3808 = vadd.f32 %v3342, %v3807
    %v3809 = vpop.f32.mrb[0].mxu0
    %v3810 = vadd.f32 %v3346, %v3809
    %3811 = vmatprep.mubr.bf16.mxu0 %v3230
    %3812 = vmatmul.mubr.bf16.gmra.mrb[0].mxu0 %v3229
    %v3813 = vpop.f32.mrb[0].mxu0
    %v3814 = vadd.f32 %v3342, %v3813
    %v3815 = vpop.f32.mrb[0].mxu0
    %v3816 = vadd.f32 %v3346, %v3815
    %v3817 = vpop.f32.mrb[0].mxu0
    %v3818 = vadd.f32 %v3342, %v3817
    %v3819 = vpop.f32.mrb[0].mxu0
    %v3820 = vadd.f32 %v3346, %v3819
    %3821 = vmatprep.mubr.bf16.mxu0 %v3232
    %3822 = vmatmul.mubr.bf16.gmra.mrb[0].mxu0 %v3231
    %v3823 = vpop.f32.mrb[0].mxu0
    %v3824 = vadd.f32 %v3342, %v3823
    %v3825 = vpop.f32.mrb[0].mxu0
    %v3826 = vadd.f32 %v3346, %v3825
    %v3827 = vpop.f32.mrb[0].mxu0
    %v3828 = vadd.f32 %v3342, %v3827
    %v3829 = vpop.f32.mrb[0].mxu0
    %v3830 = vadd.f32 %v3346, %v3829
    %3831 = vmatprep.mubr.bf16.mxu0 %v3234
    %3832 = vmatmul.mubr.bf16.gmra.mrb[0].mxu0 %v3233
    %v3833 = vpop.f32.mrb[0].mxu0
    %v3834 = vadd.f32 %v3342, %v3833
    %v3835 = vpop.f32.mrb[0].mxu0
    %v3836 = vadd.f32 %v3346, %v3835
    %v3837 = vpop.f32.mrb[0].mxu0
    %v3838 = vadd.f32 %v3342, %v3837
    %v3839 = vpop.f32.mrb[0].mxu0
    %v3840 = vadd.f32 %v3346, %v3839
    %3841 = vmatprep.mubr.bf16.mxu0 %v3236
    %3842 = vmatmul.mubr.bf16.gmra.mrb[0].mxu0 %v3235
    %v3843 = vpop.f32.mrb[0].mxu0
    %v3844 = vadd.f32 %v3342, %v3843
    %v3845 = vpop.f32.mrb[0].mxu0
    %v3846 = vadd.f32 %v3346, %v3845
    %v3847 = vpop.f32.mrb[0].mxu0
    %v3848 = vadd.f32 %v3342, %v3847
    %v3849 = vpop.f32.mrb[0].mxu0
    %v3850 = vadd.f32 %v3346, %v3849
    %3851 = vmatprep.mubr.bf16.mxu0 %v3238
    %3852 = vmatmul.mubr.bf16.gmra.mrb[0].mxu0 %v3237
    %v3853 = vpop.f32.mrb[0].mxu0
    %v3854 = vadd.f32 %v3342, %v3853
    %v3855 = vpop.f32.mrb[0].mxu0
    %v3856 = vadd.f32 %v3346, %v3855
    %v3857 = vpop.f32.mrb[0].mxu0
    %v3858 = vadd.f32 %v3342, %v3857
    %v3859 = vpop.f32.mrb[0].mxu0
    %v3860 = vadd.f32 %v3346, %v3859
    %3861 = vmatprep.mubr.bf16.mxu0 %v3240
    %3862 = vmatmul.mubr.bf16.gmra.mrb[0].mxu0 %v3239
    %v3863 = vpop.f32.mrb[0].mxu0
    %v3864 = vadd.f32 %v3342, %v3863
    %v3865 = vpop.f32.mrb[0].mxu0
    %v3866 = vadd.f32 %v3346, %v3865
    %v3867 = vpop.f32.mrb[0].mxu0
    %v3868 = vadd.f32 %v3342, %v3867
    %v3869 = vpop.f32.mrb[0].mxu0
    %v3870 = vadd.f32 %v3346, %v3869
    %3871 = vmatprep.mubr.bf16.mxu0 %v3242
    %3872 = vmatmul.mubr.bf16.gmra.mrb[0].mxu0 %v3241
    %v3873 = vpop.f32.mrb[0].mxu0
    %v3874 = vadd.f32 %v3342, %v3873
    %v3875 = vpop.f32.mrb[0].mxu0
    %v3876 = vadd.f32 %v3346, %v3875
    %v3877 = vpop.f32.mrb[0].mxu0
    %v3878 = vadd.f32 %v3342, %v3877
    %v3879 = vpop.f32.mrb[0].mxu0
    %v3880 = vadd.f32 %v3346, %v3879
    %3881 = vmatprep.mubr.bf16.mxu0 %v3244
    %3882 = vmatmul.mubr.bf16.gmra.mrb[0].mxu0 %v3243
    %v3883 = vpop.f32.mrb[0].mxu0
    %v3884 = vadd.f32 %v3342, %v3883
    %v3885 = vpop.f32.mrb[0].mxu0
    %v3886 = vadd.f32 %v3346, %v3885
    %v3887 = vpop.f32.mrb[0].mxu0
    %v3888 = vadd.f32 %v3342, %v3887
    %v3889 = vpop.f32.mrb[0].mxu0
    %v3890 = vadd.f32 %v3346, %v3889
    %3891 = vmatprep.mubr.bf16.mxu0 %v3246
    %3892 = vmatmul.mubr.bf16.gmra.mrb[0].mxu0 %v3245
    %v3893 = vpop.f32.mrb[0].mxu0
    %v3894 = vadd.f32 %v3342, %v3893
    %v3895 = vpop.f32.mrb[0].mxu0
    %v3896 = vadd.f32 %v3346, %v3895
    %v3897 = vpop.f32.mrb[0].mxu0
    %v3898 = vadd.f32 %v3342, %v3897
    %v3899 = vpop.f32.mrb[0].mxu0
    %v3900 = vadd.f32 %v3346, %v3899
    %3901 = vmatprep.mubr.bf16.mxu0 %v3248
    %3902 = vmatmul.mubr.bf16.gmra.mrb[0].mxu0 %v3247
    %v3903 = vpop.f32.mrb[0].mxu0
    %v3904 = vadd.f32 %v3342, %v3903
    %v3905 = vpop.f32.mrb[0].mxu0
    %v3906 = vadd.f32 %v3346, %v3905
    %v3907 = vpop.f32.mrb[0].mxu0
    %v3908 = vadd.f32 %v3342, %v3907
    %v3909 = vpop.f32.mrb[0].mxu0
    %v3910 = vadd.f32 %v3346, %v3909
    %3911 = vmatprep.mubr.bf16.mxu0 %v3250
    %3912 = vmatmul.mubr.bf16.gmra.mrb[0].mxu0 %v3249
    %v3913 = vpop.f32.mrb[0].mxu0
    %v3914 = vadd.f32 %v3342, %v3913
    %v3915 = vpop.f32.mrb[0].mxu0
    %v3916 = vadd.f32 %v3346, %v3915
    %v3917 = vpop.f32.mrb[0].mxu0
    %v3918 = vadd.f32 %v3342, %v3917
    %v3919 = vpop.f32.mrb[0].mxu0
    %v3920 = vadd.f32 %v3346, %v3919
    %3921 = vmatprep.mubr.bf16.mxu0 %v3252
    %3922 = vmatmul.mubr.bf16.gmra.mrb[0].mxu0 %v3251
    %v3923 = vpop.f32.mrb[0].mxu0
    %v3924 = vadd.f32 %v3342, %v3923
    %v3925 = vpop.f32.mrb[0].mxu0
    %v3926 = vadd.f32 %v3346, %v3925
    %v3927 = vpop.f32.mrb[0].mxu0
    %v3928 = vadd.f32 %v3342, %v3927
    %v3929 = vpop.f32.mrb[0].mxu0
    %v3930 = vadd.f32 %v3346, %v3929
    %3931 = vmatprep.mubr.bf16.mxu0 %v3254
    %3932 = vmatmul.mubr.bf16.gmra.mrb[0].mxu0 %v3253
    %v3933 = vpop.f32.mrb[0].mxu0
    %v3934 = vadd.f32 %v3342, %v3933
    %v3935 = vpop.f32.mrb[0].mxu0
    %v3936 = vadd.f32 %v3346, %v3935
    %v3937 = vpop.f32.mrb[0].mxu0
    %v3938 = vadd.f32 %v3342, %v3937
    %v3939 = vpop.f32.mrb[0].mxu0
    %v3940 = vadd.f32 %v3346, %v3939
    %3941 = vmatprep.mubr.bf16.mxu0 %v3256
    %3942 = vmatmul.mubr.bf16.gmra.mrb[0].mxu0 %v3255
    %v3943 = vpop.f32.mrb[0].mxu0
    %v3944 = vadd.f32 %v3342, %v3943
    %v3945 = vpop.f32.mrb[0].mxu0
    %v3946 = vadd.f32 %v3346, %v3945
    %v3947 = vpop.f32.mrb[0].mxu0
    %v3948 = vadd.f32 %v3342, %v3947
    %v3949 = vpop.f32.mrb[0].mxu0
    %v3950 = vadd.f32 %v3346, %v3949
    %3951 = vmatprep.mubr.bf16.mxu0 %v3258
    %3952 = vmatmul.mubr.bf16.gmra.mrb[0].mxu0 %v3257
    %v3953 = vpop.f32.mrb[0].mxu0
    %v3954 = vadd.f32 %v3342, %v3953
    %v3955 = vpop.f32.mrb[0].mxu0
    %v3956 = vadd.f32 %v3346, %v3955
    %v3957 = vpop.f32.mrb[0].mxu0
    %v3958 = vadd.f32 %v3342, %v3957
    %v3959 = vpop.f32.mrb[0].mxu0
    %v3960 = vadd.f32 %v3346, %v3959
    %3961 = vmatprep.mubr.bf16.mxu0 %v3260
    %3962 = vmatmul.mubr.bf16.gmra.mrb[0].mxu0 %v3259
    %v3963 = vpop.f32.mrb[0].mxu0
    %v3964 = vadd.f32 %v3342, %v3963
    %v3965 = vpop.f32.mrb[0].mxu0
    %v3966 = vadd.f32 %v3346, %v3965
    %v3967 = vpop.f32.mrb[0].mxu0
    %v3968 = vadd.f32 %v3342, %v3967
    %v3969 = vpop.f32.mrb[0].mxu0
    %v3970 = vadd.f32 %v3346, %v3969
    %3971 = vmatprep.mubr.bf16.mxu0 %v3262
    %3972 = vmatmul.mubr.bf16.gmra.mrb[0].mxu0 %v3261
    %v3973 = vpop.f32.mrb[0].mxu0
    %v3974 = vadd.f32 %v3342, %v3973
    %v3975 = vpop.f32.mrb[0].mxu0
    %v3976 = vadd.f32 %v3346, %v3975
    %v3977 = vpop.f32.mrb[0].mxu0
    %v3978 = vadd.f32 %v3342, %v3977
    %v3979 = vpop.f32.mrb[0].mxu0
    %v3980 = vadd.f32 %v3346, %v3979
    %3981 = vmatprep.mubr.bf16.mxu0 %v3264
    %3982 = vmatmul.mubr.bf16.gmra.mrb[0].mxu0 %v3263
    %v3983 = vpop.f32.mrb[0].mxu0
    %v3984 = vadd.f32 %v3342, %v3983
    %v3985 = vpop.f32.mrb[0].mxu0
    %v3986 = vadd.f32 %v3346, %v3985
    %v3987 = vpop.f32.mrb[0].mxu0
    %v3988 = vadd.f32 %v3342, %v3987
    %v3989 = vpop.f32.mrb[0].mxu0
    %v3990 = vadd.f32 %v3346, %v3989
    %3991 = vmatprep.mubr.bf16.mxu0 %v3266
    %3992 = vmatmul.mubr.bf16.gmra.mrb[0].mxu0 %v3265
    %v3993 = vpop.f32.mrb[0].mxu0
    %v3994 = vadd.f32 %v3342, %v3993
    %v3995 = vpop.f32.mrb[0].mxu0
    %v3996 = vadd.f32 %v3346, %v3995
    %v3997 = vpop.f32.mrb[0].mxu0
    %v3998 = vadd.f32 %v3342, %v3997
    %v3999 = vpop.f32.mrb[0].mxu0
    %v4000 = vadd.f32 %v3346, %v3999
    %4001 = vmatprep.mubr.bf16.mxu0 %v3268
    %4002 = vmatmul.mubr.bf16.gmra.mrb[0].mxu0 %v3267
    %v4003 = vpop.f32.mrb[0].mxu0
    %v4004 = vadd.f32 %v3342, %v4003
    %v4005 = vpop.f32.mrb[0].mxu0
    %v4006 = vadd.f32 %v3346, %v4005
    %v4007 = vpop.f32.mrb[0].mxu0
    %v4008 = vadd.f32 %v3342, %v4007
    %v4009 = vpop.f32.mrb[0].mxu0
    %v4010 = vadd.f32 %v3346, %v4009
    %4011 = vmatprep.mubr.bf16.mxu0 %v3270
    %4012 = vmatmul.mubr.bf16.gmra.mrb[0].mxu0 %v3269
    %v4013 = vpop.f32.mrb[0].mxu0
    %v4014 = vadd.f32 %v3342, %v4013
    %v4015 = vpop.f32.mrb[0].mxu0
    %v4016 = vadd.f32 %v3346, %v4015
    %v4017 = vpop.f32.mrb[0].mxu0
    %v4018 = vadd.f32 %v3342, %v4017
    %v4019 = vpop.f32.mrb[0].mxu0
    %v4020 = vadd.f32 %v3346, %v4019
    %4021 = vmatprep.mubr.bf16.mxu0 %v3272
    %4022 = vmatmul.mubr.bf16.gmra.mrb[0].mxu0 %v3271
    %v4023 = vpop.f32.mrb[0].mxu0
    %v4024 = vadd.f32 %v3342, %v4023
    %v4025 = vpop.f32.mrb[0].mxu0
    %v4026 = vadd.f32 %v3346, %v4025
    %v4027 = vpop.f32.mrb[0].mxu0
    %v4028 = vadd.f32 %v3342, %v4027
    %v4029 = vpop.f32.mrb[0].mxu0
    %v4030 = vadd.f32 %v3346, %v4029
    %4031 = vdwg.mxu0
    %4032 = vmatprep.subr.bf16.mxu0 %v3554
    %4033 = vmatpush1.bf16.msra.mxu0 %v3553
    %4034 = vmatprep.subr.bf16.mxu0 %v3558
    %4035 = vmatpush1.bf16.msra.mxu0 %v3557
    %4036 = vmatprep.subr.bf16.mxu0 %v3562
    %4037 = vmatpush1.bf16.msra.mxu0 %v3561
    %4038 = vmatprep.subr.bf16.mxu0 %v3566
    %4039 = vmatpush1.bf16.msra.mxu0 %v3565
    %4040 = vmatprep.subr.bf16.mxu0 %v3570
    %4041 = vmatpush1.bf16.msra.mxu0 %v3569
    %4042 = vmatprep.subr.bf16.mxu0 %v3574
    %4043 = vmatpush1.bf16.msra.mxu0 %v3573
    %4044 = vmatprep.subr.bf16.mxu0 %v3578
    %4045 = vmatpush1.bf16.msra.mxu0 %v3577
    %4046 = vmatprep.subr.bf16.mxu0 %v3582
    %4047 = vmatpush1.bf16.msra.mxu0 %v3581
    %4048 = vmatprep.subr.bf16.mxu0 %v3586
    %4049 = vmatpush1.bf16.msra.mxu0 %v3585
    %4050 = vmatprep.subr.bf16.mxu0 %v3590
    %4051 = vmatpush1.bf16.msra.mxu0 %v3589
    %4052 = vmatprep.subr.bf16.mxu0 %v3594
    %4053 = vmatpush1.bf16.msra.mxu0 %v3593
    %4054 = vmatprep.subr.bf16.mxu0 %v3598
    %4055 = vmatpush1.bf16.msra.mxu0 %v3597
    %4056 = vmatprep.subr.bf16.mxu0 %v3602
    %4057 = vmatpush1.bf16.msra.mxu0 %v3601
    %4058 = vmatprep.subr.bf16.mxu0 %v3606
    %4059 = vmatpush1.bf16.msra.mxu0 %v3605
    %4060 = vmatprep.subr.bf16.mxu0 %v3610
    %4061 = vmatpush1.bf16.msra.mxu0 %v3609
    %4062 = vmatprep.subr.bf16.mxu0 %v3614
    %4063 = vmatpush1.bf16.msra.mxu0 %v3613
    %4064 = vmatprep.mubr.bf16.mxu0 %v3210
    %4065 = vmatmul.mubr.bf16.gmra.mrb[0].mxu0 %v3209
    %v4066 = vpop.f32.mrb[0].mxu0
    %v4067 = vadd.f32 %v3350, %v4066
    %v4068 = vpop.f32.mrb[0].mxu0
    %v4069 = vadd.f32 %v3354, %v4068
    %v4070 = vpop.f32.mrb[0].mxu0
    %v4071 = vadd.f32 %v3350, %v4070
    %v4072 = vpop.f32.mrb[0].mxu0
    %v4073 = vadd.f32 %v3354, %v4072
    %4074 = vmatprep.mubr.bf16.mxu0 %v3212
    %4075 = vmatmul.mubr.bf16.gmra.mrb[0].mxu0 %v3211
    %v4076 = vpop.f32.mrb[0].mxu0
    %v4077 = vadd.f32 %v3350, %v4076
    %v4078 = vpop.f32.mrb[0].mxu0
    %v4079 = vadd.f32 %v3354, %v4078
    %v4080 = vpop.f32.mrb[0].mxu0
    %v4081 = vadd.f32 %v3350, %v4080
    %v4082 = vpop.f32.mrb[0].mxu0
    %v4083 = vadd.f32 %v3354, %v4082
    %4084 = vmatprep.mubr.bf16.mxu0 %v3214
    %4085 = vmatmul.mubr.bf16.gmra.mrb[0].mxu0 %v3213
    %v4086 = vpop.f32.mrb[0].mxu0
    %v4087 = vadd.f32 %v3350, %v4086
    %v4088 = vpop.f32.mrb[0].mxu0
    %v4089 = vadd.f32 %v3354, %v4088
    %v4090 = vpop.f32.mrb[0].mxu0
    %v4091 = vadd.f32 %v3350, %v4090
    %v4092 = vpop.f32.mrb[0].mxu0
    %v4093 = vadd.f32 %v3354, %v4092
    %4094 = vmatprep.mubr.bf16.mxu0 %v3216
    %4095 = vmatmul.mubr.bf16.gmra.mrb[0].mxu0 %v3215
    %v4096 = vpop.f32.mrb[0].mxu0
    %v4097 = vadd.f32 %v3350, %v4096
    %v4098 = vpop.f32.mrb[0].mxu0
    %v4099 = vadd.f32 %v3354, %v4098
    %v4100 = vpop.f32.mrb[0].mxu0
    %v4101 = vadd.f32 %v3350, %v4100
    %v4102 = vpop.f32.mrb[0].mxu0
    %v4103 = vadd.f32 %v3354, %v4102
    %4104 = vmatprep.mubr.bf16.mxu0 %v3218
    %4105 = vmatmul.mubr.bf16.gmra.mrb[0].mxu0 %v3217
    %v4106 = vpop.f32.mrb[0].mxu0
    %v4107 = vadd.f32 %v3350, %v4106
    %v4108 = vpop.f32.mrb[0].mxu0
    %v4109 = vadd.f32 %v3354, %v4108
    %v4110 = vpop.f32.mrb[0].mxu0
    %v4111 = vadd.f32 %v3350, %v4110
    %v4112 = vpop.f32.mrb[0].mxu0
    %v4113 = vadd.f32 %v3354, %v4112
    %4114 = vmatprep.mubr.bf16.mxu0 %v3220
    %4115 = vmatmul.mubr.bf16.gmra.mrb[0].mxu0 %v3219
    %v4116 = vpop.f32.mrb[0].mxu0
    %v4117 = vadd.f32 %v3350, %v4116
    %v4118 = vpop.f32.mrb[0].mxu0
    %v4119 = vadd.f32 %v3354, %v4118
    %v4120 = vpop.f32.mrb[0].mxu0
    %v4121 = vadd.f32 %v3350, %v4120
    %v4122 = vpop.f32.mrb[0].mxu0
    %v4123 = vadd.f32 %v3354, %v4122
    %4124 = vmatprep.mubr.bf16.mxu0 %v3222
    %4125 = vmatmul.mubr.bf16.gmra.mrb[0].mxu0 %v3221
    %v4126 = vpop.f32.mrb[0].mxu0
    %v4127 = vadd.f32 %v3350, %v4126
    %v4128 = vpop.f32.mrb[0].mxu0
    %v4129 = vadd.f32 %v3354, %v4128
    %v4130 = vpop.f32.mrb[0].mxu0
    %v4131 = vadd.f32 %v3350, %v4130
    %v4132 = vpop.f32.mrb[0].mxu0
    %v4133 = vadd.f32 %v3354, %v4132
    %4134 = vmatprep.mubr.bf16.mxu0 %v3224
    %4135 = vmatmul.mubr.bf16.gmra.mrb[0].mxu0 %v3223
    %v4136 = vpop.f32.mrb[0].mxu0
    %v4137 = vadd.f32 %v3350, %v4136
    %v4138 = vpop.f32.mrb[0].mxu0
    %v4139 = vadd.f32 %v3354, %v4138
    %v4140 = vpop.f32.mrb[0].mxu0
    %v4141 = vadd.f32 %v3350, %v4140
    %v4142 = vpop.f32.mrb[0].mxu0
    %v4143 = vadd.f32 %v3354, %v4142
    %4144 = vmatprep.mubr.bf16.mxu0 %v3226
    %4145 = vmatmul.mubr.bf16.gmra.mrb[0].mxu0 %v3225
    %v4146 = vpop.f32.mrb[0].mxu0
    %v4147 = vadd.f32 %v3350, %v4146
    %v4148 = vpop.f32.mrb[0].mxu0
    %v4149 = vadd.f32 %v3354, %v4148
    %v4150 = vpop.f32.mrb[0].mxu0
    %v4151 = vadd.f32 %v3350, %v4150
    %v4152 = vpop.f32.mrb[0].mxu0
    %v4153 = vadd.f32 %v3354, %v4152
    %4154 = vmatprep.mubr.bf16.mxu0 %v3228
    %4155 = vmatmul.mubr.bf16.gmra.mrb[0].mxu0 %v3227
    %v4156 = vpop.f32.mrb[0].mxu0
    %v4157 = vadd.f32 %v3350, %v4156
    %v4158 = vpop.f32.mrb[0].mxu0
    %v4159 = vadd.f32 %v3354, %v4158
    %v4160 = vpop.f32.mrb[0].mxu0
    %v4161 = vadd.f32 %v3350, %v4160
    %v4162 = vpop.f32.mrb[0].mxu0
    %v4163 = vadd.f32 %v3354, %v4162
    %4164 = vmatprep.mubr.bf16.mxu0 %v3230
    %4165 = vmatmul.mubr.bf16.gmra.mrb[0].mxu0 %v3229
    %v4166 = vpop.f32.mrb[0].mxu0
    %v4167 = vadd.f32 %v3350, %v4166
    %v4168 = vpop.f32.mrb[0].mxu0
    %v4169 = vadd.f32 %v3354, %v4168
    %v4170 = vpop.f32.mrb[0].mxu0
    %v4171 = vadd.f32 %v3350, %v4170
    %v4172 = vpop.f32.mrb[0].mxu0
    %v4173 = vadd.f32 %v3354, %v4172
    %4174 = vmatprep.mubr.bf16.mxu0 %v3232
    %4175 = vmatmul.mubr.bf16.gmra.mrb[0].mxu0 %v3231
    %v4176 = vpop.f32.mrb[0].mxu0
    %v4177 = vadd.f32 %v3350, %v4176
    %v4178 = vpop.f32.mrb[0].mxu0
    %v4179 = vadd.f32 %v3354, %v4178
    %v4180 = vpop.f32.mrb[0].mxu0
    %v4181 = vadd.f32 %v3350, %v4180
    %v4182 = vpop.f32.mrb[0].mxu0
    %v4183 = vadd.f32 %v3354, %v4182
    %4184 = vmatprep.mubr.bf16.mxu0 %v3234
    %4185 = vmatmul.mubr.bf16.gmra.mrb[0].mxu0 %v3233
    %v4186 = vpop.f32.mrb[0].mxu0
    %v4187 = vadd.f32 %v3350, %v4186
    %v4188 = vpop.f32.mrb[0].mxu0
    %v4189 = vadd.f32 %v3354, %v4188
    %v4190 = vpop.f32.mrb[0].mxu0
    %v4191 = vadd.f32 %v3350, %v4190
    %v4192 = vpop.f32.mrb[0].mxu0
    %v4193 = vadd.f32 %v3354, %v4192
    %4194 = vmatprep.mubr.bf16.mxu0 %v3236
    %4195 = vmatmul.mubr.bf16.gmra.mrb[0].mxu0 %v3235
    %v4196 = vpop.f32.mrb[0].mxu0
    %v4197 = vadd.f32 %v3350, %v4196
    %v4198 = vpop.f32.mrb[0].mxu0
    %v4199 = vadd.f32 %v3354, %v4198
    %v4200 = vpop.f32.mrb[0].mxu0
    %v4201 = vadd.f32 %v3350, %v4200
    %v4202 = vpop.f32.mrb[0].mxu0
    %v4203 = vadd.f32 %v3354, %v4202
    %4204 = vmatprep.mubr.bf16.mxu0 %v3238
    %4205 = vmatmul.mubr.bf16.gmra.mrb[0].mxu0 %v3237
    %v4206 = vpop.f32.mrb[0].mxu0
    %v4207 = vadd.f32 %v3350, %v4206
    %v4208 = vpop.f32.mrb[0].mxu0
    %v4209 = vadd.f32 %v3354, %v4208
    %v4210 = vpop.f32.mrb[0].mxu0
    %v4211 = vadd.f32 %v3350, %v4210
    %v4212 = vpop.f32.mrb[0].mxu0
    %v4213 = vadd.f32 %v3354, %v4212
    %4214 = vmatprep.mubr.bf16.mxu0 %v3240
    %4215 = vmatmul.mubr.bf16.gmra.mrb[0].mxu0 %v3239
    %v4216 = vpop.f32.mrb[0].mxu0
    %v4217 = vadd.f32 %v3350, %v4216
    %v4218 = vpop.f32.mrb[0].mxu0
    %v4219 = vadd.f32 %v3354, %v4218
    %v4220 = vpop.f32.mrb[0].mxu0
    %v4221 = vadd.f32 %v3350, %v4220
    %v4222 = vpop.f32.mrb[0].mxu0
    %v4223 = vadd.f32 %v3354, %v4222
    %4224 = vmatprep.mubr.bf16.mxu0 %v3242
    %4225 = vmatmul.mubr.bf16.gmra.mrb[0].mxu0 %v3241
    %v4226 = vpop.f32.mrb[0].mxu0
    %v4227 = vadd.f32 %v3350, %v4226
    %v4228 = vpop.f32.mrb[0].mxu0
    %v4229 = vadd.f32 %v3354, %v4228
    %v4230 = vpop.f32.mrb[0].mxu0
    %v4231 = vadd.f32 %v3350, %v4230
    %v4232 = vpop.f32.mrb[0].mxu0
    %v4233 = vadd.f32 %v3354, %v4232
    %4234 = vmatprep.mubr.bf16.mxu0 %v3244
    %4235 = vmatmul.mubr.bf16.gmra.mrb[0].mxu0 %v3243
    %v4236 = vpop.f32.mrb[0].mxu0
    %v4237 = vadd.f32 %v3350, %v4236
    %v4238 = vpop.f32.mrb[0].mxu0
    %v4239 = vadd.f32 %v3354, %v4238
    %v4240 = vpop.f32.mrb[0].mxu0
    %v4241 = vadd.f32 %v3350, %v4240
    %v4242 = vpop.f32.mrb[0].mxu0
    %v4243 = vadd.f32 %v3354, %v4242
    %4244 = vmatprep.mubr.bf16.mxu0 %v3246
    %4245 = vmatmul.mubr.bf16.gmra.mrb[0].mxu0 %v3245
    %v4246 = vpop.f32.mrb[0].mxu0
    %v4247 = vadd.f32 %v3350, %v4246
    %v4248 = vpop.f32.mrb[0].mxu0
    %v4249 = vadd.f32 %v3354, %v4248
    %v4250 = vpop.f32.mrb[0].mxu0
    %v4251 = vadd.f32 %v3350, %v4250
    %v4252 = vpop.f32.mrb[0].mxu0
    %v4253 = vadd.f32 %v3354, %v4252
    %4254 = vmatprep.mubr.bf16.mxu0 %v3248
    %4255 = vmatmul.mubr.bf16.gmra.mrb[0].mxu0 %v3247
    %v4256 = vpop.f32.mrb[0].mxu0
    %v4257 = vadd.f32 %v3350, %v4256
    %v4258 = vpop.f32.mrb[0].mxu0
    %v4259 = vadd.f32 %v3354, %v4258
    %v4260 = vpop.f32.mrb[0].mxu0
    %v4261 = vadd.f32 %v3350, %v4260
    %v4262 = vpop.f32.mrb[0].mxu0
    %v4263 = vadd.f32 %v3354, %v4262
    %4264 = vmatprep.mubr.bf16.mxu0 %v3250
    %4265 = vmatmul.mubr.bf16.gmra.mrb[0].mxu0 %v3249
    %v4266 = vpop.f32.mrb[0].mxu0
    %v4267 = vadd.f32 %v3350, %v4266
    %v4268 = vpop.f32.mrb[0].mxu0
    %v4269 = vadd.f32 %v3354, %v4268
    %v4270 = vpop.f32.mrb[0].mxu0
    %v4271 = vadd.f32 %v3350, %v4270
    %v4272 = vpop.f32.mrb[0].mxu0
    %v4273 = vadd.f32 %v3354, %v4272
    %4274 = vmatprep.mubr.bf16.mxu0 %v3252
    %4275 = vmatmul.mubr.bf16.gmra.mrb[0].mxu0 %v3251
    %v4276 = vpop.f32.mrb[0].mxu0
    %v4277 = vadd.f32 %v3350, %v4276
    %v4278 = vpop.f32.mrb[0].mxu0
    %v4279 = vadd.f32 %v3354, %v4278
    %v4280 = vpop.f32.mrb[0].mxu0
    %v4281 = vadd.f32 %v3350, %v4280
    %v4282 = vpop.f32.mrb[0].mxu0
    %v4283 = vadd.f32 %v3354, %v4282
    %4284 = vmatprep.mubr.bf16.mxu0 %v3254
    %4285 = vmatmul.mubr.bf16.gmra.mrb[0].mxu0 %v3253
    %v4286 = vpop.f32.mrb[0].mxu0
    %v4287 = vadd.f32 %v3350, %v4286
    %v4288 = vpop.f32.mrb[0].mxu0
    %v4289 = vadd.f32 %v3354, %v4288
    %v4290 = vpop.f32.mrb[0].mxu0
    %v4291 = vadd.f32 %v3350, %v4290
    %v4292 = vpop.f32.mrb[0].mxu0
    %v4293 = vadd.f32 %v3354, %v4292
    %4294 = vmatprep.mubr.bf16.mxu0 %v3256
    %4295 = vmatmul.mubr.bf16.gmra.mrb[0].mxu0 %v3255
    %v4296 = vpop.f32.mrb[0].mxu0
    %v4297 = vadd.f32 %v3350, %v4296
    %v4298 = vpop.f32.mrb[0].mxu0
    %v4299 = vadd.f32 %v3354, %v4298
    %v4300 = vpop.f32.mrb[0].mxu0
    %v4301 = vadd.f32 %v3350, %v4300
    %v4302 = vpop.f32.mrb[0].mxu0
    %v4303 = vadd.f32 %v3354, %v4302
    %4304 = vmatprep.mubr.bf16.mxu0 %v3258
    %4305 = vmatmul.mubr.bf16.gmra.mrb[0].mxu0 %v3257
    %v4306 = vpop.f32.mrb[0].mxu0
    %v4307 = vadd.f32 %v3350, %v4306
    %v4308 = vpop.f32.mrb[0].mxu0
    %v4309 = vadd.f32 %v3354, %v4308
    %v4310 = vpop.f32.mrb[0].mxu0
    %v4311 = vadd.f32 %v3350, %v4310
    %v4312 = vpop.f32.mrb[0].mxu0
    %v4313 = vadd.f32 %v3354, %v4312
    %4314 = vmatprep.mubr.bf16.mxu0 %v3260
    %4315 = vmatmul.mubr.bf16.gmra.mrb[0].mxu0 %v3259
    %v4316 = vpop.f32.mrb[0].mxu0
    %v4317 = vadd.f32 %v3350, %v4316
    %v4318 = vpop.f32.mrb[0].mxu0
    %v4319 = vadd.f32 %v3354, %v4318
    %v4320 = vpop.f32.mrb[0].mxu0
    %v4321 = vadd.f32 %v3350, %v4320
    %v4322 = vpop.f32.mrb[0].mxu0
    %v4323 = vadd.f32 %v3354, %v4322
    %4324 = vmatprep.mubr.bf16.mxu0 %v3262
    %4325 = vmatmul.mubr.bf16.gmra.mrb[0].mxu0 %v3261
    %v4326 = vpop.f32.mrb[0].mxu0
    %v4327 = vadd.f32 %v3350, %v4326
    %v4328 = vpop.f32.mrb[0].mxu0
    %v4329 = vadd.f32 %v3354, %v4328
    %v4330 = vpop.f32.mrb[0].mxu0
    %v4331 = vadd.f32 %v3350, %v4330
    %v4332 = vpop.f32.mrb[0].mxu0
    %v4333 = vadd.f32 %v3354, %v4332
    %4334 = vmatprep.mubr.bf16.mxu0 %v3264
    %4335 = vmatmul.mubr.bf16.gmra.mrb[0].mxu0 %v3263
    %v4336 = vpop.f32.mrb[0].mxu0
    %v4337 = vadd.f32 %v3350, %v4336
    %v4338 = vpop.f32.mrb[0].mxu0
    %v4339 = vadd.f32 %v3354, %v4338
    %v4340 = vpop.f32.mrb[0].mxu0
    %v4341 = vadd.f32 %v3350, %v4340
    %v4342 = vpop.f32.mrb[0].mxu0
    %v4343 = vadd.f32 %v3354, %v4342
    %4344 = vmatprep.mubr.bf16.mxu0 %v3266
    %4345 = vmatmul.mubr.bf16.gmra.mrb[0].mxu0 %v3265
    %v4346 = vpop.f32.mrb[0].mxu0
    %v4347 = vadd.f32 %v3350, %v4346
    %v4348 = vpop.f32.mrb[0].mxu0
    %v4349 = vadd.f32 %v3354, %v4348
    %v4350 = vpop.f32.mrb[0].mxu0
    %v4351 = vadd.f32 %v3350, %v4350
    %v4352 = vpop.f32.mrb[0].mxu0
    %v4353 = vadd.f32 %v3354, %v4352
    %4354 = vmatprep.mubr.bf16.mxu0 %v3268
    %4355 = vmatmul.mubr.bf16.gmra.mrb[0].mxu0 %v3267
    %v4356 = vpop.f32.mrb[0].mxu0
    %v4357 = vadd.f32 %v3350, %v4356
    %v4358 = vpop.f32.mrb[0].mxu0
    %v4359 = vadd.f32 %v3354, %v4358
    %v4360 = vpop.f32.mrb[0].mxu0
    %v4361 = vadd.f32 %v3350, %v4360
    %v4362 = vpop.f32.mrb[0].mxu0
    %v4363 = vadd.f32 %v3354, %v4362
    %4364 = vmatprep.mubr.bf16.mxu0 %v3270
    %4365 = vmatmul.mubr.bf16.gmra.mrb[0].mxu0 %v3269
    %v4366 = vpop.f32.mrb[0].mxu0
    %v4367 = vadd.f32 %v3350, %v4366
    %v4368 = vpop.f32.mrb[0].mxu0
    %v4369 = vadd.f32 %v3354, %v4368
    %v4370 = vpop.f32.mrb[0].mxu0
    %v4371 = vadd.f32 %v3350, %v4370
    %v4372 = vpop.f32.mrb[0].mxu0
    %v4373 = vadd.f32 %v3354, %v4372
    %4374 = vmatprep.mubr.bf16.mxu0 %v3272
    %4375 = vmatmul.mubr.bf16.gmra.mrb[0].mxu0 %v3271
    %v4376 = vpop.f32.mrb[0].mxu0
    %v4377 = vadd.f32 %v3350, %v4376
    %v4378 = vpop.f32.mrb[0].mxu0
    %v4379 = vadd.f32 %v3354, %v4378
    %v4380 = vpop.f32.mrb[0].mxu0
    %v4381 = vadd.f32 %v3350, %v4380
    %v4382 = vpop.f32.mrb[0].mxu0
    %v4383 = vadd.f32 %v3354, %v4382
    %4384 = vdwg.mxu0
    %v4385 = vadd.f32 %v3714, %v3718
    %v4386 = vadd.f32 %v4385, %v3724
    %v4387 = vadd.f32 %v4386, %v3728
    %v4388 = vadd.f32 %v4387, %v3734
    %v4389 = vadd.f32 %v4388, %v3738
    %v4390 = vadd.f32 %v4389, %v3744
    %v4391 = vadd.f32 %v4390, %v3748
    %v4392 = vadd.f32 %v4391, %v3754
    %v4393 = vadd.f32 %v4392, %v3758
    %v4394 = vadd.f32 %v4393, %v3764
    %v4395 = vadd.f32 %v4394, %v3768
    %v4396 = vadd.f32 %v4395, %v3774
    %v4397 = vadd.f32 %v4396, %v3778
    %v4398 = vadd.f32 %v4397, %v3784
    %v4399 = vadd.f32 %v4398, %v3788
    %v4400 = vadd.f32 %v4399, %v3794
    %v4401 = vadd.f32 %v4400, %v3798
    %v4402 = vadd.f32 %v4401, %v3804
    %v4403 = vadd.f32 %v4402, %v3808
    %v4404 = vadd.f32 %v4403, %v3814
    %v4405 = vadd.f32 %v4404, %v3818
    %v4406 = vadd.f32 %v4405, %v3824
    %v4407 = vadd.f32 %v4406, %v3828
    %v4408 = vadd.f32 %v4407, %v3834
    %v4409 = vadd.f32 %v4408, %v3838
    %v4410 = vadd.f32 %v4409, %v3844
    %v4411 = vadd.f32 %v4410, %v3848
    %v4412 = vadd.f32 %v4411, %v3854
    %v4413 = vadd.f32 %v4412, %v3858
    %v4414 = vadd.f32 %v4413, %v3864
    %v4415 = vadd.f32 %v4414, %v3868
    %v4416 = vadd.f32 %v4415, %v3874
    %v4417 = vadd.f32 %v4416, %v3878
    %v4418 = vadd.f32 %v4417, %v3884
    %v4419 = vadd.f32 %v4418, %v3888
    %v4420 = vadd.f32 %v4419, %v3894
    %v4421 = vadd.f32 %v4420, %v3898
    %v4422 = vadd.f32 %v4421, %v3904
    %v4423 = vadd.f32 %v4422, %v3908
    %v4424 = vadd.f32 %v4423, %v3914
    %v4425 = vadd.f32 %v4424, %v3918
    %v4426 = vadd.f32 %v4425, %v3924
    %v4427 = vadd.f32 %v4426, %v3928
    %v4428 = vadd.f32 %v4427, %v3934
    %v4429 = vadd.f32 %v4428, %v3938
    %v4430 = vadd.f32 %v4429, %v3944
    %v4431 = vadd.f32 %v4430, %v3948
    %v4432 = vadd.f32 %v4431, %v3954
    %v4433 = vadd.f32 %v4432, %v3958
    %v4434 = vadd.f32 %v4433, %v3964
    %v4435 = vadd.f32 %v4434, %v3968
    %v4436 = vadd.f32 %v4435, %v3974
    %v4437 = vadd.f32 %v4436, %v3978
    %v4438 = vadd.f32 %v4437, %v3984
    %v4439 = vadd.f32 %v4438, %v3988
    %v4440 = vadd.f32 %v4439, %v3994
    %v4441 = vadd.f32 %v4440, %v3998
    %v4442 = vadd.f32 %v4441, %v4004
    %v4443 = vadd.f32 %v4442, %v4008
    %v4444 = vadd.f32 %v4443, %v4014
    %v4445 = vadd.f32 %v4444, %v4018
    %v4446 = vadd.f32 %v4445, %v4024
    %v4447 = vadd.f32 %v4446, %v4028
    %v4448 = vrot.slane %v4447, 4
    %v4449 = vadd.f32 %v4447, %v4448
    %v4450 = vrot.slane %v4449, 2
    %v4451 = vadd.f32 %v4449, %v4450
    %v4452 = vrot.slane %v4451, 1
    %v4453 = vadd.f32 %v4451, %v4452
    %v4454 = vadd.f32 %v3716, %v3720
    %v4455 = vadd.f32 %v4454, %v3726
    %v4456 = vadd.f32 %v4455, %v3730
    %v4457 = vadd.f32 %v4456, %v3736
    %v4458 = vadd.f32 %v4457, %v3740
    %v4459 = vadd.f32 %v4458, %v3746
    %v4460 = vadd.f32 %v4459, %v3750
    %v4461 = vadd.f32 %v4460, %v3756
    %v4462 = vadd.f32 %v4461, %v3760
    %v4463 = vadd.f32 %v4462, %v3766
    %v4464 = vadd.f32 %v4463, %v3770
    %v4465 = vadd.f32 %v4464, %v3776
    %v4466 = vadd.f32 %v4465, %v3780
    %v4467 = vadd.f32 %v4466, %v3786
    %v4468 = vadd.f32 %v4467, %v3790
    %v4469 = vadd.f32 %v4468, %v3796
    %v4470 = vadd.f32 %v4469, %v3800
    %v4471 = vadd.f32 %v4470, %v3806
    %v4472 = vadd.f32 %v4471, %v3810
    %v4473 = vadd.f32 %v4472, %v3816
    %v4474 = vadd.f32 %v4473, %v3820
    %v4475 = vadd.f32 %v4474, %v3826
    %v4476 = vadd.f32 %v4475, %v3830
    %v4477 = vadd.f32 %v4476, %v3836
    %v4478 = vadd.f32 %v4477, %v3840
    %v4479 = vadd.f32 %v4478, %v3846
    %v4480 = vadd.f32 %v4479, %v3850
    %v4481 = vadd.f32 %v4480, %v3856
    %v4482 = vadd.f32 %v4481, %v3860
    %v4483 = vadd.f32 %v4482, %v3866
    %v4484 = vadd.f32 %v4483, %v3870
    %v4485 = vadd.f32 %v4484, %v3876
    %v4486 = vadd.f32 %v4485, %v3880
    %v4487 = vadd.f32 %v4486, %v3886
    %v4488 = vadd.f32 %v4487, %v3890
    %v4489 = vadd.f32 %v4488, %v3896
    %v4490 = vadd.f32 %v4489, %v3900
    %v4491 = vadd.f32 %v4490, %v3906
    %v4492 = vadd.f32 %v4491, %v3910
    %v4493 = vadd.f32 %v4492, %v3916
    %v4494 = vadd.f32 %v4493, %v3920
    %v4495 = vadd.f32 %v4494, %v3926
    %v4496 = vadd.f32 %v4495, %v3930
    %v4497 = vadd.f32 %v4496, %v3936
    %v4498 = vadd.f32 %v4497, %v3940
    %v4499 = vadd.f32 %v4498, %v3946
    %v4500 = vadd.f32 %v4499, %v3950
    %v4501 = vadd.f32 %v4500, %v3956
    %v4502 = vadd.f32 %v4501, %v3960
    %v4503 = vadd.f32 %v4502, %v3966
    %v4504 = vadd.f32 %v4503, %v3970
    %v4505 = vadd.f32 %v4504, %v3976
    %v4506 = vadd.f32 %v4505, %v3980
    %v4507 = vadd.f32 %v4506, %v3986
    %v4508 = vadd.f32 %v4507, %v3990
    %v4509 = vadd.f32 %v4508, %v3996
    %v4510 = vadd.f32 %v4509, %v4000
    %v4511 = vadd.f32 %v4510, %v4006
    %v4512 = vadd.f32 %v4511, %v4010
    %v4513 = vadd.f32 %v4512, %v4016
    %v4514 = vadd.f32 %v4513, %v4020
    %v4515 = vadd.f32 %v4514, %v4026
    %v4516 = vadd.f32 %v4515, %v4030
    %v4517 = vrot.slane %v4516, 4
    %v4518 = vadd.f32 %v4516, %v4517
    %v4519 = vrot.slane %v4518, 2
    %v4520 = vadd.f32 %v4518, %v4519
    %v4521 = vrot.slane %v4520, 1
    %v4522 = vadd.f32 %v4520, %v4521
    %v4523 = vadd.f32 %v4067, %v4071
    %v4524 = vadd.f32 %v4523, %v4077
    %v4525 = vadd.f32 %v4524, %v4081
    %v4526 = vadd.f32 %v4525, %v4087
    %v4527 = vadd.f32 %v4526, %v4091
    %v4528 = vadd.f32 %v4527, %v4097
    %v4529 = vadd.f32 %v4528, %v4101
    %v4530 = vadd.f32 %v4529, %v4107
    %v4531 = vadd.f32 %v4530, %v4111
    %v4532 = vadd.f32 %v4531, %v4117
    %v4533 = vadd.f32 %v4532, %v4121
    %v4534 = vadd.f32 %v4533, %v4127
    %v4535 = vadd.f32 %v4534, %v4131
    %v4536 = vadd.f32 %v4535, %v4137
    %v4537 = vadd.f32 %v4536, %v4141
    %v4538 = vadd.f32 %v4537, %v4147
    %v4539 = vadd.f32 %v4538, %v4151
    %v4540 = vadd.f32 %v4539, %v4157
    %v4541 = vadd.f32 %v4540, %v4161
    %v4542 = vadd.f32 %v4541, %v4167
    %v4543 = vadd.f32 %v4542, %v4171
    %v4544 = vadd.f32 %v4543, %v4177
    %v4545 = vadd.f32 %v4544, %v4181
    %v4546 = vadd.f32 %v4545, %v4187
    %v4547 = vadd.f32 %v4546, %v4191
    %v4548 = vadd.f32 %v4547, %v4197
    %v4549 = vadd.f32 %v4548, %v4201
    %v4550 = vadd.f32 %v4549, %v4207
    %v4551 = vadd.f32 %v4550, %v4211
    %v4552 = vadd.f32 %v4551, %v4217
    %v4553 = vadd.f32 %v4552, %v4221
    %v4554 = vadd.f32 %v4553, %v4227
    %v4555 = vadd.f32 %v4554, %v4231
    %v4556 = vadd.f32 %v4555, %v4237
    %v4557 = vadd.f32 %v4556, %v4241
    %v4558 = vadd.f32 %v4557, %v4247
    %v4559 = vadd.f32 %v4558, %v4251
    %v4560 = vadd.f32 %v4559, %v4257
    %v4561 = vadd.f32 %v4560, %v4261
    %v4562 = vadd.f32 %v4561, %v4267
    %v4563 = vadd.f32 %v4562, %v4271
    %v4564 = vadd.f32 %v4563, %v4277
    %v4565 = vadd.f32 %v4564, %v4281
    %v4566 = vadd.f32 %v4565, %v4287
    %v4567 = vadd.f32 %v4566, %v4291
    %v4568 = vadd.f32 %v4567, %v4297
    %v4569 = vadd.f32 %v4568, %v4301
    %v4570 = vadd.f32 %v4569, %v4307
    %v4571 = vadd.f32 %v4570, %v4311
    %v4572 = vadd.f32 %v4571, %v4317
    %v4573 = vadd.f32 %v4572, %v4321
    %v4574 = vadd.f32 %v4573, %v4327
    %v4575 = vadd.f32 %v4574, %v4331
    %v4576 = vadd.f32 %v4575, %v4337
    %v4577 = vadd.f32 %v4576, %v4341
    %v4578 = vadd.f32 %v4577, %v4347
    %v4579 = vadd.f32 %v4578, %v4351
    %v4580 = vadd.f32 %v4579, %v4357
    %v4581 = vadd.f32 %v4580, %v4361
    %v4582 = vadd.f32 %v4581, %v4367
    %v4583 = vadd.f32 %v4582, %v4371
    %v4584 = vadd.f32 %v4583, %v4377
    %v4585 = vadd.f32 %v4584, %v4381
    %v4586 = vrot.slane %v4585, 4
    %v4587 = vadd.f32 %v4585, %v4586
    %v4588 = vrot.slane %v4587, 2
    %v4589 = vadd.f32 %v4587, %v4588
    %v4590 = vrot.slane %v4589, 1
    %v4591 = vadd.f32 %v4589, %v4590
    %v4592 = vadd.f32 %v4069, %v4073
    %v4593 = vadd.f32 %v4592, %v4079
    %v4594 = vadd.f32 %v4593, %v4083
    %v4595 = vadd.f32 %v4594, %v4089
    %v4596 = vadd.f32 %v4595, %v4093
    %v4597 = vadd.f32 %v4596, %v4099
    %v4598 = vadd.f32 %v4597, %v4103
    %v4599 = vadd.f32 %v4598, %v4109
    %v4600 = vadd.f32 %v4599, %v4113
    %v4601 = vadd.f32 %v4600, %v4119
    %v4602 = vadd.f32 %v4601, %v4123
    %v4603 = vadd.f32 %v4602, %v4129
    %v4604 = vadd.f32 %v4603, %v4133
    %v4605 = vadd.f32 %v4604, %v4139
    %v4606 = vadd.f32 %v4605, %v4143
    %v4607 = vadd.f32 %v4606, %v4149
    %v4608 = vadd.f32 %v4607, %v4153
    %v4609 = vadd.f32 %v4608, %v4159
    %v4610 = vadd.f32 %v4609, %v4163
    %v4611 = vadd.f32 %v4610, %v4169
    %v4612 = vadd.f32 %v4611, %v4173
    %v4613 = vadd.f32 %v4612, %v4179
    %v4614 = vadd.f32 %v4613, %v4183
    %v4615 = vadd.f32 %v4614, %v4189
    %v4616 = vadd.f32 %v4615, %v4193
    %v4617 = vadd.f32 %v4616, %v4199
    %v4618 = vadd.f32 %v4617, %v4203
    %v4619 = vadd.f32 %v4618, %v4209
    %v4620 = vadd.f32 %v4619, %v4213
    %v4621 = vadd.f32 %v4620, %v4219
    %v4622 = vadd.f32 %v4621, %v4223
    %v4623 = vadd.f32 %v4622, %v4229
    %v4624 = vadd.f32 %v4623, %v4233
    %v4625 = vadd.f32 %v4624, %v4239
    %v4626 = vadd.f32 %v4625, %v4243
    %v4627 = vadd.f32 %v4626, %v4249
    %v4628 = vadd.f32 %v4627, %v4253
    %v4629 = vadd.f32 %v4628, %v4259
    %v4630 = vadd.f32 %v4629, %v4263
    %v4631 = vadd.f32 %v4630, %v4269
    %v4632 = vadd.f32 %v4631, %v4273
    %v4633 = vadd.f32 %v4632, %v4279
    %v4634 = vadd.f32 %v4633, %v4283
    %v4635 = vadd.f32 %v4634, %v4289
    %v4636 = vadd.f32 %v4635, %v4293
    %v4637 = vadd.f32 %v4636, %v4299
    %v4638 = vadd.f32 %v4637, %v4303
    %v4639 = vadd.f32 %v4638, %v4309
    %v4640 = vadd.f32 %v4639, %v4313
    %v4641 = vadd.f32 %v4640, %v4319
    %v4642 = vadd.f32 %v4641, %v4323
    %v4643 = vadd.f32 %v4642, %v4329
    %v4644 = vadd.f32 %v4643, %v4333
    %v4645 = vadd.f32 %v4644, %v4339
    %v4646 = vadd.f32 %v4645, %v4343
    %v4647 = vadd.f32 %v4646, %v4349
    %v4648 = vadd.f32 %v4647, %v4353
    %v4649 = vadd.f32 %v4648, %v4359
    %v4650 = vadd.f32 %v4649, %v4363
    %v4651 = vadd.f32 %v4650, %v4369
    %v4652 = vadd.f32 %v4651, %v4373
    %v4653 = vadd.f32 %v4652, %v4379
    %v4654 = vadd.f32 %v4653, %v4383
    %v4655 = vrot.slane %v4654, 4
    %v4656 = vadd.f32 %v4654, %v4655
    %v4657 = vrot.slane %v4656, 2
    %v4658 = vadd.f32 %v4656, %v4657
    %v4659 = vrot.slane %v4658, 1
    %v4660 = vadd.f32 %v4658, %v4659
    %v4661 = vmul.f32 %v4453, 0.001953125
    %v4662 = vmul.f32 %v4522, 0.001953125
    %v4663 = vmul.f32 %v4591, 0.001953125
    %v4664 = vmul.f32 %v4660, 0.001953125
    %v4665 = vmul.f32 %v3714, %v3714
    %v4666 = vmul.f32 %v3716, %v3716
    %v4667 = vmul.f32 %v4067, %v4067
    %v4668 = vmul.f32 %v4069, %v4069
    %v4669 = vmul.f32 %v3718, %v3718
    %v4670 = vmul.f32 %v3720, %v3720
    %v4671 = vmul.f32 %v4071, %v4071
    %v4672 = vmul.f32 %v4073, %v4073
    %v4673 = vmul.f32 %v3724, %v3724
    %v4674 = vmul.f32 %v3726, %v3726
    %v4675 = vmul.f32 %v4077, %v4077
    %v4676 = vmul.f32 %v4079, %v4079
    %v4677 = vmul.f32 %v3728, %v3728
    %v4678 = vmul.f32 %v3730, %v3730
    %v4679 = vmul.f32 %v4081, %v4081
    %v4680 = vmul.f32 %v4083, %v4083
    %v4681 = vmul.f32 %v3734, %v3734
    %v4682 = vmul.f32 %v3736, %v3736
    %v4683 = vmul.f32 %v4087, %v4087
    %v4684 = vmul.f32 %v4089, %v4089
    %v4685 = vmul.f32 %v3738, %v3738
    %v4686 = vmul.f32 %v3740, %v3740
    %v4687 = vmul.f32 %v4091, %v4091
    %v4688 = vmul.f32 %v4093, %v4093
    %v4689 = vmul.f32 %v3744, %v3744
    %v4690 = vmul.f32 %v3746, %v3746
    %v4691 = vmul.f32 %v4097, %v4097
    %v4692 = vmul.f32 %v4099, %v4099
    %v4693 = vmul.f32 %v3748, %v3748
    %v4694 = vmul.f32 %v3750, %v3750
    %v4695 = vmul.f32 %v4101, %v4101
    %v4696 = vmul.f32 %v4103, %v4103
    %v4697 = vmul.f32 %v3754, %v3754
    %v4698 = vmul.f32 %v3756, %v3756
    %v4699 = vmul.f32 %v4107, %v4107
    %v4700 = vmul.f32 %v4109, %v4109
    %v4701 = vmul.f32 %v3758, %v3758
    %v4702 = vmul.f32 %v3760, %v3760
    %v4703 = vmul.f32 %v4111, %v4111
    %v4704 = vmul.f32 %v4113, %v4113
    %v4705 = vmul.f32 %v3764, %v3764
    %v4706 = vmul.f32 %v3766, %v3766
    %v4707 = vmul.f32 %v4117, %v4117
    %v4708 = vmul.f32 %v4119, %v4119
    %v4709 = vmul.f32 %v3768, %v3768
    %v4710 = vmul.f32 %v3770, %v3770
    %v4711 = vmul.f32 %v4121, %v4121
    %v4712 = vmul.f32 %v4123, %v4123
    %v4713 = vmul.f32 %v3774, %v3774
    %v4714 = vmul.f32 %v3776, %v3776
    %v4715 = vmul.f32 %v4127, %v4127
    %v4716 = vmul.f32 %v4129, %v4129
    %v4717 = vmul.f32 %v3778, %v3778
    %v4718 = vmul.f32 %v3780, %v3780
    %v4719 = vmul.f32 %v4131, %v4131
    %v4720 = vmul.f32 %v4133, %v4133
    %v4721 = vmul.f32 %v3784, %v3784
    %v4722 = vmul.f32 %v3786, %v3786
    %v4723 = vmul.f32 %v4137, %v4137
    %v4724 = vmul.f32 %v4139, %v4139
    %v4725 = vmul.f32 %v3788, %v3788
    %v4726 = vmul.f32 %v3790, %v3790
    %v4727 = vmul.f32 %v4141, %v4141
    %v4728 = vmul.f32 %v4143, %v4143
    %v4729 = vmul.f32 %v3794, %v3794
    %v4730 = vmul.f32 %v3796, %v3796
    %v4731 = vmul.f32 %v4147, %v4147
    %v4732 = vmul.f32 %v4149, %v4149
    %v4733 = vmul.f32 %v3798, %v3798
    %v4734 = vmul.f32 %v3800, %v3800
    %v4735 = vmul.f32 %v4151, %v4151
    %v4736 = vmul.f32 %v4153, %v4153
    %v4737 = vmul.f32 %v3804, %v3804
    %v4738 = vmul.f32 %v3806, %v3806
    %v4739 = vmul.f32 %v4157, %v4157
    %v4740 = vmul.f32 %v4159, %v4159
    %v4741 = vmul.f32 %v3808, %v3808
    %v4742 = vmul.f32 %v3810, %v3810
    %v4743 = vmul.f32 %v4161, %v4161
    %v4744 = vmul.f32 %v4163, %v4163
    %v4745 = vmul.f32 %v3814, %v3814
    %v4746 = vmul.f32 %v3816, %v3816
    %v4747 = vmul.f32 %v4167, %v4167
    %v4748 = vmul.f32 %v4169, %v4169
    %v4749 = vmul.f32 %v3818, %v3818
    %v4750 = vmul.f32 %v3820, %v3820
    %v4751 = vmul.f32 %v4171, %v4171
    %v4752 = vmul.f32 %v4173, %v4173
    %v4753 = vmul.f32 %v3824, %v3824
    %v4754 = vmul.f32 %v3826, %v3826
    %v4755 = vmul.f32 %v4177, %v4177
    %v4756 = vmul.f32 %v4179, %v4179
    %v4757 = vmul.f32 %v3828, %v3828
    %v4758 = vmul.f32 %v3830, %v3830
    %v4759 = vmul.f32 %v4181, %v4181
    %v4760 = vmul.f32 %v4183, %v4183
    %v4761 = vmul.f32 %v3834, %v3834
    %v4762 = vmul.f32 %v3836, %v3836
    %v4763 = vmul.f32 %v4187, %v4187
    %v4764 = vmul.f32 %v4189, %v4189
    %v4765 = vmul.f32 %v3838, %v3838
    %v4766 = vmul.f32 %v3840, %v3840
    %v4767 = vmul.f32 %v4191, %v4191
    %v4768 = vmul.f32 %v4193, %v4193
    %v4769 = vmul.f32 %v3844, %v3844
    %v4770 = vmul.f32 %v3846, %v3846
    %v4771 = vmul.f32 %v4197, %v4197
    %v4772 = vmul.f32 %v4199, %v4199
    %v4773 = vmul.f32 %v3848, %v3848
    %v4774 = vmul.f32 %v3850, %v3850
    %v4775 = vmul.f32 %v4201, %v4201
    %v4776 = vmul.f32 %v4203, %v4203
    %v4777 = vmul.f32 %v3854, %v3854
    %v4778 = vmul.f32 %v3856, %v3856
    %v4779 = vmul.f32 %v4207, %v4207
    %v4780 = vmul.f32 %v4209, %v4209
    %v4781 = vmul.f32 %v3858, %v3858
    %v4782 = vmul.f32 %v3860, %v3860
    %v4783 = vmul.f32 %v4211, %v4211
    %v4784 = vmul.f32 %v4213, %v4213
    %v4785 = vmul.f32 %v3864, %v3864
    %v4786 = vmul.f32 %v3866, %v3866
    %v4787 = vmul.f32 %v4217, %v4217
    %v4788 = vmul.f32 %v4219, %v4219
    %v4789 = vmul.f32 %v3868, %v3868
    %v4790 = vmul.f32 %v3870, %v3870
    %v4791 = vmul.f32 %v4221, %v4221
    %v4792 = vmul.f32 %v4223, %v4223
    %v4793 = vmul.f32 %v3874, %v3874
    %v4794 = vmul.f32 %v3876, %v3876
    %v4795 = vmul.f32 %v4227, %v4227
    %v4796 = vmul.f32 %v4229, %v4229
    %v4797 = vmul.f32 %v3878, %v3878
    %v4798 = vmul.f32 %v3880, %v3880
    %v4799 = vmul.f32 %v4231, %v4231
    %v4800 = vmul.f32 %v4233, %v4233
    %v4801 = vmul.f32 %v3884, %v3884
    %v4802 = vmul.f32 %v3886, %v3886
    %v4803 = vmul.f32 %v4237, %v4237
    %v4804 = vmul.f32 %v4239, %v4239
    %v4805 = vmul.f32 %v3888, %v3888
    %v4806 = vmul.f32 %v3890, %v3890
    %v4807 = vmul.f32 %v4241, %v4241
    %v4808 = vmul.f32 %v4243, %v4243
    %v4809 = vmul.f32 %v3894, %v3894
    %v4810 = vmul.f32 %v3896, %v3896
    %v4811 = vmul.f32 %v4247, %v4247
    %v4812 = vmul.f32 %v4249, %v4249
    %v4813 = vmul.f32 %v3898, %v3898
    %v4814 = vmul.f32 %v3900, %v3900
    %v4815 = vmul.f32 %v4251, %v4251
    %v4816 = vmul.f32 %v4253, %v4253
    %v4817 = vmul.f32 %v3904, %v3904
    %v4818 = vmul.f32 %v3906, %v3906
    %v4819 = vmul.f32 %v4257, %v4257
    %v4820 = vmul.f32 %v4259, %v4259
    %v4821 = vmul.f32 %v3908, %v3908
    %v4822 = vmul.f32 %v3910, %v3910
    %v4823 = vmul.f32 %v4261, %v4261
    %v4824 = vmul.f32 %v4263, %v4263
    %v4825 = vmul.f32 %v3914, %v3914
    %v4826 = vmul.f32 %v3916, %v3916
    %v4827 = vmul.f32 %v4267, %v4267
    %v4828 = vmul.f32 %v4269, %v4269
    %v4829 = vmul.f32 %v3918, %v3918
    %v4830 = vmul.f32 %v3920, %v3920
    %v4831 = vmul.f32 %v4271, %v4271
    %v4832 = vmul.f32 %v4273, %v4273
    %v4833 = vmul.f32 %v3924, %v3924
    %v4834 = vmul.f32 %v3926, %v3926
    %v4835 = vmul.f32 %v4277, %v4277
    %v4836 = vmul.f32 %v4279, %v4279
    %v4837 = vmul.f32 %v3928, %v3928
    %v4838 = vmul.f32 %v3930, %v3930
    %v4839 = vmul.f32 %v4281, %v4281
    %v4840 = vmul.f32 %v4283, %v4283
    %v4841 = vmul.f32 %v3934, %v3934
    %v4842 = vmul.f32 %v3936, %v3936
    %v4843 = vmul.f32 %v4287, %v4287
    %v4844 = vmul.f32 %v4289, %v4289
    %v4845 = vmul.f32 %v3938, %v3938
    %v4846 = vmul.f32 %v3940, %v3940
    %v4847 = vmul.f32 %v4291, %v4291
    %v4848 = vmul.f32 %v4293, %v4293
    %v4849 = vmul.f32 %v3944, %v3944
    %v4850 = vmul.f32 %v3946, %v3946
    %v4851 = vmul.f32 %v4297, %v4297
    %v4852 = vmul.f32 %v4299, %v4299
    %v4853 = vmul.f32 %v3948, %v3948
    %v4854 = vmul.f32 %v3950, %v3950
    %v4855 = vmul.f32 %v4301, %v4301
    %v4856 = vmul.f32 %v4303, %v4303
    %v4857 = vmul.f32 %v3954, %v3954
    %v4858 = vmul.f32 %v3956, %v3956
    %v4859 = vmul.f32 %v4307, %v4307
    %v4860 = vmul.f32 %v4309, %v4309
    %v4861 = vmul.f32 %v3958, %v3958
    %v4862 = vmul.f32 %v3960, %v3960
    %v4863 = vmul.f32 %v4311, %v4311
    %v4864 = vmul.f32 %v4313, %v4313
    %v4865 = vmul.f32 %v3964, %v3964
    %v4866 = vmul.f32 %v3966, %v3966
    %v4867 = vmul.f32 %v4317, %v4317
    %v4868 = vmul.f32 %v4319, %v4319
    %v4869 = vmul.f32 %v3968, %v3968
    %v4870 = vmul.f32 %v3970, %v3970
    %v4871 = vmul.f32 %v4321, %v4321
    %v4872 = vmul.f32 %v4323, %v4323
    %v4873 = vmul.f32 %v3974, %v3974
    %v4874 = vmul.f32 %v3976, %v3976
    %v4875 = vmul.f32 %v4327, %v4327
    %v4876 = vmul.f32 %v4329, %v4329
    %v4877 = vmul.f32 %v3978, %v3978
    %v4878 = vmul.f32 %v3980, %v3980
    %v4879 = vmul.f32 %v4331, %v4331
    %v4880 = vmul.f32 %v4333, %v4333
    %v4881 = vmul.f32 %v3984, %v3984
    %v4882 = vmul.f32 %v3986, %v3986
    %v4883 = vmul.f32 %v4337, %v4337
    %v4884 = vmul.f32 %v4339, %v4339
    %v4885 = vmul.f32 %v3988, %v3988
    %v4886 = vmul.f32 %v3990, %v3990
    %v4887 = vmul.f32 %v4341, %v4341
    %v4888 = vmul.f32 %v4343, %v4343
    %v4889 = vmul.f32 %v3994, %v3994
    %v4890 = vmul.f32 %v3996, %v3996
    %v4891 = vmul.f32 %v4347, %v4347
    %v4892 = vmul.f32 %v4349, %v4349
    %v4893 = vmul.f32 %v3998, %v3998
    %v4894 = vmul.f32 %v4000, %v4000
    %v4895 = vmul.f32 %v4351, %v4351
    %v4896 = vmul.f32 %v4353, %v4353
    %v4897 = vmul.f32 %v4004, %v4004
    %v4898 = vmul.f32 %v4006, %v4006
    %v4899 = vmul.f32 %v4357, %v4357
    %v4900 = vmul.f32 %v4359, %v4359
    %v4901 = vmul.f32 %v4008, %v4008
    %v4902 = vmul.f32 %v4010, %v4010
    %v4903 = vmul.f32 %v4361, %v4361
    %v4904 = vmul.f32 %v4363, %v4363
    %v4905 = vmul.f32 %v4014, %v4014
    %v4906 = vmul.f32 %v4016, %v4016
    %v4907 = vmul.f32 %v4367, %v4367
    %v4908 = vmul.f32 %v4369, %v4369
    %v4909 = vmul.f32 %v4018, %v4018
    %v4910 = vmul.f32 %v4020, %v4020
    %v4911 = vmul.f32 %v4371, %v4371
    %v4912 = vmul.f32 %v4373, %v4373
    %v4913 = vmul.f32 %v4024, %v4024
    %v4914 = vmul.f32 %v4026, %v4026
    %v4915 = vmul.f32 %v4377, %v4377
    %v4916 = vmul.f32 %v4379, %v4379
    %v4917 = vmul.f32 %v4028, %v4028
    %v4918 = vmul.f32 %v4030, %v4030
    %v4919 = vmul.f32 %v4381, %v4381
    %v4920 = vmul.f32 %v4383, %v4383
    %v4921 = vadd.f32 %v4665, %v4669
    %v4922 = vadd.f32 %v4921, %v4673
    %v4923 = vadd.f32 %v4922, %v4677
    %v4924 = vadd.f32 %v4923, %v4681
    %v4925 = vadd.f32 %v4924, %v4685
    %v4926 = vadd.f32 %v4925, %v4689
    %v4927 = vadd.f32 %v4926, %v4693
    %v4928 = vadd.f32 %v4927, %v4697
    %v4929 = vadd.f32 %v4928, %v4701
    %v4930 = vadd.f32 %v4929, %v4705
    %v4931 = vadd.f32 %v4930, %v4709
    %v4932 = vadd.f32 %v4931, %v4713
    %v4933 = vadd.f32 %v4932, %v4717
    %v4934 = vadd.f32 %v4933, %v4721
    %v4935 = vadd.f32 %v4934, %v4725
    %v4936 = vadd.f32 %v4935, %v4729
    %v4937 = vadd.f32 %v4936, %v4733
    %v4938 = vadd.f32 %v4937, %v4737
    %v4939 = vadd.f32 %v4938, %v4741
    %v4940 = vadd.f32 %v4939, %v4745
    %v4941 = vadd.f32 %v4940, %v4749
    %v4942 = vadd.f32 %v4941, %v4753
    %v4943 = vadd.f32 %v4942, %v4757
    %v4944 = vadd.f32 %v4943, %v4761
    %v4945 = vadd.f32 %v4944, %v4765
    %v4946 = vadd.f32 %v4945, %v4769
    %v4947 = vadd.f32 %v4946, %v4773
    %v4948 = vadd.f32 %v4947, %v4777
    %v4949 = vadd.f32 %v4948, %v4781
    %v4950 = vadd.f32 %v4949, %v4785
    %v4951 = vadd.f32 %v4950, %v4789
    %v4952 = vadd.f32 %v4951, %v4793
    %v4953 = vadd.f32 %v4952, %v4797
    %v4954 = vadd.f32 %v4953, %v4801
    %v4955 = vadd.f32 %v4954, %v4805
    %v4956 = vadd.f32 %v4955, %v4809
    %v4957 = vadd.f32 %v4956, %v4813
    %v4958 = vadd.f32 %v4957, %v4817
    %v4959 = vadd.f32 %v4958, %v4821
    %v4960 = vadd.f32 %v4959, %v4825
    %v4961 = vadd.f32 %v4960, %v4829
    %v4962 = vadd.f32 %v4961, %v4833
    %v4963 = vadd.f32 %v4962, %v4837
    %v4964 = vadd.f32 %v4963, %v4841
    %v4965 = vadd.f32 %v4964, %v4845
    %v4966 = vadd.f32 %v4965, %v4849
    %v4967 = vadd.f32 %v4966, %v4853
    %v4968 = vadd.f32 %v4967, %v4857
    %v4969 = vadd.f32 %v4968, %v4861
    %v4970 = vadd.f32 %v4969, %v4865
    %v4971 = vadd.f32 %v4970, %v4869
    %v4972 = vadd.f32 %v4971, %v4873
    %v4973 = vadd.f32 %v4972, %v4877
    %v4974 = vadd.f32 %v4973, %v4881
    %v4975 = vadd.f32 %v4974, %v4885
    %v4976 = vadd.f32 %v4975, %v4889
    %v4977 = vadd.f32 %v4976, %v4893
    %v4978 = vadd.f32 %v4977, %v4897
    %v4979 = vadd.f32 %v4978, %v4901
    %v4980 = vadd.f32 %v4979, %v4905
    %v4981 = vadd.f32 %v4980, %v4909
    %v4982 = vadd.f32 %v4981, %v4913
    %v4983 = vadd.f32 %v4982, %v4917
    %v4984 = vrot.slane %v4983, 4
    %v4985 = vadd.f32 %v4983, %v4984
    %v4986 = vrot.slane %v4985, 2
    %v4987 = vadd.f32 %v4985, %v4986
    %v4988 = vrot.slane %v4987, 1
    %v4989 = vadd.f32 %v4987, %v4988
    %v4990 = vadd.f32 %v4666, %v4670
    %v4991 = vadd.f32 %v4990, %v4674
    %v4992 = vadd.f32 %v4991, %v4678
    %v4993 = vadd.f32 %v4992, %v4682
    %v4994 = vadd.f32 %v4993, %v4686
    %v4995 = vadd.f32 %v4994, %v4690
    %v4996 = vadd.f32 %v4995, %v4694
    %v4997 = vadd.f32 %v4996, %v4698
    %v4998 = vadd.f32 %v4997, %v4702
    %v4999 = vadd.f32 %v4998, %v4706
    %v5000 = vadd.f32 %v4999, %v4710
    %v5001 = vadd.f32 %v5000, %v4714
    %v5002 = vadd.f32 %v5001, %v4718
    %v5003 = vadd.f32 %v5002, %v4722
    %v5004 = vadd.f32 %v5003, %v4726
    %v5005 = vadd.f32 %v5004, %v4730
    %v5006 = vadd.f32 %v5005, %v4734
    %v5007 = vadd.f32 %v5006, %v4738
    %v5008 = vadd.f32 %v5007, %v4742
    %v5009 = vadd.f32 %v5008, %v4746
    %v5010 = vadd.f32 %v5009, %v4750
    %v5011 = vadd.f32 %v5010, %v4754
    %v5012 = vadd.f32 %v5011, %v4758
    %v5013 = vadd.f32 %v5012, %v4762
    %v5014 = vadd.f32 %v5013, %v4766
    %v5015 = vadd.f32 %v5014, %v4770
    %v5016 = vadd.f32 %v5015, %v4774
    %v5017 = vadd.f32 %v5016, %v4778
    %v5018 = vadd.f32 %v5017, %v4782
    %v5019 = vadd.f32 %v5018, %v4786
    %v5020 = vadd.f32 %v5019, %v4790
    %v5021 = vadd.f32 %v5020, %v4794
    %v5022 = vadd.f32 %v5021, %v4798
    %v5023 = vadd.f32 %v5022, %v4802
    %v5024 = vadd.f32 %v5023, %v4806
    %v5025 = vadd.f32 %v5024, %v4810
    %v5026 = vadd.f32 %v5025, %v4814
    %v5027 = vadd.f32 %v5026, %v4818
    %v5028 = vadd.f32 %v5027, %v4822
    %v5029 = vadd.f32 %v5028, %v4826
    %v5030 = vadd.f32 %v5029, %v4830
    %v5031 = vadd.f32 %v5030, %v4834
    %v5032 = vadd.f32 %v5031, %v4838
    %v5033 = vadd.f32 %v5032, %v4842
    %v5034 = vadd.f32 %v5033, %v4846
    %v5035 = vadd.f32 %v5034, %v4850
    %v5036 = vadd.f32 %v5035, %v4854
    %v5037 = vadd.f32 %v5036, %v4858
    %v5038 = vadd.f32 %v5037, %v4862
    %v5039 = vadd.f32 %v5038, %v4866
    %v5040 = vadd.f32 %v5039, %v4870
    %v5041 = vadd.f32 %v5040, %v4874
    %v5042 = vadd.f32 %v5041, %v4878
    %v5043 = vadd.f32 %v5042, %v4882
    %v5044 = vadd.f32 %v5043, %v4886
    %v5045 = vadd.f32 %v5044, %v4890
    %v5046 = vadd.f32 %v5045, %v4894
    %v5047 = vadd.f32 %v5046, %v4898
    %v5048 = vadd.f32 %v5047, %v4902
    %v5049 = vadd.f32 %v5048, %v4906
    %v5050 = vadd.f32 %v5049, %v4910
    %v5051 = vadd.f32 %v5050, %v4914
    %v5052 = vadd.f32 %v5051, %v4918
    %v5053 = vrot.slane %v5052, 4
    %v5054 = vadd.f32 %v5052, %v5053
    %v5055 = vrot.slane %v5054, 2
    %v5056 = vadd.f32 %v5054, %v5055
    %v5057 = vrot.slane %v5056, 1
    %v5058 = vadd.f32 %v5056, %v5057
    %v5059 = vadd.f32 %v4667, %v4671
    %v5060 = vadd.f32 %v5059, %v4675
    %v5061 = vadd.f32 %v5060, %v4679
    %v5062 = vadd.f32 %v5061, %v4683
    %v5063 = vadd.f32 %v5062, %v4687
    %v5064 = vadd.f32 %v5063, %v4691
    %v5065 = vadd.f32 %v5064, %v4695
    %v5066 = vadd.f32 %v5065, %v4699
    %v5067 = vadd.f32 %v5066, %v4703
    %v5068 = vadd.f32 %v5067, %v4707
    %v5069 = vadd.f32 %v5068, %v4711
    %v5070 = vadd.f32 %v5069, %v4715
    %v5071 = vadd.f32 %v5070, %v4719
    %v5072 = vadd.f32 %v5071, %v4723
    %v5073 = vadd.f32 %v5072, %v4727
    %v5074 = vadd.f32 %v5073, %v4731
    %v5075 = vadd.f32 %v5074, %v4735
    %v5076 = vadd.f32 %v5075, %v4739
    %v5077 = vadd.f32 %v5076, %v4743
    %v5078 = vadd.f32 %v5077, %v4747
    %v5079 = vadd.f32 %v5078, %v4751
    %v5080 = vadd.f32 %v5079, %v4755
    %v5081 = vadd.f32 %v5080, %v4759
    %v5082 = vadd.f32 %v5081, %v4763
    %v5083 = vadd.f32 %v5082, %v4767
    %v5084 = vadd.f32 %v5083, %v4771
    %v5085 = vadd.f32 %v5084, %v4775
    %v5086 = vadd.f32 %v5085, %v4779
    %v5087 = vadd.f32 %v5086, %v4783
    %v5088 = vadd.f32 %v5087, %v4787
    %v5089 = vadd.f32 %v5088, %v4791
    %v5090 = vadd.f32 %v5089, %v4795
    %v5091 = vadd.f32 %v5090, %v4799
    %v5092 = vadd.f32 %v5091, %v4803
    %v5093 = vadd.f32 %v5092, %v4807
    %v5094 = vadd.f32 %v5093, %v4811
    %v5095 = vadd.f32 %v5094, %v4815
    %v5096 = vadd.f32 %v5095, %v4819
    %v5097 = vadd.f32 %v5096, %v4823
    %v5098 = vadd.f32 %v5097, %v4827
    %v5099 = vadd.f32 %v5098, %v4831
    %v5100 = vadd.f32 %v5099, %v4835
    %v5101 = vadd.f32 %v5100, %v4839
    %v5102 = vadd.f32 %v5101, %v4843
    %v5103 = vadd.f32 %v5102, %v4847
    %v5104 = vadd.f32 %v5103, %v4851
    %v5105 = vadd.f32 %v5104, %v4855
    %v5106 = vadd.f32 %v5105, %v4859
    %v5107 = vadd.f32 %v5106, %v4863
    %v5108 = vadd.f32 %v5107, %v4867
    %v5109 = vadd.f32 %v5108, %v4871
    %v5110 = vadd.f32 %v5109, %v4875
    %v5111 = vadd.f32 %v5110, %v4879
    %v5112 = vadd.f32 %v5111, %v4883
    %v5113 = vadd.f32 %v5112, %v4887
    %v5114 = vadd.f32 %v5113, %v4891
    %v5115 = vadd.f32 %v5114, %v4895
    %v5116 = vadd.f32 %v5115, %v4899
    %v5117 = vadd.f32 %v5116, %v4903
    %v5118 = vadd.f32 %v5117, %v4907
    %v5119 = vadd.f32 %v5118, %v4911
    %v5120 = vadd.f32 %v5119, %v4915
    %v5121 = vadd.f32 %v5120, %v4919
    %v5122 = vrot.slane %v5121, 4
    %v5123 = vadd.f32 %v5121, %v5122
    %v5124 = vrot.slane %v5123, 2
    %v5125 = vadd.f32 %v5123, %v5124
    %v5126 = vrot.slane %v5125, 1
    %v5127 = vadd.f32 %v5125, %v5126
    %v5128 = vadd.f32 %v4668, %v4672
    %v5129 = vadd.f32 %v5128, %v4676
    %v5130 = vadd.f32 %v5129, %v4680
    %v5131 = vadd.f32 %v5130, %v4684
    %v5132 = vadd.f32 %v5131, %v4688
    %v5133 = vadd.f32 %v5132, %v4692
    %v5134 = vadd.f32 %v5133, %v4696
    %v5135 = vadd.f32 %v5134, %v4700
    %v5136 = vadd.f32 %v5135, %v4704
    %v5137 = vadd.f32 %v5136, %v4708
    %v5138 = vadd.f32 %v5137, %v4712
    %v5139 = vadd.f32 %v5138, %v4716
    %v5140 = vadd.f32 %v5139, %v4720
    %v5141 = vadd.f32 %v5140, %v4724
    %v5142 = vadd.f32 %v5141, %v4728
    %v5143 = vadd.f32 %v5142, %v4732
    %v5144 = vadd.f32 %v5143, %v4736
    %v5145 = vadd.f32 %v5144, %v4740
    %v5146 = vadd.f32 %v5145, %v4744
    %v5147 = vadd.f32 %v5146, %v4748
    %v5148 = vadd.f32 %v5147, %v4752
    %v5149 = vadd.f32 %v5148, %v4756
    %v5150 = vadd.f32 %v5149, %v4760
    %v5151 = vadd.f32 %v5150, %v4764
    %v5152 = vadd.f32 %v5151, %v4768
    %v5153 = vadd.f32 %v5152, %v4772
    %v5154 = vadd.f32 %v5153, %v4776
    %v5155 = vadd.f32 %v5154, %v4780
    %v5156 = vadd.f32 %v5155, %v4784
    %v5157 = vadd.f32 %v5156, %v4788
    %v5158 = vadd.f32 %v5157, %v4792
    %v5159 = vadd.f32 %v5158, %v4796
    %v5160 = vadd.f32 %v5159, %v4800
    %v5161 = vadd.f32 %v5160, %v4804
    %v5162 = vadd.f32 %v5161, %v4808
    %v5163 = vadd.f32 %v5162, %v4812
    %v5164 = vadd.f32 %v5163, %v4816
    %v5165 = vadd.f32 %v5164, %v4820
    %v5166 = vadd.f32 %v5165, %v4824
    %v5167 = vadd.f32 %v5166, %v4828
    %v5168 = vadd.f32 %v5167, %v4832
    %v5169 = vadd.f32 %v5168, %v4836
    %v5170 = vadd.f32 %v5169, %v4840
    %v5171 = vadd.f32 %v5170, %v4844
    %v5172 = vadd.f32 %v5171, %v4848
    %v5173 = vadd.f32 %v5172, %v4852
    %v5174 = vadd.f32 %v5173, %v4856
    %v5175 = vadd.f32 %v5174, %v4860
    %v5176 = vadd.f32 %v5175, %v4864
    %v5177 = vadd.f32 %v5176, %v4868
    %v5178 = vadd.f32 %v5177, %v4872
    %v5179 = vadd.f32 %v5178, %v4876
    %v5180 = vadd.f32 %v5179, %v4880
    %v5181 = vadd.f32 %v5180, %v4884
    %v5182 = vadd.f32 %v5181, %v4888
    %v5183 = vadd.f32 %v5182, %v4892
    %v5184 = vadd.f32 %v5183, %v4896
    %v5185 = vadd.f32 %v5184, %v4900
    %v5186 = vadd.f32 %v5185, %v4904
    %v5187 = vadd.f32 %v5186, %v4908
    %v5188 = vadd.f32 %v5187, %v4912
    %v5189 = vadd.f32 %v5188, %v4916
    %v5190 = vadd.f32 %v5189, %v4920
    %v5191 = vrot.slane %v5190, 4
    %v5192 = vadd.f32 %v5190, %v5191
    %v5193 = vrot.slane %v5192, 2
    %v5194 = vadd.f32 %v5192, %v5193
    %v5195 = vrot.slane %v5194, 1
    %v5196 = vadd.f32 %v5194, %v5195
    %v5197 = vmul.f32 %v4989, 0.001953125
    %v5198 = vmul.f32 %v5058, 0.001953125
    %v5199 = vmul.f32 %v5127, 0.001953125
    %v5200 = vmul.f32 %v5196, 0.001953125
    %v5201 = vmul.f32 %v4661, %v4661
    %v5202 = vmul.f32 %v4662, %v4662
    %v5203 = vmul.f32 %v4663, %v4663
    %v5204 = vmul.f32 %v4664, %v4664
    %v5205 = vsub.f32 %v5197, %v5201
    %v5206 = vsub.f32 %v5198, %v5202
    %v5207 = vsub.f32 %v5199, %v5203
    %v5208 = vsub.f32 %v5200, %v5204
    %v5209 = vmax.f32 %v5205, 0.0
    %v5210 = vmax.f32 %v5206, 0.0
    %v5211 = vmax.f32 %v5207, 0.0
    %v5212 = vmax.f32 %v5208, 0.0
    %v5213 = vsub.f32 %v3714, %v4661
    %v5214 = vsub.f32 %v3716, %v4662
    %v5215 = vsub.f32 %v4067, %v4663
    %v5216 = vsub.f32 %v4069, %v4664
    %v5217 = vsub.f32 %v3718, %v4661
    %v5218 = vsub.f32 %v3720, %v4662
    %v5219 = vsub.f32 %v4071, %v4663
    %v5220 = vsub.f32 %v4073, %v4664
    %v5221 = vsub.f32 %v3724, %v4661
    %v5222 = vsub.f32 %v3726, %v4662
    %v5223 = vsub.f32 %v4077, %v4663
    %v5224 = vsub.f32 %v4079, %v4664
    %v5225 = vsub.f32 %v3728, %v4661
    %v5226 = vsub.f32 %v3730, %v4662
    %v5227 = vsub.f32 %v4081, %v4663
    %v5228 = vsub.f32 %v4083, %v4664
    %v5229 = vsub.f32 %v3734, %v4661
    %v5230 = vsub.f32 %v3736, %v4662
    %v5231 = vsub.f32 %v4087, %v4663
    %v5232 = vsub.f32 %v4089, %v4664
    %v5233 = vsub.f32 %v3738, %v4661
    %v5234 = vsub.f32 %v3740, %v4662
    %v5235 = vsub.f32 %v4091, %v4663
    %v5236 = vsub.f32 %v4093, %v4664
    %v5237 = vsub.f32 %v3744, %v4661
    %v5238 = vsub.f32 %v3746, %v4662
    %v5239 = vsub.f32 %v4097, %v4663
    %v5240 = vsub.f32 %v4099, %v4664
    %v5241 = vsub.f32 %v3748, %v4661
    %v5242 = vsub.f32 %v3750, %v4662
    %v5243 = vsub.f32 %v4101, %v4663
    %v5244 = vsub.f32 %v4103, %v4664
    %v5245 = vsub.f32 %v3754, %v4661
    %v5246 = vsub.f32 %v3756, %v4662
    %v5247 = vsub.f32 %v4107, %v4663
    %v5248 = vsub.f32 %v4109, %v4664
    %v5249 = vsub.f32 %v3758, %v4661
    %v5250 = vsub.f32 %v3760, %v4662
    %v5251 = vsub.f32 %v4111, %v4663
    %v5252 = vsub.f32 %v4113, %v4664
    %v5253 = vsub.f32 %v3764, %v4661
    %v5254 = vsub.f32 %v3766, %v4662
    %v5255 = vsub.f32 %v4117, %v4663
    %v5256 = vsub.f32 %v4119, %v4664
    %v5257 = vsub.f32 %v3768, %v4661
    %v5258 = vsub.f32 %v3770, %v4662
    %v5259 = vsub.f32 %v4121, %v4663
    %v5260 = vsub.f32 %v4123, %v4664
    %v5261 = vsub.f32 %v3774, %v4661
    %v5262 = vsub.f32 %v3776, %v4662
    %v5263 = vsub.f32 %v4127, %v4663
    %v5264 = vsub.f32 %v4129, %v4664
    %v5265 = vsub.f32 %v3778, %v4661
    %v5266 = vsub.f32 %v3780, %v4662
    %v5267 = vsub.f32 %v4131, %v4663
    %v5268 = vsub.f32 %v4133, %v4664
    %v5269 = vsub.f32 %v3784, %v4661
    %v5270 = vsub.f32 %v3786, %v4662
    %v5271 = vsub.f32 %v4137, %v4663
    %v5272 = vsub.f32 %v4139, %v4664
    %v5273 = vsub.f32 %v3788, %v4661
    %v5274 = vsub.f32 %v3790, %v4662
    %v5275 = vsub.f32 %v4141, %v4663
    %v5276 = vsub.f32 %v4143, %v4664
    %v5277 = vsub.f32 %v3794, %v4661
    %v5278 = vsub.f32 %v3796, %v4662
    %v5279 = vsub.f32 %v4147, %v4663
    %v5280 = vsub.f32 %v4149, %v4664
    %v5281 = vsub.f32 %v3798, %v4661
    %v5282 = vsub.f32 %v3800, %v4662
    %v5283 = vsub.f32 %v4151, %v4663
    %v5284 = vsub.f32 %v4153, %v4664
    %v5285 = vsub.f32 %v3804, %v4661
    %v5286 = vsub.f32 %v3806, %v4662
    %v5287 = vsub.f32 %v4157, %v4663
    %v5288 = vsub.f32 %v4159, %v4664
    %v5289 = vsub.f32 %v3808, %v4661
    %v5290 = vsub.f32 %v3810, %v4662
    %v5291 = vsub.f32 %v4161, %v4663
    %v5292 = vsub.f32 %v4163, %v4664
    %v5293 = vsub.f32 %v3814, %v4661
    %v5294 = vsub.f32 %v3816, %v4662
    %v5295 = vsub.f32 %v4167, %v4663
    %v5296 = vsub.f32 %v4169, %v4664
    %v5297 = vsub.f32 %v3818, %v4661
    %v5298 = vsub.f32 %v3820, %v4662
    %v5299 = vsub.f32 %v4171, %v4663
    %v5300 = vsub.f32 %v4173, %v4664
    %v5301 = vsub.f32 %v3824, %v4661
    %v5302 = vsub.f32 %v3826, %v4662
    %v5303 = vsub.f32 %v4177, %v4663
    %v5304 = vsub.f32 %v4179, %v4664
    %v5305 = vsub.f32 %v3828, %v4661
    %v5306 = vsub.f32 %v3830, %v4662
    %v5307 = vsub.f32 %v4181, %v4663
    %v5308 = vsub.f32 %v4183, %v4664
    %v5309 = vsub.f32 %v3834, %v4661
    %v5310 = vsub.f32 %v3836, %v4662
    %v5311 = vsub.f32 %v4187, %v4663
    %v5312 = vsub.f32 %v4189, %v4664
    %v5313 = vsub.f32 %v3838, %v4661
    %v5314 = vsub.f32 %v3840, %v4662
    %v5315 = vsub.f32 %v4191, %v4663
    %v5316 = vsub.f32 %v4193, %v4664
    %v5317 = vsub.f32 %v3844, %v4661
    %v5318 = vsub.f32 %v3846, %v4662
    %v5319 = vsub.f32 %v4197, %v4663
    %v5320 = vsub.f32 %v4199, %v4664
    %v5321 = vsub.f32 %v3848, %v4661
    %v5322 = vsub.f32 %v3850, %v4662
    %v5323 = vsub.f32 %v4201, %v4663
    %v5324 = vsub.f32 %v4203, %v4664
    %v5325 = vsub.f32 %v3854, %v4661
    %v5326 = vsub.f32 %v3856, %v4662
    %v5327 = vsub.f32 %v4207, %v4663
    %v5328 = vsub.f32 %v4209, %v4664
    %v5329 = vsub.f32 %v3858, %v4661
    %v5330 = vsub.f32 %v3860, %v4662
    %v5331 = vsub.f32 %v4211, %v4663
    %v5332 = vsub.f32 %v4213, %v4664
    %v5333 = vsub.f32 %v3864, %v4661
    %v5334 = vsub.f32 %v3866, %v4662
    %v5335 = vsub.f32 %v4217, %v4663
    %v5336 = vsub.f32 %v4219, %v4664
    %v5337 = vsub.f32 %v3868, %v4661
    %v5338 = vsub.f32 %v3870, %v4662
    %v5339 = vsub.f32 %v4221, %v4663
    %v5340 = vsub.f32 %v4223, %v4664
    %v5341 = vsub.f32 %v3874, %v4661
    %v5342 = vsub.f32 %v3876, %v4662
    %v5343 = vsub.f32 %v4227, %v4663
    %v5344 = vsub.f32 %v4229, %v4664
    %v5345 = vsub.f32 %v3878, %v4661
    %v5346 = vsub.f32 %v3880, %v4662
    %v5347 = vsub.f32 %v4231, %v4663
    %v5348 = vsub.f32 %v4233, %v4664
    %v5349 = vsub.f32 %v3884, %v4661
    %v5350 = vsub.f32 %v3886, %v4662
    %v5351 = vsub.f32 %v4237, %v4663
    %v5352 = vsub.f32 %v4239, %v4664
    %v5353 = vsub.f32 %v3888, %v4661
    %v5354 = vsub.f32 %v3890, %v4662
    %v5355 = vsub.f32 %v4241, %v4663
    %v5356 = vsub.f32 %v4243, %v4664
    %v5357 = vsub.f32 %v3894, %v4661
    %v5358 = vsub.f32 %v3896, %v4662
    %v5359 = vsub.f32 %v4247, %v4663
    %v5360 = vsub.f32 %v4249, %v4664
    %v5361 = vsub.f32 %v3898, %v4661
    %v5362 = vsub.f32 %v3900, %v4662
    %v5363 = vsub.f32 %v4251, %v4663
    %v5364 = vsub.f32 %v4253, %v4664
    %v5365 = vsub.f32 %v3904, %v4661
    %v5366 = vsub.f32 %v3906, %v4662
    %v5367 = vsub.f32 %v4257, %v4663
    %v5368 = vsub.f32 %v4259, %v4664
    %v5369 = vsub.f32 %v3908, %v4661
    %v5370 = vsub.f32 %v3910, %v4662
    %v5371 = vsub.f32 %v4261, %v4663
    %v5372 = vsub.f32 %v4263, %v4664
    %v5373 = vsub.f32 %v3914, %v4661
    %v5374 = vsub.f32 %v3916, %v4662
    %v5375 = vsub.f32 %v4267, %v4663
    %v5376 = vsub.f32 %v4269, %v4664
    %v5377 = vsub.f32 %v3918, %v4661
    %v5378 = vsub.f32 %v3920, %v4662
    %v5379 = vsub.f32 %v4271, %v4663
    %v5380 = vsub.f32 %v4273, %v4664
    %v5381 = vsub.f32 %v3924, %v4661
    %v5382 = vsub.f32 %v3926, %v4662
    %v5383 = vsub.f32 %v4277, %v4663
    %v5384 = vsub.f32 %v4279, %v4664
    %v5385 = vsub.f32 %v3928, %v4661
    %v5386 = vsub.f32 %v3930, %v4662
    %v5387 = vsub.f32 %v4281, %v4663
    %v5388 = vsub.f32 %v4283, %v4664
    %v5389 = vsub.f32 %v3934, %v4661
    %v5390 = vsub.f32 %v3936, %v4662
    %v5391 = vsub.f32 %v4287, %v4663
    %v5392 = vsub.f32 %v4289, %v4664
    %v5393 = vsub.f32 %v3938, %v4661
    %v5394 = vsub.f32 %v3940, %v4662
    %v5395 = vsub.f32 %v4291, %v4663
    %v5396 = vsub.f32 %v4293, %v4664
    %v5397 = vsub.f32 %v3944, %v4661
    %v5398 = vsub.f32 %v3946, %v4662
    %v5399 = vsub.f32 %v4297, %v4663
    %v5400 = vsub.f32 %v4299, %v4664
    %v5401 = vsub.f32 %v3948, %v4661
    %v5402 = vsub.f32 %v3950, %v4662
    %v5403 = vsub.f32 %v4301, %v4663
    %v5404 = vsub.f32 %v4303, %v4664
    %v5405 = vsub.f32 %v3954, %v4661
    %v5406 = vsub.f32 %v3956, %v4662
    %v5407 = vsub.f32 %v4307, %v4663
    %v5408 = vsub.f32 %v4309, %v4664
    %v5409 = vsub.f32 %v3958, %v4661
    %v5410 = vsub.f32 %v3960, %v4662
    %v5411 = vsub.f32 %v4311, %v4663
    %v5412 = vsub.f32 %v4313, %v4664
    %v5413 = vsub.f32 %v3964, %v4661
    %v5414 = vsub.f32 %v3966, %v4662
    %v5415 = vsub.f32 %v4317, %v4663
    %v5416 = vsub.f32 %v4319, %v4664
    %v5417 = vsub.f32 %v3968, %v4661
    %v5418 = vsub.f32 %v3970, %v4662
    %v5419 = vsub.f32 %v4321, %v4663
    %v5420 = vsub.f32 %v4323, %v4664
    %v5421 = vsub.f32 %v3974, %v4661
    %v5422 = vsub.f32 %v3976, %v4662
    %v5423 = vsub.f32 %v4327, %v4663
    %v5424 = vsub.f32 %v4329, %v4664
    %v5425 = vsub.f32 %v3978, %v4661
    %v5426 = vsub.f32 %v3980, %v4662
    %v5427 = vsub.f32 %v4331, %v4663
    %v5428 = vsub.f32 %v4333, %v4664
    %v5429 = vsub.f32 %v3984, %v4661
    %v5430 = vsub.f32 %v3986, %v4662
    %v5431 = vsub.f32 %v4337, %v4663
    %v5432 = vsub.f32 %v4339, %v4664
    %v5433 = vsub.f32 %v3988, %v4661
    %v5434 = vsub.f32 %v3990, %v4662
    %v5435 = vsub.f32 %v4341, %v4663
    %v5436 = vsub.f32 %v4343, %v4664
    %v5437 = vsub.f32 %v3994, %v4661
    %v5438 = vsub.f32 %v3996, %v4662
    %v5439 = vsub.f32 %v4347, %v4663
    %v5440 = vsub.f32 %v4349, %v4664
    %v5441 = vsub.f32 %v3998, %v4661
    %v5442 = vsub.f32 %v4000, %v4662
    %v5443 = vsub.f32 %v4351, %v4663
    %v5444 = vsub.f32 %v4353, %v4664
    %v5445 = vsub.f32 %v4004, %v4661
    %v5446 = vsub.f32 %v4006, %v4662
    %v5447 = vsub.f32 %v4357, %v4663
    %v5448 = vsub.f32 %v4359, %v4664
    %v5449 = vsub.f32 %v4008, %v4661
    %v5450 = vsub.f32 %v4010, %v4662
    %v5451 = vsub.f32 %v4361, %v4663
    %v5452 = vsub.f32 %v4363, %v4664
    %v5453 = vsub.f32 %v4014, %v4661
    %v5454 = vsub.f32 %v4016, %v4662
    %v5455 = vsub.f32 %v4367, %v4663
    %v5456 = vsub.f32 %v4369, %v4664
    %v5457 = vsub.f32 %v4018, %v4661
    %v5458 = vsub.f32 %v4020, %v4662
    %v5459 = vsub.f32 %v4371, %v4663
    %v5460 = vsub.f32 %v4373, %v4664
    %v5461 = vsub.f32 %v4024, %v4661
    %v5462 = vsub.f32 %v4026, %v4662
    %v5463 = vsub.f32 %v4377, %v4663
    %v5464 = vsub.f32 %v4379, %v4664
    %v5465 = vsub.f32 %v4028, %v4661
    %v5466 = vsub.f32 %v4030, %v4662
    %v5467 = vsub.f32 %v4381, %v4663
    %v5468 = vsub.f32 %v4383, %v4664
    %v5469 = vadd.f32 %v5209, 1e-05
    %v5470 = vadd.f32 %v5210, 1e-05
    %v5471 = vadd.f32 %v5211, 1e-05
    %v5472 = vadd.f32 %v5212, 1e-05
    %v5473 = vrsqrt.pop %v5469
    %v5474 = vrsqrt.pop %v5470
    %v5475 = vrsqrt.pop %v5471
    %v5476 = vrsqrt.pop %v5472
    %v5477 = vmul.f32 %v5213, %v5473
    %v5478 = vmul.f32 %v5214, %v5474
    %v5479 = vmul.f32 %v5215, %v5475
    %v5480 = vmul.f32 %v5216, %v5476
    %v5481 = vmul.f32 %v5217, %v5473
    %v5482 = vmul.f32 %v5218, %v5474
    %v5483 = vmul.f32 %v5219, %v5475
    %v5484 = vmul.f32 %v5220, %v5476
    %v5485 = vmul.f32 %v5221, %v5473
    %v5486 = vmul.f32 %v5222, %v5474
    %v5487 = vmul.f32 %v5223, %v5475
    %v5488 = vmul.f32 %v5224, %v5476
    %v5489 = vmul.f32 %v5225, %v5473
    %v5490 = vmul.f32 %v5226, %v5474
    %v5491 = vmul.f32 %v5227, %v5475
    %v5492 = vmul.f32 %v5228, %v5476
    %v5493 = vmul.f32 %v5229, %v5473
    %v5494 = vmul.f32 %v5230, %v5474
    %v5495 = vmul.f32 %v5231, %v5475
    %v5496 = vmul.f32 %v5232, %v5476
    %v5497 = vmul.f32 %v5233, %v5473
    %v5498 = vmul.f32 %v5234, %v5474
    %v5499 = vmul.f32 %v5235, %v5475
    %v5500 = vmul.f32 %v5236, %v5476
    %v5501 = vmul.f32 %v5237, %v5473
    %v5502 = vmul.f32 %v5238, %v5474
    %v5503 = vmul.f32 %v5239, %v5475
    %v5504 = vmul.f32 %v5240, %v5476
    %v5505 = vmul.f32 %v5241, %v5473
    %v5506 = vmul.f32 %v5242, %v5474
    %v5507 = vmul.f32 %v5243, %v5475
    %v5508 = vmul.f32 %v5244, %v5476
    %v5509 = vmul.f32 %v5245, %v5473
    %v5510 = vmul.f32 %v5246, %v5474
    %v5511 = vmul.f32 %v5247, %v5475
    %v5512 = vmul.f32 %v5248, %v5476
    %v5513 = vmul.f32 %v5249, %v5473
    %v5514 = vmul.f32 %v5250, %v5474
    %v5515 = vmul.f32 %v5251, %v5475
    %v5516 = vmul.f32 %v5252, %v5476
    %v5517 = vmul.f32 %v5253, %v5473
    %v5518 = vmul.f32 %v5254, %v5474
    %v5519 = vmul.f32 %v5255, %v5475
    %v5520 = vmul.f32 %v5256, %v5476
    %v5521 = vmul.f32 %v5257, %v5473
    %v5522 = vmul.f32 %v5258, %v5474
    %v5523 = vmul.f32 %v5259, %v5475
    %v5524 = vmul.f32 %v5260, %v5476
    %v5525 = vmul.f32 %v5261, %v5473
    %v5526 = vmul.f32 %v5262, %v5474
    %v5527 = vmul.f32 %v5263, %v5475
    %v5528 = vmul.f32 %v5264, %v5476
    %v5529 = vmul.f32 %v5265, %v5473
    %v5530 = vmul.f32 %v5266, %v5474
    %v5531 = vmul.f32 %v5267, %v5475
    %v5532 = vmul.f32 %v5268, %v5476
    %v5533 = vmul.f32 %v5269, %v5473
    %v5534 = vmul.f32 %v5270, %v5474
    %v5535 = vmul.f32 %v5271, %v5475
    %v5536 = vmul.f32 %v5272, %v5476
    %v5537 = vmul.f32 %v5273, %v5473
    %v5538 = vmul.f32 %v5274, %v5474
    %v5539 = vmul.f32 %v5275, %v5475
    %v5540 = vmul.f32 %v5276, %v5476
    %v5541 = vmul.f32 %v5277, %v5473
    %v5542 = vmul.f32 %v5278, %v5474
    %v5543 = vmul.f32 %v5279, %v5475
    %v5544 = vmul.f32 %v5280, %v5476
    %v5545 = vmul.f32 %v5281, %v5473
    %v5546 = vmul.f32 %v5282, %v5474
    %v5547 = vmul.f32 %v5283, %v5475
    %v5548 = vmul.f32 %v5284, %v5476
    %v5549 = vmul.f32 %v5285, %v5473
    %v5550 = vmul.f32 %v5286, %v5474
    %v5551 = vmul.f32 %v5287, %v5475
    %v5552 = vmul.f32 %v5288, %v5476
    %v5553 = vmul.f32 %v5289, %v5473
    %v5554 = vmul.f32 %v5290, %v5474
    %v5555 = vmul.f32 %v5291, %v5475
    %v5556 = vmul.f32 %v5292, %v5476
    %v5557 = vmul.f32 %v5293, %v5473
    %v5558 = vmul.f32 %v5294, %v5474
    %v5559 = vmul.f32 %v5295, %v5475
    %v5560 = vmul.f32 %v5296, %v5476
    %v5561 = vmul.f32 %v5297, %v5473
    %v5562 = vmul.f32 %v5298, %v5474
    %v5563 = vmul.f32 %v5299, %v5475
    %v5564 = vmul.f32 %v5300, %v5476
    %v5565 = vmul.f32 %v5301, %v5473
    %v5566 = vmul.f32 %v5302, %v5474
    %v5567 = vmul.f32 %v5303, %v5475
    %v5568 = vmul.f32 %v5304, %v5476
    %v5569 = vmul.f32 %v5305, %v5473
    %v5570 = vmul.f32 %v5306, %v5474
    %v5571 = vmul.f32 %v5307, %v5475
    %v5572 = vmul.f32 %v5308, %v5476
    %v5573 = vmul.f32 %v5309, %v5473
    %v5574 = vmul.f32 %v5310, %v5474
    %v5575 = vmul.f32 %v5311, %v5475
    %v5576 = vmul.f32 %v5312, %v5476
    %v5577 = vmul.f32 %v5313, %v5473
    %v5578 = vmul.f32 %v5314, %v5474
    %v5579 = vmul.f32 %v5315, %v5475
    %v5580 = vmul.f32 %v5316, %v5476
    %v5581 = vmul.f32 %v5317, %v5473
    %v5582 = vmul.f32 %v5318, %v5474
    %v5583 = vmul.f32 %v5319, %v5475
    %v5584 = vmul.f32 %v5320, %v5476
    %v5585 = vmul.f32 %v5321, %v5473
    %v5586 = vmul.f32 %v5322, %v5474
    %v5587 = vmul.f32 %v5323, %v5475
    %v5588 = vmul.f32 %v5324, %v5476
    %v5589 = vmul.f32 %v5325, %v5473
    %v5590 = vmul.f32 %v5326, %v5474
    %v5591 = vmul.f32 %v5327, %v5475
    %v5592 = vmul.f32 %v5328, %v5476
    %v5593 = vmul.f32 %v5329, %v5473
    %v5594 = vmul.f32 %v5330, %v5474
    %v5595 = vmul.f32 %v5331, %v5475
    %v5596 = vmul.f32 %v5332, %v5476
    %v5597 = vmul.f32 %v5333, %v5473
    %v5598 = vmul.f32 %v5334, %v5474
    %v5599 = vmul.f32 %v5335, %v5475
    %v5600 = vmul.f32 %v5336, %v5476
    %v5601 = vmul.f32 %v5337, %v5473
    %v5602 = vmul.f32 %v5338, %v5474
    %v5603 = vmul.f32 %v5339, %v5475
    %v5604 = vmul.f32 %v5340, %v5476
    %v5605 = vmul.f32 %v5341, %v5473
    %v5606 = vmul.f32 %v5342, %v5474
    %v5607 = vmul.f32 %v5343, %v5475
    %v5608 = vmul.f32 %v5344, %v5476
    %v5609 = vmul.f32 %v5345, %v5473
    %v5610 = vmul.f32 %v5346, %v5474
    %v5611 = vmul.f32 %v5347, %v5475
    %v5612 = vmul.f32 %v5348, %v5476
    %v5613 = vmul.f32 %v5349, %v5473
    %v5614 = vmul.f32 %v5350, %v5474
    %v5615 = vmul.f32 %v5351, %v5475
    %v5616 = vmul.f32 %v5352, %v5476
    %v5617 = vmul.f32 %v5353, %v5473
    %v5618 = vmul.f32 %v5354, %v5474
    %v5619 = vmul.f32 %v5355, %v5475
    %v5620 = vmul.f32 %v5356, %v5476
    %v5621 = vmul.f32 %v5357, %v5473
    %v5622 = vmul.f32 %v5358, %v5474
    %v5623 = vmul.f32 %v5359, %v5475
    %v5624 = vmul.f32 %v5360, %v5476
    %v5625 = vmul.f32 %v5361, %v5473
    %v5626 = vmul.f32 %v5362, %v5474
    %v5627 = vmul.f32 %v5363, %v5475
    %v5628 = vmul.f32 %v5364, %v5476
    %v5629 = vmul.f32 %v5365, %v5473
    %v5630 = vmul.f32 %v5366, %v5474
    %v5631 = vmul.f32 %v5367, %v5475
    %v5632 = vmul.f32 %v5368, %v5476
    %v5633 = vmul.f32 %v5369, %v5473
    %v5634 = vmul.f32 %v5370, %v5474
    %v5635 = vmul.f32 %v5371, %v5475
    %v5636 = vmul.f32 %v5372, %v5476
    %v5637 = vmul.f32 %v5373, %v5473
    %v5638 = vmul.f32 %v5374, %v5474
    %v5639 = vmul.f32 %v5375, %v5475
    %v5640 = vmul.f32 %v5376, %v5476
    %v5641 = vmul.f32 %v5377, %v5473
    %v5642 = vmul.f32 %v5378, %v5474
    %v5643 = vmul.f32 %v5379, %v5475
    %v5644 = vmul.f32 %v5380, %v5476
    %v5645 = vmul.f32 %v5381, %v5473
    %v5646 = vmul.f32 %v5382, %v5474
    %v5647 = vmul.f32 %v5383, %v5475
    %v5648 = vmul.f32 %v5384, %v5476
    %v5649 = vmul.f32 %v5385, %v5473
    %v5650 = vmul.f32 %v5386, %v5474
    %v5651 = vmul.f32 %v5387, %v5475
    %v5652 = vmul.f32 %v5388, %v5476
    %v5653 = vmul.f32 %v5389, %v5473
    %v5654 = vmul.f32 %v5390, %v5474
    %v5655 = vmul.f32 %v5391, %v5475
    %v5656 = vmul.f32 %v5392, %v5476
    %v5657 = vmul.f32 %v5393, %v5473
    %v5658 = vmul.f32 %v5394, %v5474
    %v5659 = vmul.f32 %v5395, %v5475
    %v5660 = vmul.f32 %v5396, %v5476
    %v5661 = vmul.f32 %v5397, %v5473
    %v5662 = vmul.f32 %v5398, %v5474
    %v5663 = vmul.f32 %v5399, %v5475
    %v5664 = vmul.f32 %v5400, %v5476
    %v5665 = vmul.f32 %v5401, %v5473
    %v5666 = vmul.f32 %v5402, %v5474
    %v5667 = vmul.f32 %v5403, %v5475
    %v5668 = vmul.f32 %v5404, %v5476
    %v5669 = vmul.f32 %v5405, %v5473
    %v5670 = vmul.f32 %v5406, %v5474
    %v5671 = vmul.f32 %v5407, %v5475
    %v5672 = vmul.f32 %v5408, %v5476
    %v5673 = vmul.f32 %v5409, %v5473
    %v5674 = vmul.f32 %v5410, %v5474
    %v5675 = vmul.f32 %v5411, %v5475
    %v5676 = vmul.f32 %v5412, %v5476
    %v5677 = vmul.f32 %v5413, %v5473
    %v5678 = vmul.f32 %v5414, %v5474
    %v5679 = vmul.f32 %v5415, %v5475
    %v5680 = vmul.f32 %v5416, %v5476
    %v5681 = vmul.f32 %v5417, %v5473
    %v5682 = vmul.f32 %v5418, %v5474
    %v5683 = vmul.f32 %v5419, %v5475
    %v5684 = vmul.f32 %v5420, %v5476
    %v5685 = vmul.f32 %v5421, %v5473
    %v5686 = vmul.f32 %v5422, %v5474
    %v5687 = vmul.f32 %v5423, %v5475
    %v5688 = vmul.f32 %v5424, %v5476
    %v5689 = vmul.f32 %v5425, %v5473
    %v5690 = vmul.f32 %v5426, %v5474
    %v5691 = vmul.f32 %v5427, %v5475
    %v5692 = vmul.f32 %v5428, %v5476
    %v5693 = vmul.f32 %v5429, %v5473
    %v5694 = vmul.f32 %v5430, %v5474
    %v5695 = vmul.f32 %v5431, %v5475
    %v5696 = vmul.f32 %v5432, %v5476
    %v5697 = vmul.f32 %v5433, %v5473
    %v5698 = vmul.f32 %v5434, %v5474
    %v5699 = vmul.f32 %v5435, %v5475
    %v5700 = vmul.f32 %v5436, %v5476
    %v5701 = vmul.f32 %v5437, %v5473
    %v5702 = vmul.f32 %v5438, %v5474
    %v5703 = vmul.f32 %v5439, %v5475
    %v5704 = vmul.f32 %v5440, %v5476
    %v5705 = vmul.f32 %v5441, %v5473
    %v5706 = vmul.f32 %v5442, %v5474
    %v5707 = vmul.f32 %v5443, %v5475
    %v5708 = vmul.f32 %v5444, %v5476
    %v5709 = vmul.f32 %v5445, %v5473
    %v5710 = vmul.f32 %v5446, %v5474
    %v5711 = vmul.f32 %v5447, %v5475
    %v5712 = vmul.f32 %v5448, %v5476
    %v5713 = vmul.f32 %v5449, %v5473
    %v5714 = vmul.f32 %v5450, %v5474
    %v5715 = vmul.f32 %v5451, %v5475
    %v5716 = vmul.f32 %v5452, %v5476
    %v5717 = vmul.f32 %v5453, %v5473
    %v5718 = vmul.f32 %v5454, %v5474
    %v5719 = vmul.f32 %v5455, %v5475
    %v5720 = vmul.f32 %v5456, %v5476
    %v5721 = vmul.f32 %v5457, %v5473
    %v5722 = vmul.f32 %v5458, %v5474
    %v5723 = vmul.f32 %v5459, %v5475
    %v5724 = vmul.f32 %v5460, %v5476
    %v5725 = vmul.f32 %v5461, %v5473
    %v5726 = vmul.f32 %v5462, %v5474
    %v5727 = vmul.f32 %v5463, %v5475
    %v5728 = vmul.f32 %v5464, %v5476
    %v5729 = vmul.f32 %v5465, %v5473
    %v5730 = vmul.f32 %v5466, %v5474
    %v5731 = vmul.f32 %v5467, %v5475
    %v5732 = vmul.f32 %v5468, %v5476
    %v5733 = vld [vmem:[%s11] sm:$0xf]
    %v5735 = vlaneseq
    %v5736 = vshrl.u32 %v5735, 7
    %v5737 = vsub.s32 0, %v5736
    %v5738 = vrot.slane %v5733, %v5737
    %v5739 = vlaneseq
    %v5740 = vshrl.u32 %v5739, 7
    %v5741 = vsub.s32 1, %v5740
    %v5742 = vrot.slane %v5733, %v5741
    %v5743 = vlaneseq
    %v5744 = vshrl.u32 %v5743, 7
    %v5745 = vsub.s32 2, %v5744
    %v5746 = vrot.slane %v5733, %v5745
    %v5747 = vlaneseq
    %v5748 = vshrl.u32 %v5747, 7
    %v5749 = vsub.s32 3, %v5748
    %v5750 = vrot.slane %v5733, %v5749
    %v5755 = vmul.f32 %v5477, %v5738
    %v5756 = vmul.f32 %v5478, %v5742
    %v5757 = vmul.f32 %v5479, %v5746
    %v5758 = vmul.f32 %v5480, %v5750
    %v5759 = vmul.f32 %v5481, %v5738
    %v5760 = vmul.f32 %v5482, %v5742
    %v5761 = vmul.f32 %v5483, %v5746
    %v5762 = vmul.f32 %v5484, %v5750
    %v5763 = vmul.f32 %v5485, %v5738
    %v5764 = vmul.f32 %v5486, %v5742
    %v5765 = vmul.f32 %v5487, %v5746
    %v5766 = vmul.f32 %v5488, %v5750
    %v5767 = vmul.f32 %v5489, %v5738
    %v5768 = vmul.f32 %v5490, %v5742
    %v5769 = vmul.f32 %v5491, %v5746
    %v5770 = vmul.f32 %v5492, %v5750
    %v5771 = vmul.f32 %v5493, %v5738
    %v5772 = vmul.f32 %v5494, %v5742
    %v5773 = vmul.f32 %v5495, %v5746
    %v5774 = vmul.f32 %v5496, %v5750
    %v5775 = vmul.f32 %v5497, %v5738
    %v5776 = vmul.f32 %v5498, %v5742
    %v5777 = vmul.f32 %v5499, %v5746
    %v5778 = vmul.f32 %v5500, %v5750
    %v5779 = vmul.f32 %v5501, %v5738
    %v5780 = vmul.f32 %v5502, %v5742
    %v5781 = vmul.f32 %v5503, %v5746
    %v5782 = vmul.f32 %v5504, %v5750
    %v5783 = vmul.f32 %v5505, %v5738
    %v5784 = vmul.f32 %v5506, %v5742
    %v5785 = vmul.f32 %v5507, %v5746
    %v5786 = vmul.f32 %v5508, %v5750
    %v5787 = vmul.f32 %v5509, %v5738
    %v5788 = vmul.f32 %v5510, %v5742
    %v5789 = vmul.f32 %v5511, %v5746
    %v5790 = vmul.f32 %v5512, %v5750
    %v5791 = vmul.f32 %v5513, %v5738
    %v5792 = vmul.f32 %v5514, %v5742
    %v5793 = vmul.f32 %v5515, %v5746
    %v5794 = vmul.f32 %v5516, %v5750
    %v5795 = vmul.f32 %v5517, %v5738
    %v5796 = vmul.f32 %v5518, %v5742
    %v5797 = vmul.f32 %v5519, %v5746
    %v5798 = vmul.f32 %v5520, %v5750
    %v5799 = vmul.f32 %v5521, %v5738
    %v5800 = vmul.f32 %v5522, %v5742
    %v5801 = vmul.f32 %v5523, %v5746
    %v5802 = vmul.f32 %v5524, %v5750
    %v5803 = vmul.f32 %v5525, %v5738
    %v5804 = vmul.f32 %v5526, %v5742
    %v5805 = vmul.f32 %v5527, %v5746
    %v5806 = vmul.f32 %v5528, %v5750
    %v5807 = vmul.f32 %v5529, %v5738
    %v5808 = vmul.f32 %v5530, %v5742
    %v5809 = vmul.f32 %v5531, %v5746
    %v5810 = vmul.f32 %v5532, %v5750
    %v5811 = vmul.f32 %v5533, %v5738
    %v5812 = vmul.f32 %v5534, %v5742
    %v5813 = vmul.f32 %v5535, %v5746
    %v5814 = vmul.f32 %v5536, %v5750
    %v5815 = vmul.f32 %v5537, %v5738
    %v5816 = vmul.f32 %v5538, %v5742
    %v5817 = vmul.f32 %v5539, %v5746
    %v5818 = vmul.f32 %v5540, %v5750
    %v5819 = vmul.f32 %v5541, %v5738
    %v5820 = vmul.f32 %v5542, %v5742
    %v5821 = vmul.f32 %v5543, %v5746
    %v5822 = vmul.f32 %v5544, %v5750
    %v5823 = vmul.f32 %v5545, %v5738
    %v5824 = vmul.f32 %v5546, %v5742
    %v5825 = vmul.f32 %v5547, %v5746
    %v5826 = vmul.f32 %v5548, %v5750
    %v5827 = vmul.f32 %v5549, %v5738
    %v5828 = vmul.f32 %v5550, %v5742
    %v5829 = vmul.f32 %v5551, %v5746
    %v5830 = vmul.f32 %v5552, %v5750
    %v5831 = vmul.f32 %v5553, %v5738
    %v5832 = vmul.f32 %v5554, %v5742
    %v5833 = vmul.f32 %v5555, %v5746
    %v5834 = vmul.f32 %v5556, %v5750
    %v5835 = vmul.f32 %v5557, %v5738
    %v5836 = vmul.f32 %v5558, %v5742
    %v5837 = vmul.f32 %v5559, %v5746
    %v5838 = vmul.f32 %v5560, %v5750
    %v5839 = vmul.f32 %v5561, %v5738
    %v5840 = vmul.f32 %v5562, %v5742
    %v5841 = vmul.f32 %v5563, %v5746
    %v5842 = vmul.f32 %v5564, %v5750
    %v5843 = vmul.f32 %v5565, %v5738
    %v5844 = vmul.f32 %v5566, %v5742
    %v5845 = vmul.f32 %v5567, %v5746
    %v5846 = vmul.f32 %v5568, %v5750
    %v5847 = vmul.f32 %v5569, %v5738
    %v5848 = vmul.f32 %v5570, %v5742
    %v5849 = vmul.f32 %v5571, %v5746
    %v5850 = vmul.f32 %v5572, %v5750
    %v5851 = vmul.f32 %v5573, %v5738
    %v5852 = vmul.f32 %v5574, %v5742
    %v5853 = vmul.f32 %v5575, %v5746
    %v5854 = vmul.f32 %v5576, %v5750
    %v5855 = vmul.f32 %v5577, %v5738
    %v5856 = vmul.f32 %v5578, %v5742
    %v5857 = vmul.f32 %v5579, %v5746
    %v5858 = vmul.f32 %v5580, %v5750
    %v5859 = vmul.f32 %v5581, %v5738
    %v5860 = vmul.f32 %v5582, %v5742
    %v5861 = vmul.f32 %v5583, %v5746
    %v5862 = vmul.f32 %v5584, %v5750
    %v5863 = vmul.f32 %v5585, %v5738
    %v5864 = vmul.f32 %v5586, %v5742
    %v5865 = vmul.f32 %v5587, %v5746
    %v5866 = vmul.f32 %v5588, %v5750
    %v5867 = vmul.f32 %v5589, %v5738
    %v5868 = vmul.f32 %v5590, %v5742
    %v5869 = vmul.f32 %v5591, %v5746
    %v5870 = vmul.f32 %v5592, %v5750
    %v5871 = vmul.f32 %v5593, %v5738
    %v5872 = vmul.f32 %v5594, %v5742
    %v5873 = vmul.f32 %v5595, %v5746
    %v5874 = vmul.f32 %v5596, %v5750
    %v5875 = vmul.f32 %v5597, %v5738
    %v5876 = vmul.f32 %v5598, %v5742
    %v5877 = vmul.f32 %v5599, %v5746
    %v5878 = vmul.f32 %v5600, %v5750
    %v5879 = vmul.f32 %v5601, %v5738
    %v5880 = vmul.f32 %v5602, %v5742
    %v5881 = vmul.f32 %v5603, %v5746
    %v5882 = vmul.f32 %v5604, %v5750
    %v5883 = vmul.f32 %v5605, %v5738
    %v5884 = vmul.f32 %v5606, %v5742
    %v5885 = vmul.f32 %v5607, %v5746
    %v5886 = vmul.f32 %v5608, %v5750
    %v5887 = vmul.f32 %v5609, %v5738
    %v5888 = vmul.f32 %v5610, %v5742
    %v5889 = vmul.f32 %v5611, %v5746
    %v5890 = vmul.f32 %v5612, %v5750
    %v5891 = vmul.f32 %v5613, %v5738
    %v5892 = vmul.f32 %v5614, %v5742
    %v5893 = vmul.f32 %v5615, %v5746
    %v5894 = vmul.f32 %v5616, %v5750
    %v5895 = vmul.f32 %v5617, %v5738
    %v5896 = vmul.f32 %v5618, %v5742
    %v5897 = vmul.f32 %v5619, %v5746
    %v5898 = vmul.f32 %v5620, %v5750
    %v5899 = vmul.f32 %v5621, %v5738
    %v5900 = vmul.f32 %v5622, %v5742
    %v5901 = vmul.f32 %v5623, %v5746
    %v5902 = vmul.f32 %v5624, %v5750
    %v5903 = vmul.f32 %v5625, %v5738
    %v5904 = vmul.f32 %v5626, %v5742
    %v5905 = vmul.f32 %v5627, %v5746
    %v5906 = vmul.f32 %v5628, %v5750
    %v5907 = vmul.f32 %v5629, %v5738
    %v5908 = vmul.f32 %v5630, %v5742
    %v5909 = vmul.f32 %v5631, %v5746
    %v5910 = vmul.f32 %v5632, %v5750
    %v5911 = vmul.f32 %v5633, %v5738
    %v5912 = vmul.f32 %v5634, %v5742
    %v5913 = vmul.f32 %v5635, %v5746
    %v5914 = vmul.f32 %v5636, %v5750
    %v5915 = vmul.f32 %v5637, %v5738
    %v5916 = vmul.f32 %v5638, %v5742
    %v5917 = vmul.f32 %v5639, %v5746
    %v5918 = vmul.f32 %v5640, %v5750
    %v5919 = vmul.f32 %v5641, %v5738
    %v5920 = vmul.f32 %v5642, %v5742
    %v5921 = vmul.f32 %v5643, %v5746
    %v5922 = vmul.f32 %v5644, %v5750
    %v5923 = vmul.f32 %v5645, %v5738
    %v5924 = vmul.f32 %v5646, %v5742
    %v5925 = vmul.f32 %v5647, %v5746
    %v5926 = vmul.f32 %v5648, %v5750
    %v5927 = vmul.f32 %v5649, %v5738
    %v5928 = vmul.f32 %v5650, %v5742
    %v5929 = vmul.f32 %v5651, %v5746
    %v5930 = vmul.f32 %v5652, %v5750
    %v5931 = vmul.f32 %v5653, %v5738
    %v5932 = vmul.f32 %v5654, %v5742
    %v5933 = vmul.f32 %v5655, %v5746
    %v5934 = vmul.f32 %v5656, %v5750
    %v5935 = vmul.f32 %v5657, %v5738
    %v5936 = vmul.f32 %v5658, %v5742
    %v5937 = vmul.f32 %v5659, %v5746
    %v5938 = vmul.f32 %v5660, %v5750
    %v5939 = vmul.f32 %v5661, %v5738
    %v5940 = vmul.f32 %v5662, %v5742
    %v5941 = vmul.f32 %v5663, %v5746
    %v5942 = vmul.f32 %v5664, %v5750
    %v5943 = vmul.f32 %v5665, %v5738
    %v5944 = vmul.f32 %v5666, %v5742
    %v5945 = vmul.f32 %v5667, %v5746
    %v5946 = vmul.f32 %v5668, %v5750
    %v5947 = vmul.f32 %v5669, %v5738
    %v5948 = vmul.f32 %v5670, %v5742
    %v5949 = vmul.f32 %v5671, %v5746
    %v5950 = vmul.f32 %v5672, %v5750
    %v5951 = vmul.f32 %v5673, %v5738
    %v5952 = vmul.f32 %v5674, %v5742
    %v5953 = vmul.f32 %v5675, %v5746
    %v5954 = vmul.f32 %v5676, %v5750
    %v5955 = vmul.f32 %v5677, %v5738
    %v5956 = vmul.f32 %v5678, %v5742
    %v5957 = vmul.f32 %v5679, %v5746
    %v5958 = vmul.f32 %v5680, %v5750
    %v5959 = vmul.f32 %v5681, %v5738
    %v5960 = vmul.f32 %v5682, %v5742
    %v5961 = vmul.f32 %v5683, %v5746
    %v5962 = vmul.f32 %v5684, %v5750
    %v5963 = vmul.f32 %v5685, %v5738
    %v5964 = vmul.f32 %v5686, %v5742
    %v5965 = vmul.f32 %v5687, %v5746
    %v5966 = vmul.f32 %v5688, %v5750
    %v5967 = vmul.f32 %v5689, %v5738
    %v5968 = vmul.f32 %v5690, %v5742
    %v5969 = vmul.f32 %v5691, %v5746
    %v5970 = vmul.f32 %v5692, %v5750
    %v5971 = vmul.f32 %v5693, %v5738
    %v5972 = vmul.f32 %v5694, %v5742
    %v5973 = vmul.f32 %v5695, %v5746
    %v5974 = vmul.f32 %v5696, %v5750
    %v5975 = vmul.f32 %v5697, %v5738
    %v5976 = vmul.f32 %v5698, %v5742
    %v5977 = vmul.f32 %v5699, %v5746
    %v5978 = vmul.f32 %v5700, %v5750
    %v5979 = vmul.f32 %v5701, %v5738
    %v5980 = vmul.f32 %v5702, %v5742
    %v5981 = vmul.f32 %v5703, %v5746
    %v5982 = vmul.f32 %v5704, %v5750
    %v5983 = vmul.f32 %v5705, %v5738
    %v5984 = vmul.f32 %v5706, %v5742
    %v5985 = vmul.f32 %v5707, %v5746
    %v5986 = vmul.f32 %v5708, %v5750
    %v5987 = vmul.f32 %v5709, %v5738
    %v5988 = vmul.f32 %v5710, %v5742
    %v5989 = vmul.f32 %v5711, %v5746
    %v5990 = vmul.f32 %v5712, %v5750
    %v5991 = vmul.f32 %v5713, %v5738
    %v5992 = vmul.f32 %v5714, %v5742
    %v5993 = vmul.f32 %v5715, %v5746
    %v5994 = vmul.f32 %v5716, %v5750
    %v5995 = vmul.f32 %v5717, %v5738
    %v5996 = vmul.f32 %v5718, %v5742
    %v5997 = vmul.f32 %v5719, %v5746
    %v5998 = vmul.f32 %v5720, %v5750
    %v5999 = vmul.f32 %v5721, %v5738
    %v6000 = vmul.f32 %v5722, %v5742
    %v6001 = vmul.f32 %v5723, %v5746
    %v6002 = vmul.f32 %v5724, %v5750
    %v6003 = vmul.f32 %v5725, %v5738
    %v6004 = vmul.f32 %v5726, %v5742
    %v6005 = vmul.f32 %v5727, %v5746
    %v6006 = vmul.f32 %v5728, %v5750
    %v6007 = vmul.f32 %v5729, %v5738
    %v6008 = vmul.f32 %v5730, %v5742
    %v6009 = vmul.f32 %v5731, %v5746
    %v6010 = vmul.f32 %v5732, %v5750
    %v6011 = vld [vmem:[%s12] sm:$0xf]
    %v6013 = vlaneseq
    %v6014 = vshrl.u32 %v6013, 7
    %v6015 = vsub.s32 0, %v6014
    %v6016 = vrot.slane %v6011, %v6015
    %v6017 = vlaneseq
    %v6018 = vshrl.u32 %v6017, 7
    %v6019 = vsub.s32 1, %v6018
    %v6020 = vrot.slane %v6011, %v6019
    %v6021 = vlaneseq
    %v6022 = vshrl.u32 %v6021, 7
    %v6023 = vsub.s32 2, %v6022
    %v6024 = vrot.slane %v6011, %v6023
    %v6025 = vlaneseq
    %v6026 = vshrl.u32 %v6025, 7
    %v6027 = vsub.s32 3, %v6026
    %v6028 = vrot.slane %v6011, %v6027
    %v6033 = vadd.f32 %v5755, %v6016
    %v6034 = vadd.f32 %v5756, %v6020
    %v6035 = vadd.f32 %v5757, %v6024
    %v6036 = vadd.f32 %v5758, %v6028
    %v6037 = vadd.f32 %v5759, %v6016
    %v6038 = vadd.f32 %v5760, %v6020
    %v6039 = vadd.f32 %v5761, %v6024
    %v6040 = vadd.f32 %v5762, %v6028
    %v6041 = vadd.f32 %v5763, %v6016
    %v6042 = vadd.f32 %v5764, %v6020
    %v6043 = vadd.f32 %v5765, %v6024
    %v6044 = vadd.f32 %v5766, %v6028
    %v6045 = vadd.f32 %v5767, %v6016
    %v6046 = vadd.f32 %v5768, %v6020
    %v6047 = vadd.f32 %v5769, %v6024
    %v6048 = vadd.f32 %v5770, %v6028
    %v6049 = vadd.f32 %v5771, %v6016
    %v6050 = vadd.f32 %v5772, %v6020
    %v6051 = vadd.f32 %v5773, %v6024
    %v6052 = vadd.f32 %v5774, %v6028
    %v6053 = vadd.f32 %v5775, %v6016
    %v6054 = vadd.f32 %v5776, %v6020
    %v6055 = vadd.f32 %v5777, %v6024
    %v6056 = vadd.f32 %v5778, %v6028
    %v6057 = vadd.f32 %v5779, %v6016
    %v6058 = vadd.f32 %v5780, %v6020
    %v6059 = vadd.f32 %v5781, %v6024
    %v6060 = vadd.f32 %v5782, %v6028
    %v6061 = vadd.f32 %v5783, %v6016
    %v6062 = vadd.f32 %v5784, %v6020
    %v6063 = vadd.f32 %v5785, %v6024
    %v6064 = vadd.f32 %v5786, %v6028
    %v6065 = vadd.f32 %v5787, %v6016
    %v6066 = vadd.f32 %v5788, %v6020
    %v6067 = vadd.f32 %v5789, %v6024
    %v6068 = vadd.f32 %v5790, %v6028
    %v6069 = vadd.f32 %v5791, %v6016
    %v6070 = vadd.f32 %v5792, %v6020
    %v6071 = vadd.f32 %v5793, %v6024
    %v6072 = vadd.f32 %v5794, %v6028
    %v6073 = vadd.f32 %v5795, %v6016
    %v6074 = vadd.f32 %v5796, %v6020
    %v6075 = vadd.f32 %v5797, %v6024
    %v6076 = vadd.f32 %v5798, %v6028
    %v6077 = vadd.f32 %v5799, %v6016
    %v6078 = vadd.f32 %v5800, %v6020
    %v6079 = vadd.f32 %v5801, %v6024
    %v6080 = vadd.f32 %v5802, %v6028
    %v6081 = vadd.f32 %v5803, %v6016
    %v6082 = vadd.f32 %v5804, %v6020
    %v6083 = vadd.f32 %v5805, %v6024
    %v6084 = vadd.f32 %v5806, %v6028
    %v6085 = vadd.f32 %v5807, %v6016
    %v6086 = vadd.f32 %v5808, %v6020
    %v6087 = vadd.f32 %v5809, %v6024
    %v6088 = vadd.f32 %v5810, %v6028
    %v6089 = vadd.f32 %v5811, %v6016
    %v6090 = vadd.f32 %v5812, %v6020
    %v6091 = vadd.f32 %v5813, %v6024
    %v6092 = vadd.f32 %v5814, %v6028
    %v6093 = vadd.f32 %v5815, %v6016
    %v6094 = vadd.f32 %v5816, %v6020
    %v6095 = vadd.f32 %v5817, %v6024
    %v6096 = vadd.f32 %v5818, %v6028
    %v6097 = vadd.f32 %v5819, %v6016
    %v6098 = vadd.f32 %v5820, %v6020
    %v6099 = vadd.f32 %v5821, %v6024
    %v6100 = vadd.f32 %v5822, %v6028
    %v6101 = vadd.f32 %v5823, %v6016
    %v6102 = vadd.f32 %v5824, %v6020
    %v6103 = vadd.f32 %v5825, %v6024
    %v6104 = vadd.f32 %v5826, %v6028
    %v6105 = vadd.f32 %v5827, %v6016
    %v6106 = vadd.f32 %v5828, %v6020
    %v6107 = vadd.f32 %v5829, %v6024
    %v6108 = vadd.f32 %v5830, %v6028
    %v6109 = vadd.f32 %v5831, %v6016
    %v6110 = vadd.f32 %v5832, %v6020
    %v6111 = vadd.f32 %v5833, %v6024
    %v6112 = vadd.f32 %v5834, %v6028
    %v6113 = vadd.f32 %v5835, %v6016
    %v6114 = vadd.f32 %v5836, %v6020
    %v6115 = vadd.f32 %v5837, %v6024
    %v6116 = vadd.f32 %v5838, %v6028
    %v6117 = vadd.f32 %v5839, %v6016
    %v6118 = vadd.f32 %v5840, %v6020
    %v6119 = vadd.f32 %v5841, %v6024
    %v6120 = vadd.f32 %v5842, %v6028
    %v6121 = vadd.f32 %v5843, %v6016
    %v6122 = vadd.f32 %v5844, %v6020
    %v6123 = vadd.f32 %v5845, %v6024
    %v6124 = vadd.f32 %v5846, %v6028
    %v6125 = vadd.f32 %v5847, %v6016
    %v6126 = vadd.f32 %v5848, %v6020
    %v6127 = vadd.f32 %v5849, %v6024
    %v6128 = vadd.f32 %v5850, %v6028
    %v6129 = vadd.f32 %v5851, %v6016
    %v6130 = vadd.f32 %v5852, %v6020
    %v6131 = vadd.f32 %v5853, %v6024
    %v6132 = vadd.f32 %v5854, %v6028
    %v6133 = vadd.f32 %v5855, %v6016
    %v6134 = vadd.f32 %v5856, %v6020
    %v6135 = vadd.f32 %v5857, %v6024
    %v6136 = vadd.f32 %v5858, %v6028
    %v6137 = vadd.f32 %v5859, %v6016
    %v6138 = vadd.f32 %v5860, %v6020
    %v6139 = vadd.f32 %v5861, %v6024
    %v6140 = vadd.f32 %v5862, %v6028
    %v6141 = vadd.f32 %v5863, %v6016
    %v6142 = vadd.f32 %v5864, %v6020
    %v6143 = vadd.f32 %v5865, %v6024
    %v6144 = vadd.f32 %v5866, %v6028
    %v6145 = vadd.f32 %v5867, %v6016
    %v6146 = vadd.f32 %v5868, %v6020
    %v6147 = vadd.f32 %v5869, %v6024
    %v6148 = vadd.f32 %v5870, %v6028
    %v6149 = vadd.f32 %v5871, %v6016
    %v6150 = vadd.f32 %v5872, %v6020
    %v6151 = vadd.f32 %v5873, %v6024
    %v6152 = vadd.f32 %v5874, %v6028
    %v6153 = vadd.f32 %v5875, %v6016
    %v6154 = vadd.f32 %v5876, %v6020
    %v6155 = vadd.f32 %v5877, %v6024
    %v6156 = vadd.f32 %v5878, %v6028
    %v6157 = vadd.f32 %v5879, %v6016
    %v6158 = vadd.f32 %v5880, %v6020
    %v6159 = vadd.f32 %v5881, %v6024
    %v6160 = vadd.f32 %v5882, %v6028
    %v6161 = vadd.f32 %v5883, %v6016
    %v6162 = vadd.f32 %v5884, %v6020
    %v6163 = vadd.f32 %v5885, %v6024
    %v6164 = vadd.f32 %v5886, %v6028
    %v6165 = vadd.f32 %v5887, %v6016
    %v6166 = vadd.f32 %v5888, %v6020
    %v6167 = vadd.f32 %v5889, %v6024
    %v6168 = vadd.f32 %v5890, %v6028
    %v6169 = vadd.f32 %v5891, %v6016
    %v6170 = vadd.f32 %v5892, %v6020
    %v6171 = vadd.f32 %v5893, %v6024
    %v6172 = vadd.f32 %v5894, %v6028
    %v6173 = vadd.f32 %v5895, %v6016
    %v6174 = vadd.f32 %v5896, %v6020
    %v6175 = vadd.f32 %v5897, %v6024
    %v6176 = vadd.f32 %v5898, %v6028
    %v6177 = vadd.f32 %v5899, %v6016
    %v6178 = vadd.f32 %v5900, %v6020
    %v6179 = vadd.f32 %v5901, %v6024
    %v6180 = vadd.f32 %v5902, %v6028
    %v6181 = vadd.f32 %v5903, %v6016
    %v6182 = vadd.f32 %v5904, %v6020
    %v6183 = vadd.f32 %v5905, %v6024
    %v6184 = vadd.f32 %v5906, %v6028
    %v6185 = vadd.f32 %v5907, %v6016
    %v6186 = vadd.f32 %v5908, %v6020
    %v6187 = vadd.f32 %v5909, %v6024
    %v6188 = vadd.f32 %v5910, %v6028
    %v6189 = vadd.f32 %v5911, %v6016
    %v6190 = vadd.f32 %v5912, %v6020
    %v6191 = vadd.f32 %v5913, %v6024
    %v6192 = vadd.f32 %v5914, %v6028
    %v6193 = vadd.f32 %v5915, %v6016
    %v6194 = vadd.f32 %v5916, %v6020
    %v6195 = vadd.f32 %v5917, %v6024
    %v6196 = vadd.f32 %v5918, %v6028
    %v6197 = vadd.f32 %v5919, %v6016
    %v6198 = vadd.f32 %v5920, %v6020
    %v6199 = vadd.f32 %v5921, %v6024
    %v6200 = vadd.f32 %v5922, %v6028
    %v6201 = vadd.f32 %v5923, %v6016
    %v6202 = vadd.f32 %v5924, %v6020
    %v6203 = vadd.f32 %v5925, %v6024
    %v6204 = vadd.f32 %v5926, %v6028
    %v6205 = vadd.f32 %v5927, %v6016
    %v6206 = vadd.f32 %v5928, %v6020
    %v6207 = vadd.f32 %v5929, %v6024
    %v6208 = vadd.f32 %v5930, %v6028
    %v6209 = vadd.f32 %v5931, %v6016
    %v6210 = vadd.f32 %v5932, %v6020
    %v6211 = vadd.f32 %v5933, %v6024
    %v6212 = vadd.f32 %v5934, %v6028
    %v6213 = vadd.f32 %v5935, %v6016
    %v6214 = vadd.f32 %v5936, %v6020
    %v6215 = vadd.f32 %v5937, %v6024
    %v6216 = vadd.f32 %v5938, %v6028
    %v6217 = vadd.f32 %v5939, %v6016
    %v6218 = vadd.f32 %v5940, %v6020
    %v6219 = vadd.f32 %v5941, %v6024
    %v6220 = vadd.f32 %v5942, %v6028
    %v6221 = vadd.f32 %v5943, %v6016
    %v6222 = vadd.f32 %v5944, %v6020
    %v6223 = vadd.f32 %v5945, %v6024
    %v6224 = vadd.f32 %v5946, %v6028
    %v6225 = vadd.f32 %v5947, %v6016
    %v6226 = vadd.f32 %v5948, %v6020
    %v6227 = vadd.f32 %v5949, %v6024
    %v6228 = vadd.f32 %v5950, %v6028
    %v6229 = vadd.f32 %v5951, %v6016
    %v6230 = vadd.f32 %v5952, %v6020
    %v6231 = vadd.f32 %v5953, %v6024
    %v6232 = vadd.f32 %v5954, %v6028
    %v6233 = vadd.f32 %v5955, %v6016
    %v6234 = vadd.f32 %v5956, %v6020
    %v6235 = vadd.f32 %v5957, %v6024
    %v6236 = vadd.f32 %v5958, %v6028
    %v6237 = vadd.f32 %v5959, %v6016
    %v6238 = vadd.f32 %v5960, %v6020
    %v6239 = vadd.f32 %v5961, %v6024
    %v6240 = vadd.f32 %v5962, %v6028
    %v6241 = vadd.f32 %v5963, %v6016
    %v6242 = vadd.f32 %v5964, %v6020
    %v6243 = vadd.f32 %v5965, %v6024
    %v6244 = vadd.f32 %v5966, %v6028
    %v6245 = vadd.f32 %v5967, %v6016
    %v6246 = vadd.f32 %v5968, %v6020
    %v6247 = vadd.f32 %v5969, %v6024
    %v6248 = vadd.f32 %v5970, %v6028
    %v6249 = vadd.f32 %v5971, %v6016
    %v6250 = vadd.f32 %v5972, %v6020
    %v6251 = vadd.f32 %v5973, %v6024
    %v6252 = vadd.f32 %v5974, %v6028
    %v6253 = vadd.f32 %v5975, %v6016
    %v6254 = vadd.f32 %v5976, %v6020
    %v6255 = vadd.f32 %v5977, %v6024
    %v6256 = vadd.f32 %v5978, %v6028
    %v6257 = vadd.f32 %v5979, %v6016
    %v6258 = vadd.f32 %v5980, %v6020
    %v6259 = vadd.f32 %v5981, %v6024
    %v6260 = vadd.f32 %v5982, %v6028
    %v6261 = vadd.f32 %v5983, %v6016
    %v6262 = vadd.f32 %v5984, %v6020
    %v6263 = vadd.f32 %v5985, %v6024
    %v6264 = vadd.f32 %v5986, %v6028
    %v6265 = vadd.f32 %v5987, %v6016
    %v6266 = vadd.f32 %v5988, %v6020
    %v6267 = vadd.f32 %v5989, %v6024
    %v6268 = vadd.f32 %v5990, %v6028
    %v6269 = vadd.f32 %v5991, %v6016
    %v6270 = vadd.f32 %v5992, %v6020
    %v6271 = vadd.f32 %v5993, %v6024
    %v6272 = vadd.f32 %v5994, %v6028
    %v6273 = vadd.f32 %v5995, %v6016
    %v6274 = vadd.f32 %v5996, %v6020
    %v6275 = vadd.f32 %v5997, %v6024
    %v6276 = vadd.f32 %v5998, %v6028
    %v6277 = vadd.f32 %v5999, %v6016
    %v6278 = vadd.f32 %v6000, %v6020
    %v6279 = vadd.f32 %v6001, %v6024
    %v6280 = vadd.f32 %v6002, %v6028
    %v6281 = vadd.f32 %v6003, %v6016
    %v6282 = vadd.f32 %v6004, %v6020
    %v6283 = vadd.f32 %v6005, %v6024
    %v6284 = vadd.f32 %v6006, %v6028
    %v6285 = vadd.f32 %v6007, %v6016
    %v6286 = vadd.f32 %v6008, %v6020
    %v6287 = vadd.f32 %v6009, %v6024
    %v6288 = vadd.f32 %v6010, %v6028
    %vm6289 = vcmp.ge.f32.partialorder %v6033, 0.0
    %vm6290 = vcmp.ge.f32.partialorder %v6034, 0.0
    %vm6291 = vcmp.ge.f32.partialorder %v6035, 0.0
    %vm6292 = vcmp.ge.f32.partialorder %v6036, 0.0
    %vm6293 = vcmp.ge.f32.partialorder %v6037, 0.0
    %vm6294 = vcmp.ge.f32.partialorder %v6038, 0.0
    %vm6295 = vcmp.ge.f32.partialorder %v6039, 0.0
    %vm6296 = vcmp.ge.f32.partialorder %v6040, 0.0
    %vm6297 = vcmp.ge.f32.partialorder %v6041, 0.0
    %vm6298 = vcmp.ge.f32.partialorder %v6042, 0.0
    %vm6299 = vcmp.ge.f32.partialorder %v6043, 0.0
    %vm6300 = vcmp.ge.f32.partialorder %v6044, 0.0
    %vm6301 = vcmp.ge.f32.partialorder %v6045, 0.0
    %vm6302 = vcmp.ge.f32.partialorder %v6046, 0.0
    %vm6303 = vcmp.ge.f32.partialorder %v6047, 0.0
    %vm6304 = vcmp.ge.f32.partialorder %v6048, 0.0
    %vm6305 = vcmp.ge.f32.partialorder %v6049, 0.0
    %vm6306 = vcmp.ge.f32.partialorder %v6050, 0.0
    %vm6307 = vcmp.ge.f32.partialorder %v6051, 0.0
    %vm6308 = vcmp.ge.f32.partialorder %v6052, 0.0
    %vm6309 = vcmp.ge.f32.partialorder %v6053, 0.0
    %vm6310 = vcmp.ge.f32.partialorder %v6054, 0.0
    %vm6311 = vcmp.ge.f32.partialorder %v6055, 0.0
    %vm6312 = vcmp.ge.f32.partialorder %v6056, 0.0
    %vm6313 = vcmp.ge.f32.partialorder %v6057, 0.0
    %vm6314 = vcmp.ge.f32.partialorder %v6058, 0.0
    %vm6315 = vcmp.ge.f32.partialorder %v6059, 0.0
    %vm6316 = vcmp.ge.f32.partialorder %v6060, 0.0
    %vm6317 = vcmp.ge.f32.partialorder %v6061, 0.0
    %vm6318 = vcmp.ge.f32.partialorder %v6062, 0.0
    %vm6319 = vcmp.ge.f32.partialorder %v6063, 0.0
    %vm6320 = vcmp.ge.f32.partialorder %v6064, 0.0
    %vm6321 = vcmp.ge.f32.partialorder %v6065, 0.0
    %vm6322 = vcmp.ge.f32.partialorder %v6066, 0.0
    %vm6323 = vcmp.ge.f32.partialorder %v6067, 0.0
    %vm6324 = vcmp.ge.f32.partialorder %v6068, 0.0
    %vm6325 = vcmp.ge.f32.partialorder %v6069, 0.0
    %vm6326 = vcmp.ge.f32.partialorder %v6070, 0.0
    %vm6327 = vcmp.ge.f32.partialorder %v6071, 0.0
    %vm6328 = vcmp.ge.f32.partialorder %v6072, 0.0
    %vm6329 = vcmp.ge.f32.partialorder %v6073, 0.0
    %vm6330 = vcmp.ge.f32.partialorder %v6074, 0.0
    %vm6331 = vcmp.ge.f32.partialorder %v6075, 0.0
    %vm6332 = vcmp.ge.f32.partialorder %v6076, 0.0
    %vm6333 = vcmp.ge.f32.partialorder %v6077, 0.0
    %vm6334 = vcmp.ge.f32.partialorder %v6078, 0.0
    %vm6335 = vcmp.ge.f32.partialorder %v6079, 0.0
    %vm6336 = vcmp.ge.f32.partialorder %v6080, 0.0
    %vm6337 = vcmp.ge.f32.partialorder %v6081, 0.0
    %vm6338 = vcmp.ge.f32.partialorder %v6082, 0.0
    %vm6339 = vcmp.ge.f32.partialorder %v6083, 0.0
    %vm6340 = vcmp.ge.f32.partialorder %v6084, 0.0
    %vm6341 = vcmp.ge.f32.partialorder %v6085, 0.0
    %vm6342 = vcmp.ge.f32.partialorder %v6086, 0.0
    %vm6343 = vcmp.ge.f32.partialorder %v6087, 0.0
    %vm6344 = vcmp.ge.f32.partialorder %v6088, 0.0
    %vm6345 = vcmp.ge.f32.partialorder %v6089, 0.0
    %vm6346 = vcmp.ge.f32.partialorder %v6090, 0.0
    %vm6347 = vcmp.ge.f32.partialorder %v6091, 0.0
    %vm6348 = vcmp.ge.f32.partialorder %v6092, 0.0
    %vm6349 = vcmp.ge.f32.partialorder %v6093, 0.0
    %vm6350 = vcmp.ge.f32.partialorder %v6094, 0.0
    %vm6351 = vcmp.ge.f32.partialorder %v6095, 0.0
    %vm6352 = vcmp.ge.f32.partialorder %v6096, 0.0
    %vm6353 = vcmp.ge.f32.partialorder %v6097, 0.0
    %vm6354 = vcmp.ge.f32.partialorder %v6098, 0.0
    %vm6355 = vcmp.ge.f32.partialorder %v6099, 0.0
    %vm6356 = vcmp.ge.f32.partialorder %v6100, 0.0
    %vm6357 = vcmp.ge.f32.partialorder %v6101, 0.0
    %vm6358 = vcmp.ge.f32.partialorder %v6102, 0.0
    %vm6359 = vcmp.ge.f32.partialorder %v6103, 0.0
    %vm6360 = vcmp.ge.f32.partialorder %v6104, 0.0
    %vm6361 = vcmp.ge.f32.partialorder %v6105, 0.0
    %vm6362 = vcmp.ge.f32.partialorder %v6106, 0.0
    %vm6363 = vcmp.ge.f32.partialorder %v6107, 0.0
    %vm6364 = vcmp.ge.f32.partialorder %v6108, 0.0
    %vm6365 = vcmp.ge.f32.partialorder %v6109, 0.0
    %vm6366 = vcmp.ge.f32.partialorder %v6110, 0.0
    %vm6367 = vcmp.ge.f32.partialorder %v6111, 0.0
    %vm6368 = vcmp.ge.f32.partialorder %v6112, 0.0
    %vm6369 = vcmp.ge.f32.partialorder %v6113, 0.0
    %vm6370 = vcmp.ge.f32.partialorder %v6114, 0.0
    %vm6371 = vcmp.ge.f32.partialorder %v6115, 0.0
    %vm6372 = vcmp.ge.f32.partialorder %v6116, 0.0
    %vm6373 = vcmp.ge.f32.partialorder %v6117, 0.0
    %vm6374 = vcmp.ge.f32.partialorder %v6118, 0.0
    %vm6375 = vcmp.ge.f32.partialorder %v6119, 0.0
    %vm6376 = vcmp.ge.f32.partialorder %v6120, 0.0
    %vm6377 = vcmp.ge.f32.partialorder %v6121, 0.0
    %vm6378 = vcmp.ge.f32.partialorder %v6122, 0.0
    %vm6379 = vcmp.ge.f32.partialorder %v6123, 0.0
    %vm6380 = vcmp.ge.f32.partialorder %v6124, 0.0
    %vm6381 = vcmp.ge.f32.partialorder %v6125, 0.0
    %vm6382 = vcmp.ge.f32.partialorder %v6126, 0.0
    %vm6383 = vcmp.ge.f32.partialorder %v6127, 0.0
    %vm6384 = vcmp.ge.f32.partialorder %v6128, 0.0
    %vm6385 = vcmp.ge.f32.partialorder %v6129, 0.0
    %vm6386 = vcmp.ge.f32.partialorder %v6130, 0.0
    %vm6387 = vcmp.ge.f32.partialorder %v6131, 0.0
    %vm6388 = vcmp.ge.f32.partialorder %v6132, 0.0
    %vm6389 = vcmp.ge.f32.partialorder %v6133, 0.0
    %vm6390 = vcmp.ge.f32.partialorder %v6134, 0.0
    %vm6391 = vcmp.ge.f32.partialorder %v6135, 0.0
    %vm6392 = vcmp.ge.f32.partialorder %v6136, 0.0
    %vm6393 = vcmp.ge.f32.partialorder %v6137, 0.0
    %vm6394 = vcmp.ge.f32.partialorder %v6138, 0.0
    %vm6395 = vcmp.ge.f32.partialorder %v6139, 0.0
    %vm6396 = vcmp.ge.f32.partialorder %v6140, 0.0
    %vm6397 = vcmp.ge.f32.partialorder %v6141, 0.0
    %vm6398 = vcmp.ge.f32.partialorder %v6142, 0.0
    %vm6399 = vcmp.ge.f32.partialorder %v6143, 0.0
    %vm6400 = vcmp.ge.f32.partialorder %v6144, 0.0
    %vm6401 = vcmp.ge.f32.partialorder %v6145, 0.0
    %vm6402 = vcmp.ge.f32.partialorder %v6146, 0.0
    %vm6403 = vcmp.ge.f32.partialorder %v6147, 0.0
    %vm6404 = vcmp.ge.f32.partialorder %v6148, 0.0
    %vm6405 = vcmp.ge.f32.partialorder %v6149, 0.0
    %vm6406 = vcmp.ge.f32.partialorder %v6150, 0.0
    %vm6407 = vcmp.ge.f32.partialorder %v6151, 0.0
    %vm6408 = vcmp.ge.f32.partialorder %v6152, 0.0
    %vm6409 = vcmp.ge.f32.partialorder %v6153, 0.0
    %vm6410 = vcmp.ge.f32.partialorder %v6154, 0.0
    %vm6411 = vcmp.ge.f32.partialorder %v6155, 0.0
    %vm6412 = vcmp.ge.f32.partialorder %v6156, 0.0
    %vm6413 = vcmp.ge.f32.partialorder %v6157, 0.0
    %vm6414 = vcmp.ge.f32.partialorder %v6158, 0.0
    %vm6415 = vcmp.ge.f32.partialorder %v6159, 0.0
    %vm6416 = vcmp.ge.f32.partialorder %v6160, 0.0
    %vm6417 = vcmp.ge.f32.partialorder %v6161, 0.0
    %vm6418 = vcmp.ge.f32.partialorder %v6162, 0.0
    %vm6419 = vcmp.ge.f32.partialorder %v6163, 0.0
    %vm6420 = vcmp.ge.f32.partialorder %v6164, 0.0
    %vm6421 = vcmp.ge.f32.partialorder %v6165, 0.0
    %vm6422 = vcmp.ge.f32.partialorder %v6166, 0.0
    %vm6423 = vcmp.ge.f32.partialorder %v6167, 0.0
    %vm6424 = vcmp.ge.f32.partialorder %v6168, 0.0
    %vm6425 = vcmp.ge.f32.partialorder %v6169, 0.0
    %vm6426 = vcmp.ge.f32.partialorder %v6170, 0.0
    %vm6427 = vcmp.ge.f32.partialorder %v6171, 0.0
    %vm6428 = vcmp.ge.f32.partialorder %v6172, 0.0
    %vm6429 = vcmp.ge.f32.partialorder %v6173, 0.0
    %vm6430 = vcmp.ge.f32.partialorder %v6174, 0.0
    %vm6431 = vcmp.ge.f32.partialorder %v6175, 0.0
    %vm6432 = vcmp.ge.f32.partialorder %v6176, 0.0
    %vm6433 = vcmp.ge.f32.partialorder %v6177, 0.0
    %vm6434 = vcmp.ge.f32.partialorder %v6178, 0.0
    %vm6435 = vcmp.ge.f32.partialorder %v6179, 0.0
    %vm6436 = vcmp.ge.f32.partialorder %v6180, 0.0
    %vm6437 = vcmp.ge.f32.partialorder %v6181, 0.0
    %vm6438 = vcmp.ge.f32.partialorder %v6182, 0.0
    %vm6439 = vcmp.ge.f32.partialorder %v6183, 0.0
    %vm6440 = vcmp.ge.f32.partialorder %v6184, 0.0
    %vm6441 = vcmp.ge.f32.partialorder %v6185, 0.0
    %vm6442 = vcmp.ge.f32.partialorder %v6186, 0.0
    %vm6443 = vcmp.ge.f32.partialorder %v6187, 0.0
    %vm6444 = vcmp.ge.f32.partialorder %v6188, 0.0
    %vm6445 = vcmp.ge.f32.partialorder %v6189, 0.0
    %vm6446 = vcmp.ge.f32.partialorder %v6190, 0.0
    %vm6447 = vcmp.ge.f32.partialorder %v6191, 0.0
    %vm6448 = vcmp.ge.f32.partialorder %v6192, 0.0
    %vm6449 = vcmp.ge.f32.partialorder %v6193, 0.0
    %vm6450 = vcmp.ge.f32.partialorder %v6194, 0.0
    %vm6451 = vcmp.ge.f32.partialorder %v6195, 0.0
    %vm6452 = vcmp.ge.f32.partialorder %v6196, 0.0
    %vm6453 = vcmp.ge.f32.partialorder %v6197, 0.0
    %vm6454 = vcmp.ge.f32.partialorder %v6198, 0.0
    %vm6455 = vcmp.ge.f32.partialorder %v6199, 0.0
    %vm6456 = vcmp.ge.f32.partialorder %v6200, 0.0
    %vm6457 = vcmp.ge.f32.partialorder %v6201, 0.0
    %vm6458 = vcmp.ge.f32.partialorder %v6202, 0.0
    %vm6459 = vcmp.ge.f32.partialorder %v6203, 0.0
    %vm6460 = vcmp.ge.f32.partialorder %v6204, 0.0
    %vm6461 = vcmp.ge.f32.partialorder %v6205, 0.0
    %vm6462 = vcmp.ge.f32.partialorder %v6206, 0.0
    %vm6463 = vcmp.ge.f32.partialorder %v6207, 0.0
    %vm6464 = vcmp.ge.f32.partialorder %v6208, 0.0
    %vm6465 = vcmp.ge.f32.partialorder %v6209, 0.0
    %vm6466 = vcmp.ge.f32.partialorder %v6210, 0.0
    %vm6467 = vcmp.ge.f32.partialorder %v6211, 0.0
    %vm6468 = vcmp.ge.f32.partialorder %v6212, 0.0
    %vm6469 = vcmp.ge.f32.partialorder %v6213, 0.0
    %vm6470 = vcmp.ge.f32.partialorder %v6214, 0.0
    %vm6471 = vcmp.ge.f32.partialorder %v6215, 0.0
    %vm6472 = vcmp.ge.f32.partialorder %v6216, 0.0
    %vm6473 = vcmp.ge.f32.partialorder %v6217, 0.0
    %vm6474 = vcmp.ge.f32.partialorder %v6218, 0.0
    %vm6475 = vcmp.ge.f32.partialorder %v6219, 0.0
    %vm6476 = vcmp.ge.f32.partialorder %v6220, 0.0
    %vm6477 = vcmp.ge.f32.partialorder %v6221, 0.0
    %vm6478 = vcmp.ge.f32.partialorder %v6222, 0.0
    %vm6479 = vcmp.ge.f32.partialorder %v6223, 0.0
    %vm6480 = vcmp.ge.f32.partialorder %v6224, 0.0
    %vm6481 = vcmp.ge.f32.partialorder %v6225, 0.0
    %vm6482 = vcmp.ge.f32.partialorder %v6226, 0.0
    %vm6483 = vcmp.ge.f32.partialorder %v6227, 0.0
    %vm6484 = vcmp.ge.f32.partialorder %v6228, 0.0
    %vm6485 = vcmp.ge.f32.partialorder %v6229, 0.0
    %vm6486 = vcmp.ge.f32.partialorder %v6230, 0.0
    %vm6487 = vcmp.ge.f32.partialorder %v6231, 0.0
    %vm6488 = vcmp.ge.f32.partialorder %v6232, 0.0
    %vm6489 = vcmp.ge.f32.partialorder %v6233, 0.0
    %vm6490 = vcmp.ge.f32.partialorder %v6234, 0.0
    %vm6491 = vcmp.ge.f32.partialorder %v6235, 0.0
    %vm6492 = vcmp.ge.f32.partialorder %v6236, 0.0
    %vm6493 = vcmp.ge.f32.partialorder %v6237, 0.0
    %vm6494 = vcmp.ge.f32.partialorder %v6238, 0.0
    %vm6495 = vcmp.ge.f32.partialorder %v6239, 0.0
    %vm6496 = vcmp.ge.f32.partialorder %v6240, 0.0
    %vm6497 = vcmp.ge.f32.partialorder %v6241, 0.0
    %vm6498 = vcmp.ge.f32.partialorder %v6242, 0.0
    %vm6499 = vcmp.ge.f32.partialorder %v6243, 0.0
    %vm6500 = vcmp.ge.f32.partialorder %v6244, 0.0
    %vm6501 = vcmp.ge.f32.partialorder %v6245, 0.0
    %vm6502 = vcmp.ge.f32.partialorder %v6246, 0.0
    %vm6503 = vcmp.ge.f32.partialorder %v6247, 0.0
    %vm6504 = vcmp.ge.f32.partialorder %v6248, 0.0
    %vm6505 = vcmp.ge.f32.partialorder %v6249, 0.0
    %vm6506 = vcmp.ge.f32.partialorder %v6250, 0.0
    %vm6507 = vcmp.ge.f32.partialorder %v6251, 0.0
    %vm6508 = vcmp.ge.f32.partialorder %v6252, 0.0
    %vm6509 = vcmp.ge.f32.partialorder %v6253, 0.0
    %vm6510 = vcmp.ge.f32.partialorder %v6254, 0.0
    %vm6511 = vcmp.ge.f32.partialorder %v6255, 0.0
    %vm6512 = vcmp.ge.f32.partialorder %v6256, 0.0
    %vm6513 = vcmp.ge.f32.partialorder %v6257, 0.0
    %vm6514 = vcmp.ge.f32.partialorder %v6258, 0.0
    %vm6515 = vcmp.ge.f32.partialorder %v6259, 0.0
    %vm6516 = vcmp.ge.f32.partialorder %v6260, 0.0
    %vm6517 = vcmp.ge.f32.partialorder %v6261, 0.0
    %vm6518 = vcmp.ge.f32.partialorder %v6262, 0.0
    %vm6519 = vcmp.ge.f32.partialorder %v6263, 0.0
    %vm6520 = vcmp.ge.f32.partialorder %v6264, 0.0
    %vm6521 = vcmp.ge.f32.partialorder %v6265, 0.0
    %vm6522 = vcmp.ge.f32.partialorder %v6266, 0.0
    %vm6523 = vcmp.ge.f32.partialorder %v6267, 0.0
    %vm6524 = vcmp.ge.f32.partialorder %v6268, 0.0
    %vm6525 = vcmp.ge.f32.partialorder %v6269, 0.0
    %vm6526 = vcmp.ge.f32.partialorder %v6270, 0.0
    %vm6527 = vcmp.ge.f32.partialorder %v6271, 0.0
    %vm6528 = vcmp.ge.f32.partialorder %v6272, 0.0
    %vm6529 = vcmp.ge.f32.partialorder %v6273, 0.0
    %vm6530 = vcmp.ge.f32.partialorder %v6274, 0.0
    %vm6531 = vcmp.ge.f32.partialorder %v6275, 0.0
    %vm6532 = vcmp.ge.f32.partialorder %v6276, 0.0
    %vm6533 = vcmp.ge.f32.partialorder %v6277, 0.0
    %vm6534 = vcmp.ge.f32.partialorder %v6278, 0.0
    %vm6535 = vcmp.ge.f32.partialorder %v6279, 0.0
    %vm6536 = vcmp.ge.f32.partialorder %v6280, 0.0
    %vm6537 = vcmp.ge.f32.partialorder %v6281, 0.0
    %vm6538 = vcmp.ge.f32.partialorder %v6282, 0.0
    %vm6539 = vcmp.ge.f32.partialorder %v6283, 0.0
    %vm6540 = vcmp.ge.f32.partialorder %v6284, 0.0
    %vm6541 = vcmp.ge.f32.partialorder %v6285, 0.0
    %vm6542 = vcmp.ge.f32.partialorder %v6286, 0.0
    %vm6543 = vcmp.ge.f32.partialorder %v6287, 0.0
    %vm6544 = vcmp.ge.f32.partialorder %v6288, 0.0
    %v6545 = vmul.f32 %v6033, 0.1
    %v6546 = vmul.f32 %v6034, 0.1
    %v6547 = vmul.f32 %v6035, 0.1
    %v6548 = vmul.f32 %v6036, 0.1
    %v6549 = vmul.f32 %v6037, 0.1
    %v6550 = vmul.f32 %v6038, 0.1
    %v6551 = vmul.f32 %v6039, 0.1
    %v6552 = vmul.f32 %v6040, 0.1
    %v6553 = vmul.f32 %v6041, 0.1
    %v6554 = vmul.f32 %v6042, 0.1
    %v6555 = vmul.f32 %v6043, 0.1
    %v6556 = vmul.f32 %v6044, 0.1
    %v6557 = vmul.f32 %v6045, 0.1
    %v6558 = vmul.f32 %v6046, 0.1
    %v6559 = vmul.f32 %v6047, 0.1
    %v6560 = vmul.f32 %v6048, 0.1
    %v6561 = vmul.f32 %v6049, 0.1
    %v6562 = vmul.f32 %v6050, 0.1
    %v6563 = vmul.f32 %v6051, 0.1
    %v6564 = vmul.f32 %v6052, 0.1
    %v6565 = vmul.f32 %v6053, 0.1
    %v6566 = vmul.f32 %v6054, 0.1
    %v6567 = vmul.f32 %v6055, 0.1
    %v6568 = vmul.f32 %v6056, 0.1
    %v6569 = vmul.f32 %v6057, 0.1
    %v6570 = vmul.f32 %v6058, 0.1
    %v6571 = vmul.f32 %v6059, 0.1
    %v6572 = vmul.f32 %v6060, 0.1
    %v6573 = vmul.f32 %v6061, 0.1
    %v6574 = vmul.f32 %v6062, 0.1
    %v6575 = vmul.f32 %v6063, 0.1
    %v6576 = vmul.f32 %v6064, 0.1
    %v6577 = vmul.f32 %v6065, 0.1
    %v6578 = vmul.f32 %v6066, 0.1
    %v6579 = vmul.f32 %v6067, 0.1
    %v6580 = vmul.f32 %v6068, 0.1
    %v6581 = vmul.f32 %v6069, 0.1
    %v6582 = vmul.f32 %v6070, 0.1
    %v6583 = vmul.f32 %v6071, 0.1
    %v6584 = vmul.f32 %v6072, 0.1
    %v6585 = vmul.f32 %v6073, 0.1
    %v6586 = vmul.f32 %v6074, 0.1
    %v6587 = vmul.f32 %v6075, 0.1
    %v6588 = vmul.f32 %v6076, 0.1
    %v6589 = vmul.f32 %v6077, 0.1
    %v6590 = vmul.f32 %v6078, 0.1
    %v6591 = vmul.f32 %v6079, 0.1
    %v6592 = vmul.f32 %v6080, 0.1
    %v6593 = vmul.f32 %v6081, 0.1
    %v6594 = vmul.f32 %v6082, 0.1
    %v6595 = vmul.f32 %v6083, 0.1
    %v6596 = vmul.f32 %v6084, 0.1
    %v6597 = vmul.f32 %v6085, 0.1
    %v6598 = vmul.f32 %v6086, 0.1
    %v6599 = vmul.f32 %v6087, 0.1
    %v6600 = vmul.f32 %v6088, 0.1
    %v6601 = vmul.f32 %v6089, 0.1
    %v6602 = vmul.f32 %v6090, 0.1
    %v6603 = vmul.f32 %v6091, 0.1
    %v6604 = vmul.f32 %v6092, 0.1
    %v6605 = vmul.f32 %v6093, 0.1
    %v6606 = vmul.f32 %v6094, 0.1
    %v6607 = vmul.f32 %v6095, 0.1
    %v6608 = vmul.f32 %v6096, 0.1
    %v6609 = vmul.f32 %v6097, 0.1
    %v6610 = vmul.f32 %v6098, 0.1
    %v6611 = vmul.f32 %v6099, 0.1
    %v6612 = vmul.f32 %v6100, 0.1
    %v6613 = vmul.f32 %v6101, 0.1
    %v6614 = vmul.f32 %v6102, 0.1
    %v6615 = vmul.f32 %v6103, 0.1
    %v6616 = vmul.f32 %v6104, 0.1
    %v6617 = vmul.f32 %v6105, 0.1
    %v6618 = vmul.f32 %v6106, 0.1
    %v6619 = vmul.f32 %v6107, 0.1
    %v6620 = vmul.f32 %v6108, 0.1
    %v6621 = vmul.f32 %v6109, 0.1
    %v6622 = vmul.f32 %v6110, 0.1
    %v6623 = vmul.f32 %v6111, 0.1
    %v6624 = vmul.f32 %v6112, 0.1
    %v6625 = vmul.f32 %v6113, 0.1
    %v6626 = vmul.f32 %v6114, 0.1
    %v6627 = vmul.f32 %v6115, 0.1
    %v6628 = vmul.f32 %v6116, 0.1
    %v6629 = vmul.f32 %v6117, 0.1
    %v6630 = vmul.f32 %v6118, 0.1
    %v6631 = vmul.f32 %v6119, 0.1
    %v6632 = vmul.f32 %v6120, 0.1
    %v6633 = vmul.f32 %v6121, 0.1
    %v6634 = vmul.f32 %v6122, 0.1
    %v6635 = vmul.f32 %v6123, 0.1
    %v6636 = vmul.f32 %v6124, 0.1
    %v6637 = vmul.f32 %v6125, 0.1
    %v6638 = vmul.f32 %v6126, 0.1
    %v6639 = vmul.f32 %v6127, 0.1
    %v6640 = vmul.f32 %v6128, 0.1
    %v6641 = vmul.f32 %v6129, 0.1
    %v6642 = vmul.f32 %v6130, 0.1
    %v6643 = vmul.f32 %v6131, 0.1
    %v6644 = vmul.f32 %v6132, 0.1
    %v6645 = vmul.f32 %v6133, 0.1
    %v6646 = vmul.f32 %v6134, 0.1
    %v6647 = vmul.f32 %v6135, 0.1
    %v6648 = vmul.f32 %v6136, 0.1
    %v6649 = vmul.f32 %v6137, 0.1
    %v6650 = vmul.f32 %v6138, 0.1
    %v6651 = vmul.f32 %v6139, 0.1
    %v6652 = vmul.f32 %v6140, 0.1
    %v6653 = vmul.f32 %v6141, 0.1
    %v6654 = vmul.f32 %v6142, 0.1
    %v6655 = vmul.f32 %v6143, 0.1
    %v6656 = vmul.f32 %v6144, 0.1
    %v6657 = vmul.f32 %v6145, 0.1
    %v6658 = vmul.f32 %v6146, 0.1
    %v6659 = vmul.f32 %v6147, 0.1
    %v6660 = vmul.f32 %v6148, 0.1
    %v6661 = vmul.f32 %v6149, 0.1
    %v6662 = vmul.f32 %v6150, 0.1
    %v6663 = vmul.f32 %v6151, 0.1
    %v6664 = vmul.f32 %v6152, 0.1
    %v6665 = vmul.f32 %v6153, 0.1
    %v6666 = vmul.f32 %v6154, 0.1
    %v6667 = vmul.f32 %v6155, 0.1
    %v6668 = vmul.f32 %v6156, 0.1
    %v6669 = vmul.f32 %v6157, 0.1
    %v6670 = vmul.f32 %v6158, 0.1
    %v6671 = vmul.f32 %v6159, 0.1
    %v6672 = vmul.f32 %v6160, 0.1
    %v6673 = vmul.f32 %v6161, 0.1
    %v6674 = vmul.f32 %v6162, 0.1
    %v6675 = vmul.f32 %v6163, 0.1
    %v6676 = vmul.f32 %v6164, 0.1
    %v6677 = vmul.f32 %v6165, 0.1
    %v6678 = vmul.f32 %v6166, 0.1
    %v6679 = vmul.f32 %v6167, 0.1
    %v6680 = vmul.f32 %v6168, 0.1
    %v6681 = vmul.f32 %v6169, 0.1
    %v6682 = vmul.f32 %v6170, 0.1
    %v6683 = vmul.f32 %v6171, 0.1
    %v6684 = vmul.f32 %v6172, 0.1
    %v6685 = vmul.f32 %v6173, 0.1
    %v6686 = vmul.f32 %v6174, 0.1
    %v6687 = vmul.f32 %v6175, 0.1
    %v6688 = vmul.f32 %v6176, 0.1
    %v6689 = vmul.f32 %v6177, 0.1
    %v6690 = vmul.f32 %v6178, 0.1
    %v6691 = vmul.f32 %v6179, 0.1
    %v6692 = vmul.f32 %v6180, 0.1
    %v6693 = vmul.f32 %v6181, 0.1
    %v6694 = vmul.f32 %v6182, 0.1
    %v6695 = vmul.f32 %v6183, 0.1
    %v6696 = vmul.f32 %v6184, 0.1
    %v6697 = vmul.f32 %v6185, 0.1
    %v6698 = vmul.f32 %v6186, 0.1
    %v6699 = vmul.f32 %v6187, 0.1
    %v6700 = vmul.f32 %v6188, 0.1
    %v6701 = vmul.f32 %v6189, 0.1
    %v6702 = vmul.f32 %v6190, 0.1
    %v6703 = vmul.f32 %v6191, 0.1
    %v6704 = vmul.f32 %v6192, 0.1
    %v6705 = vmul.f32 %v6193, 0.1
    %v6706 = vmul.f32 %v6194, 0.1
    %v6707 = vmul.f32 %v6195, 0.1
    %v6708 = vmul.f32 %v6196, 0.1
    %v6709 = vmul.f32 %v6197, 0.1
    %v6710 = vmul.f32 %v6198, 0.1
    %v6711 = vmul.f32 %v6199, 0.1
    %v6712 = vmul.f32 %v6200, 0.1
    %v6713 = vmul.f32 %v6201, 0.1
    %v6714 = vmul.f32 %v6202, 0.1
    %v6715 = vmul.f32 %v6203, 0.1
    %v6716 = vmul.f32 %v6204, 0.1
    %v6717 = vmul.f32 %v6205, 0.1
    %v6718 = vmul.f32 %v6206, 0.1
    %v6719 = vmul.f32 %v6207, 0.1
    %v6720 = vmul.f32 %v6208, 0.1
    %v6721 = vmul.f32 %v6209, 0.1
    %v6722 = vmul.f32 %v6210, 0.1
    %v6723 = vmul.f32 %v6211, 0.1
    %v6724 = vmul.f32 %v6212, 0.1
    %v6725 = vmul.f32 %v6213, 0.1
    %v6726 = vmul.f32 %v6214, 0.1
    %v6727 = vmul.f32 %v6215, 0.1
    %v6728 = vmul.f32 %v6216, 0.1
    %v6729 = vmul.f32 %v6217, 0.1
    %v6730 = vmul.f32 %v6218, 0.1
    %v6731 = vmul.f32 %v6219, 0.1
    %v6732 = vmul.f32 %v6220, 0.1
    %v6733 = vmul.f32 %v6221, 0.1
    %v6734 = vmul.f32 %v6222, 0.1
    %v6735 = vmul.f32 %v6223, 0.1
    %v6736 = vmul.f32 %v6224, 0.1
    %v6737 = vmul.f32 %v6225, 0.1
    %v6738 = vmul.f32 %v6226, 0.1
    %v6739 = vmul.f32 %v6227, 0.1
    %v6740 = vmul.f32 %v6228, 0.1
    %v6741 = vmul.f32 %v6229, 0.1
    %v6742 = vmul.f32 %v6230, 0.1
    %v6743 = vmul.f32 %v6231, 0.1
    %v6744 = vmul.f32 %v6232, 0.1
    %v6745 = vmul.f32 %v6233, 0.1
    %v6746 = vmul.f32 %v6234, 0.1
    %v6747 = vmul.f32 %v6235, 0.1
    %v6748 = vmul.f32 %v6236, 0.1
    %v6749 = vmul.f32 %v6237, 0.1
    %v6750 = vmul.f32 %v6238, 0.1
    %v6751 = vmul.f32 %v6239, 0.1
    %v6752 = vmul.f32 %v6240, 0.1
    %v6753 = vmul.f32 %v6241, 0.1
    %v6754 = vmul.f32 %v6242, 0.1
    %v6755 = vmul.f32 %v6243, 0.1
    %v6756 = vmul.f32 %v6244, 0.1
    %v6757 = vmul.f32 %v6245, 0.1
    %v6758 = vmul.f32 %v6246, 0.1
    %v6759 = vmul.f32 %v6247, 0.1
    %v6760 = vmul.f32 %v6248, 0.1
    %v6761 = vmul.f32 %v6249, 0.1
    %v6762 = vmul.f32 %v6250, 0.1
    %v6763 = vmul.f32 %v6251, 0.1
    %v6764 = vmul.f32 %v6252, 0.1
    %v6765 = vmul.f32 %v6253, 0.1
    %v6766 = vmul.f32 %v6254, 0.1
    %v6767 = vmul.f32 %v6255, 0.1
    %v6768 = vmul.f32 %v6256, 0.1
    %v6769 = vmul.f32 %v6257, 0.1
    %v6770 = vmul.f32 %v6258, 0.1
    %v6771 = vmul.f32 %v6259, 0.1
    %v6772 = vmul.f32 %v6260, 0.1
    %v6773 = vmul.f32 %v6261, 0.1
    %v6774 = vmul.f32 %v6262, 0.1
    %v6775 = vmul.f32 %v6263, 0.1
    %v6776 = vmul.f32 %v6264, 0.1
    %v6777 = vmul.f32 %v6265, 0.1
    %v6778 = vmul.f32 %v6266, 0.1
    %v6779 = vmul.f32 %v6267, 0.1
    %v6780 = vmul.f32 %v6268, 0.1
    %v6781 = vmul.f32 %v6269, 0.1
    %v6782 = vmul.f32 %v6270, 0.1
    %v6783 = vmul.f32 %v6271, 0.1
    %v6784 = vmul.f32 %v6272, 0.1
    %v6785 = vmul.f32 %v6273, 0.1
    %v6786 = vmul.f32 %v6274, 0.1
    %v6787 = vmul.f32 %v6275, 0.1
    %v6788 = vmul.f32 %v6276, 0.1
    %v6789 = vmul.f32 %v6277, 0.1
    %v6790 = vmul.f32 %v6278, 0.1
    %v6791 = vmul.f32 %v6279, 0.1
    %v6792 = vmul.f32 %v6280, 0.1
    %v6793 = vmul.f32 %v6281, 0.1
    %v6794 = vmul.f32 %v6282, 0.1
    %v6795 = vmul.f32 %v6283, 0.1
    %v6796 = vmul.f32 %v6284, 0.1
    %v6797 = vmul.f32 %v6285, 0.1
    %v6798 = vmul.f32 %v6286, 0.1
    %v6799 = vmul.f32 %v6287, 0.1
    %v6800 = vmul.f32 %v6288, 0.1
    %v6801 = vsel %vm6289, %v6033, %v6545
    %v6802 = vsel %vm6290, %v6034, %v6546
    %v6803 = vsel %vm6291, %v6035, %v6547
    %v6804 = vsel %vm6292, %v6036, %v6548
    %v6805 = vsel %vm6293, %v6037, %v6549
    %v6806 = vsel %vm6294, %v6038, %v6550
    %v6807 = vsel %vm6295, %v6039, %v6551
    %v6808 = vsel %vm6296, %v6040, %v6552
    %v6809 = vsel %vm6297, %v6041, %v6553
    %v6810 = vsel %vm6298, %v6042, %v6554
    %v6811 = vsel %vm6299, %v6043, %v6555
    %v6812 = vsel %vm6300, %v6044, %v6556
    %v6813 = vsel %vm6301, %v6045, %v6557
    %v6814 = vsel %vm6302, %v6046, %v6558
    %v6815 = vsel %vm6303, %v6047, %v6559
    %v6816 = vsel %vm6304, %v6048, %v6560
    %v6817 = vsel %vm6305, %v6049, %v6561
    %v6818 = vsel %vm6306, %v6050, %v6562
    %v6819 = vsel %vm6307, %v6051, %v6563
    %v6820 = vsel %vm6308, %v6052, %v6564
    %v6821 = vsel %vm6309, %v6053, %v6565
    %v6822 = vsel %vm6310, %v6054, %v6566
    %v6823 = vsel %vm6311, %v6055, %v6567
    %v6824 = vsel %vm6312, %v6056, %v6568
    %v6825 = vsel %vm6313, %v6057, %v6569
    %v6826 = vsel %vm6314, %v6058, %v6570
    %v6827 = vsel %vm6315, %v6059, %v6571
    %v6828 = vsel %vm6316, %v6060, %v6572
    %v6829 = vsel %vm6317, %v6061, %v6573
    %v6830 = vsel %vm6318, %v6062, %v6574
    %v6831 = vsel %vm6319, %v6063, %v6575
    %v6832 = vsel %vm6320, %v6064, %v6576
    %v6833 = vsel %vm6321, %v6065, %v6577
    %v6834 = vsel %vm6322, %v6066, %v6578
    %v6835 = vsel %vm6323, %v6067, %v6579
    %v6836 = vsel %vm6324, %v6068, %v6580
    %v6837 = vsel %vm6325, %v6069, %v6581
    %v6838 = vsel %vm6326, %v6070, %v6582
    %v6839 = vsel %vm6327, %v6071, %v6583
    %v6840 = vsel %vm6328, %v6072, %v6584
    %v6841 = vsel %vm6329, %v6073, %v6585
    %v6842 = vsel %vm6330, %v6074, %v6586
    %v6843 = vsel %vm6331, %v6075, %v6587
    %v6844 = vsel %vm6332, %v6076, %v6588
    %v6845 = vsel %vm6333, %v6077, %v6589
    %v6846 = vsel %vm6334, %v6078, %v6590
    %v6847 = vsel %vm6335, %v6079, %v6591
    %v6848 = vsel %vm6336, %v6080, %v6592
    %v6849 = vsel %vm6337, %v6081, %v6593
    %v6850 = vsel %vm6338, %v6082, %v6594
    %v6851 = vsel %vm6339, %v6083, %v6595
    %v6852 = vsel %vm6340, %v6084, %v6596
    %v6853 = vsel %vm6341, %v6085, %v6597
    %v6854 = vsel %vm6342, %v6086, %v6598
    %v6855 = vsel %vm6343, %v6087, %v6599
    %v6856 = vsel %vm6344, %v6088, %v6600
    %v6857 = vsel %vm6345, %v6089, %v6601
    %v6858 = vsel %vm6346, %v6090, %v6602
    %v6859 = vsel %vm6347, %v6091, %v6603
    %v6860 = vsel %vm6348, %v6092, %v6604
    %v6861 = vsel %vm6349, %v6093, %v6605
    %v6862 = vsel %vm6350, %v6094, %v6606
    %v6863 = vsel %vm6351, %v6095, %v6607
    %v6864 = vsel %vm6352, %v6096, %v6608
    %v6865 = vsel %vm6353, %v6097, %v6609
    %v6866 = vsel %vm6354, %v6098, %v6610
    %v6867 = vsel %vm6355, %v6099, %v6611
    %v6868 = vsel %vm6356, %v6100, %v6612
    %v6869 = vsel %vm6357, %v6101, %v6613
    %v6870 = vsel %vm6358, %v6102, %v6614
    %v6871 = vsel %vm6359, %v6103, %v6615
    %v6872 = vsel %vm6360, %v6104, %v6616
    %v6873 = vsel %vm6361, %v6105, %v6617
    %v6874 = vsel %vm6362, %v6106, %v6618
    %v6875 = vsel %vm6363, %v6107, %v6619
    %v6876 = vsel %vm6364, %v6108, %v6620
    %v6877 = vsel %vm6365, %v6109, %v6621
    %v6878 = vsel %vm6366, %v6110, %v6622
    %v6879 = vsel %vm6367, %v6111, %v6623
    %v6880 = vsel %vm6368, %v6112, %v6624
    %v6881 = vsel %vm6369, %v6113, %v6625
    %v6882 = vsel %vm6370, %v6114, %v6626
    %v6883 = vsel %vm6371, %v6115, %v6627
    %v6884 = vsel %vm6372, %v6116, %v6628
    %v6885 = vsel %vm6373, %v6117, %v6629
    %v6886 = vsel %vm6374, %v6118, %v6630
    %v6887 = vsel %vm6375, %v6119, %v6631
    %v6888 = vsel %vm6376, %v6120, %v6632
    %v6889 = vsel %vm6377, %v6121, %v6633
    %v6890 = vsel %vm6378, %v6122, %v6634
    %v6891 = vsel %vm6379, %v6123, %v6635
    %v6892 = vsel %vm6380, %v6124, %v6636
    %v6893 = vsel %vm6381, %v6125, %v6637
    %v6894 = vsel %vm6382, %v6126, %v6638
    %v6895 = vsel %vm6383, %v6127, %v6639
    %v6896 = vsel %vm6384, %v6128, %v6640
    %v6897 = vsel %vm6385, %v6129, %v6641
    %v6898 = vsel %vm6386, %v6130, %v6642
    %v6899 = vsel %vm6387, %v6131, %v6643
    %v6900 = vsel %vm6388, %v6132, %v6644
    %v6901 = vsel %vm6389, %v6133, %v6645
    %v6902 = vsel %vm6390, %v6134, %v6646
    %v6903 = vsel %vm6391, %v6135, %v6647
    %v6904 = vsel %vm6392, %v6136, %v6648
    %v6905 = vsel %vm6393, %v6137, %v6649
    %v6906 = vsel %vm6394, %v6138, %v6650
    %v6907 = vsel %vm6395, %v6139, %v6651
    %v6908 = vsel %vm6396, %v6140, %v6652
    %v6909 = vsel %vm6397, %v6141, %v6653
    %v6910 = vsel %vm6398, %v6142, %v6654
    %v6911 = vsel %vm6399, %v6143, %v6655
    %v6912 = vsel %vm6400, %v6144, %v6656
    %v6913 = vsel %vm6401, %v6145, %v6657
    %v6914 = vsel %vm6402, %v6146, %v6658
    %v6915 = vsel %vm6403, %v6147, %v6659
    %v6916 = vsel %vm6404, %v6148, %v6660
    %v6917 = vsel %vm6405, %v6149, %v6661
    %v6918 = vsel %vm6406, %v6150, %v6662
    %v6919 = vsel %vm6407, %v6151, %v6663
    %v6920 = vsel %vm6408, %v6152, %v6664
    %v6921 = vsel %vm6409, %v6153, %v6665
    %v6922 = vsel %vm6410, %v6154, %v6666
    %v6923 = vsel %vm6411, %v6155, %v6667
    %v6924 = vsel %vm6412, %v6156, %v6668
    %v6925 = vsel %vm6413, %v6157, %v6669
    %v6926 = vsel %vm6414, %v6158, %v6670
    %v6927 = vsel %vm6415, %v6159, %v6671
    %v6928 = vsel %vm6416, %v6160, %v6672
    %v6929 = vsel %vm6417, %v6161, %v6673
    %v6930 = vsel %vm6418, %v6162, %v6674
    %v6931 = vsel %vm6419, %v6163, %v6675
    %v6932 = vsel %vm6420, %v6164, %v6676
    %v6933 = vsel %vm6421, %v6165, %v6677
    %v6934 = vsel %vm6422, %v6166, %v6678
    %v6935 = vsel %vm6423, %v6167, %v6679
    %v6936 = vsel %vm6424, %v6168, %v6680
    %v6937 = vsel %vm6425, %v6169, %v6681
    %v6938 = vsel %vm6426, %v6170, %v6682
    %v6939 = vsel %vm6427, %v6171, %v6683
    %v6940 = vsel %vm6428, %v6172, %v6684
    %v6941 = vsel %vm6429, %v6173, %v6685
    %v6942 = vsel %vm6430, %v6174, %v6686
    %v6943 = vsel %vm6431, %v6175, %v6687
    %v6944 = vsel %vm6432, %v6176, %v6688
    %v6945 = vsel %vm6433, %v6177, %v6689
    %v6946 = vsel %vm6434, %v6178, %v6690
    %v6947 = vsel %vm6435, %v6179, %v6691
    %v6948 = vsel %vm6436, %v6180, %v6692
    %v6949 = vsel %vm6437, %v6181, %v6693
    %v6950 = vsel %vm6438, %v6182, %v6694
    %v6951 = vsel %vm6439, %v6183, %v6695
    %v6952 = vsel %vm6440, %v6184, %v6696
    %v6953 = vsel %vm6441, %v6185, %v6697
    %v6954 = vsel %vm6442, %v6186, %v6698
    %v6955 = vsel %vm6443, %v6187, %v6699
    %v6956 = vsel %vm6444, %v6188, %v6700
    %v6957 = vsel %vm6445, %v6189, %v6701
    %v6958 = vsel %vm6446, %v6190, %v6702
    %v6959 = vsel %vm6447, %v6191, %v6703
    %v6960 = vsel %vm6448, %v6192, %v6704
    %v6961 = vsel %vm6449, %v6193, %v6705
    %v6962 = vsel %vm6450, %v6194, %v6706
    %v6963 = vsel %vm6451, %v6195, %v6707
    %v6964 = vsel %vm6452, %v6196, %v6708
    %v6965 = vsel %vm6453, %v6197, %v6709
    %v6966 = vsel %vm6454, %v6198, %v6710
    %v6967 = vsel %vm6455, %v6199, %v6711
    %v6968 = vsel %vm6456, %v6200, %v6712
    %v6969 = vsel %vm6457, %v6201, %v6713
    %v6970 = vsel %vm6458, %v6202, %v6714
    %v6971 = vsel %vm6459, %v6203, %v6715
    %v6972 = vsel %vm6460, %v6204, %v6716
    %v6973 = vsel %vm6461, %v6205, %v6717
    %v6974 = vsel %vm6462, %v6206, %v6718
    %v6975 = vsel %vm6463, %v6207, %v6719
    %v6976 = vsel %vm6464, %v6208, %v6720
    %v6977 = vsel %vm6465, %v6209, %v6721
    %v6978 = vsel %vm6466, %v6210, %v6722
    %v6979 = vsel %vm6467, %v6211, %v6723
    %v6980 = vsel %vm6468, %v6212, %v6724
    %v6981 = vsel %vm6469, %v6213, %v6725
    %v6982 = vsel %vm6470, %v6214, %v6726
    %v6983 = vsel %vm6471, %v6215, %v6727
    %v6984 = vsel %vm6472, %v6216, %v6728
    %v6985 = vsel %vm6473, %v6217, %v6729
    %v6986 = vsel %vm6474, %v6218, %v6730
    %v6987 = vsel %vm6475, %v6219, %v6731
    %v6988 = vsel %vm6476, %v6220, %v6732
    %v6989 = vsel %vm6477, %v6221, %v6733
    %v6990 = vsel %vm6478, %v6222, %v6734
    %v6991 = vsel %vm6479, %v6223, %v6735
    %v6992 = vsel %vm6480, %v6224, %v6736
    %v6993 = vsel %vm6481, %v6225, %v6737
    %v6994 = vsel %vm6482, %v6226, %v6738
    %v6995 = vsel %vm6483, %v6227, %v6739
    %v6996 = vsel %vm6484, %v6228, %v6740
    %v6997 = vsel %vm6485, %v6229, %v6741
    %v6998 = vsel %vm6486, %v6230, %v6742
    %v6999 = vsel %vm6487, %v6231, %v6743
    %v7000 = vsel %vm6488, %v6232, %v6744
    %v7001 = vsel %vm6489, %v6233, %v6745
    %v7002 = vsel %vm6490, %v6234, %v6746
    %v7003 = vsel %vm6491, %v6235, %v6747
    %v7004 = vsel %vm6492, %v6236, %v6748
    %v7005 = vsel %vm6493, %v6237, %v6749
    %v7006 = vsel %vm6494, %v6238, %v6750
    %v7007 = vsel %vm6495, %v6239, %v6751
    %v7008 = vsel %vm6496, %v6240, %v6752
    %v7009 = vsel %vm6497, %v6241, %v6753
    %v7010 = vsel %vm6498, %v6242, %v6754
    %v7011 = vsel %vm6499, %v6243, %v6755
    %v7012 = vsel %vm6500, %v6244, %v6756
    %v7013 = vsel %vm6501, %v6245, %v6757
    %v7014 = vsel %vm6502, %v6246, %v6758
    %v7015 = vsel %vm6503, %v6247, %v6759
    %v7016 = vsel %vm6504, %v6248, %v6760
    %v7017 = vsel %vm6505, %v6249, %v6761
    %v7018 = vsel %vm6506, %v6250, %v6762
    %v7019 = vsel %vm6507, %v6251, %v6763
    %v7020 = vsel %vm6508, %v6252, %v6764
    %v7021 = vsel %vm6509, %v6253, %v6765
    %v7022 = vsel %vm6510, %v6254, %v6766
    %v7023 = vsel %vm6511, %v6255, %v6767
    %v7024 = vsel %vm6512, %v6256, %v6768
    %v7025 = vsel %vm6513, %v6257, %v6769
    %v7026 = vsel %vm6514, %v6258, %v6770
    %v7027 = vsel %vm6515, %v6259, %v6771
    %v7028 = vsel %vm6516, %v6260, %v6772
    %v7029 = vsel %vm6517, %v6261, %v6773
    %v7030 = vsel %vm6518, %v6262, %v6774
    %v7031 = vsel %vm6519, %v6263, %v6775
    %v7032 = vsel %vm6520, %v6264, %v6776
    %v7033 = vsel %vm6521, %v6265, %v6777
    %v7034 = vsel %vm6522, %v6266, %v6778
    %v7035 = vsel %vm6523, %v6267, %v6779
    %v7036 = vsel %vm6524, %v6268, %v6780
    %v7037 = vsel %vm6525, %v6269, %v6781
    %v7038 = vsel %vm6526, %v6270, %v6782
    %v7039 = vsel %vm6527, %v6271, %v6783
    %v7040 = vsel %vm6528, %v6272, %v6784
    %v7041 = vsel %vm6529, %v6273, %v6785
    %v7042 = vsel %vm6530, %v6274, %v6786
    %v7043 = vsel %vm6531, %v6275, %v6787
    %v7044 = vsel %vm6532, %v6276, %v6788
    %v7045 = vsel %vm6533, %v6277, %v6789
    %v7046 = vsel %vm6534, %v6278, %v6790
    %v7047 = vsel %vm6535, %v6279, %v6791
    %v7048 = vsel %vm6536, %v6280, %v6792
    %v7049 = vsel %vm6537, %v6281, %v6793
    %v7050 = vsel %vm6538, %v6282, %v6794
    %v7051 = vsel %vm6539, %v6283, %v6795
    %v7052 = vsel %vm6540, %v6284, %v6796
    %v7053 = vsel %vm6541, %v6285, %v6797
    %v7054 = vsel %vm6542, %v6286, %v6798
    %v7055 = vsel %vm6543, %v6287, %v6799
    %v7056 = vsel %vm6544, %v6288, %v6800
    %v7057 = vadd.f32 %v6801, %v6805
    %v7058 = vadd.f32 %v7057, %v6809
    %v7059 = vadd.f32 %v7058, %v6813
    %v7060 = vadd.f32 %v7059, %v6817
    %v7061 = vadd.f32 %v7060, %v6821
    %v7062 = vadd.f32 %v7061, %v6825
    %v7063 = vadd.f32 %v7062, %v6829
    %v7064 = vadd.f32 %v7063, %v6833
    %v7065 = vadd.f32 %v7064, %v6837
    %v7066 = vadd.f32 %v7065, %v6841
    %v7067 = vadd.f32 %v7066, %v6845
    %v7068 = vadd.f32 %v7067, %v6849
    %v7069 = vadd.f32 %v7068, %v6853
    %v7070 = vadd.f32 %v7069, %v6857
    %v7071 = vadd.f32 %v7070, %v6861
    %v7072 = vadd.f32 %v7071, %v6865
    %v7073 = vadd.f32 %v7072, %v6869
    %v7074 = vadd.f32 %v7073, %v6873
    %v7075 = vadd.f32 %v7074, %v6877
    %v7076 = vadd.f32 %v7075, %v6881
    %v7077 = vadd.f32 %v7076, %v6885
    %v7078 = vadd.f32 %v7077, %v6889
    %v7079 = vadd.f32 %v7078, %v6893
    %v7080 = vadd.f32 %v7079, %v6897
    %v7081 = vadd.f32 %v7080, %v6901
    %v7082 = vadd.f32 %v7081, %v6905
    %v7083 = vadd.f32 %v7082, %v6909
    %v7084 = vadd.f32 %v7083, %v6913
    %v7085 = vadd.f32 %v7084, %v6917
    %v7086 = vadd.f32 %v7085, %v6921
    %v7087 = vadd.f32 %v7086, %v6925
    %v7088 = vrot.slane %v7087, 4
    %v7089 = vadd.f32 %v7087, %v7088
    %v7090 = vrot.slane %v7089, 2
    %v7091 = vadd.f32 %v7089, %v7090
    %v7092 = vrot.slane %v7091, 1
    %v7093 = vadd.f32 %v7091, %v7092
    %v7094 = vadd.f32 %v6802, %v6806
    %v7095 = vadd.f32 %v7094, %v6810
    %v7096 = vadd.f32 %v7095, %v6814
    %v7097 = vadd.f32 %v7096, %v6818
    %v7098 = vadd.f32 %v7097, %v6822
    %v7099 = vadd.f32 %v7098, %v6826
    %v7100 = vadd.f32 %v7099, %v6830
    %v7101 = vadd.f32 %v7100, %v6834
    %v7102 = vadd.f32 %v7101, %v6838
    %v7103 = vadd.f32 %v7102, %v6842
    %v7104 = vadd.f32 %v7103, %v6846
    %v7105 = vadd.f32 %v7104, %v6850
    %v7106 = vadd.f32 %v7105, %v6854
    %v7107 = vadd.f32 %v7106, %v6858
    %v7108 = vadd.f32 %v7107, %v6862
    %v7109 = vadd.f32 %v7108, %v6866
    %v7110 = vadd.f32 %v7109, %v6870
    %v7111 = vadd.f32 %v7110, %v6874
    %v7112 = vadd.f32 %v7111, %v6878
    %v7113 = vadd.f32 %v7112, %v6882
    %v7114 = vadd.f32 %v7113, %v6886
    %v7115 = vadd.f32 %v7114, %v6890
    %v7116 = vadd.f32 %v7115, %v6894
    %v7117 = vadd.f32 %v7116, %v6898
    %v7118 = vadd.f32 %v7117, %v6902
    %v7119 = vadd.f32 %v7118, %v6906
    %v7120 = vadd.f32 %v7119, %v6910
    %v7121 = vadd.f32 %v7120, %v6914
    %v7122 = vadd.f32 %v7121, %v6918
    %v7123 = vadd.f32 %v7122, %v6922
    %v7124 = vadd.f32 %v7123, %v6926
    %v7125 = vrot.slane %v7124, 4
    %v7126 = vadd.f32 %v7124, %v7125
    %v7127 = vrot.slane %v7126, 2
    %v7128 = vadd.f32 %v7126, %v7127
    %v7129 = vrot.slane %v7128, 1
    %v7130 = vadd.f32 %v7128, %v7129
    %v7131 = vadd.f32 %v6803, %v6807
    %v7132 = vadd.f32 %v7131, %v6811
    %v7133 = vadd.f32 %v7132, %v6815
    %v7134 = vadd.f32 %v7133, %v6819
    %v7135 = vadd.f32 %v7134, %v6823
    %v7136 = vadd.f32 %v7135, %v6827
    %v7137 = vadd.f32 %v7136, %v6831
    %v7138 = vadd.f32 %v7137, %v6835
    %v7139 = vadd.f32 %v7138, %v6839
    %v7140 = vadd.f32 %v7139, %v6843
    %v7141 = vadd.f32 %v7140, %v6847
    %v7142 = vadd.f32 %v7141, %v6851
    %v7143 = vadd.f32 %v7142, %v6855
    %v7144 = vadd.f32 %v7143, %v6859
    %v7145 = vadd.f32 %v7144, %v6863
    %v7146 = vadd.f32 %v7145, %v6867
    %v7147 = vadd.f32 %v7146, %v6871
    %v7148 = vadd.f32 %v7147, %v6875
    %v7149 = vadd.f32 %v7148, %v6879
    %v7150 = vadd.f32 %v7149, %v6883
    %v7151 = vadd.f32 %v7150, %v6887
    %v7152 = vadd.f32 %v7151, %v6891
    %v7153 = vadd.f32 %v7152, %v6895
    %v7154 = vadd.f32 %v7153, %v6899
    %v7155 = vadd.f32 %v7154, %v6903
    %v7156 = vadd.f32 %v7155, %v6907
    %v7157 = vadd.f32 %v7156, %v6911
    %v7158 = vadd.f32 %v7157, %v6915
    %v7159 = vadd.f32 %v7158, %v6919
    %v7160 = vadd.f32 %v7159, %v6923
    %v7161 = vadd.f32 %v7160, %v6927
    %v7162 = vrot.slane %v7161, 4
    %v7163 = vadd.f32 %v7161, %v7162
    %v7164 = vrot.slane %v7163, 2
    %v7165 = vadd.f32 %v7163, %v7164
    %v7166 = vrot.slane %v7165, 1
    %v7167 = vadd.f32 %v7165, %v7166
    %v7168 = vadd.f32 %v6804, %v6808
    %v7169 = vadd.f32 %v7168, %v6812
    %v7170 = vadd.f32 %v7169, %v6816
    %v7171 = vadd.f32 %v7170, %v6820
    %v7172 = vadd.f32 %v7171, %v6824
    %v7173 = vadd.f32 %v7172, %v6828
    %v7174 = vadd.f32 %v7173, %v6832
    %v7175 = vadd.f32 %v7174, %v6836
    %v7176 = vadd.f32 %v7175, %v6840
    %v7177 = vadd.f32 %v7176, %v6844
    %v7178 = vadd.f32 %v7177, %v6848
    %v7179 = vadd.f32 %v7178, %v6852
    %v7180 = vadd.f32 %v7179, %v6856
    %v7181 = vadd.f32 %v7180, %v6860
    %v7182 = vadd.f32 %v7181, %v6864
    %v7183 = vadd.f32 %v7182, %v6868
    %v7184 = vadd.f32 %v7183, %v6872
    %v7185 = vadd.f32 %v7184, %v6876
    %v7186 = vadd.f32 %v7185, %v6880
    %v7187 = vadd.f32 %v7186, %v6884
    %v7188 = vadd.f32 %v7187, %v6888
    %v7189 = vadd.f32 %v7188, %v6892
    %v7190 = vadd.f32 %v7189, %v6896
    %v7191 = vadd.f32 %v7190, %v6900
    %v7192 = vadd.f32 %v7191, %v6904
    %v7193 = vadd.f32 %v7192, %v6908
    %v7194 = vadd.f32 %v7193, %v6912
    %v7195 = vadd.f32 %v7194, %v6916
    %v7196 = vadd.f32 %v7195, %v6920
    %v7197 = vadd.f32 %v7196, %v6924
    %v7198 = vadd.f32 %v7197, %v6928
    %v7199 = vrot.slane %v7198, 4
    %v7200 = vadd.f32 %v7198, %v7199
    %v7201 = vrot.slane %v7200, 2
    %v7202 = vadd.f32 %v7200, %v7201
    %v7203 = vrot.slane %v7202, 1
    %v7204 = vadd.f32 %v7202, %v7203
    %v7205 = vadd.f32 %v6929, %v6933
    %v7206 = vadd.f32 %v7205, %v6937
    %v7207 = vadd.f32 %v7206, %v6941
    %v7208 = vadd.f32 %v7207, %v6945
    %v7209 = vadd.f32 %v7208, %v6949
    %v7210 = vadd.f32 %v7209, %v6953
    %v7211 = vadd.f32 %v7210, %v6957
    %v7212 = vadd.f32 %v7211, %v6961
    %v7213 = vadd.f32 %v7212, %v6965
    %v7214 = vadd.f32 %v7213, %v6969
    %v7215 = vadd.f32 %v7214, %v6973
    %v7216 = vadd.f32 %v7215, %v6977
    %v7217 = vadd.f32 %v7216, %v6981
    %v7218 = vadd.f32 %v7217, %v6985
    %v7219 = vadd.f32 %v7218, %v6989
    %v7220 = vadd.f32 %v7219, %v6993
    %v7221 = vadd.f32 %v7220, %v6997
    %v7222 = vadd.f32 %v7221, %v7001
    %v7223 = vadd.f32 %v7222, %v7005
    %v7224 = vadd.f32 %v7223, %v7009
    %v7225 = vadd.f32 %v7224, %v7013
    %v7226 = vadd.f32 %v7225, %v7017
    %v7227 = vadd.f32 %v7226, %v7021
    %v7228 = vadd.f32 %v7227, %v7025
    %v7229 = vadd.f32 %v7228, %v7029
    %v7230 = vadd.f32 %v7229, %v7033
    %v7231 = vadd.f32 %v7230, %v7037
    %v7232 = vadd.f32 %v7231, %v7041
    %v7233 = vadd.f32 %v7232, %v7045
    %v7234 = vadd.f32 %v7233, %v7049
    %v7235 = vadd.f32 %v7234, %v7053
    %v7236 = vrot.slane %v7235, 4
    %v7237 = vadd.f32 %v7235, %v7236
    %v7238 = vrot.slane %v7237, 2
    %v7239 = vadd.f32 %v7237, %v7238
    %v7240 = vrot.slane %v7239, 1
    %v7241 = vadd.f32 %v7239, %v7240
    %v7242 = vadd.f32 %v6930, %v6934
    %v7243 = vadd.f32 %v7242, %v6938
    %v7244 = vadd.f32 %v7243, %v6942
    %v7245 = vadd.f32 %v7244, %v6946
    %v7246 = vadd.f32 %v7245, %v6950
    %v7247 = vadd.f32 %v7246, %v6954
    %v7248 = vadd.f32 %v7247, %v6958
    %v7249 = vadd.f32 %v7248, %v6962
    %v7250 = vadd.f32 %v7249, %v6966
    %v7251 = vadd.f32 %v7250, %v6970
    %v7252 = vadd.f32 %v7251, %v6974
    %v7253 = vadd.f32 %v7252, %v6978
    %v7254 = vadd.f32 %v7253, %v6982
    %v7255 = vadd.f32 %v7254, %v6986
    %v7256 = vadd.f32 %v7255, %v6990
    %v7257 = vadd.f32 %v7256, %v6994
    %v7258 = vadd.f32 %v7257, %v6998
    %v7259 = vadd.f32 %v7258, %v7002
    %v7260 = vadd.f32 %v7259, %v7006
    %v7261 = vadd.f32 %v7260, %v7010
    %v7262 = vadd.f32 %v7261, %v7014
    %v7263 = vadd.f32 %v7262, %v7018
    %v7264 = vadd.f32 %v7263, %v7022
    %v7265 = vadd.f32 %v7264, %v7026
    %v7266 = vadd.f32 %v7265, %v7030
    %v7267 = vadd.f32 %v7266, %v7034
    %v7268 = vadd.f32 %v7267, %v7038
    %v7269 = vadd.f32 %v7268, %v7042
    %v7270 = vadd.f32 %v7269, %v7046
    %v7271 = vadd.f32 %v7270, %v7050
    %v7272 = vadd.f32 %v7271, %v7054
    %v7273 = vrot.slane %v7272, 4
    %v7274 = vadd.f32 %v7272, %v7273
    %v7275 = vrot.slane %v7274, 2
    %v7276 = vadd.f32 %v7274, %v7275
    %v7277 = vrot.slane %v7276, 1
    %v7278 = vadd.f32 %v7276, %v7277
    %v7279 = vadd.f32 %v6931, %v6935
    %v7280 = vadd.f32 %v7279, %v6939
    %v7281 = vadd.f32 %v7280, %v6943
    %v7282 = vadd.f32 %v7281, %v6947
    %v7283 = vadd.f32 %v7282, %v6951
    %v7284 = vadd.f32 %v7283, %v6955
    %v7285 = vadd.f32 %v7284, %v6959
    %v7286 = vadd.f32 %v7285, %v6963
    %v7287 = vadd.f32 %v7286, %v6967
    %v7288 = vadd.f32 %v7287, %v6971
    %v7289 = vadd.f32 %v7288, %v6975
    %v7290 = vadd.f32 %v7289, %v6979
    %v7291 = vadd.f32 %v7290, %v6983
    %v7292 = vadd.f32 %v7291, %v6987
    %v7293 = vadd.f32 %v7292, %v6991
    %v7294 = vadd.f32 %v7293, %v6995
    %v7295 = vadd.f32 %v7294, %v6999
    %v7296 = vadd.f32 %v7295, %v7003
    %v7297 = vadd.f32 %v7296, %v7007
    %v7298 = vadd.f32 %v7297, %v7011
    %v7299 = vadd.f32 %v7298, %v7015
    %v7300 = vadd.f32 %v7299, %v7019
    %v7301 = vadd.f32 %v7300, %v7023
    %v7302 = vadd.f32 %v7301, %v7027
    %v7303 = vadd.f32 %v7302, %v7031
    %v7304 = vadd.f32 %v7303, %v7035
    %v7305 = vadd.f32 %v7304, %v7039
    %v7306 = vadd.f32 %v7305, %v7043
    %v7307 = vadd.f32 %v7306, %v7047
    %v7308 = vadd.f32 %v7307, %v7051
    %v7309 = vadd.f32 %v7308, %v7055
    %v7310 = vrot.slane %v7309, 4
    %v7311 = vadd.f32 %v7309, %v7310
    %v7312 = vrot.slane %v7311, 2
    %v7313 = vadd.f32 %v7311, %v7312
    %v7314 = vrot.slane %v7313, 1
    %v7315 = vadd.f32 %v7313, %v7314
    %v7316 = vadd.f32 %v6932, %v6936
    %v7317 = vadd.f32 %v7316, %v6940
    %v7318 = vadd.f32 %v7317, %v6944
    %v7319 = vadd.f32 %v7318, %v6948
    %v7320 = vadd.f32 %v7319, %v6952
    %v7321 = vadd.f32 %v7320, %v6956
    %v7322 = vadd.f32 %v7321, %v6960
    %v7323 = vadd.f32 %v7322, %v6964
    %v7324 = vadd.f32 %v7323, %v6968
    %v7325 = vadd.f32 %v7324, %v6972
    %v7326 = vadd.f32 %v7325, %v6976
    %v7327 = vadd.f32 %v7326, %v6980
    %v7328 = vadd.f32 %v7327, %v6984
    %v7329 = vadd.f32 %v7328, %v6988
    %v7330 = vadd.f32 %v7329, %v6992
    %v7331 = vadd.f32 %v7330, %v6996
    %v7332 = vadd.f32 %v7331, %v7000
    %v7333 = vadd.f32 %v7332, %v7004
    %v7334 = vadd.f32 %v7333, %v7008
    %v7335 = vadd.f32 %v7334, %v7012
    %v7336 = vadd.f32 %v7335, %v7016
    %v7337 = vadd.f32 %v7336, %v7020
    %v7338 = vadd.f32 %v7337, %v7024
    %v7339 = vadd.f32 %v7338, %v7028
    %v7340 = vadd.f32 %v7339, %v7032
    %v7341 = vadd.f32 %v7340, %v7036
    %v7342 = vadd.f32 %v7341, %v7040
    %v7343 = vadd.f32 %v7342, %v7044
    %v7344 = vadd.f32 %v7343, %v7048
    %v7345 = vadd.f32 %v7344, %v7052
    %v7346 = vadd.f32 %v7345, %v7056
    %v7347 = vrot.slane %v7346, 4
    %v7348 = vadd.f32 %v7346, %v7347
    %v7349 = vrot.slane %v7348, 2
    %v7350 = vadd.f32 %v7348, %v7349
    %v7351 = vrot.slane %v7350, 1
    %v7352 = vadd.f32 %v7350, %v7351
    %v7353 = vrcp.pop 256.0
    %v7354 = vmul.f32 %v7093, %v7353
    %v7355 = vmul.f32 %v7130, %v7353
    %v7356 = vmul.f32 %v7167, %v7353
    %v7357 = vmul.f32 %v7204, %v7353
    %v7358 = vmul.f32 %v7241, %v7353
    %v7359 = vmul.f32 %v7278, %v7353
    %v7360 = vmul.f32 %v7315, %v7353
    %v7361 = vmul.f32 %v7352, %v7353
    %v7362 = vpack.c.bf16 %v7354, %v7354
    %v7363 = vpack.c.bf16 %v7355, %v7355
    %v7364 = vpack.c.bf16 %v7356, %v7356
    %v7365 = vpack.c.bf16 %v7357, %v7357
    %v7366 = vpack.c.bf16 %v7358, %v7358
    %v7367 = vpack.c.bf16 %v7359, %v7359
    %v7368 = vpack.c.bf16 %v7360, %v7360
    %v7369 = vpack.c.bf16 %v7361, %v7361
    %v7370 = vld [vmem:[%s13] sm:$0xf]
    %v7371 = vld [vmem:[%s13 + $0x4] sm:$0xf]
    %v7372 = vld [vmem:[%s13 + $0x8] sm:$0xf]
    %v7373 = vld [vmem:[%s13 + $0xc] sm:$0xf]
    %v7374 = vld [vmem:[%s13 + $0x10] sm:$0xf]
    %v7375 = vld [vmem:[%s13 + $0x14] sm:$0xf]
    %v7376 = vld [vmem:[%s13 + $0x18] sm:$0xf]
    %v7377 = vld [vmem:[%s13 + $0x1c] sm:$0xf]
    %v7378 = vld [vmem:[%s13 + $0x20] sm:$0xf]
    %v7379 = vld [vmem:[%s13 + $0x24] sm:$0xf]
    %v7380 = vld [vmem:[%s13 + $0x28] sm:$0xf]
    %v7381 = vld [vmem:[%s13 + $0x2c] sm:$0xf]
    %v7382 = vld [vmem:[%s13 + $0x30] sm:$0xf]
    %v7383 = vld [vmem:[%s13 + $0x34] sm:$0xf]
    %v7384 = vld [vmem:[%s13 + $0x38] sm:$0xf]
    %v7385 = vld [vmem:[%s13 + $0x3c] sm:$0xf]
    %v7386 = vld [vmem:[%s13 + $0x40] sm:$0xf]
    %v7387 = vld [vmem:[%s13 + $0x44] sm:$0xf]
    %v7388 = vld [vmem:[%s13 + $0x48] sm:$0xf]
    %v7389 = vld [vmem:[%s13 + $0x4c] sm:$0xf]
    %v7390 = vld [vmem:[%s13 + $0x50] sm:$0xf]
    %v7391 = vld [vmem:[%s13 + $0x54] sm:$0xf]
    %v7392 = vld [vmem:[%s13 + $0x58] sm:$0xf]
    %v7393 = vld [vmem:[%s13 + $0x5c] sm:$0xf]
    %v7394 = vld [vmem:[%s13 + $0x60] sm:$0xf]
    %v7395 = vld [vmem:[%s13 + $0x64] sm:$0xf]
    %v7396 = vld [vmem:[%s13 + $0x68] sm:$0xf]
    %v7397 = vld [vmem:[%s13 + $0x6c] sm:$0xf]
    %v7398 = vld [vmem:[%s13 + $0x70] sm:$0xf]
    %v7399 = vld [vmem:[%s13 + $0x74] sm:$0xf]
    %v7400 = vld [vmem:[%s13 + $0x78] sm:$0xf]
    %v7401 = vld [vmem:[%s13 + $0x7c] sm:$0xf]
    %v7402 = vld [vmem:[%s13 + $0x80] sm:$0xf]
    %v7403 = vld [vmem:[%s13 + $0x84] sm:$0xf]
    %v7404 = vld [vmem:[%s13 + $0x88] sm:$0xf]
    %v7405 = vld [vmem:[%s13 + $0x8c] sm:$0xf]
    %v7406 = vld [vmem:[%s13 + $0x90] sm:$0xf]
    %v7407 = vld [vmem:[%s13 + $0x94] sm:$0xf]
    %v7408 = vld [vmem:[%s13 + $0x98] sm:$0xf]
    %v7409 = vld [vmem:[%s13 + $0x9c] sm:$0xf]
    %v7410 = vld [vmem:[%s13 + $0xa0] sm:$0xf]
    %v7411 = vld [vmem:[%s13 + $0xa4] sm:$0xf]
    %v7412 = vld [vmem:[%s13 + $0xa8] sm:$0xf]
    %v7413 = vld [vmem:[%s13 + $0xac] sm:$0xf]
    %v7414 = vld [vmem:[%s13 + $0xb0] sm:$0xf]
    %v7415 = vld [vmem:[%s13 + $0xb4] sm:$0xf]
    %v7416 = vld [vmem:[%s13 + $0xb8] sm:$0xf]
    %v7417 = vld [vmem:[%s13 + $0xbc] sm:$0xf]
    %v7418 = vld [vmem:[%s13 + $0xc0] sm:$0xf]
    %v7419 = vld [vmem:[%s13 + $0xc4] sm:$0xf]
    %v7420 = vld [vmem:[%s13 + $0xc8] sm:$0xf]
    %v7421 = vld [vmem:[%s13 + $0xcc] sm:$0xf]
    %v7422 = vld [vmem:[%s13 + $0xd0] sm:$0xf]
    %v7423 = vld [vmem:[%s13 + $0xd4] sm:$0xf]
    %v7424 = vld [vmem:[%s13 + $0xd8] sm:$0xf]
    %v7425 = vld [vmem:[%s13 + $0xdc] sm:$0xf]
    %v7426 = vld [vmem:[%s13 + $0xe0] sm:$0xf]
    %v7427 = vld [vmem:[%s13 + $0xe4] sm:$0xf]
    %v7428 = vld [vmem:[%s13 + $0xe8] sm:$0xf]
    %v7429 = vld [vmem:[%s13 + $0xec] sm:$0xf]
    %v7430 = vld [vmem:[%s13 + $0xf0] sm:$0xf]
    %v7431 = vld [vmem:[%s13 + $0xf4] sm:$0xf]
    %v7432 = vld [vmem:[%s13 + $0xf8] sm:$0xf]
    %v7433 = vld [vmem:[%s13 + $0xfc] sm:$0xf]
    %v7434 = vld [vmem:[%s14] sm:$0x1]
    %v7436 = vlaneseq
    %v7437 = vshrl.u32 %v7436, 7
    %v7438 = vsub.s32 0, %v7437
    %v7439 = vrot.slane %v7434, %v7438
    %v7449 = vunpack.c.l.b16 %v7362
    %v7450 = vunpack.c.l.b16 %v7363
    %v7451 = vunpack.c.l.b16 %v7364
    %v7452 = vunpack.c.l.b16 %v7365
    %v7453 = vunpack.c.l.b16 %v7366
    %v7454 = vunpack.c.l.b16 %v7367
    %v7455 = vunpack.c.l.b16 %v7368
    %v7456 = vunpack.c.l.b16 %v7369
    %vm7457 = vcmask 1041409
    %v7458 = vsel %vm7457, %v7453, %v7449
    %v7459 = vsel %vm7457, %v7454, %v7450
    %v7460 = vsel %vm7457, %v7455, %v7451
    %v7461 = vsel %vm7457, %v7456, %v7452
    %v7462 = vpack.c.b16 %v7458, %v7458
    %v7463 = vpack.c.b16 %v7459, %v7459
    %v7464 = vpack.c.b16 %v7460, %v7460
    %v7465 = vpack.c.b16 %v7461, %v7461
    %v7534 = vunpack.c.l.b16 %v7370
    %v7535 = vunpack.c.l.b16 %v7371
    %v7536 = vunpack.c.l.b16 %v7372
    %v7537 = vunpack.c.l.b16 %v7373
    %v7538 = vunpack.c.l.b16 %v7374
    %v7539 = vunpack.c.l.b16 %v7375
    %v7540 = vunpack.c.l.b16 %v7376
    %v7541 = vunpack.c.l.b16 %v7377
    %v7542 = vunpack.c.l.b16 %v7378
    %v7543 = vunpack.c.l.b16 %v7379
    %v7544 = vunpack.c.l.b16 %v7380
    %v7545 = vunpack.c.l.b16 %v7381
    %v7546 = vunpack.c.l.b16 %v7382
    %v7547 = vunpack.c.l.b16 %v7383
    %v7548 = vunpack.c.l.b16 %v7384
    %v7549 = vunpack.c.l.b16 %v7385
    %v7550 = vunpack.c.l.b16 %v7386
    %v7551 = vunpack.c.l.b16 %v7387
    %v7552 = vunpack.c.l.b16 %v7388
    %v7553 = vunpack.c.l.b16 %v7389
    %v7554 = vunpack.c.l.b16 %v7390
    %v7555 = vunpack.c.l.b16 %v7391
    %v7556 = vunpack.c.l.b16 %v7392
    %v7557 = vunpack.c.l.b16 %v7393
    %v7558 = vunpack.c.l.b16 %v7394
    %v7559 = vunpack.c.l.b16 %v7395
    %v7560 = vunpack.c.l.b16 %v7396
    %v7561 = vunpack.c.l.b16 %v7397
    %v7562 = vunpack.c.l.b16 %v7398
    %v7563 = vunpack.c.l.b16 %v7399
    %v7564 = vunpack.c.l.b16 %v7400
    %v7565 = vunpack.c.l.b16 %v7401
    %v7566 = vunpack.c.l.b16 %v7402
    %v7567 = vunpack.c.l.b16 %v7403
    %v7568 = vunpack.c.l.b16 %v7404
    %v7569 = vunpack.c.l.b16 %v7405
    %v7570 = vunpack.c.l.b16 %v7406
    %v7571 = vunpack.c.l.b16 %v7407
    %v7572 = vunpack.c.l.b16 %v7408
    %v7573 = vunpack.c.l.b16 %v7409
    %v7574 = vunpack.c.l.b16 %v7410
    %v7575 = vunpack.c.l.b16 %v7411
    %v7576 = vunpack.c.l.b16 %v7412
    %v7577 = vunpack.c.l.b16 %v7413
    %v7578 = vunpack.c.l.b16 %v7414
    %v7579 = vunpack.c.l.b16 %v7415
    %v7580 = vunpack.c.l.b16 %v7416
    %v7581 = vunpack.c.l.b16 %v7417
    %v7582 = vunpack.c.l.b16 %v7418
    %v7583 = vunpack.c.l.b16 %v7419
    %v7584 = vunpack.c.l.b16 %v7420
    %v7585 = vunpack.c.l.b16 %v7421
    %v7586 = vunpack.c.l.b16 %v7422
    %v7587 = vunpack.c.l.b16 %v7423
    %v7588 = vunpack.c.l.b16 %v7424
    %v7589 = vunpack.c.l.b16 %v7425
    %v7590 = vunpack.c.l.b16 %v7426
    %v7591 = vunpack.c.l.b16 %v7427
    %v7592 = vunpack.c.l.b16 %v7428
    %v7593 = vunpack.c.l.b16 %v7429
    %v7594 = vunpack.c.l.b16 %v7430
    %v7595 = vunpack.c.l.b16 %v7431
    %v7596 = vunpack.c.l.b16 %v7432
    %v7597 = vunpack.c.l.b16 %v7433
    %v7598 = vpack.c.b16 %v7535, %v7534
    %v7599 = vpack.c.b16 %v7537, %v7536
    %v7600 = vpack.c.b16 %v7539, %v7538
    %v7601 = vpack.c.b16 %v7541, %v7540
    %v7602 = vpack.c.b16 %v7543, %v7542
    %v7603 = vpack.c.b16 %v7545, %v7544
    %v7604 = vpack.c.b16 %v7547, %v7546
    %v7605 = vpack.c.b16 %v7549, %v7548
    %v7606 = vpack.c.b16 %v7551, %v7550
    %v7607 = vpack.c.b16 %v7553, %v7552
    %v7608 = vpack.c.b16 %v7555, %v7554
    %v7609 = vpack.c.b16 %v7557, %v7556
    %v7610 = vpack.c.b16 %v7559, %v7558
    %v7611 = vpack.c.b16 %v7561, %v7560
    %v7612 = vpack.c.b16 %v7563, %v7562
    %v7613 = vpack.c.b16 %v7565, %v7564
    %v7614 = vpack.c.b16 %v7567, %v7566
    %v7615 = vpack.c.b16 %v7569, %v7568
    %v7616 = vpack.c.b16 %v7571, %v7570
    %v7617 = vpack.c.b16 %v7573, %v7572
    %v7618 = vpack.c.b16 %v7575, %v7574
    %v7619 = vpack.c.b16 %v7577, %v7576
    %v7620 = vpack.c.b16 %v7579, %v7578
    %v7621 = vpack.c.b16 %v7581, %v7580
    %v7622 = vpack.c.b16 %v7583, %v7582
    %v7623 = vpack.c.b16 %v7585, %v7584
    %v7624 = vpack.c.b16 %v7587, %v7586
    %v7625 = vpack.c.b16 %v7589, %v7588
    %v7626 = vpack.c.b16 %v7591, %v7590
    %v7627 = vpack.c.b16 %v7593, %v7592
    %v7628 = vpack.c.b16 %v7595, %v7594
    %v7629 = vpack.c.b16 %v7597, %v7596
    %7662 = vmatprep.subr.bf16.mxu0 0
    %7663 = vmatpush1.bf16.msra.mxu0 %v7598
    %7664 = vmatprep.subr.bf16.mxu0 0
    %7665 = vmatpush1.bf16.msra.mxu0 %v7599
    %7666 = vmatprep.subr.bf16.mxu0 0
    %7667 = vmatpush1.bf16.msra.mxu0 %v7600
    %7668 = vmatprep.subr.bf16.mxu0 0
    %7669 = vmatpush1.bf16.msra.mxu0 %v7601
    %7670 = vmatprep.subr.bf16.mxu0 0
    %7671 = vmatpush1.bf16.msra.mxu0 %v7602
    %7672 = vmatprep.subr.bf16.mxu0 0
    %7673 = vmatpush1.bf16.msra.mxu0 %v7603
    %7674 = vmatprep.subr.bf16.mxu0 0
    %7675 = vmatpush1.bf16.msra.mxu0 %v7604
    %7676 = vmatprep.subr.bf16.mxu0 0
    %7677 = vmatpush1.bf16.msra.mxu0 %v7605
    %7678 = vmatprep.subr.bf16.mxu0 0
    %7679 = vmatpush1.bf16.msra.mxu0 %v7606
    %7680 = vmatprep.subr.bf16.mxu0 0
    %7681 = vmatpush1.bf16.msra.mxu0 %v7607
    %7682 = vmatprep.subr.bf16.mxu0 0
    %7683 = vmatpush1.bf16.msra.mxu0 %v7608
    %7684 = vmatprep.subr.bf16.mxu0 0
    %7685 = vmatpush1.bf16.msra.mxu0 %v7609
    %7686 = vmatprep.subr.bf16.mxu0 0
    %7687 = vmatpush1.bf16.msra.mxu0 %v7610
    %7688 = vmatprep.subr.bf16.mxu0 0
    %7689 = vmatpush1.bf16.msra.mxu0 %v7611
    %7690 = vmatprep.subr.bf16.mxu0 0
    %7691 = vmatpush1.bf16.msra.mxu0 %v7612
    %7692 = vmatprep.subr.bf16.mxu0 0
    %7693 = vmatpush1.bf16.msra.mxu0 %v7613
    %7694 = vmatprep.mubr.bf16.mxu0 %v7463
    %7695 = vmatmul.mubr.bf16.gmra.mrb[0].mxu0 %v7462
    %v7696 = vpop.f32.mrb[0].mxu0
    %v7697 = vadd.f32 %v7439, %v7696
    %v7698 = vpop.f32.mrb[0].mxu0
    %v7699 = vpop.f32.mrb[0].mxu0
    %v7700 = vpop.f32.mrb[0].mxu0
    %7701 = vdwg.mxu0
    %7702 = vmatprep.subr.bf16.mxu0 0
    %7703 = vmatpush1.bf16.msra.mxu0 %v7614
    %7704 = vmatprep.subr.bf16.mxu0 0
    %7705 = vmatpush1.bf16.msra.mxu0 %v7615
    %7706 = vmatprep.subr.bf16.mxu0 0
    %7707 = vmatpush1.bf16.msra.mxu0 %v7616
    %7708 = vmatprep.subr.bf16.mxu0 0
    %7709 = vmatpush1.bf16.msra.mxu0 %v7617
    %7710 = vmatprep.subr.bf16.mxu0 0
    %7711 = vmatpush1.bf16.msra.mxu0 %v7618
    %7712 = vmatprep.subr.bf16.mxu0 0
    %7713 = vmatpush1.bf16.msra.mxu0 %v7619
    %7714 = vmatprep.subr.bf16.mxu0 0
    %7715 = vmatpush1.bf16.msra.mxu0 %v7620
    %7716 = vmatprep.subr.bf16.mxu0 0
    %7717 = vmatpush1.bf16.msra.mxu0 %v7621
    %7718 = vmatprep.subr.bf16.mxu0 0
    %7719 = vmatpush1.bf16.msra.mxu0 %v7622
    %7720 = vmatprep.subr.bf16.mxu0 0
    %7721 = vmatpush1.bf16.msra.mxu0 %v7623
    %7722 = vmatprep.subr.bf16.mxu0 0
    %7723 = vmatpush1.bf16.msra.mxu0 %v7624
    %7724 = vmatprep.subr.bf16.mxu0 0
    %7725 = vmatpush1.bf16.msra.mxu0 %v7625
    %7726 = vmatprep.subr.bf16.mxu0 0
    %7727 = vmatpush1.bf16.msra.mxu0 %v7626
    %7728 = vmatprep.subr.bf16.mxu0 0
    %7729 = vmatpush1.bf16.msra.mxu0 %v7627
    %7730 = vmatprep.subr.bf16.mxu0 0
    %7731 = vmatpush1.bf16.msra.mxu0 %v7628
    %7732 = vmatprep.subr.bf16.mxu0 0
    %7733 = vmatpush1.bf16.msra.mxu0 %v7629
    %7734 = vmatprep.mubr.bf16.mxu0 %v7465
    %7735 = vmatmul.mubr.bf16.gmra.mrb[0].mxu0 %v7464
    %v7736 = vpop.f32.mrb[0].mxu0
    %v7737 = vadd.f32 %v7697, %v7736
    %v7738 = vpop.f32.mrb[0].mxu0
    %v7739 = vpop.f32.mrb[0].mxu0
    %v7740 = vpop.f32.mrb[0].mxu0
    %7741 = vdwg.mxu0
    %vm7742 = vcmp.ge.f32.partialorder %v7737, 0.0
    %v7743 = vmul.f32 %v7737, 0.01
    %v7744 = vsel %vm7742, %v7737, %v7743
    %v7745 = vpack.c.bf16 %v7744, %v7744
    %v7746 = vld [vmem:[%s15] sm:$0xf]
    %v7747 = vld [vmem:[%s15 + $0x4] sm:$0xf]
    %v7748 = vld [vmem:[%s15 + $0x8] sm:$0xf]
    %v7749 = vld [vmem:[%s15 + $0xc] sm:$0xf]
    %v7750 = vld [vmem:[%s15 + $0x10] sm:$0xf]
    %v7751 = vld [vmem:[%s15 + $0x14] sm:$0xf]
    %v7752 = vld [vmem:[%s15 + $0x18] sm:$0xf]
    %v7753 = vld [vmem:[%s15 + $0x1c] sm:$0xf]
    %v7754 = vld [vmem:[%s16] sm:$0x1]
    %v7756 = vlaneseq
    %v7757 = vshrl.u32 %v7756, 7
    %v7758 = vsub.s32 0, %v7757
    %v7759 = vrot.slane %v7754, %v7758
    %v7769 = vunpack.c.l.b16 %v7746
    %v7770 = vunpack.c.l.b16 %v7747
    %v7771 = vunpack.c.l.b16 %v7748
    %v7772 = vunpack.c.l.b16 %v7749
    %v7773 = vunpack.c.l.b16 %v7750
    %v7774 = vunpack.c.l.b16 %v7751
    %v7775 = vunpack.c.l.b16 %v7752
    %v7776 = vunpack.c.l.b16 %v7753
    %v7777 = vpack.c.b16 %v7770, %v7769
    %v7778 = vpack.c.b16 %v7772, %v7771
    %v7779 = vpack.c.b16 %v7774, %v7773
    %v7780 = vpack.c.b16 %v7776, %v7775
    %v7786 = vsel %vm321, %v7745, 0
    %7788 = vmatprep.subr.bf16.mxu0 0
    %7789 = vmatpush1.bf16.msra.mxu0 %v7777
    %7790 = vmatprep.subr.bf16.mxu0 0
    %7791 = vmatpush1.bf16.msra.mxu0 %v7778
    %7792 = vmatprep.subr.bf16.mxu0 0
    %7793 = vmatpush1.bf16.msra.mxu0 %v7779
    %7794 = vmatprep.subr.bf16.mxu0 0
    %7795 = vmatpush1.bf16.msra.mxu0 %v7780
    %7796 = vmatprep.subr.bf16.mxu0 0
    %7797 = vmatpush1.bf16.msra.mxu0 0
    %7798 = vmatprep.subr.bf16.mxu0 0
    %7799 = vmatpush1.bf16.msra.mxu0 0
    %7800 = vmatprep.subr.bf16.mxu0 0
    %7801 = vmatpush1.bf16.msra.mxu0 0
    %7802 = vmatprep.subr.bf16.mxu0 0
    %7803 = vmatpush1.bf16.msra.mxu0 0
    %7804 = vmatprep.subr.bf16.mxu0 0
    %7805 = vmatpush1.bf16.msra.mxu0 0
    %7806 = vmatprep.subr.bf16.mxu0 0
    %7807 = vmatpush1.bf16.msra.mxu0 0
    %7808 = vmatprep.subr.bf16.mxu0 0
    %7809 = vmatpush1.bf16.msra.mxu0 0
    %7810 = vmatprep.subr.bf16.mxu0 0
    %7811 = vmatpush1.bf16.msra.mxu0 0
    %7812 = vmatprep.subr.bf16.mxu0 0
    %7813 = vmatpush1.bf16.msra.mxu0 0
    %7814 = vmatprep.subr.bf16.mxu0 0
    %7815 = vmatpush1.bf16.msra.mxu0 0
    %7816 = vmatprep.subr.bf16.mxu0 0
    %7817 = vmatpush1.bf16.msra.mxu0 0
    %7818 = vmatprep.subr.bf16.mxu0 0
    %7819 = vmatpush1.bf16.msra.mxu0 0
    %7820 = vmatprep.mubr.bf16.mxu0 0
    %7821 = vmatmul.mubr.bf16.gmra.mrb[0].mxu0 %v7786
    %v7822 = vpop.f32.mrb[0].mxu0
    %v7823 = vadd.f32 %v7759, %v7822
    %v7824 = vpop.f32.mrb[0].mxu0
    %v7825 = vpop.f32.mrb[0].mxu0
    %v7826 = vpop.f32.mrb[0].mxu0
    %7827 = vdwg.mxu0
    %vm7828 = vcmp.ge.f32.partialorder %v7823, 0.0
    %v7829 = vmul.f32 %v7823, 0.01
    %v7830 = vsel %vm7828, %v7823, %v7829
    %vm7831 = vcmask 58368
    %7832 = vst.msk [vmem:[#allocation2] sm:$0x3] %vm7831, %v7830
    // Predicated region
    $region70: #{deep_image_forward.3} parent=1 // pred_check
      _
    $region71: #{deep_image_forward.3} parent=1 // pred_check_branch
      %7834 = sbr.rel (0) target = $region73
    $region72: #{deep_image_forward.3} parent=1 // pred_region
      %s7836 = ssub.s32 32, 32
      %7837 = vsyncadd [#allocation3], %s7836
      %s7839 = sshll.u32 [#allocation2], 4
      %s7840 = int_to_ptr.vmem [resolvable:$true] %s7839
      %7842 = dma.vmem_to_hbm [thread:$0]  %s7840, 32, %s17, [#allocation3]
    $region73: #{deep_image_forward.3} parent=1 // pred_fallthru
      _
    // Predicated region
    $region74: #{deep_image_forward.3} parent=1 // pred_check
      _
    $region75: #{deep_image_forward.3} parent=1 // pred_check_branch
      %7844 = sbr.rel (0) target = $region77
    $region76: #{deep_image_forward.3} parent=1 // pred_region
      %7845 = dma.done [#allocation3], 32
    $region77: #{deep_image_forward.3} parent=1 // pred_fallthru
      _
    %7846 = vsyncpa [#allocation3], 1

</llo_original>
